<compile_context>
chip_gen: v7x
topology: tpu7x:2x2x1
jax: 0.10.0
libtpu: 0.0.40
codegen_flags: <defaults>
</compile_context>

<pallas_src>
import numpy as np
import jax
import jax.numpy as jnp
from jax.experimental import pallas as pl
from jax.experimental.pallas import tpu as pltpu

# Module constants, scaled down for a small self-contained demo
# (original module hard-codes SEQ_LEN=128, EMB_SIZE=128; formulas identical).
SEQ_LEN = 32
EMB_SIZE = 128
HIDDEN = 512
LATENT = 32
VOCAB = 256
BATCH = 2

# Streamed tile size (perf review: bigger tiles, fewer steps). Demo: 16 tokens
# -> 2 chunks/phase (still exercises the K-reduction). Production SEQ_LEN=128:
# use TOK_CHUNK=32 -> CHUNK=4096, ~4 MiB bf16 tiles, double-buffered ~16 MiB.
TOK_CHUNK = min(32, SEQ_LEN // 2)
CHUNK = TOK_CHUNK * EMB_SIZE         # flattened features per chunk (lane-dense)
N_CHUNKS = SEQ_LEN // TOK_CHUNK      # K-tiles of enc_fc1 == N-tiles of dec_fc2
FLAT = SEQ_LEN * EMB_SIZE


# ----------------------------- fused kernel --------------------------------

def vae_fused_kernel(e_ref, pe_ref, w1_ref, b1_ref, wh_ref, bh_ref, eps_ref,
                     wd1_ref, bd1_ref, wd2_ref, bd2_ref, wo_ref, bo_ref,
                     head_ref, logits_ref,
                     h_acc, hd_buf):
    phase = pl.program_id(0)      # 0: encoder K-streaming, 1: decoder N-streaming
    c = pl.program_id(1)
    n_c = pl.num_programs(1)

    @pl.when(phase == 0)
    def _encode():
        @pl.when(c == 0)
        def _init():
            h_acc[...] = jnp.zeros_like(h_acc)

        # posenc add (bf16), then one K-tile of enc_fc1 (bf16 weights, f32 acc)
        x = e_ref[...] + pe_ref[...]
        h_acc[...] += jnp.dot(x, w1_ref[...],
                              preferred_element_type=jnp.float32)

        @pl.when(c == n_c - 1)
        def _finish_encoder():
            # bias + ReLU only once, on the final K step
            h = jnp.maximum(h_acc[...] + b1_ref[...], 0.0)
            # merged mu/logvar head: one (HIDDEN, 2*LATENT) matmul, one output
            head = jnp.dot(h, wh_ref[...],
                           preferred_element_type=jnp.float32) + bh_ref[...]
            head_ref[...] = head
            mu = head[:, :LATENT]
            lv = head[:, LATENT:]
            # reparameterization + dec_fc1 (ReLU); hd stays in VMEM scratch,
            # cast to bf16 ONCE here instead of per phase-1 step.
            z = mu + eps_ref[...] * jnp.exp(0.5 * lv)
            hd = jnp.maximum(
                jnp.dot(z, wd1_ref[...],
                        preferred_element_type=jnp.float32) + bd1_ref[...],
                0.0)
            hd_buf[...] = hd.astype(jnp.bfloat16)

    @pl.when(phase == 1)
    def _decode():
        # one N-tile of dec_fc2 (bf16 weights, f32 acc), + bias + posenc add
        e_dec = (jnp.dot(hd_buf[...], wd2_ref[...],
                         preferred_element_type=jnp.float32)
                 + bd2_ref[...] + pe_ref[...])                 # (B, CHUNK) f32
        # out_fc: reshape to (B*TOK_CHUNK, E) token rows (b-major), one MXU
        # push, then ONE dense full-block store (no concat, no strided stores).
        rows = e_dec.reshape(BATCH * TOK_CHUNK, EMB_SIZE)
        lg = jnp.dot(rows, wo_ref[...],
                     preferred_element_type=jnp.float32) + bo_ref[...]
        logits_ref[...] = lg.reshape(BATCH, TOK_CHUNK, VOCAB)


# ------------------------------ wrapper -------------------------------------

def event_vae_forward(params, x_ids, eps):
    B = x_ids.shape[0]
    assert B == BATCH

    # glue: embedding gather (nn.Embedding lookup) + flatten, done by XLA.
    # TODO(synk): data-dependent token-id gather has no clean rectangular
    # BlockSpec; it stays outside the kernel.
    e = jnp.take(params["emb"], x_ids, axis=0)                     # (B, S, E)
    e_flat = e.reshape(B, FLAT).astype(jnp.bfloat16)               # bf16 DMA
    pe_flat = params["pe"].reshape(1, FLAT).astype(jnp.bfloat16)   # bf16 DMA

    last = N_CHUNKS - 1  # freeze phase-1 index here -> no spurious re-DMA

    in_specs = [
        pl.BlockSpec((B, CHUNK), lambda p, c: (0, (1 - p) * c + p * last)),      # e_flat
        pl.BlockSpec((1, CHUNK), lambda p, c: (0, c)),                           # pe (both phases)
        pl.BlockSpec((CHUNK, HIDDEN), lambda p, c: ((1 - p) * c + p * last, 0)), # w_enc1 K-tiles (bf16)
        pl.BlockSpec((1, HIDDEN), lambda p, c: (0, 0)),                          # b_enc1
        pl.BlockSpec((HIDDEN, 2 * LATENT), lambda p, c: (0, 0)),                 # merged mu/lv weights
        pl.BlockSpec((1, 2 * LATENT), lambda p, c: (0, 0)),                      # merged mu/lv bias
        pl.BlockSpec((B, LATENT), lambda p, c: (0, 0)),                          # eps
        pl.BlockSpec((LATENT, HIDDEN), lambda p, c: (0, 0)),                     # w_dec1
        pl.BlockSpec((1, HIDDEN), lambda p, c: (0, 0)),                          # b_dec1
        pl.BlockSpec((HIDDEN, CHUNK), lambda p, c: (0, c * p)),                  # w_dec2 N-tiles (bf16)
        pl.BlockSpec((1, CHUNK), lambda p, c: (0, c * p)),                       # b_dec2 N-tiles
        pl.BlockSpec((EMB_SIZE, VOCAB), lambda p, c: (0, 0)),                    # w_out
        pl.BlockSpec((1, VOCAB), lambda p, c: (0, 0)),                           # b_out
    ]
    out_specs = (
        pl.BlockSpec((B, 2 * LATENT), lambda p, c: (0, 0)),                      # head = [mu | logvar]
        pl.BlockSpec((B, TOK_CHUNK, VOCAB), lambda p, c: (0, c * p, 0)),         # logits
    )
    out_shape = (
        jax.ShapeDtypeStruct((B, 2 * LATENT), jnp.float32),
        jax.ShapeDtypeStruct((B, SEQ_LEN, VOCAB), jnp.float32),
    )

    head, logits = pl.pallas_call(
        vae_fused_kernel,
        out_shape=out_shape,
        grid_spec=pltpu.PrefetchScalarGridSpec(
            num_scalar_prefetch=0,
            grid=(2, N_CHUNKS),                 # (phase, chunk) -- both sequential
            in_specs=in_specs,
            out_specs=out_specs,
            scratch_shapes=[pltpu.VMEM((B, HIDDEN), jnp.float32),    # enc_fc1 accumulator
                            pltpu.VMEM((B, HIDDEN), jnp.bfloat16)],  # decoder hidden hd (bf16)
        ),
        compiler_params=pltpu.CompilerParams(
            # Correctness requires sequential grid order (K-reduction + hd_buf
            # carry): keep both axes "arbitrary" even on v7x megacore.
            dimension_semantics=("arbitrary", "arbitrary"),
            vmem_limit_bytes=32 * 1024 * 1024),
    )(e_flat, pe_flat,
      params["w_enc1"], params["b_enc1"],
      params["w_head"], params["b_head"],
      eps,
      params["w_dec1"], params["b_dec1"],
      params["w_dec2"], params["b_dec2"],
      params["w_out"], params["b_out"])

    mu = head[:, :LATENT]
    logvar = head[:, LATENT:]
    return logits, mu, logvar


# ------------------------ params / reference --------------------------------

def _positional_encoding(seq_len, d_model):
    pos = np.arange(seq_len)[:, None].astype(np.float64)
    div = np.exp(np.arange(0, d_model, 2).astype(np.float64)
                 * (-np.log(10000.0) / d_model))
    pe = np.zeros((seq_len, d_model), dtype=np.float32)
    pe[:, 0::2] = np.sin(pos * div)
    pe[:, 1::2] = np.cos(pos * div)
    return jnp.asarray(pe)


def init_params(key):
    ks = jax.random.split(key, 7)

    def linear(k, fan_in, fan_out):
        bound = 1.0 / np.sqrt(fan_in)
        kw, kb = jax.random.split(k)
        w = jax.random.uniform(kw, (fan_in, fan_out), jnp.float32, -bound, bound)
        b = jax.random.uniform(kb, (1, fan_out), jnp.float32, -bound, bound)
        return w, b

    # emb stands in for the pretrained emb_matrix (deterministic synthetic init)
    emb = jax.random.normal(ks[0], (VOCAB, EMB_SIZE), jnp.float32)
    pe = _positional_encoding(SEQ_LEN, EMB_SIZE)

    w_enc1, b_enc1 = linear(ks[1], FLAT, HIDDEN)
    w_mu, b_mu = linear(ks[2], HIDDEN, LATENT)
    w_lv, b_lv = linear(ks[3], HIDDEN, LATENT)
    w_dec1, b_dec1 = linear(ks[4], LATENT, HIDDEN)
    w_dec2, b_dec2 = linear(ks[5], HIDDEN, FLAT)
    w_out, b_out = linear(ks[6], EMB_SIZE, VOCAB)

    return dict(
        emb=emb, pe=pe,
        # big weights stored in bf16 (streamed, bandwidth-bound), f32 accumulate
        w_enc1=w_enc1.astype(jnp.bfloat16), b_enc1=b_enc1,
        # merged mu/logvar head
        w_head=jnp.concatenate([w_mu, w_lv], axis=1),
        b_head=jnp.concatenate([b_mu, b_lv], axis=1),
        w_dec1=w_dec1, b_dec1=b_dec1,
        w_dec2=w_dec2.astype(jnp.bfloat16), b_dec2=b_dec2,
        w_out=w_out, b_out=b_out)


def reference_forward(params, x_ids, eps):
    # pure-JAX reference mirroring the PyTorch forward AND the kernel's
    # documented bf16 rounding points: (e+pe) in bf16, hd in bf16, bf16 big
    # weights, pe added in bf16 on the decode path. Everything else f32/HIGHEST.
    B = x_ids.shape[0]
    hi = jax.lax.Precision.HIGHEST
    w_enc1 = params["w_enc1"].astype(jnp.float32)
    w_dec2 = params["w_dec2"].astype(jnp.float32)
    w_mu = params["w_head"][:, :LATENT]
    w_lv = params["w_head"][:, LATENT:]
    b_mu = params["b_head"][:, :LATENT]
    b_lv = params["b_head"][:, LATENT:]

    pe_bf = params["pe"].astype(jnp.bfloat16)
    e_bf = jnp.take(params["emb"], x_ids, axis=0).astype(jnp.bfloat16)
    x = (e_bf + pe_bf[None]).reshape(B, -1).astype(jnp.float32)

    h = jax.nn.relu(jnp.dot(x, w_enc1, precision=hi) + params["b_enc1"])
    mu = jnp.dot(h, w_mu, precision=hi) + b_mu
    logvar = jnp.dot(h, w_lv, precision=hi) + b_lv
    z = mu + eps * jnp.exp(0.5 * logvar)
    hd = jax.nn.relu(jnp.dot(z, params["w_dec1"], precision=hi) + params["b_dec1"])
    hd = hd.astype(jnp.bfloat16).astype(jnp.float32)          # mirrors hd_buf
    ed = (jnp.dot(hd, w_dec2, precision=hi) + params["b_dec2"]
          ).reshape(B, SEQ_LEN, EMB_SIZE) + pe_bf.astype(jnp.float32)[None]
    logits = jnp.einsum("bse,ev->bsv", ed, params["w_out"],
                        precision=hi) + params["b_out"][0]
    return logits, mu, logvar


# ------------------------------ main ----------------------------------------

if __name__ == "__main__":
    key = jax.random.PRNGKey(0)
    pkey, xkey, ekey = jax.random.split(key, 3)

    params = init_params(pkey)
    x = jax.random.randint(xkey, (BATCH, SEQ_LEN), 0, VOCAB, dtype=jnp.int32)
    # eps plays the role of torch.randn_like(std) in reparam(), passed in
    # explicitly so the kernel forward is deterministic.
    eps = jax.random.normal(ekey, (BATCH, LATENT), jnp.float32)

    logits, mu, logvar = event_vae_forward(params, x, eps)
    jax.block_until_ready((logits, mu, logvar))

    # sanity check vs. pure-JAX reference (bf16 contract mirrored above)
    ref_logits, ref_mu, ref_lv = reference_forward(params, x, eps)
    np.testing.assert_allclose(np.asarray(mu), np.asarray(ref_mu),
                               rtol=1e-2, atol=1e-2)
    np.testing.assert_allclose(np.asarray(logvar), np.asarray(ref_lv),
                               rtol=1e-2, atol=1e-2)
    np.testing.assert_allclose(np.asarray(logits), np.asarray(ref_logits),
                               rtol=1e-2, atol=1e-2)
    assert logits.shape == (BATCH, SEQ_LEN, VOCAB)
    assert mu.shape == (BATCH, LATENT) and logvar.shape == (BATCH, LATENT)

    print("KERNEL_OK")
</pallas_src>

<mosaic_0001>
module attributes {stable_mosaic.version = 11 : i64} {
  func.func @vae_fused_kernel(%arg0: i32, %arg1: i32, %arg2: memref<2x2048xbf16, #tpu.memory_space<vmem>>, %arg3: memref<1x2048xbf16, #tpu.memory_space<vmem>>, %arg4: memref<2048x512xbf16, #tpu.memory_space<vmem>>, %arg5: memref<1x512xf32, #tpu.memory_space<vmem>>, %arg6: memref<512x64xf32, #tpu.memory_space<vmem>>, %arg7: memref<1x64xf32, #tpu.memory_space<vmem>>, %arg8: memref<2x32xf32, #tpu.memory_space<vmem>>, %arg9: memref<32x512xf32, #tpu.memory_space<vmem>>, %arg10: memref<1x512xf32, #tpu.memory_space<vmem>>, %arg11: memref<512x2048xbf16, #tpu.memory_space<vmem>>, %arg12: memref<1x2048xf32, #tpu.memory_space<vmem>>, %arg13: memref<128x256xf32, #tpu.memory_space<vmem>>, %arg14: memref<1x256xf32, #tpu.memory_space<vmem>>, %arg15: memref<2x64xf32, #tpu.memory_space<vmem>>, %arg16: memref<2x16x256xf32, #tpu.memory_space<vmem>>, %arg17: memref<2x512xf32, #tpu.memory_space<vmem>>, %arg18: memref<2x512xbf16, #tpu.memory_space<vmem>>) attributes {dimension_semantics = [#tpu.dimension_semantics<arbitrary>, #tpu.dimension_semantics<arbitrary>], iteration_bounds = array<i64: 2, 2>, scalar_prefetch = 0 : i64, scratch_operands = 2 : i64, tpu.core_type = #tpu.core_type<tc>, window_params = [{transform_indices = @transform_0, window_bounds = array<i64: 2, 2048>}, {transform_indices = @transform_1, window_bounds = array<i64: 1, 2048>}, {transform_indices = @transform_2, window_bounds = array<i64: 2048, 512>}, {pipeline_mode = #tpu.pipeline_mode<synchronous>, transform_indices = @transform_3, window_bounds = array<i64: 1, 512>}, {pipeline_mode = #tpu.pipeline_mode<synchronous>, transform_indices = @transform_4, window_bounds = array<i64: 512, 64>}, {pipeline_mode = #tpu.pipeline_mode<synchronous>, transform_indices = @transform_5, window_bounds = array<i64: 1, 64>}, {pipeline_mode = #tpu.pipeline_mode<synchronous>, transform_indices = @transform_6, window_bounds = array<i64: 2, 32>}, {pipeline_mode = #tpu.pipeline_mode<synchronous>, transform_indices = @transform_7, window_bounds = array<i64: 32, 512>}, {pipeline_mode = #tpu.pipeline_mode<synchronous>, transform_indices = @transform_8, window_bounds = array<i64: 1, 512>}, {transform_indices = @transform_9, window_bounds = array<i64: 512, 2048>}, {transform_indices = @transform_10, window_bounds = array<i64: 1, 2048>}, {pipeline_mode = #tpu.pipeline_mode<synchronous>, transform_indices = @transform_11, window_bounds = array<i64: 128, 256>}, {pipeline_mode = #tpu.pipeline_mode<synchronous>, transform_indices = @transform_12, window_bounds = array<i64: 1, 256>}, {pipeline_mode = #tpu.pipeline_mode<synchronous>, transform_indices = @transform_13, window_bounds = array<i64: 2, 64>}, {transform_indices = @transform_14, window_bounds = array<i64: 2, 16, 256>}]} {
    %c0_i32 = arith.constant 0 : i32
    %0 = arith.cmpi eq, %arg0, %c0_i32 : i32
    %1 = arith.extui %0 : i1 to i32
    %c0_i32_0 = arith.constant 0 : i32
    %2 = arith.cmpi ne, %1, %c0_i32_0 : i32
    scf.if %2 {
      %c0_i32_2 = arith.constant 0 : i32
      %6 = arith.cmpi eq, %arg1, %c0_i32_2 : i32
      %7 = arith.extui %6 : i1 to i32
      %c0_i32_3 = arith.constant 0 : i32
      %8 = arith.cmpi ne, %7, %c0_i32_3 : i32
      scf.if %8 {
        %cst_15 = arith.constant 0.000000e+00 : f32
        %21 = vector.broadcast %cst_15 : f32 to vector<2x512xf32>
        %c0_16 = arith.constant 0 : index
        %c0_17 = arith.constant 0 : index
        %22 = vector.load %arg17[%c0_16, %c0_17] : memref<2x512xf32, #tpu.memory_space<vmem>>, vector<2x512xf32>
        tpu.vector_store %arg17[%c0_16, %c0_17], %21 {strides = array<i32>} : memref<2x512xf32, #tpu.memory_space<vmem>>, vector<2x512xf32>,
      } else {
      }
      %c0 = arith.constant 0 : index
      %c0_4 = arith.constant 0 : index
      %9 = vector.load %arg2[%c0, %c0_4] : memref<2x2048xbf16, #tpu.memory_space<vmem>>, vector<2x2048xbf16>
      %c0_5 = arith.constant 0 : index
      %c0_6 = arith.constant 0 : index
      %10 = vector.load %arg3[%c0_5, %c0_6] : memref<1x2048xbf16, #tpu.memory_space<vmem>>, vector<1x2048xbf16>
      %11 = vector.broadcast %10 : vector<1x2048xbf16> to vector<2x2048xbf16>
      %12 = arith.addf %9, %11 : vector<2x2048xbf16>
      %c0_7 = arith.constant 0 : index
      %c0_8 = arith.constant 0 : index
      %13 = vector.load %arg17[%c0_7, %c0_8] : memref<2x512xf32, #tpu.memory_space<vmem>>, vector<2x512xf32>
      %c0_9 = arith.constant 0 : index
      %c0_10 = arith.constant 0 : index
      %14 = vector.load %arg4[%c0_9, %c0_10] : memref<2048x512xbf16, #tpu.memory_space<vmem>>, vector<2048x512xbf16>
      %cst = arith.constant dense<0.000000e+00> : vector<2x512xf32>
      %15 = tpu.matmul %12, %14, %cst {dimension_numbers = #tpu.dot_dimension_numbers<[1], [0], [0], [1], [0, 0, 1, 1], [], []>} : vector<2x2048xbf16>, vector<2048x512xbf16>, vector<2x512xf32> -> vector<2x512xf32>
      %16 = arith.addf %13, %15 : vector<2x512xf32>
      %c0_11 = arith.constant 0 : index
      %c0_12 = arith.constant 0 : index
      %17 = vector.load %arg17[%c0_11, %c0_12] : memref<2x512xf32, #tpu.memory_space<vmem>>, vector<2x512xf32>
      tpu.vector_store %arg17[%c0_11, %c0_12], %16 {strides = array<i32>} : memref<2x512xf32, #tpu.memory_space<vmem>>, vector<2x512xf32>,
      %c1_i32_13 = arith.constant 1 : i32
      %18 = arith.cmpi eq, %arg1, %c1_i32_13 : i32
      %19 = arith.extui %18 : i1 to i32
      %c0_i32_14 = arith.constant 0 : i32
      %20 = arith.cmpi ne, %19, %c0_i32_14 : i32
      scf.if %20 {
        %c0_15 = arith.constant 0 : index
        %c0_16 = arith.constant 0 : index
        %21 = vector.load %arg17[%c0_15, %c0_16] : memref<2x512xf32, #tpu.memory_space<vmem>>, vector<2x512xf32>
        %c0_17 = arith.constant 0 : index
        %c0_18 = arith.constant 0 : index
        %22 = vector.load %arg5[%c0_17, %c0_18] : memref<1x512xf32, #tpu.memory_space<vmem>>, vector<1x512xf32>
        %23 = vector.broadcast %22 : vector<1x512xf32> to vector<2x512xf32>
        %24 = arith.addf %21, %23 : vector<2x512xf32>
        %cst_19 = arith.constant 0.000000e+00 : f32
        %25 = vector.broadcast %cst_19 : f32 to vector<2x512xf32>
        %26 = arith.maximumf %24, %25 : vector<2x512xf32>
        %c0_20 = arith.constant 0 : index
        %c0_21 = arith.constant 0 : index
        %27 = vector.load %arg6[%c0_20, %c0_21] : memref<512x64xf32, #tpu.memory_space<vmem>>, vector<512x64xf32>
        %cst_22 = arith.constant dense<0.000000e+00> : vector<2x64xf32>
        %28 = tpu.matmul %26, %27, %cst_22 {dimension_numbers = #tpu.dot_dimension_numbers<[1], [0], [0], [1], [0, 0, 1, 1], [], []>} : vector<2x512xf32>, vector<512x64xf32>, vector<2x64xf32> -> vector<2x64xf32>
        %c0_23 = arith.constant 0 : index
        %c0_24 = arith.constant 0 : index
        %29 = vector.load %arg7[%c0_23, %c0_24] : memref<1x64xf32, #tpu.memory_space<vmem>>, vector<1x64xf32>
        %30 = vector.broadcast %29 : vector<1x64xf32> to vector<2x64xf32>
        %31 = arith.addf %28, %30 : vector<2x64xf32>
        %c0_25 = arith.constant 0 : index
        %c0_26 = arith.constant 0 : index
        %32 = vector.load %arg15[%c0_25, %c0_26] : memref<2x64xf32, #tpu.memory_space<vmem>>, vector<2x64xf32>
        tpu.vector_store %arg15[%c0_25, %c0_26], %31 {strides = array<i32>} : memref<2x64xf32, #tpu.memory_space<vmem>>, vector<2x64xf32>,
        %33 = vector.extract_strided_slice %31 {offsets = [0, 0], sizes = [2, 32], strides = [1, 1]} : vector<2x64xf32> to vector<2x32xf32>
        %34 = vector.extract_strided_slice %31 {offsets = [0, 32], sizes = [2, 32], strides = [1, 1]} : vector<2x64xf32> to vector<2x32xf32>
        %c0_27 = arith.constant 0 : index
        %c0_28 = arith.constant 0 : index
        %35 = vector.load %arg8[%c0_27, %c0_28] : memref<2x32xf32, #tpu.memory_space<vmem>>, vector<2x32xf32>
        %cst_29 = arith.constant 5.000000e-01 : f32
        %36 = vector.broadcast %cst_29 : f32 to vector<2x32xf32>
        %37 = arith.mulf %36, %34 : vector<2x32xf32>
        %38 = math.exp %37 : vector<2x32xf32>
        %39 = arith.mulf %35, %38 : vector<2x32xf32>
        %40 = arith.addf %33, %39 : vector<2x32xf32>
        %c0_30 = arith.constant 0 : index
        %c0_31 = arith.constant 0 : index
        %41 = vector.load %arg9[%c0_30, %c0_31] : memref<32x512xf32, #tpu.memory_space<vmem>>, vector<32x512xf32>
        %cst_32 = arith.constant dense<0.000000e+00> : vector<2x512xf32>
        %42 = tpu.matmul %40, %41, %cst_32 {dimension_numbers = #tpu.dot_dimension_numbers<[1], [0], [0], [1], [0, 0, 1, 1], [], []>} : vector<2x32xf32>, vector<32x512xf32>, vector<2x512xf32> -> vector<2x512xf32>
        %c0_33 = arith.constant 0 : index
        %c0_34 = arith.constant 0 : index
        %43 = vector.load %arg10[%c0_33, %c0_34] : memref<1x512xf32, #tpu.memory_space<vmem>>, vector<1x512xf32>
        %44 = vector.broadcast %43 : vector<1x512xf32> to vector<2x512xf32>
        %45 = arith.addf %42, %44 : vector<2x512xf32>
        %cst_35 = arith.constant 0.000000e+00 : f32
        %46 = vector.broadcast %cst_35 : f32 to vector<2x512xf32>
        %47 = arith.maximumf %45, %46 : vector<2x512xf32>
        %48 = arith.truncf %47 : vector<2x512xf32> to vector<2x512xbf16>
        %c0_36 = arith.constant 0 : index
        %c0_37 = arith.constant 0 : index
        %49 = vector.load %arg18[%c0_36, %c0_37] : memref<2x512xbf16, #tpu.memory_space<vmem>>, vector<2x512xbf16>
        tpu.vector_store %arg18[%c0_36, %c0_37], %48 {strides = array<i32>} : memref<2x512xbf16, #tpu.memory_space<vmem>>, vector<2x512xbf16>,
      } else {
      }
    } else {
    }
    %c1_i32 = arith.constant 1 : i32
    %3 = arith.cmpi eq, %arg0, %c1_i32 : i32
    %4 = arith.extui %3 : i1 to i32
    %c0_i32_1 = arith.constant 0 : i32
    %5 = arith.cmpi ne, %4, %c0_i32_1 : i32
    scf.if %5 {
      %c0 = arith.constant 0 : index
      %c0_2 = arith.constant 0 : index
      %6 = vector.load %arg18[%c0, %c0_2] : memref<2x512xbf16, #tpu.memory_space<vmem>>, vector<2x512xbf16>
      %c0_3 = arith.constant 0 : index
      %c0_4 = arith.constant 0 : index
      %7 = vector.load %arg11[%c0_3, %c0_4] : memref<512x2048xbf16, #tpu.memory_space<vmem>>, vector<512x2048xbf16>
      %cst = arith.constant dense<0.000000e+00> : vector<2x2048xf32>
      %8 = tpu.matmul %6, %7, %cst {dimension_numbers = #tpu.dot_dimension_numbers<[1], [0], [0], [1], [0, 0, 1, 1], [], []>} : vector<2x512xbf16>, vector<512x2048xbf16>, vector<2x2048xf32> -> vector<2x2048xf32>
      %c0_5 = arith.constant 0 : index
      %c0_6 = arith.constant 0 : index
      %9 = vector.load %arg12[%c0_5, %c0_6] : memref<1x2048xf32, #tpu.memory_space<vmem>>, vector<1x2048xf32>
      %10 = vector.broadcast %9 : vector<1x2048xf32> to vector<2x2048xf32>
      %11 = arith.addf %8, %10 : vector<2x2048xf32>
      %c0_7 = arith.constant 0 : index
      %c0_8 = arith.constant 0 : index
      %12 = vector.load %arg3[%c0_7, %c0_8] : memref<1x2048xbf16, #tpu.memory_space<vmem>>, vector<1x2048xbf16>
      %13 = arith.extf %12 : vector<1x2048xbf16> to vector<1x2048xf32>
      %14 = vector.broadcast %13 : vector<1x2048xf32> to vector<2x2048xf32>
      %15 = arith.addf %11, %14 : vector<2x2048xf32>
      %16 = vector.shape_cast %15 : vector<2x2048xf32> to vector<32x128xf32>
      %c0_9 = arith.constant 0 : index
      %c0_10 = arith.constant 0 : index
      %17 = vector.load %arg13[%c0_9, %c0_10] : memref<128x256xf32, #tpu.memory_space<vmem>>, vector<128x256xf32>
      %cst_11 = arith.constant dense<0.000000e+00> : vector<32x256xf32>
      %18 = tpu.matmul %16, %17, %cst_11 {dimension_numbers = #tpu.dot_dimension_numbers<[1], [0], [0], [1], [0, 0, 1, 1], [], []>} : vector<32x128xf32>, vector<128x256xf32>, vector<32x256xf32> -> vector<32x256xf32>
      %c0_12 = arith.constant 0 : index
      %c0_13 = arith.constant 0 : index
      %19 = vector.load %arg14[%c0_12, %c0_13] : memref<1x256xf32, #tpu.memory_space<vmem>>, vector<1x256xf32>
      %20 = vector.broadcast %19 : vector<1x256xf32> to vector<32x256xf32>
      %21 = arith.addf %18, %20 : vector<32x256xf32>
      %22 = vector.shape_cast %21 : vector<32x256xf32> to vector<2x16x256xf32>
      %c0_14 = arith.constant 0 : index
      %c0_15 = arith.constant 0 : index
      %c0_16 = arith.constant 0 : index
      %23 = vector.load %arg16[%c0_14, %c0_15, %c0_16] : memref<2x16x256xf32, #tpu.memory_space<vmem>>, vector<2x16x256xf32>
      tpu.vector_store %arg16[%c0_14, %c0_15, %c0_16], %22 {strides = array<i32>} : memref<2x16x256xf32, #tpu.memory_space<vmem>>, vector<2x16x256xf32>,
    } else {
    }
    return
  }
  func.func @transform_0(%arg0: i32, %arg1: i32) -> (i32, i32) {
    %c1_i32 = arith.constant 1 : i32
    %0 = arith.subi %c1_i32, %arg0 : i32
    %1 = arith.muli %0, %arg1 : i32
    %c1_i32_0 = arith.constant 1 : i32
    %2 = arith.muli %arg0, %c1_i32_0 : i32
    %3 = arith.addi %1, %2 : i32
    %c0_i32 = arith.constant 0 : i32
    %c0_i32_1 = arith.constant 0 : i32
    return %c0_i32, %3 : i32, i32
  }
  func.func @transform_1(%arg0: i32, %arg1: i32) -> (i32, i32) {
    %c0_i32 = arith.constant 0 : i32
    %c0_i32_0 = arith.constant 0 : i32
    return %c0_i32, %arg1 : i32, i32
  }
  func.func @transform_2(%arg0: i32, %arg1: i32) -> (i32, i32) {
    %c1_i32 = arith.constant 1 : i32
    %0 = arith.subi %c1_i32, %arg0 : i32
    %1 = arith.muli %0, %arg1 : i32
    %c1_i32_0 = arith.constant 1 : i32
    %2 = arith.muli %arg0, %c1_i32_0 : i32
    %3 = arith.addi %1, %2 : i32
    %c0_i32 = arith.constant 0 : i32
    %c0_i32_1 = arith.constant 0 : i32
    return %3, %c0_i32 : i32, i32
  }
  func.func @transform_3(%arg0: i32, %arg1: i32) -> (i32, i32) {
    %c0_i32 = arith.constant 0 : i32
    %c0_i32_0 = arith.constant 0 : i32
    %c0_i32_1 = arith.constant 0 : i32
    return %c0_i32, %c0_i32_0 : i32, i32
  }
  func.func @transform_4(%arg0: i32, %arg1: i32) -> (i32, i32) {
    %c0_i32 = arith.constant 0 : i32
    %c0_i32_0 = arith.constant 0 : i32
    %c0_i32_1 = arith.constant 0 : i32
    return %c0_i32, %c0_i32_0 : i32, i32
  }
  func.func @transform_5(%arg0: i32, %arg1: i32) -> (i32, i32) {
    %c0_i32 = arith.constant 0 : i32
    %c0_i32_0 = arith.constant 0 : i32
    %c0_i32_1 = arith.constant 0 : i32
    return %c0_i32, %c0_i32_0 : i32, i32
  }
  func.func @transform_6(%arg0: i32, %arg1: i32) -> (i32, i32) {
    %c0_i32 = arith.constant 0 : i32
    %c0_i32_0 = arith.constant 0 : i32
    %c0_i32_1 = arith.constant 0 : i32
    return %c0_i32, %c0_i32_0 : i32, i32
  }
  func.func @transform_7(%arg0: i32, %arg1: i32) -> (i32, i32) {
    %c0_i32 = arith.constant 0 : i32
    %c0_i32_0 = arith.constant 0 : i32
    %c0_i32_1 = arith.constant 0 : i32
    return %c0_i32, %c0_i32_0 : i32, i32
  }
  func.func @transform_8(%arg0: i32, %arg1: i32) -> (i32, i32) {
    %c0_i32 = arith.constant 0 : i32
    %c0_i32_0 = arith.constant 0 : i32
    %c0_i32_1 = arith.constant 0 : i32
    return %c0_i32, %c0_i32_0 : i32, i32
  }
  func.func @transform_9(%arg0: i32, %arg1: i32) -> (i32, i32) {
    %0 = arith.muli %arg1, %arg0 : i32
    %c0_i32 = arith.constant 0 : i32
    %c0_i32_0 = arith.constant 0 : i32
    return %c0_i32, %0 : i32, i32
  }
  func.func @transform_10(%arg0: i32, %arg1: i32) -> (i32, i32) {
    %0 = arith.muli %arg1, %arg0 : i32
    %c0_i32 = arith.constant 0 : i32
    %c0_i32_0 = arith.constant 0 : i32
    return %c0_i32, %0 : i32, i32
  }
  func.func @transform_11(%arg0: i32, %arg1: i32) -> (i32, i32) {
    %c0_i32 = arith.constant 0 : i32
    %c0_i32_0 = arith.constant 0 : i32
    %c0_i32_1 = arith.constant 0 : i32
    return %c0_i32, %c0_i32_0 : i32, i32
  }
  func.func @transform_12(%arg0: i32, %arg1: i32) -> (i32, i32) {
    %c0_i32 = arith.constant 0 : i32
    %c0_i32_0 = arith.constant 0 : i32
    %c0_i32_1 = arith.constant 0 : i32
    return %c0_i32, %c0_i32_0 : i32, i32
  }
  func.func @transform_13(%arg0: i32, %arg1: i32) -> (i32, i32) {
    %c0_i32 = arith.constant 0 : i32
    %c0_i32_0 = arith.constant 0 : i32
    %c0_i32_1 = arith.constant 0 : i32
    return %c0_i32, %c0_i32_0 : i32, i32
  }
  func.func @transform_14(%arg0: i32, %arg1: i32) -> (i32, i32, i32) {
    %0 = arith.muli %arg1, %arg0 : i32
    %c0_i32 = arith.constant 0 : i32
    %c0_i32_0 = arith.constant 0 : i32
    %c0_i32_1 = arith.constant 0 : i32
    return %c0_i32, %0, %c0_i32_0 : i32, i32, i32
  }
}

</mosaic_0001>

<llo_original>
// kernel: tpu_custom_call.1
$region0: #{tpu_custom_call.1}
  #allocation0 [shape = 'u32[]', space=smem, size = 0x4, offset = 0x4, fixed_abs, tag = 'smem constant byte address 0x4 - core index']
  #allocation1 [shape = 'u32[144,128]{1,0:T(1,128)}', space=vmem, size = 0x12000, scoped, tag = 'internal scratch']
  #allocation2 [shape = 'f32[2,512]{1,0:T(2,128)}', space=vmem, size = 0x1000, scoped, tag = 'scratch operand']
  #allocation3 [shape = 'bf16[2,512]{1,0:T(2,128)(2,1)}', space=vmem, size = 0x800, scoped, tag = 'scratch operand']
  #allocation25 [shape = 's32[]', space=sflag, size = 0x4, offset = 0, fixed_abs, tag = 'sflag constant byte address 0x0 - dummy sync flag']
  %s0 = inlined_call_operand.hbm [shape: bf16[2,4096], index: 0, kind: input, shape index: {}]
  %s1 = inlined_call_operand.hbm [shape: bf16[1,4096], index: 1, kind: input, shape index: {}]
  %s2 = inlined_call_operand.hbm [shape: bf16[4096,512], index: 2, kind: input, shape index: {}]
  %s3 = inlined_call_operand.hbm [shape: f32[1,512], index: 3, kind: input, shape index: {}]
  %s4 = inlined_call_operand.vmem [shape: f32[512,64], index: 4, kind: input, shape index: {}]
  %s5 = inlined_call_operand.hbm [shape: f32[1,64], index: 5, kind: input, shape index: {}]
  %s6 = inlined_call_operand.hbm [shape: f32[2,32], index: 6, kind: input, shape index: {}]
  %s7 = inlined_call_operand.hbm [shape: f32[32,512], index: 7, kind: input, shape index: {}]
  %s8 = inlined_call_operand.hbm [shape: f32[1,512], index: 8, kind: input, shape index: {}]
  %s9 = inlined_call_operand.hbm [shape: bf16[512,4096], index: 9, kind: input, shape index: {}]
  %s10 = inlined_call_operand.hbm [shape: f32[1,4096], index: 10, kind: input, shape index: {}]
  %s11 = inlined_call_operand.hbm [shape: f32[128,256], index: 11, kind: input, shape index: {}]
  %s12 = inlined_call_operand.hbm [shape: f32[1,256], index: 12, kind: input, shape index: {}]
  %s13 = inlined_call_operand.hbm [shape: f32[2,64], index: 13, kind: output, shape index: {0}]
  %s14 = inlined_call_operand.hbm [shape: f32[2,32,256], index: 14, kind: output, shape index: {1}]
  %15 = xla_tuple %s13, %s14
  %s16 = sld [smem:[#allocation0]]
  $region157: #{tpu_custom_call.1} parent=0
    _
  %s18 = ssub.s32 1, %s16
  %s19 = scalar_select 0, %s18, %s16
  $region1: #{tpu_custom_call.1} parent=0
    #allocation4 [shape = 'u8[16384]{0}', space=vmem, size = 0x4000, scoped, tag = 'input window, operand 0']
    #allocation5 [shape = 's32[2]{0}', space=sflag, size = 0x8, scoped, tag = 'scoped memory for tpu_custom_call.1']
    #allocation6 [shape = 's32[2]{0}', space=sflag, size = 0x8, scoped, tag = 'scoped memory for tpu_custom_call.1']
    #allocation7 [shape = 'u8[16384]{0}', space=vmem, size = 0x4000, scoped, tag = 'input window, operand 1']
    #allocation8 [shape = 's32[2]{0}', space=sflag, size = 0x8, scoped, tag = 'scoped memory for tpu_custom_call.1']
    #allocation9 [shape = 'u8[4194304]{0}', space=vmem, size = 0x400000, scoped, tag = 'input window, operand 2']
    #allocation10 [shape = 'u8[2048]{0}', space=vmem, size = 0x800, scoped, tag = 'input window, operand 3, single buffered']
    #allocation11 [shape = 's32[1]{0}', space=sflag, size = 0x4, scoped, tag = 'scoped memory for tpu_custom_call.1']
    #allocation12 [shape = 'u8[512]{0}', space=vmem, size = 0x400, scoped, tag = 'input window, operand 5, single buffered']
    #allocation13 [shape = 'u8[1024]{0}', space=vmem, size = 0x400, scoped, tag = 'input window, operand 6, single buffered']
    #allocation14 [shape = 's32[1]{0}', space=sflag, size = 0x4, scoped, tag = 'scoped memory for tpu_custom_call.1']
    #allocation15 [shape = 'u8[65536]{0}', space=vmem, size = 0x10000, scoped, tag = 'input window, operand 7, single buffered']
    #allocation16 [shape = 'u8[2048]{0}', space=vmem, size = 0x800, scoped, tag = 'input window, operand 8, single buffered']
    #allocation17 [shape = 's32[1]{0}', space=sflag, size = 0x4, scoped, tag = 'scoped memory for tpu_custom_call.1']
    #allocation18 [shape = 'u8[4194304]{0}', space=vmem, size = 0x400000, scoped, tag = 'input window, operand 9']
    #allocation19 [shape = 'u8[16384]{0}', space=vmem, size = 0x4000, scoped, tag = 'input window, operand 10']
    #allocation20 [shape = 'u8[131072]{0}', space=vmem, size = 0x20000, scoped, tag = 'input window, operand 11, single buffered']
    #allocation21 [shape = 'u8[1024]{0}', space=vmem, size = 0x400, scoped, tag = 'input window, operand 12, single buffered']
    #allocation22 [shape = 'u8[1024]{0}', space=vmem, size = 0x400, scoped, tag = 'output window, operand 0, single buffered']
    #allocation23 [shape = 'u8[65536]{0}', space=vmem, size = 0x10000, scoped, tag = 'output window, operand 1']
    #allocation24 [shape = 's32[2]{0}', space=sflag, size = 0x8, scoped, tag = 'scoped memory for tpu_custom_call.1']
    %20 = vsyncpa [#allocation5], 0
    %s21 = scalar_lea.sflag [#allocation5], 1
    %22 = vsyncpa %s21, 0
    %23 = vsyncpa [#allocation8], 0
    %s24 = scalar_lea.sflag [#allocation8], 1
    %25 = vsyncpa %s24, 0
    %26 = vsyncpa [#allocation11], 0
    %27 = vsyncpa [#allocation14], 0
    %28 = vsyncpa [#allocation17], 0
    %29 = vsyncpa [#allocation6], 0
    %30 = vsyncpa [#allocation24], 0
    %s31 = scalar_lea.sflag [#allocation24], 1
    %32 = vsyncpa %s31, 0
    loop: start=0, step=1, limit=6
    $region2: #{tpu_custom_call.1} parent=1 // loop_pre_header
      _
    $region3: #{tpu_custom_call.1} parent=1 // loop_header
      %s34 = sphi 0, %s38
      %p35 = scmp.ge.s32.totalorder %s34, 6
      %s41 = sphi 0, %s53
      %s42 = sphi 0, %s49
      %s43 = sphi 0, %s41
      %s44 = sphi 0, %s42
      %s45 = sphi 0, %s43
      %s46 = sphi 0, %s44
      %s62 = sphi 0, %s64
      %s65 = sphi 0, %s62
      %s66 = sphi 0, %s65
      %s82 = sphi 0, %s66
      %s88 = sphi 0, %s90
      %s91 = sphi 0, %s88
      %s92 = sphi 0, %s91
      %s108 = sphi 0, %s92
      %s120 = sphi 0, %s122
      %s123 = sphi 0, %s120
      %s124 = sphi 0, %s123
      %s140 = sphi 0, %s124
      %s144 = sphi 0, %s144
      %s146 = sphi 0, %s144
      %s147 = sphi 0, %s146
      %s161 = sphi 0, %s147
      %s165 = sphi 0, %s165
      %s167 = sphi 0, %s165
      %s168 = sphi 0, %s167
      %s182 = sphi 0, %s168
      %s186 = sphi 0, %s186
      %s188 = sphi 0, %s186
      %s189 = sphi 0, %s188
      %s203 = sphi 0, %s189
      %s207 = sphi 0, %s207
      %s209 = sphi 0, %s207
      %s210 = sphi 0, %s209
      %s224 = sphi 0, %s210
      %s228 = sphi 0, %s228
      %s230 = sphi 0, %s228
      %s231 = sphi 0, %s230
      %s245 = sphi 0, %s231
      %s249 = sphi 0, %s249
      %s251 = sphi 0, %s249
      %s252 = sphi 0, %s251
      %s266 = sphi 0, %s252
      %s274 = sphi 0, %s276
      %s277 = sphi 0, %s274
      %s278 = sphi 0, %s277
      %s294 = sphi 0, %s278
      %s302 = sphi 0, %s304
      %s305 = sphi 0, %s302
      %s306 = sphi 0, %s305
      %s322 = sphi 0, %s306
      %s326 = sphi 0, %s326
      %s328 = sphi 0, %s326
      %s329 = sphi 0, %s328
      %s343 = sphi 0, %s329
      %s347 = sphi 0, %s347
      %s349 = sphi 0, %s347
      %s350 = sphi 0, %s349
      %s364 = sphi 0, %s350
      %s368 = sphi 0, %s368
      %s370 = sphi 0, %s368
      %s371 = sphi 0, %s370
      %s385 = sphi 0, %s371
      %s393 = sphi 0, %s395
      %s396 = sphi 0, %s393
      %s397 = sphi 0, %s396
      %s413 = sphi 0, %s397
    $region4: #{tpu_custom_call.1} parent=1 // loop_header_branch
      %37 = sbr.rel (%p35) target = $region8
    $region5: #{tpu_custom_call.1} parent=1 // loop_body
      %s39 = ssub.s32 %s34, 1
      %s40 = ssub.s32 %s34, 2
      %s47 = sadd.s32 1, %s42
      %p48 = scmp.ge.s32.totalorder %s47, 2
      %s49 = scalar_select %p48, 0, %s47
      %s50 = sadd.s32 1, %s41
      %s51 = scalar_select %p48, %s50, %s41
      %p52 = scmp.ge.s32.totalorder %s51, 2
      %s53 = scalar_select %p52, 0, %s51
      %s54 = ssub.s32 1, %s41
      %s55 = smul.u32 %s54, %s42
      %s56 = sadd.s32 %s55, %s41
      %s57 = ssub.s32 1, %s53
      %s58 = smul.u32 %s57, %s49
      %s59 = sadd.s32 %s58, %s53
      %s60 = ssub.s32 %s56, %s59
      %p61 = scmp.eq.s32.totalorder %s60, 0
      %s63 = sadd.s32 %s62, 1
      %s64 = scalar_select %p61, %s62, %s63
      %p67 = pneg %p61
      %p68 = scmp.eq.s32.totalorder %s34, 3
      %p69 = por %p67, %p68
      %p70 = scmp.ne.s32.totalorder %s62, %s65
      %p71 = scmp.eq.s32.totalorder %s34, 0
      %p72 = por %p70, %p71
      %p73 = scmp.ne.s32.totalorder %s62, %s65
      %p74 = scmp.eq.s32.totalorder %s39, 3
      %p75 = por %p73, %p74
      %p76 = scmp.ne.s32.totalorder %s65, %s66
      %p77 = scmp.eq.s32.totalorder %s39, 0
      %p78 = por %p76, %p77
      %p79 = scmp.ne.s32.totalorder %s65, %s66
      %p80 = scmp.eq.s32.totalorder %s40, 3
      %p81 = por %p79, %p80
      %p83 = scmp.ne.s32.totalorder %s66, %s82
      %p84 = scmp.eq.s32.totalorder %s40, 0
      %p85 = por %p83, %p84
      %s86 = ssub.s32 %s42, %s49
      %p87 = scmp.eq.s32.totalorder %s86, 0
      %s89 = sadd.s32 %s88, 1
      %s90 = scalar_select %p87, %s88, %s89
      %p93 = pneg %p87
      %p94 = scmp.eq.s32.totalorder %s34, 3
      %p95 = por %p93, %p94
      %p96 = scmp.ne.s32.totalorder %s88, %s91
      %p97 = scmp.eq.s32.totalorder %s34, 0
      %p98 = por %p96, %p97
      %p99 = scmp.ne.s32.totalorder %s88, %s91
      %p100 = scmp.eq.s32.totalorder %s39, 3
      %p101 = por %p99, %p100
      %p102 = scmp.ne.s32.totalorder %s91, %s92
      %p103 = scmp.eq.s32.totalorder %s39, 0
      %p104 = por %p102, %p103
      %p105 = scmp.ne.s32.totalorder %s91, %s92
      %p106 = scmp.eq.s32.totalorder %s40, 3
      %p107 = por %p105, %p106
      %p109 = scmp.ne.s32.totalorder %s92, %s108
      %p110 = scmp.eq.s32.totalorder %s40, 0
      %p111 = por %p109, %p110
      %s112 = ssub.s32 1, %s41
      %s113 = smul.u32 %s112, %s42
      %s114 = sadd.s32 %s113, %s41
      %s115 = ssub.s32 1, %s53
      %s116 = smul.u32 %s115, %s49
      %s117 = sadd.s32 %s116, %s53
      %s118 = ssub.s32 %s114, %s117
      %p119 = scmp.eq.s32.totalorder %s118, 0
      %s121 = sadd.s32 %s120, 1
      %s122 = scalar_select %p119, %s120, %s121
      %p125 = pneg %p119
      %p126 = scmp.eq.s32.totalorder %s34, 3
      %p127 = por %p125, %p126
      %p128 = scmp.ne.s32.totalorder %s120, %s123
      %p129 = scmp.eq.s32.totalorder %s34, 0
      %p130 = por %p128, %p129
      %p131 = scmp.ne.s32.totalorder %s120, %s123
      %p132 = scmp.eq.s32.totalorder %s39, 3
      %p133 = por %p131, %p132
      %p134 = scmp.ne.s32.totalorder %s123, %s124
      %p135 = scmp.eq.s32.totalorder %s39, 0
      %p136 = por %p134, %p135
      %p137 = scmp.ne.s32.totalorder %s123, %s124
      %p138 = scmp.eq.s32.totalorder %s40, 3
      %p139 = por %p137, %p138
      %p141 = scmp.ne.s32.totalorder %s124, %s140
      %p142 = scmp.eq.s32.totalorder %s40, 0
      %p143 = por %p141, %p142
      %s145 = sadd.s32 %s144, 1
      %p148 = scmp.eq.s32.totalorder %s34, 3
      %p149 = scmp.ne.s32.totalorder %s144, %s146
      %p150 = scmp.eq.s32.totalorder %s34, 0
      %p151 = por %p149, %p150
      %p152 = scmp.ne.s32.totalorder %s144, %s146
      %p153 = scmp.eq.s32.totalorder %s39, 3
      %p154 = por %p152, %p153
      %p155 = scmp.ne.s32.totalorder %s146, %s147
      %p156 = scmp.eq.s32.totalorder %s39, 0
      %p157 = por %p155, %p156
      %p158 = scmp.ne.s32.totalorder %s146, %s147
      %p159 = scmp.eq.s32.totalorder %s40, 3
      %p160 = por %p158, %p159
      %p162 = scmp.ne.s32.totalorder %s147, %s161
      %p163 = scmp.eq.s32.totalorder %s40, 0
      %p164 = por %p162, %p163
      %s166 = sadd.s32 %s165, 1
      %p169 = scmp.eq.s32.totalorder %s34, 3
      %p170 = scmp.ne.s32.totalorder %s165, %s167
      %p171 = scmp.eq.s32.totalorder %s34, 0
      %p172 = por %p170, %p171
      %p173 = scmp.ne.s32.totalorder %s165, %s167
      %p174 = scmp.eq.s32.totalorder %s39, 3
      %p175 = por %p173, %p174
      %p176 = scmp.ne.s32.totalorder %s167, %s168
      %p177 = scmp.eq.s32.totalorder %s39, 0
      %p178 = por %p176, %p177
      %p179 = scmp.ne.s32.totalorder %s167, %s168
      %p180 = scmp.eq.s32.totalorder %s40, 3
      %p181 = por %p179, %p180
      %p183 = scmp.ne.s32.totalorder %s168, %s182
      %p184 = scmp.eq.s32.totalorder %s40, 0
      %p185 = por %p183, %p184
      %s187 = sadd.s32 %s186, 1
      %p190 = scmp.eq.s32.totalorder %s34, 3
      %p191 = scmp.ne.s32.totalorder %s186, %s188
      %p192 = scmp.eq.s32.totalorder %s34, 0
      %p193 = por %p191, %p192
      %p194 = scmp.ne.s32.totalorder %s186, %s188
      %p195 = scmp.eq.s32.totalorder %s39, 3
      %p196 = por %p194, %p195
      %p197 = scmp.ne.s32.totalorder %s188, %s189
      %p198 = scmp.eq.s32.totalorder %s39, 0
      %p199 = por %p197, %p198
      %p200 = scmp.ne.s32.totalorder %s188, %s189
      %p201 = scmp.eq.s32.totalorder %s40, 3
      %p202 = por %p200, %p201
      %p204 = scmp.ne.s32.totalorder %s189, %s203
      %p205 = scmp.eq.s32.totalorder %s40, 0
      %p206 = por %p204, %p205
      %s208 = sadd.s32 %s207, 1
      %p211 = scmp.eq.s32.totalorder %s34, 3
      %p212 = scmp.ne.s32.totalorder %s207, %s209
      %p213 = scmp.eq.s32.totalorder %s34, 0
      %p214 = por %p212, %p213
      %p215 = scmp.ne.s32.totalorder %s207, %s209
      %p216 = scmp.eq.s32.totalorder %s39, 3
      %p217 = por %p215, %p216
      %p218 = scmp.ne.s32.totalorder %s209, %s210
      %p219 = scmp.eq.s32.totalorder %s39, 0
      %p220 = por %p218, %p219
      %p221 = scmp.ne.s32.totalorder %s209, %s210
      %p222 = scmp.eq.s32.totalorder %s40, 3
      %p223 = por %p221, %p222
      %p225 = scmp.ne.s32.totalorder %s210, %s224
      %p226 = scmp.eq.s32.totalorder %s40, 0
      %p227 = por %p225, %p226
      %s229 = sadd.s32 %s228, 1
      %p232 = scmp.eq.s32.totalorder %s34, 3
      %p233 = scmp.ne.s32.totalorder %s228, %s230
      %p234 = scmp.eq.s32.totalorder %s34, 0
      %p235 = por %p233, %p234
      %p236 = scmp.ne.s32.totalorder %s228, %s230
      %p237 = scmp.eq.s32.totalorder %s39, 3
      %p238 = por %p236, %p237
      %p239 = scmp.ne.s32.totalorder %s230, %s231
      %p240 = scmp.eq.s32.totalorder %s39, 0
      %p241 = por %p239, %p240
      %p242 = scmp.ne.s32.totalorder %s230, %s231
      %p243 = scmp.eq.s32.totalorder %s40, 3
      %p244 = por %p242, %p243
      %p246 = scmp.ne.s32.totalorder %s231, %s245
      %p247 = scmp.eq.s32.totalorder %s40, 0
      %p248 = por %p246, %p247
      %s250 = sadd.s32 %s249, 1
      %p253 = scmp.eq.s32.totalorder %s34, 3
      %p254 = scmp.ne.s32.totalorder %s249, %s251
      %p255 = scmp.eq.s32.totalorder %s34, 0
      %p256 = por %p254, %p255
      %p257 = scmp.ne.s32.totalorder %s249, %s251
      %p258 = scmp.eq.s32.totalorder %s39, 3
      %p259 = por %p257, %p258
      %p260 = scmp.ne.s32.totalorder %s251, %s252
      %p261 = scmp.eq.s32.totalorder %s39, 0
      %p262 = por %p260, %p261
      %p263 = scmp.ne.s32.totalorder %s251, %s252
      %p264 = scmp.eq.s32.totalorder %s40, 3
      %p265 = por %p263, %p264
      %p267 = scmp.ne.s32.totalorder %s252, %s266
      %p268 = scmp.eq.s32.totalorder %s40, 0
      %p269 = por %p267, %p268
      %s270 = smul.u32 %s42, %s41
      %s271 = smul.u32 %s49, %s53
      %s272 = ssub.s32 %s270, %s271
      %p273 = scmp.eq.s32.totalorder %s272, 0
      %s275 = sadd.s32 %s274, 1
      %s276 = scalar_select %p273, %s274, %s275
      %p279 = pneg %p273
      %p280 = scmp.eq.s32.totalorder %s34, 3
      %p281 = por %p279, %p280
      %p282 = scmp.ne.s32.totalorder %s274, %s277
      %p283 = scmp.eq.s32.totalorder %s34, 0
      %p284 = por %p282, %p283
      %p285 = scmp.ne.s32.totalorder %s274, %s277
      %p286 = scmp.eq.s32.totalorder %s39, 3
      %p287 = por %p285, %p286
      %p288 = scmp.ne.s32.totalorder %s277, %s278
      %p289 = scmp.eq.s32.totalorder %s39, 0
      %p290 = por %p288, %p289
      %p291 = scmp.ne.s32.totalorder %s277, %s278
      %p292 = scmp.eq.s32.totalorder %s40, 3
      %p293 = por %p291, %p292
      %p295 = scmp.ne.s32.totalorder %s278, %s294
      %p296 = scmp.eq.s32.totalorder %s40, 0
      %p297 = por %p295, %p296
      %s298 = smul.u32 %s42, %s41
      %s299 = smul.u32 %s49, %s53
      %s300 = ssub.s32 %s298, %s299
      %p301 = scmp.eq.s32.totalorder %s300, 0
      %s303 = sadd.s32 %s302, 1
      %s304 = scalar_select %p301, %s302, %s303
      %p307 = pneg %p301
      %p308 = scmp.eq.s32.totalorder %s34, 3
      %p309 = por %p307, %p308
      %p310 = scmp.ne.s32.totalorder %s302, %s305
      %p311 = scmp.eq.s32.totalorder %s34, 0
      %p312 = por %p310, %p311
      %p313 = scmp.ne.s32.totalorder %s302, %s305
      %p314 = scmp.eq.s32.totalorder %s39, 3
      %p315 = por %p313, %p314
      %p316 = scmp.ne.s32.totalorder %s305, %s306
      %p317 = scmp.eq.s32.totalorder %s39, 0
      %p318 = por %p316, %p317
      %p319 = scmp.ne.s32.totalorder %s305, %s306
      %p320 = scmp.eq.s32.totalorder %s40, 3
      %p321 = por %p319, %p320
      %p323 = scmp.ne.s32.totalorder %s306, %s322
      %p324 = scmp.eq.s32.totalorder %s40, 0
      %p325 = por %p323, %p324
      %s327 = sadd.s32 %s326, 1
      %p330 = scmp.eq.s32.totalorder %s34, 3
      %p331 = scmp.ne.s32.totalorder %s326, %s328
      %p332 = scmp.eq.s32.totalorder %s34, 0
      %p333 = por %p331, %p332
      %p334 = scmp.ne.s32.totalorder %s326, %s328
      %p335 = scmp.eq.s32.totalorder %s39, 3
      %p336 = por %p334, %p335
      %p337 = scmp.ne.s32.totalorder %s328, %s329
      %p338 = scmp.eq.s32.totalorder %s39, 0
      %p339 = por %p337, %p338
      %p340 = scmp.ne.s32.totalorder %s328, %s329
      %p341 = scmp.eq.s32.totalorder %s40, 3
      %p342 = por %p340, %p341
      %p344 = scmp.ne.s32.totalorder %s329, %s343
      %p345 = scmp.eq.s32.totalorder %s40, 0
      %p346 = por %p344, %p345
      %s348 = sadd.s32 %s347, 1
      %p351 = scmp.eq.s32.totalorder %s34, 3
      %p352 = scmp.ne.s32.totalorder %s347, %s349
      %p353 = scmp.eq.s32.totalorder %s34, 0
      %p354 = por %p352, %p353
      %p355 = scmp.ne.s32.totalorder %s347, %s349
      %p356 = scmp.eq.s32.totalorder %s39, 3
      %p357 = por %p355, %p356
      %p358 = scmp.ne.s32.totalorder %s349, %s350
      %p359 = scmp.eq.s32.totalorder %s39, 0
      %p360 = por %p358, %p359
      %p361 = scmp.ne.s32.totalorder %s349, %s350
      %p362 = scmp.eq.s32.totalorder %s40, 3
      %p363 = por %p361, %p362
      %p365 = scmp.ne.s32.totalorder %s350, %s364
      %p366 = scmp.eq.s32.totalorder %s40, 0
      %p367 = por %p365, %p366
      %s369 = sadd.s32 %s368, 1
      %p372 = scmp.eq.s32.totalorder %s34, 3
      %p373 = scmp.ne.s32.totalorder %s368, %s370
      %p374 = scmp.eq.s32.totalorder %s34, 0
      %p375 = por %p373, %p374
      %p376 = scmp.ne.s32.totalorder %s368, %s370
      %p377 = scmp.eq.s32.totalorder %s39, 3
      %p378 = por %p376, %p377
      %p379 = scmp.ne.s32.totalorder %s370, %s371
      %p380 = scmp.eq.s32.totalorder %s39, 0
      %p381 = por %p379, %p380
      %p382 = scmp.ne.s32.totalorder %s370, %s371
      %p383 = scmp.eq.s32.totalorder %s40, 3
      %p384 = por %p382, %p383
      %p386 = scmp.ne.s32.totalorder %s371, %s385
      %p387 = scmp.eq.s32.totalorder %s40, 0
      %p388 = por %p386, %p387
      %s389 = smul.u32 %s42, %s41
      %s390 = smul.u32 %s49, %s53
      %s391 = ssub.s32 %s389, %s390
      %p392 = scmp.eq.s32.totalorder %s391, 0
      %s394 = sadd.s32 %s393, 1
      %s395 = scalar_select %p392, %s393, %s394
      %p398 = pneg %p392
      %p399 = scmp.eq.s32.totalorder %s34, 3
      %p400 = por %p398, %p399
      %p401 = scmp.ne.s32.totalorder %s393, %s396
      %p402 = scmp.eq.s32.totalorder %s34, 0
      %p403 = por %p401, %p402
      %p404 = scmp.ne.s32.totalorder %s393, %s396
      %p405 = scmp.eq.s32.totalorder %s39, 3
      %p406 = por %p404, %p405
      %p407 = scmp.ne.s32.totalorder %s396, %s397
      %p408 = scmp.eq.s32.totalorder %s39, 0
      %p409 = por %p407, %p408
      %p410 = scmp.ne.s32.totalorder %s396, %s397
      %p411 = scmp.eq.s32.totalorder %s40, 3
      %p412 = por %p410, %p411
      %p414 = scmp.ne.s32.totalorder %s397, %s413
      %p415 = scmp.eq.s32.totalorder %s40, 0
      %p416 = por %p414, %p415
      %p417 = scmp.le.s32.totalorder 1, %s34
      %p418 = scmp.lt.s32.totalorder %s34, 5
      %p419 = pnand %p417, %p418
      %p420 = pneg %p419
      // Predicated region
      $region9: #{tpu_custom_call.1} parent=5 // pred_check
        _
      $region10: #{tpu_custom_call.1} parent=5 // pred_check_branch
        %422 = sbr.rel (%p419) target = $region12
      $region11: #{tpu_custom_call.1} parent=5 // pred_region
        %s423 = ssub.s32 %s34, 1
        // Predicated region
        $region13: #{tpu_custom_call.1} parent=11 // pred_check
          %p424 = pneg %p157
        $region14: #{tpu_custom_call.1} parent=11 // pred_check_branch
          %426 = sbr.rel (%p424) target = $region16
        $region15: #{tpu_custom_call.1} parent=11 // pred_region
          %s428 = ssub.s32 64, 64
          %429 = vsyncadd [#allocation11], %s428
          %s431 = sshll.u32 [#allocation10], 4
          %s432 = int_to_ptr.vmem [resolvable:$true] %s431
          %434 = dma.hbm_to_vmem [thread:$0]  %s3, 64, %s432, [#allocation11]
        $region16: #{tpu_custom_call.1} parent=11 // pred_fallthru
          _
        // Predicated region
        $region17: #{tpu_custom_call.1} parent=11 // pred_check
          %p435 = pneg %p178
        $region18: #{tpu_custom_call.1} parent=11 // pred_check_branch
          %437 = sbr.rel (%p435) target = $region20
        $region19: #{tpu_custom_call.1} parent=11 // pred_region
          _
        $region20: #{tpu_custom_call.1} parent=11 // pred_fallthru
          _
        // Predicated region
        $region21: #{tpu_custom_call.1} parent=11 // pred_check
          %p438 = pneg %p199
        $region22: #{tpu_custom_call.1} parent=11 // pred_check_branch
          %440 = sbr.rel (%p438) target = $region24
        $region23: #{tpu_custom_call.1} parent=11 // pred_region
          %s442 = ssub.s32 16, 16
          %443 = vsyncadd [#allocation11], %s442
          %s445 = sshll.u32 [#allocation12], 4
          %s446 = int_to_ptr.vmem [resolvable:$true] %s445
          %448 = dma.hbm_to_vmem [thread:$0]  %s5, 16, %s446, [#allocation11]
        $region24: #{tpu_custom_call.1} parent=11 // pred_fallthru
          _
        // Predicated region
        $region25: #{tpu_custom_call.1} parent=11 // pred_check
          %p449 = pneg %p220
        $region26: #{tpu_custom_call.1} parent=11 // pred_check_branch
          %451 = sbr.rel (%p449) target = $region28
        $region27: #{tpu_custom_call.1} parent=11 // pred_region
          %s453 = ssub.s32 32, 32
          %454 = vsyncadd [#allocation14], %s453
          %s456 = sshll.u32 [#allocation13], 4
          %s457 = int_to_ptr.vmem [resolvable:$true] %s456
          %459 = dma.hbm_to_vmem [thread:$0]  %s6, 32, %s457, [#allocation14]
        $region28: #{tpu_custom_call.1} parent=11 // pred_fallthru
          _
        // Predicated region
        $region29: #{tpu_custom_call.1} parent=11 // pred_check
          %p460 = pneg %p241
        $region30: #{tpu_custom_call.1} parent=11 // pred_check_branch
          %462 = sbr.rel (%p460) target = $region32
        $region31: #{tpu_custom_call.1} parent=11 // pred_region
          %s464 = ssub.s32 2048, 2048
          %465 = vsyncadd [#allocation14], %s464
          %s466 = sshll.u32 [#allocation15], 4
          %s467 = int_to_ptr.vmem [resolvable:$true] %s466
          %472 = dma.hbm_to_vmem [thread:$0]  %s7, 2048, %s467, [#allocation14], 512, 512, 32
        $region32: #{tpu_custom_call.1} parent=11 // pred_fallthru
          _
        // Predicated region
        $region33: #{tpu_custom_call.1} parent=11 // pred_check
          %p473 = pneg %p262
        $region34: #{tpu_custom_call.1} parent=11 // pred_check_branch
          %475 = sbr.rel (%p473) target = $region36
        $region35: #{tpu_custom_call.1} parent=11 // pred_region
          %s477 = ssub.s32 64, 64
          %478 = vsyncadd [#allocation17], %s477
          %s480 = sshll.u32 [#allocation16], 4
          %s481 = int_to_ptr.vmem [resolvable:$true] %s480
          %483 = dma.hbm_to_vmem [thread:$0]  %s8, 64, %s481, [#allocation17]
        $region36: #{tpu_custom_call.1} parent=11 // pred_fallthru
          _
        // Predicated region
        $region37: #{tpu_custom_call.1} parent=11 // pred_check
          %p484 = pneg %p339
        $region38: #{tpu_custom_call.1} parent=11 // pred_check_branch
          %486 = sbr.rel (%p484) target = $region40
        $region39: #{tpu_custom_call.1} parent=11 // pred_region
          %s488 = ssub.s32 4096, 4096
          %489 = vsyncadd [#allocation11], %s488
          %s490 = sshll.u32 [#allocation20], 4
          %s491 = int_to_ptr.vmem [resolvable:$true] %s490
          %496 = dma.hbm_to_vmem [thread:$0]  %s11, 4096, %s491, [#allocation11], 256, 256, 16
        $region40: #{tpu_custom_call.1} parent=11 // pred_fallthru
          _
        // Predicated region
        $region41: #{tpu_custom_call.1} parent=11 // pred_check
          %p497 = pneg %p360
        $region42: #{tpu_custom_call.1} parent=11 // pred_check_branch
          %499 = sbr.rel (%p497) target = $region44
        $region43: #{tpu_custom_call.1} parent=11 // pred_region
          %s501 = ssub.s32 32, 32
          %502 = vsyncadd [#allocation14], %s501
          %s504 = sshll.u32 [#allocation21], 4
          %s505 = int_to_ptr.vmem [resolvable:$true] %s504
          %507 = dma.hbm_to_vmem [thread:$0]  %s12, 32, %s505, [#allocation14]
        $region44: #{tpu_custom_call.1} parent=11 // pred_fallthru
          _
      $region12: #{tpu_custom_call.1} parent=5 // pred_fallthru
        _
      %p508 = scmp.lt.s32.totalorder %s34, 4
      // Predicated region
      $region45: #{tpu_custom_call.1} parent=5 // pred_check
        %p509 = pneg %p508
      $region46: #{tpu_custom_call.1} parent=5 // pred_check_branch
        %511 = sbr.rel (%p509) target = $region48
      $region47: #{tpu_custom_call.1} parent=5 // pred_region
        // Predicated region
        $region49: #{tpu_custom_call.1} parent=47 // pred_check
          %p512 = pneg %p72
        $region50: #{tpu_custom_call.1} parent=47 // pred_check_branch
          %514 = sbr.rel (%p512) target = $region52
        $region51: #{tpu_custom_call.1} parent=47 // pred_region
          %s515 = sand.u32 %s34, 1
          %s516 = scalar_lea.sflag [#allocation5], %s515
          %s517 = sand.u32 %s62, 1
          %s518 = smul.addr %s517, 16
          %s519 = scalar_lea.vmem [#allocation4], %s518
          %s520 = ssub.s32 1, %s41
          %s521 = smul.u32 %s520, %s42
          %s522 = sadd.s32 %s521, %s41
          %s523 = smul.u32 16, %s522
          %s525 = ssub.s32 256, 256
          %526 = vsyncadd %s516, %s525
          %s527 = smul.addr %s523, 16
          %s528 = scalar_lea.hbm %s0, %s527
          %s530 = sshll.u32 %s519, 4
          %s531 = int_to_ptr.vmem [resolvable:$true] %s530
          %533 = dma.hbm_to_vmem [thread:$0]  %s528, 256, %s531, %s516
        $region52: #{tpu_custom_call.1} parent=47 // pred_fallthru
          _
        // Predicated region
        $region53: #{tpu_custom_call.1} parent=47 // pred_check
          %p534 = pneg %p98
        $region54: #{tpu_custom_call.1} parent=47 // pred_check_branch
          %536 = sbr.rel (%p534) target = $region56
        $region55: #{tpu_custom_call.1} parent=47 // pred_region
          %s537 = sand.u32 %s34, 1
          %s538 = scalar_lea.sflag [#allocation8], %s537
          %s539 = sand.u32 %s88, 1
          %s540 = smul.addr %s539, 16
          %s541 = scalar_lea.vmem [#allocation7], %s540
          %s542 = smul.u32 16, %s42
          %s544 = ssub.s32 256, 256
          %545 = vsyncadd %s538, %s544
          %s546 = smul.addr %s542, 16
          %s547 = scalar_lea.hbm %s1, %s546
          %s549 = sshll.u32 %s541, 4
          %s550 = int_to_ptr.vmem [resolvable:$true] %s549
          %552 = dma.hbm_to_vmem [thread:$0]  %s547, 256, %s550, %s538
        $region56: #{tpu_custom_call.1} parent=47 // pred_fallthru
          _
        // Predicated region
        $region57: #{tpu_custom_call.1} parent=47 // pred_check
          %p553 = pneg %p130
        $region58: #{tpu_custom_call.1} parent=47 // pred_check_branch
          %555 = sbr.rel (%p553) target = $region60
        $region59: #{tpu_custom_call.1} parent=47 // pred_region
          %s556 = sand.u32 %s34, 1
          %s557 = scalar_lea.sflag [#allocation8], %s556
          %s558 = sand.u32 %s120, 1
          %s559 = smul.addr %s558, 4096
          %s560 = scalar_lea.vmem [#allocation9], %s559
          %s561 = ssub.s32 1, %s41
          %s562 = smul.u32 %s561, %s42
          %s563 = sadd.s32 %s562, %s41
          %s564 = smul.u32 256, %s563
          %s566 = ssub.s32 65536, 65536
          %567 = vsyncadd %s557, %s566
          %s568 = smul.addr %s564, 4
          %s569 = smul.addr %s568, 64
          %s570 = scalar_lea.hbm %s2, %s569
          %s571 = sshll.u32 %s560, 4
          %s572 = int_to_ptr.vmem [resolvable:$true] %s571
          %577 = dma.hbm_to_vmem [thread:$0]  %s570, 65536, %s572, %s557, 256, 256, 16
        $region60: #{tpu_custom_call.1} parent=47 // pred_fallthru
          _
        // Predicated region
        $region61: #{tpu_custom_call.1} parent=47 // pred_check
          %p578 = pneg %p284
        $region62: #{tpu_custom_call.1} parent=47 // pred_check_branch
          %580 = sbr.rel (%p578) target = $region64
        $region63: #{tpu_custom_call.1} parent=47 // pred_region
          %s581 = sand.u32 %s34, 1
          %s582 = scalar_lea.sflag [#allocation5], %s581
          %s583 = sand.u32 %s274, 1
          %s584 = smul.addr %s583, 4096
          %s585 = scalar_lea.vmem [#allocation18], %s584
          %s586 = smul.u32 %s42, %s41
          %s587 = smul.u32 16, %s586
          %s589 = ssub.s32 65536, 65536
          %590 = vsyncadd %s582, %s589
          %s591 = smul.addr %s587, 64
          %s592 = scalar_lea.hbm %s9, %s591
          %s593 = sshll.u32 %s585, 4
          %s594 = int_to_ptr.vmem [resolvable:$true] %s593
          %599 = dma.hbm_to_vmem [thread:$0]  %s592, 65536, %s594, %s582, 2048, 1024, 64
        $region64: #{tpu_custom_call.1} parent=47 // pred_fallthru
          _
        // Predicated region
        $region65: #{tpu_custom_call.1} parent=47 // pred_check
          %p600 = pneg %p312
        $region66: #{tpu_custom_call.1} parent=47 // pred_check_branch
          %602 = sbr.rel (%p600) target = $region68
        $region67: #{tpu_custom_call.1} parent=47 // pred_region
          %s603 = sand.u32 %s34, 1
          %s604 = scalar_lea.sflag [#allocation8], %s603
          %s605 = sand.u32 %s302, 1
          %s606 = smul.addr %s605, 16
          %s607 = scalar_lea.vmem [#allocation19], %s606
          %s608 = smul.u32 %s42, %s41
          %s609 = smul.u32 16, %s608
          %s611 = ssub.s32 256, 256
          %612 = vsyncadd %s604, %s611
          %s613 = smul.addr %s609, 16
          %s614 = scalar_lea.hbm %s10, %s613
          %s616 = sshll.u32 %s607, 4
          %s617 = int_to_ptr.vmem [resolvable:$true] %s616
          %619 = dma.hbm_to_vmem [thread:$0]  %s614, 256, %s617, %s604
        $region68: #{tpu_custom_call.1} parent=47 // pred_fallthru
          _
      $region48: #{tpu_custom_call.1} parent=5 // pred_fallthru
        _
      %p620 = scmp.le.s32.totalorder 1, %s34
      %p621 = scmp.lt.s32.totalorder %s34, 5
      %p622 = pnand %p620, %p621
      %p623 = pneg %p622
      // Predicated region
      $region69: #{tpu_custom_call.1} parent=5 // pred_check
        _
      $region70: #{tpu_custom_call.1} parent=5 // pred_check_branch
        %625 = sbr.rel (%p622) target = $region72
      $region71: #{tpu_custom_call.1} parent=5 // pred_region
        %s626 = ssub.s32 %s34, 1
        %s627 = sand.u32 %s39, 1
        %s628 = scalar_lea.sflag [#allocation5], %s627
        %s629 = sand.u32 %s65, 1
        %s630 = smul.addr %s629, 16
        %s631 = scalar_lea.vmem [#allocation4], %s630
        // Predicated region
        $region73: #{tpu_custom_call.1} parent=71 // pred_check
          %p632 = pneg %p78
        $region74: #{tpu_custom_call.1} parent=71 // pred_check_branch
          %634 = sbr.rel (%p632) target = $region76
        $region75: #{tpu_custom_call.1} parent=71 // pred_region
          %635 = dma.done %s628, 256
        $region76: #{tpu_custom_call.1} parent=71 // pred_fallthru
          _
        %s636 = sand.u32 %s39, 1
        %s637 = scalar_lea.sflag [#allocation8], %s636
        %s638 = sand.u32 %s91, 1
        %s639 = smul.addr %s638, 16
        %s640 = scalar_lea.vmem [#allocation7], %s639
        // Predicated region
        $region77: #{tpu_custom_call.1} parent=71 // pred_check
          %p641 = pneg %p104
        $region78: #{tpu_custom_call.1} parent=71 // pred_check_branch
          %643 = sbr.rel (%p641) target = $region80
        $region79: #{tpu_custom_call.1} parent=71 // pred_region
          %644 = dma.done %s637, 256
        $region80: #{tpu_custom_call.1} parent=71 // pred_fallthru
          _
        %s645 = sand.u32 %s39, 1
        %s646 = scalar_lea.sflag [#allocation8], %s645
        %s647 = sand.u32 %s123, 1
        %s648 = smul.addr %s647, 4096
        %s649 = scalar_lea.vmem [#allocation9], %s648
        // Predicated region
        $region81: #{tpu_custom_call.1} parent=71 // pred_check
          %p650 = pneg %p136
        $region82: #{tpu_custom_call.1} parent=71 // pred_check_branch
          %652 = sbr.rel (%p650) target = $region84
        $region83: #{tpu_custom_call.1} parent=71 // pred_region
          %653 = dma.done %s646, 65536
        $region84: #{tpu_custom_call.1} parent=71 // pred_fallthru
          _
        // Predicated region
        $region85: #{tpu_custom_call.1} parent=71 // pred_check
          %p654 = pneg %p157
        $region86: #{tpu_custom_call.1} parent=71 // pred_check_branch
          %656 = sbr.rel (%p654) target = $region88
        $region87: #{tpu_custom_call.1} parent=71 // pred_region
          %657 = dma.done [#allocation11], 64
        $region88: #{tpu_custom_call.1} parent=71 // pred_fallthru
          _
        // Predicated region
        $region89: #{tpu_custom_call.1} parent=71 // pred_check
          %p658 = pneg %p199
        $region90: #{tpu_custom_call.1} parent=71 // pred_check_branch
          %660 = sbr.rel (%p658) target = $region92
        $region91: #{tpu_custom_call.1} parent=71 // pred_region
          %661 = dma.done [#allocation11], 16
        $region92: #{tpu_custom_call.1} parent=71 // pred_fallthru
          _
        // Predicated region
        $region93: #{tpu_custom_call.1} parent=71 // pred_check
          %p662 = pneg %p220
        $region94: #{tpu_custom_call.1} parent=71 // pred_check_branch
          %664 = sbr.rel (%p662) target = $region96
        $region95: #{tpu_custom_call.1} parent=71 // pred_region
          %665 = dma.done [#allocation14], 32
        $region96: #{tpu_custom_call.1} parent=71 // pred_fallthru
          _
        // Predicated region
        $region97: #{tpu_custom_call.1} parent=71 // pred_check
          %p666 = pneg %p241
        $region98: #{tpu_custom_call.1} parent=71 // pred_check_branch
          %668 = sbr.rel (%p666) target = $region100
        $region99: #{tpu_custom_call.1} parent=71 // pred_region
          %669 = dma.done [#allocation14], 2048
        $region100: #{tpu_custom_call.1} parent=71 // pred_fallthru
          _
        // Predicated region
        $region101: #{tpu_custom_call.1} parent=71 // pred_check
          %p670 = pneg %p262
        $region102: #{tpu_custom_call.1} parent=71 // pred_check_branch
          %672 = sbr.rel (%p670) target = $region104
        $region103: #{tpu_custom_call.1} parent=71 // pred_region
          %673 = dma.done [#allocation17], 64
        $region104: #{tpu_custom_call.1} parent=71 // pred_fallthru
          _
        %s674 = sand.u32 %s39, 1
        %s675 = scalar_lea.sflag [#allocation5], %s674
        %s676 = sand.u32 %s277, 1
        %s677 = smul.addr %s676, 4096
        %s678 = scalar_lea.vmem [#allocation18], %s677
        // Predicated region
        $region105: #{tpu_custom_call.1} parent=71 // pred_check
          %p679 = pneg %p290
        $region106: #{tpu_custom_call.1} parent=71 // pred_check_branch
          %681 = sbr.rel (%p679) target = $region108
        $region107: #{tpu_custom_call.1} parent=71 // pred_region
          %682 = dma.done %s675, 65536
        $region108: #{tpu_custom_call.1} parent=71 // pred_fallthru
          _
        %s683 = sand.u32 %s39, 1
        %s684 = scalar_lea.sflag [#allocation8], %s683
        %s685 = sand.u32 %s305, 1
        %s686 = smul.addr %s685, 16
        %s687 = scalar_lea.vmem [#allocation19], %s686
        // Predicated region
        $region109: #{tpu_custom_call.1} parent=71 // pred_check
          %p688 = pneg %p318
        $region110: #{tpu_custom_call.1} parent=71 // pred_check_branch
          %690 = sbr.rel (%p688) target = $region112
        $region111: #{tpu_custom_call.1} parent=71 // pred_region
          %691 = dma.done %s684, 256
        $region112: #{tpu_custom_call.1} parent=71 // pred_fallthru
          _
        // Predicated region
        $region113: #{tpu_custom_call.1} parent=71 // pred_check
          %p692 = pneg %p339
        $region114: #{tpu_custom_call.1} parent=71 // pred_check_branch
          %694 = sbr.rel (%p692) target = $region116
        $region115: #{tpu_custom_call.1} parent=71 // pred_region
          %695 = dma.done [#allocation11], 4096
        $region116: #{tpu_custom_call.1} parent=71 // pred_fallthru
          _
        // Predicated region
        $region117: #{tpu_custom_call.1} parent=71 // pred_check
          %p696 = pneg %p360
        $region118: #{tpu_custom_call.1} parent=71 // pred_check_branch
          %698 = sbr.rel (%p696) target = $region120
        $region119: #{tpu_custom_call.1} parent=71 // pred_region
          %699 = dma.done [#allocation14], 32
        $region120: #{tpu_custom_call.1} parent=71 // pred_fallthru
          _
        %s700 = sand.u32 %s39, 1
        %s701 = scalar_lea.sflag [#allocation5], %s700
        %s702 = sand.u32 %s65, 1
        %s703 = smul.addr %s702, 16
        %s704 = scalar_lea.vmem [#allocation4], %s703
        %p705 = pneg %p78
        %p706 = pneg %p75
        %s707 = sand.u32 %s39, 1
        %s708 = scalar_lea.sflag [#allocation8], %s707
        %s709 = sand.u32 %s91, 1
        %s710 = smul.addr %s709, 16
        %s711 = scalar_lea.vmem [#allocation7], %s710
        %p712 = pneg %p104
        %p713 = pneg %p101
        %s714 = sand.u32 %s39, 1
        %s715 = scalar_lea.sflag [#allocation8], %s714
        %s716 = sand.u32 %s123, 1
        %s717 = smul.addr %s716, 4096
        %s718 = scalar_lea.vmem [#allocation9], %s717
        %p719 = pneg %p136
        %p720 = pneg %p133
        %p721 = pneg %p157
        %p722 = pneg %p154
        %p723 = pneg %p178
        %p724 = pneg %p175
        %p725 = pneg %p199
        %p726 = pneg %p196
        %p727 = pneg %p220
        %p728 = pneg %p217
        %p729 = pneg %p241
        %p730 = pneg %p238
        %p731 = pneg %p262
        %p732 = pneg %p259
        %s733 = sand.u32 %s39, 1
        %s734 = scalar_lea.sflag [#allocation5], %s733
        %s735 = sand.u32 %s277, 1
        %s736 = smul.addr %s735, 4096
        %s737 = scalar_lea.vmem [#allocation18], %s736
        %p738 = pneg %p290
        %p739 = pneg %p287
        %s740 = sand.u32 %s39, 1
        %s741 = scalar_lea.sflag [#allocation8], %s740
        %s742 = sand.u32 %s305, 1
        %s743 = smul.addr %s742, 16
        %s744 = scalar_lea.vmem [#allocation19], %s743
        %p745 = pneg %p318
        %p746 = pneg %p315
        %p747 = pneg %p339
        %p748 = pneg %p336
        %p749 = pneg %p360
        %p750 = pneg %p357
        %p751 = pneg %p381
        %p752 = pneg %p378
        %p753 = pneg %p409
        %p754 = pneg %p406
        %s755 = sand.u32 %s396, 1
        %s756 = scalar_lea.sflag [#allocation24], %s755
        %s757 = sand.u32 %s396, 1
        %s758 = smul.addr %s757, 64
        %s759 = scalar_lea.vmem [#allocation23], %s758
        %s760 = ssub.s32 1, %s43
        %s761 = smul.u32 %s760, %s44
        %s762 = sadd.s32 %s761, %s43
        %s763 = smul.u32 16, %s762
        %s764 = smul.u32 16, %s44
        %s765 = ssub.s32 1, %s43
        %s766 = smul.u32 %s765, %s44
        %s767 = sadd.s32 %s766, %s43
        %s768 = smul.u32 256, %s767
        %s769 = smul.u32 %s44, %s43
        %s770 = smul.u32 16, %s769
        %s771 = smul.u32 %s44, %s43
        %s772 = smul.u32 16, %s771
        %s773 = smul.u32 %s44, %s43
        %s774 = smul.u32 2, %s773
        %p775 = scmp.eq.s32.totalorder %s43, 0
        // Predicated region
        $region121: #{tpu_custom_call.1} parent=71 // pred_check
          %p776 = pneg %p775
        $region122: #{tpu_custom_call.1} parent=71 // pred_check_branch
          %778 = sbr.rel (%p776) target = $region124
        $region123: #{tpu_custom_call.1} parent=71 // pred_region
          %p779 = scmp.eq.s32.totalorder %s44, 0
          // Predicated region
          $region125: #{tpu_custom_call.1} parent=123 // pred_check
            %p780 = pneg %p779
          $region126: #{tpu_custom_call.1} parent=123 // pred_check_branch
            %782 = sbr.rel (%p780) target = $region128
          $region127: #{tpu_custom_call.1} parent=123 // pred_region
            %783 = vst [vmem:[#allocation2] sm:$0xff] 0.0
          $region128: #{tpu_custom_call.1} parent=123 // pred_fallthru
            _
          %v784 = vld [vmem:[%s631] sm:$0xff]
          %v785 = vld [vmem:[%s631 + $0x8] sm:$0xff]
          %v786 = vld [vmem:[%s640] sm:$0xff]
          %v787 = vld [vmem:[%s640 + $0x8] sm:$0xff]
          %v790 = vcombine.high %v786, %v786
          %v792 = vunpack.c.l.s4 1966171168
          %v793 = vunpack.c.0.s8 %v792
          %v794 = vlaneseq
          %v795 = vshrl.u32 %v794, 7
          %v796 = vsub.s32 %v793, %v795
          %v797 = vrot.slane %v786, %v796
          %v799 = vunpack.c.l.s4 1966171168
          %v800 = vunpack.c.0.s8 %v799
          %v801 = vlaneseq
          %v802 = vshrl.u32 %v801, 7
          %v803 = vsub.s32 %v800, %v802
          %v804 = vrot.slane %v790, %v803
          %v805 = vcombine.high %v797, %v797
          %v806 = vcombine.high %v804, %v804
          %v808 = vunpack.c.l.s4 1966171168
          %v809 = vunpack.c.0.s8 %v808
          %v810 = vlaneseq
          %v811 = vshrl.u32 %v810, 7
          %v812 = vsub.s32 %v809, %v811
          %v813 = vrot.slane %v797, %v812
          %v815 = vunpack.c.l.s4 1966171168
          %v816 = vunpack.c.0.s8 %v815
          %v817 = vlaneseq
          %v818 = vshrl.u32 %v817, 7
          %v819 = vsub.s32 %v816, %v818
          %v820 = vrot.slane %v804, %v819
          %v822 = vunpack.c.l.s4 1966171168
          %v823 = vunpack.c.0.s8 %v822
          %v824 = vlaneseq
          %v825 = vshrl.u32 %v824, 7
          %v826 = vsub.s32 %v823, %v825
          %v827 = vrot.slane %v805, %v826
          %v829 = vunpack.c.l.s4 1966171168
          %v830 = vunpack.c.0.s8 %v829
          %v831 = vlaneseq
          %v832 = vshrl.u32 %v831, 7
          %v833 = vsub.s32 %v830, %v832
          %v834 = vrot.slane %v806, %v833
          %v835 = vcombine.high %v813, %v813
          %v836 = vcombine.high %v820, %v820
          %v837 = vcombine.high %v827, %v827
          %v838 = vcombine.high %v834, %v834
          %v839 = vcombine.high %v787, %v787
          %v841 = vunpack.c.l.s4 1966171168
          %v842 = vunpack.c.0.s8 %v841
          %v843 = vlaneseq
          %v844 = vshrl.u32 %v843, 7
          %v845 = vsub.s32 %v842, %v844
          %v846 = vrot.slane %v787, %v845
          %v848 = vunpack.c.l.s4 1966171168
          %v849 = vunpack.c.0.s8 %v848
          %v850 = vlaneseq
          %v851 = vshrl.u32 %v850, 7
          %v852 = vsub.s32 %v849, %v851
          %v853 = vrot.slane %v839, %v852
          %v854 = vcombine.high %v846, %v846
          %v855 = vcombine.high %v853, %v853
          %v857 = vunpack.c.l.s4 1966171168
          %v858 = vunpack.c.0.s8 %v857
          %v859 = vlaneseq
          %v860 = vshrl.u32 %v859, 7
          %v861 = vsub.s32 %v858, %v860
          %v862 = vrot.slane %v846, %v861
          %v864 = vunpack.c.l.s4 1966171168
          %v865 = vunpack.c.0.s8 %v864
          %v866 = vlaneseq
          %v867 = vshrl.u32 %v866, 7
          %v868 = vsub.s32 %v865, %v867
          %v869 = vrot.slane %v853, %v868
          %v871 = vunpack.c.l.s4 1966171168
          %v872 = vunpack.c.0.s8 %v871
          %v873 = vlaneseq
          %v874 = vshrl.u32 %v873, 7
          %v875 = vsub.s32 %v872, %v874
          %v876 = vrot.slane %v854, %v875
          %v878 = vunpack.c.l.s4 1966171168
          %v879 = vunpack.c.0.s8 %v878
          %v880 = vlaneseq
          %v881 = vshrl.u32 %v880, 7
          %v882 = vsub.s32 %v879, %v881
          %v883 = vrot.slane %v855, %v882
          %v884 = vcombine.high %v862, %v862
          %v885 = vcombine.high %v869, %v869
          %v886 = vcombine.high %v876, %v876
          %v887 = vcombine.high %v883, %v883
          %v889 = vpack.i.b16 %v813, %v813
          %v891 = vlaneseq
          %v892 = vshrl.u32 %v891, 7
          %v893 = vsub.s32 0, %v892
          %v894 = vrot.slane %v889, %v893
          %v896 = vpack.i.b16 %v827, %v827
          %v898 = vlaneseq
          %v899 = vshrl.u32 %v898, 7
          %v900 = vsub.s32 0, %v899
          %v901 = vrot.slane %v896, %v900
          %v903 = vpack.i.b16 %v835, %v835
          %v905 = vlaneseq
          %v906 = vshrl.u32 %v905, 7
          %v907 = vsub.s32 0, %v906
          %v908 = vrot.slane %v903, %v907
          %v910 = vpack.i.b16 %v837, %v837
          %v912 = vlaneseq
          %v913 = vshrl.u32 %v912, 7
          %v914 = vsub.s32 0, %v913
          %v915 = vrot.slane %v910, %v914
          %v917 = vpack.i.b16 %v820, %v820
          %v919 = vlaneseq
          %v920 = vshrl.u32 %v919, 7
          %v921 = vsub.s32 0, %v920
          %v922 = vrot.slane %v917, %v921
          %v924 = vpack.i.b16 %v834, %v834
          %v926 = vlaneseq
          %v927 = vshrl.u32 %v926, 7
          %v928 = vsub.s32 0, %v927
          %v929 = vrot.slane %v924, %v928
          %v931 = vpack.i.b16 %v836, %v836
          %v933 = vlaneseq
          %v934 = vshrl.u32 %v933, 7
          %v935 = vsub.s32 0, %v934
          %v936 = vrot.slane %v931, %v935
          %v938 = vpack.i.b16 %v838, %v838
          %v940 = vlaneseq
          %v941 = vshrl.u32 %v940, 7
          %v942 = vsub.s32 0, %v941
          %v943 = vrot.slane %v938, %v942
          %v945 = vpack.i.b16 %v862, %v862
          %v947 = vlaneseq
          %v948 = vshrl.u32 %v947, 7
          %v949 = vsub.s32 0, %v948
          %v950 = vrot.slane %v945, %v949
          %v952 = vpack.i.b16 %v876, %v876
          %v954 = vlaneseq
          %v955 = vshrl.u32 %v954, 7
          %v956 = vsub.s32 0, %v955
          %v957 = vrot.slane %v952, %v956
          %v959 = vpack.i.b16 %v884, %v884
          %v961 = vlaneseq
          %v962 = vshrl.u32 %v961, 7
          %v963 = vsub.s32 0, %v962
          %v964 = vrot.slane %v959, %v963
          %v966 = vpack.i.b16 %v886, %v886
          %v968 = vlaneseq
          %v969 = vshrl.u32 %v968, 7
          %v970 = vsub.s32 0, %v969
          %v971 = vrot.slane %v966, %v970
          %v973 = vpack.i.b16 %v869, %v869
          %v975 = vlaneseq
          %v976 = vshrl.u32 %v975, 7
          %v977 = vsub.s32 0, %v976
          %v978 = vrot.slane %v973, %v977
          %v980 = vpack.i.b16 %v883, %v883
          %v982 = vlaneseq
          %v983 = vshrl.u32 %v982, 7
          %v984 = vsub.s32 0, %v983
          %v985 = vrot.slane %v980, %v984
          %v987 = vpack.i.b16 %v885, %v885
          %v989 = vlaneseq
          %v990 = vshrl.u32 %v989, 7
          %v991 = vsub.s32 0, %v990
          %v992 = vrot.slane %v987, %v991
          %v994 = vpack.i.b16 %v887, %v887
          %v996 = vlaneseq
          %v997 = vshrl.u32 %v996, 7
          %v998 = vsub.s32 0, %v997
          %v999 = vrot.slane %v994, %v998
          %v1016 = vcombine.low %v894, %v901
          %v1017 = vcombine.low %v908, %v915
          %v1018 = vcombine.low %v922, %v929
          %v1019 = vcombine.low %v936, %v943
          %v1021 = vunpack.c.l.s4 1966171168
          %v1022 = vunpack.c.0.s8 %v1021
          %v1023 = vlaneseq
          %v1024 = vshrl.u32 %v1023, 7
          %v1025 = vsub.s32 %v1022, %v1024
          %v1026 = vrot.slane %v1016, %v1025
          %v1028 = vunpack.c.l.s4 1966171168
          %v1029 = vunpack.c.0.s8 %v1028
          %v1030 = vlaneseq
          %v1031 = vshrl.u32 %v1030, 7
          %v1032 = vsub.s32 %v1029, %v1031
          %v1033 = vrot.slane %v1017, %v1032
          %v1035 = vunpack.c.l.s4 1966171168
          %v1036 = vunpack.c.0.s8 %v1035
          %v1037 = vlaneseq
          %v1038 = vshrl.u32 %v1037, 7
          %v1039 = vsub.s32 %v1036, %v1038
          %v1040 = vrot.slane %v1018, %v1039
          %v1042 = vunpack.c.l.s4 1966171168
          %v1043 = vunpack.c.0.s8 %v1042
          %v1044 = vlaneseq
          %v1045 = vshrl.u32 %v1044, 7
          %v1046 = vsub.s32 %v1043, %v1045
          %v1047 = vrot.slane %v1019, %v1046
          %v1048 = vcombine.low %v1026, %v1033
          %v1049 = vcombine.low %v1040, %v1047
          %v1051 = vunpack.c.l.s4 1966171168
          %v1052 = vunpack.c.0.s8 %v1051
          %v1053 = vlaneseq
          %v1054 = vshrl.u32 %v1053, 7
          %v1055 = vsub.s32 %v1052, %v1054
          %v1056 = vrot.slane %v1048, %v1055
          %v1058 = vunpack.c.l.s4 1966171168
          %v1059 = vunpack.c.0.s8 %v1058
          %v1060 = vlaneseq
          %v1061 = vshrl.u32 %v1060, 7
          %v1062 = vsub.s32 %v1059, %v1061
          %v1063 = vrot.slane %v1049, %v1062
          %v1064 = vcombine.low %v1056, %v1063
          %v1065 = vcombine.low %v950, %v957
          %v1066 = vcombine.low %v964, %v971
          %v1067 = vcombine.low %v978, %v985
          %v1068 = vcombine.low %v992, %v999
          %v1070 = vunpack.c.l.s4 1966171168
          %v1071 = vunpack.c.0.s8 %v1070
          %v1072 = vlaneseq
          %v1073 = vshrl.u32 %v1072, 7
          %v1074 = vsub.s32 %v1071, %v1073
          %v1075 = vrot.slane %v1065, %v1074
          %v1077 = vunpack.c.l.s4 1966171168
          %v1078 = vunpack.c.0.s8 %v1077
          %v1079 = vlaneseq
          %v1080 = vshrl.u32 %v1079, 7
          %v1081 = vsub.s32 %v1078, %v1080
          %v1082 = vrot.slane %v1066, %v1081
          %v1084 = vunpack.c.l.s4 1966171168
          %v1085 = vunpack.c.0.s8 %v1084
          %v1086 = vlaneseq
          %v1087 = vshrl.u32 %v1086, 7
          %v1088 = vsub.s32 %v1085, %v1087
          %v1089 = vrot.slane %v1067, %v1088
          %v1091 = vunpack.c.l.s4 1966171168
          %v1092 = vunpack.c.0.s8 %v1091
          %v1093 = vlaneseq
          %v1094 = vshrl.u32 %v1093, 7
          %v1095 = vsub.s32 %v1092, %v1094
          %v1096 = vrot.slane %v1068, %v1095
          %v1097 = vcombine.low %v1075, %v1082
          %v1098 = vcombine.low %v1089, %v1096
          %v1100 = vunpack.c.l.s4 1966171168
          %v1101 = vunpack.c.0.s8 %v1100
          %v1102 = vlaneseq
          %v1103 = vshrl.u32 %v1102, 7
          %v1104 = vsub.s32 %v1101, %v1103
          %v1105 = vrot.slane %v1097, %v1104
          %v1107 = vunpack.c.l.s4 1966171168
          %v1108 = vunpack.c.0.s8 %v1107
          %v1109 = vlaneseq
          %v1110 = vshrl.u32 %v1109, 7
          %v1111 = vsub.s32 %v1108, %v1110
          %v1112 = vrot.slane %v1098, %v1111
          %v1113 = vcombine.low %v1105, %v1112
          %v1116 = vadd.bf16 %v784, %v1064
          %v1117 = vadd.bf16 %v785, %v1113
          %v1118 = vld [vmem:[#allocation2] sm:$0xff]
          %v1119 = vld [vmem:[%s649] sm:$0xff]
          %v1120 = vld [vmem:[%s649 + $0x8] sm:$0xff]
          %v1121 = vld [vmem:[%s649 + $0x10] sm:$0xff]
          %v1122 = vld [vmem:[%s649 + $0x18] sm:$0xff]
          %v1123 = vld [vmem:[%s649 + $0x20] sm:$0xff]
          %v1124 = vld [vmem:[%s649 + $0x28] sm:$0xff]
          %v1125 = vld [vmem:[%s649 + $0x30] sm:$0xff]
          %v1126 = vld [vmem:[%s649 + $0x38] sm:$0xff]
          %v1127 = vld [vmem:[%s649 + $0x40] sm:$0xff]
          %v1128 = vld [vmem:[%s649 + $0x48] sm:$0xff]
          %v1129 = vld [vmem:[%s649 + $0x50] sm:$0xff]
          %v1130 = vld [vmem:[%s649 + $0x58] sm:$0xff]
          %v1131 = vld [vmem:[%s649 + $0x60] sm:$0xff]
          %v1132 = vld [vmem:[%s649 + $0x68] sm:$0xff]
          %v1133 = vld [vmem:[%s649 + $0x70] sm:$0xff]
          %v1134 = vld [vmem:[%s649 + $0x78] sm:$0xff]
          %v1135 = vld [vmem:[%s649 + $0x80] sm:$0xff]
          %v1136 = vld [vmem:[%s649 + $0x88] sm:$0xff]
          %v1137 = vld [vmem:[%s649 + $0x90] sm:$0xff]
          %v1138 = vld [vmem:[%s649 + $0x98] sm:$0xff]
          %v1139 = vld [vmem:[%s649 + $0xa0] sm:$0xff]
          %v1140 = vld [vmem:[%s649 + $0xa8] sm:$0xff]
          %v1141 = vld [vmem:[%s649 + $0xb0] sm:$0xff]
          %v1142 = vld [vmem:[%s649 + $0xb8] sm:$0xff]
          %v1143 = vld [vmem:[%s649 + $0xc0] sm:$0xff]
          %v1144 = vld [vmem:[%s649 + $0xc8] sm:$0xff]
          %v1145 = vld [vmem:[%s649 + $0xd0] sm:$0xff]
          %v1146 = vld [vmem:[%s649 + $0xd8] sm:$0xff]
          %v1147 = vld [vmem:[%s649 + $0xe0] sm:$0xff]
          %v1148 = vld [vmem:[%s649 + $0xe8] sm:$0xff]
          %v1149 = vld [vmem:[%s649 + $0xf0] sm:$0xff]
          %v1150 = vld [vmem:[%s649 + $0xf8] sm:$0xff]
          %v1151 = vld [vmem:[%s649 + $0x100] sm:$0xff]
          %v1152 = vld [vmem:[%s649 + $0x108] sm:$0xff]
          %v1153 = vld [vmem:[%s649 + $0x110] sm:$0xff]
          %v1154 = vld [vmem:[%s649 + $0x118] sm:$0xff]
          %v1155 = vld [vmem:[%s649 + $0x120] sm:$0xff]
          %v1156 = vld [vmem:[%s649 + $0x128] sm:$0xff]
          %v1157 = vld [vmem:[%s649 + $0x130] sm:$0xff]
          %v1158 = vld [vmem:[%s649 + $0x138] sm:$0xff]
          %v1159 = vld [vmem:[%s649 + $0x140] sm:$0xff]
          %v1160 = vld [vmem:[%s649 + $0x148] sm:$0xff]
          %v1161 = vld [vmem:[%s649 + $0x150] sm:$0xff]
          %v1162 = vld [vmem:[%s649 + $0x158] sm:$0xff]
          %v1163 = vld [vmem:[%s649 + $0x160] sm:$0xff]
          %v1164 = vld [vmem:[%s649 + $0x168] sm:$0xff]
          %v1165 = vld [vmem:[%s649 + $0x170] sm:$0xff]
          %v1166 = vld [vmem:[%s649 + $0x178] sm:$0xff]
          %v1167 = vld [vmem:[%s649 + $0x180] sm:$0xff]
          %v1168 = vld [vmem:[%s649 + $0x188] sm:$0xff]
          %v1169 = vld [vmem:[%s649 + $0x190] sm:$0xff]
          %v1170 = vld [vmem:[%s649 + $0x198] sm:$0xff]
          %v1171 = vld [vmem:[%s649 + $0x1a0] sm:$0xff]
          %v1172 = vld [vmem:[%s649 + $0x1a8] sm:$0xff]
          %v1173 = vld [vmem:[%s649 + $0x1b0] sm:$0xff]
          %v1174 = vld [vmem:[%s649 + $0x1b8] sm:$0xff]
          %v1175 = vld [vmem:[%s649 + $0x1c0] sm:$0xff]
          %v1176 = vld [vmem:[%s649 + $0x1c8] sm:$0xff]
          %v1177 = vld [vmem:[%s649 + $0x1d0] sm:$0xff]
          %v1178 = vld [vmem:[%s649 + $0x1d8] sm:$0xff]
          %v1179 = vld [vmem:[%s649 + $0x1e0] sm:$0xff]
          %v1180 = vld [vmem:[%s649 + $0x1e8] sm:$0xff]
          %v1181 = vld [vmem:[%s649 + $0x1f0] sm:$0xff]
          %v1182 = vld [vmem:[%s649 + $0x1f8] sm:$0xff]
          %v1183 = vld [vmem:[%s649 + $0x200] sm:$0xff]
          %v1184 = vld [vmem:[%s649 + $0x208] sm:$0xff]
          %v1185 = vld [vmem:[%s649 + $0x210] sm:$0xff]
          %v1186 = vld [vmem:[%s649 + $0x218] sm:$0xff]
          %v1187 = vld [vmem:[%s649 + $0x220] sm:$0xff]
          %v1188 = vld [vmem:[%s649 + $0x228] sm:$0xff]
          %v1189 = vld [vmem:[%s649 + $0x230] sm:$0xff]
          %v1190 = vld [vmem:[%s649 + $0x238] sm:$0xff]
          %v1191 = vld [vmem:[%s649 + $0x240] sm:$0xff]
          %v1192 = vld [vmem:[%s649 + $0x248] sm:$0xff]
          %v1193 = vld [vmem:[%s649 + $0x250] sm:$0xff]
          %v1194 = vld [vmem:[%s649 + $0x258] sm:$0xff]
          %v1195 = vld [vmem:[%s649 + $0x260] sm:$0xff]
          %v1196 = vld [vmem:[%s649 + $0x268] sm:$0xff]
          %v1197 = vld [vmem:[%s649 + $0x270] sm:$0xff]
          %v1198 = vld [vmem:[%s649 + $0x278] sm:$0xff]
          %v1199 = vld [vmem:[%s649 + $0x280] sm:$0xff]
          %v1200 = vld [vmem:[%s649 + $0x288] sm:$0xff]
          %v1201 = vld [vmem:[%s649 + $0x290] sm:$0xff]
          %v1202 = vld [vmem:[%s649 + $0x298] sm:$0xff]
          %v1203 = vld [vmem:[%s649 + $0x2a0] sm:$0xff]
          %v1204 = vld [vmem:[%s649 + $0x2a8] sm:$0xff]
          %v1205 = vld [vmem:[%s649 + $0x2b0] sm:$0xff]
          %v1206 = vld [vmem:[%s649 + $0x2b8] sm:$0xff]
          %v1207 = vld [vmem:[%s649 + $0x2c0] sm:$0xff]
          %v1208 = vld [vmem:[%s649 + $0x2c8] sm:$0xff]
          %v1209 = vld [vmem:[%s649 + $0x2d0] sm:$0xff]
          %v1210 = vld [vmem:[%s649 + $0x2d8] sm:$0xff]
          %v1211 = vld [vmem:[%s649 + $0x2e0] sm:$0xff]
          %v1212 = vld [vmem:[%s649 + $0x2e8] sm:$0xff]
          %v1213 = vld [vmem:[%s649 + $0x2f0] sm:$0xff]
          %v1214 = vld [vmem:[%s649 + $0x2f8] sm:$0xff]
          %v1215 = vld [vmem:[%s649 + $0x300] sm:$0xff]
          %v1216 = vld [vmem:[%s649 + $0x308] sm:$0xff]
          %v1217 = vld [vmem:[%s649 + $0x310] sm:$0xff]
          %v1218 = vld [vmem:[%s649 + $0x318] sm:$0xff]
          %v1219 = vld [vmem:[%s649 + $0x320] sm:$0xff]
          %v1220 = vld [vmem:[%s649 + $0x328] sm:$0xff]
          %v1221 = vld [vmem:[%s649 + $0x330] sm:$0xff]
          %v1222 = vld [vmem:[%s649 + $0x338] sm:$0xff]
          %v1223 = vld [vmem:[%s649 + $0x340] sm:$0xff]
          %v1224 = vld [vmem:[%s649 + $0x348] sm:$0xff]
          %v1225 = vld [vmem:[%s649 + $0x350] sm:$0xff]
          %v1226 = vld [vmem:[%s649 + $0x358] sm:$0xff]
          %v1227 = vld [vmem:[%s649 + $0x360] sm:$0xff]
          %v1228 = vld [vmem:[%s649 + $0x368] sm:$0xff]
          %v1229 = vld [vmem:[%s649 + $0x370] sm:$0xff]
          %v1230 = vld [vmem:[%s649 + $0x378] sm:$0xff]
          %v1231 = vld [vmem:[%s649 + $0x380] sm:$0xff]
          %v1232 = vld [vmem:[%s649 + $0x388] sm:$0xff]
          %v1233 = vld [vmem:[%s649 + $0x390] sm:$0xff]
          %v1234 = vld [vmem:[%s649 + $0x398] sm:$0xff]
          %v1235 = vld [vmem:[%s649 + $0x3a0] sm:$0xff]
          %v1236 = vld [vmem:[%s649 + $0x3a8] sm:$0xff]
          %v1237 = vld [vmem:[%s649 + $0x3b0] sm:$0xff]
          %v1238 = vld [vmem:[%s649 + $0x3b8] sm:$0xff]
          %v1239 = vld [vmem:[%s649 + $0x3c0] sm:$0xff]
          %v1240 = vld [vmem:[%s649 + $0x3c8] sm:$0xff]
          %v1241 = vld [vmem:[%s649 + $0x3d0] sm:$0xff]
          %v1242 = vld [vmem:[%s649 + $0x3d8] sm:$0xff]
          %v1243 = vld [vmem:[%s649 + $0x3e0] sm:$0xff]
          %v1244 = vld [vmem:[%s649 + $0x3e8] sm:$0xff]
          %v1245 = vld [vmem:[%s649 + $0x3f0] sm:$0xff]
          %v1246 = vld [vmem:[%s649 + $0x3f8] sm:$0xff]
          %v1247 = vld [vmem:[%s649 + $0x400] sm:$0xff]
          %v1248 = vld [vmem:[%s649 + $0x408] sm:$0xff]
          %v1249 = vld [vmem:[%s649 + $0x410] sm:$0xff]
          %v1250 = vld [vmem:[%s649 + $0x418] sm:$0xff]
          %v1251 = vld [vmem:[%s649 + $0x420] sm:$0xff]
          %v1252 = vld [vmem:[%s649 + $0x428] sm:$0xff]
          %v1253 = vld [vmem:[%s649 + $0x430] sm:$0xff]
          %v1254 = vld [vmem:[%s649 + $0x438] sm:$0xff]
          %v1255 = vld [vmem:[%s649 + $0x440] sm:$0xff]
          %v1256 = vld [vmem:[%s649 + $0x448] sm:$0xff]
          %v1257 = vld [vmem:[%s649 + $0x450] sm:$0xff]
          %v1258 = vld [vmem:[%s649 + $0x458] sm:$0xff]
          %v1259 = vld [vmem:[%s649 + $0x460] sm:$0xff]
          %v1260 = vld [vmem:[%s649 + $0x468] sm:$0xff]
          %v1261 = vld [vmem:[%s649 + $0x470] sm:$0xff]
          %v1262 = vld [vmem:[%s649 + $0x478] sm:$0xff]
          %v1263 = vld [vmem:[%s649 + $0x480] sm:$0xff]
          %v1264 = vld [vmem:[%s649 + $0x488] sm:$0xff]
          %v1265 = vld [vmem:[%s649 + $0x490] sm:$0xff]
          %v1266 = vld [vmem:[%s649 + $0x498] sm:$0xff]
          %v1267 = vld [vmem:[%s649 + $0x4a0] sm:$0xff]
          %v1268 = vld [vmem:[%s649 + $0x4a8] sm:$0xff]
          %v1269 = vld [vmem:[%s649 + $0x4b0] sm:$0xff]
          %v1270 = vld [vmem:[%s649 + $0x4b8] sm:$0xff]
          %v1271 = vld [vmem:[%s649 + $0x4c0] sm:$0xff]
          %v1272 = vld [vmem:[%s649 + $0x4c8] sm:$0xff]
          %v1273 = vld [vmem:[%s649 + $0x4d0] sm:$0xff]
          %v1274 = vld [vmem:[%s649 + $0x4d8] sm:$0xff]
          %v1275 = vld [vmem:[%s649 + $0x4e0] sm:$0xff]
          %v1276 = vld [vmem:[%s649 + $0x4e8] sm:$0xff]
          %v1277 = vld [vmem:[%s649 + $0x4f0] sm:$0xff]
          %v1278 = vld [vmem:[%s649 + $0x4f8] sm:$0xff]
          %v1279 = vld [vmem:[%s649 + $0x500] sm:$0xff]
          %v1280 = vld [vmem:[%s649 + $0x508] sm:$0xff]
          %v1281 = vld [vmem:[%s649 + $0x510] sm:$0xff]
          %v1282 = vld [vmem:[%s649 + $0x518] sm:$0xff]
          %v1283 = vld [vmem:[%s649 + $0x520] sm:$0xff]
          %v1284 = vld [vmem:[%s649 + $0x528] sm:$0xff]
          %v1285 = vld [vmem:[%s649 + $0x530] sm:$0xff]
          %v1286 = vld [vmem:[%s649 + $0x538] sm:$0xff]
          %v1287 = vld [vmem:[%s649 + $0x540] sm:$0xff]
          %v1288 = vld [vmem:[%s649 + $0x548] sm:$0xff]
          %v1289 = vld [vmem:[%s649 + $0x550] sm:$0xff]
          %v1290 = vld [vmem:[%s649 + $0x558] sm:$0xff]
          %v1291 = vld [vmem:[%s649 + $0x560] sm:$0xff]
          %v1292 = vld [vmem:[%s649 + $0x568] sm:$0xff]
          %v1293 = vld [vmem:[%s649 + $0x570] sm:$0xff]
          %v1294 = vld [vmem:[%s649 + $0x578] sm:$0xff]
          %v1295 = vld [vmem:[%s649 + $0x580] sm:$0xff]
          %v1296 = vld [vmem:[%s649 + $0x588] sm:$0xff]
          %v1297 = vld [vmem:[%s649 + $0x590] sm:$0xff]
          %v1298 = vld [vmem:[%s649 + $0x598] sm:$0xff]
          %v1299 = vld [vmem:[%s649 + $0x5a0] sm:$0xff]
          %v1300 = vld [vmem:[%s649 + $0x5a8] sm:$0xff]
          %v1301 = vld [vmem:[%s649 + $0x5b0] sm:$0xff]
          %v1302 = vld [vmem:[%s649 + $0x5b8] sm:$0xff]
          %v1303 = vld [vmem:[%s649 + $0x5c0] sm:$0xff]
          %v1304 = vld [vmem:[%s649 + $0x5c8] sm:$0xff]
          %v1305 = vld [vmem:[%s649 + $0x5d0] sm:$0xff]
          %v1306 = vld [vmem:[%s649 + $0x5d8] sm:$0xff]
          %v1307 = vld [vmem:[%s649 + $0x5e0] sm:$0xff]
          %v1308 = vld [vmem:[%s649 + $0x5e8] sm:$0xff]
          %v1309 = vld [vmem:[%s649 + $0x5f0] sm:$0xff]
          %v1310 = vld [vmem:[%s649 + $0x5f8] sm:$0xff]
          %v1311 = vld [vmem:[%s649 + $0x600] sm:$0xff]
          %v1312 = vld [vmem:[%s649 + $0x608] sm:$0xff]
          %v1313 = vld [vmem:[%s649 + $0x610] sm:$0xff]
          %v1314 = vld [vmem:[%s649 + $0x618] sm:$0xff]
          %v1315 = vld [vmem:[%s649 + $0x620] sm:$0xff]
          %v1316 = vld [vmem:[%s649 + $0x628] sm:$0xff]
          %v1317 = vld [vmem:[%s649 + $0x630] sm:$0xff]
          %v1318 = vld [vmem:[%s649 + $0x638] sm:$0xff]
          %v1319 = vld [vmem:[%s649 + $0x640] sm:$0xff]
          %v1320 = vld [vmem:[%s649 + $0x648] sm:$0xff]
          %v1321 = vld [vmem:[%s649 + $0x650] sm:$0xff]
          %v1322 = vld [vmem:[%s649 + $0x658] sm:$0xff]
          %v1323 = vld [vmem:[%s649 + $0x660] sm:$0xff]
          %v1324 = vld [vmem:[%s649 + $0x668] sm:$0xff]
          %v1325 = vld [vmem:[%s649 + $0x670] sm:$0xff]
          %v1326 = vld [vmem:[%s649 + $0x678] sm:$0xff]
          %v1327 = vld [vmem:[%s649 + $0x680] sm:$0xff]
          %v1328 = vld [vmem:[%s649 + $0x688] sm:$0xff]
          %v1329 = vld [vmem:[%s649 + $0x690] sm:$0xff]
          %v1330 = vld [vmem:[%s649 + $0x698] sm:$0xff]
          %v1331 = vld [vmem:[%s649 + $0x6a0] sm:$0xff]
          %v1332 = vld [vmem:[%s649 + $0x6a8] sm:$0xff]
          %v1333 = vld [vmem:[%s649 + $0x6b0] sm:$0xff]
          %v1334 = vld [vmem:[%s649 + $0x6b8] sm:$0xff]
          %v1335 = vld [vmem:[%s649 + $0x6c0] sm:$0xff]
          %v1336 = vld [vmem:[%s649 + $0x6c8] sm:$0xff]
          %v1337 = vld [vmem:[%s649 + $0x6d0] sm:$0xff]
          %v1338 = vld [vmem:[%s649 + $0x6d8] sm:$0xff]
          %v1339 = vld [vmem:[%s649 + $0x6e0] sm:$0xff]
          %v1340 = vld [vmem:[%s649 + $0x6e8] sm:$0xff]
          %v1341 = vld [vmem:[%s649 + $0x6f0] sm:$0xff]
          %v1342 = vld [vmem:[%s649 + $0x6f8] sm:$0xff]
          %v1343 = vld [vmem:[%s649 + $0x700] sm:$0xff]
          %v1344 = vld [vmem:[%s649 + $0x708] sm:$0xff]
          %v1345 = vld [vmem:[%s649 + $0x710] sm:$0xff]
          %v1346 = vld [vmem:[%s649 + $0x718] sm:$0xff]
          %v1347 = vld [vmem:[%s649 + $0x720] sm:$0xff]
          %v1348 = vld [vmem:[%s649 + $0x728] sm:$0xff]
          %v1349 = vld [vmem:[%s649 + $0x730] sm:$0xff]
          %v1350 = vld [vmem:[%s649 + $0x738] sm:$0xff]
          %v1351 = vld [vmem:[%s649 + $0x740] sm:$0xff]
          %v1352 = vld [vmem:[%s649 + $0x748] sm:$0xff]
          %v1353 = vld [vmem:[%s649 + $0x750] sm:$0xff]
          %v1354 = vld [vmem:[%s649 + $0x758] sm:$0xff]
          %v1355 = vld [vmem:[%s649 + $0x760] sm:$0xff]
          %v1356 = vld [vmem:[%s649 + $0x768] sm:$0xff]
          %v1357 = vld [vmem:[%s649 + $0x770] sm:$0xff]
          %v1358 = vld [vmem:[%s649 + $0x778] sm:$0xff]
          %v1359 = vld [vmem:[%s649 + $0x780] sm:$0xff]
          %v1360 = vld [vmem:[%s649 + $0x788] sm:$0xff]
          %v1361 = vld [vmem:[%s649 + $0x790] sm:$0xff]
          %v1362 = vld [vmem:[%s649 + $0x798] sm:$0xff]
          %v1363 = vld [vmem:[%s649 + $0x7a0] sm:$0xff]
          %v1364 = vld [vmem:[%s649 + $0x7a8] sm:$0xff]
          %v1365 = vld [vmem:[%s649 + $0x7b0] sm:$0xff]
          %v1366 = vld [vmem:[%s649 + $0x7b8] sm:$0xff]
          %v1367 = vld [vmem:[%s649 + $0x7c0] sm:$0xff]
          %v1368 = vld [vmem:[%s649 + $0x7c8] sm:$0xff]
          %v1369 = vld [vmem:[%s649 + $0x7d0] sm:$0xff]
          %v1370 = vld [vmem:[%s649 + $0x7d8] sm:$0xff]
          %v1371 = vld [vmem:[%s649 + $0x7e0] sm:$0xff]
          %v1372 = vld [vmem:[%s649 + $0x7e8] sm:$0xff]
          %v1373 = vld [vmem:[%s649 + $0x7f0] sm:$0xff]
          %v1374 = vld [vmem:[%s649 + $0x7f8] sm:$0xff]
          %v1375 = vld [vmem:[%s649 + $0x800] sm:$0xff]
          %v1376 = vld [vmem:[%s649 + $0x808] sm:$0xff]
          %v1377 = vld [vmem:[%s649 + $0x810] sm:$0xff]
          %v1378 = vld [vmem:[%s649 + $0x818] sm:$0xff]
          %v1379 = vld [vmem:[%s649 + $0x820] sm:$0xff]
          %v1380 = vld [vmem:[%s649 + $0x828] sm:$0xff]
          %v1381 = vld [vmem:[%s649 + $0x830] sm:$0xff]
          %v1382 = vld [vmem:[%s649 + $0x838] sm:$0xff]
          %v1383 = vld [vmem:[%s649 + $0x840] sm:$0xff]
          %v1384 = vld [vmem:[%s649 + $0x848] sm:$0xff]
          %v1385 = vld [vmem:[%s649 + $0x850] sm:$0xff]
          %v1386 = vld [vmem:[%s649 + $0x858] sm:$0xff]
          %v1387 = vld [vmem:[%s649 + $0x860] sm:$0xff]
          %v1388 = vld [vmem:[%s649 + $0x868] sm:$0xff]
          %v1389 = vld [vmem:[%s649 + $0x870] sm:$0xff]
          %v1390 = vld [vmem:[%s649 + $0x878] sm:$0xff]
          %v1391 = vld [vmem:[%s649 + $0x880] sm:$0xff]
          %v1392 = vld [vmem:[%s649 + $0x888] sm:$0xff]
          %v1393 = vld [vmem:[%s649 + $0x890] sm:$0xff]
          %v1394 = vld [vmem:[%s649 + $0x898] sm:$0xff]
          %v1395 = vld [vmem:[%s649 + $0x8a0] sm:$0xff]
          %v1396 = vld [vmem:[%s649 + $0x8a8] sm:$0xff]
          %v1397 = vld [vmem:[%s649 + $0x8b0] sm:$0xff]
          %v1398 = vld [vmem:[%s649 + $0x8b8] sm:$0xff]
          %v1399 = vld [vmem:[%s649 + $0x8c0] sm:$0xff]
          %v1400 = vld [vmem:[%s649 + $0x8c8] sm:$0xff]
          %v1401 = vld [vmem:[%s649 + $0x8d0] sm:$0xff]
          %v1402 = vld [vmem:[%s649 + $0x8d8] sm:$0xff]
          %v1403 = vld [vmem:[%s649 + $0x8e0] sm:$0xff]
          %v1404 = vld [vmem:[%s649 + $0x8e8] sm:$0xff]
          %v1405 = vld [vmem:[%s649 + $0x8f0] sm:$0xff]
          %v1406 = vld [vmem:[%s649 + $0x8f8] sm:$0xff]
          %v1407 = vld [vmem:[%s649 + $0x900] sm:$0xff]
          %v1408 = vld [vmem:[%s649 + $0x908] sm:$0xff]
          %v1409 = vld [vmem:[%s649 + $0x910] sm:$0xff]
          %v1410 = vld [vmem:[%s649 + $0x918] sm:$0xff]
          %v1411 = vld [vmem:[%s649 + $0x920] sm:$0xff]
          %v1412 = vld [vmem:[%s649 + $0x928] sm:$0xff]
          %v1413 = vld [vmem:[%s649 + $0x930] sm:$0xff]
          %v1414 = vld [vmem:[%s649 + $0x938] sm:$0xff]
          %v1415 = vld [vmem:[%s649 + $0x940] sm:$0xff]
          %v1416 = vld [vmem:[%s649 + $0x948] sm:$0xff]
          %v1417 = vld [vmem:[%s649 + $0x950] sm:$0xff]
          %v1418 = vld [vmem:[%s649 + $0x958] sm:$0xff]
          %v1419 = vld [vmem:[%s649 + $0x960] sm:$0xff]
          %v1420 = vld [vmem:[%s649 + $0x968] sm:$0xff]
          %v1421 = vld [vmem:[%s649 + $0x970] sm:$0xff]
          %v1422 = vld [vmem:[%s649 + $0x978] sm:$0xff]
          %v1423 = vld [vmem:[%s649 + $0x980] sm:$0xff]
          %v1424 = vld [vmem:[%s649 + $0x988] sm:$0xff]
          %v1425 = vld [vmem:[%s649 + $0x990] sm:$0xff]
          %v1426 = vld [vmem:[%s649 + $0x998] sm:$0xff]
          %v1427 = vld [vmem:[%s649 + $0x9a0] sm:$0xff]
          %v1428 = vld [vmem:[%s649 + $0x9a8] sm:$0xff]
          %v1429 = vld [vmem:[%s649 + $0x9b0] sm:$0xff]
          %v1430 = vld [vmem:[%s649 + $0x9b8] sm:$0xff]
          %v1431 = vld [vmem:[%s649 + $0x9c0] sm:$0xff]
          %v1432 = vld [vmem:[%s649 + $0x9c8] sm:$0xff]
          %v1433 = vld [vmem:[%s649 + $0x9d0] sm:$0xff]
          %v1434 = vld [vmem:[%s649 + $0x9d8] sm:$0xff]
          %v1435 = vld [vmem:[%s649 + $0x9e0] sm:$0xff]
          %v1436 = vld [vmem:[%s649 + $0x9e8] sm:$0xff]
          %v1437 = vld [vmem:[%s649 + $0x9f0] sm:$0xff]
          %v1438 = vld [vmem:[%s649 + $0x9f8] sm:$0xff]
          %v1439 = vld [vmem:[%s649 + $0xa00] sm:$0xff]
          %v1440 = vld [vmem:[%s649 + $0xa08] sm:$0xff]
          %v1441 = vld [vmem:[%s649 + $0xa10] sm:$0xff]
          %v1442 = vld [vmem:[%s649 + $0xa18] sm:$0xff]
          %v1443 = vld [vmem:[%s649 + $0xa20] sm:$0xff]
          %v1444 = vld [vmem:[%s649 + $0xa28] sm:$0xff]
          %v1445 = vld [vmem:[%s649 + $0xa30] sm:$0xff]
          %v1446 = vld [vmem:[%s649 + $0xa38] sm:$0xff]
          %v1447 = vld [vmem:[%s649 + $0xa40] sm:$0xff]
          %v1448 = vld [vmem:[%s649 + $0xa48] sm:$0xff]
          %v1449 = vld [vmem:[%s649 + $0xa50] sm:$0xff]
          %v1450 = vld [vmem:[%s649 + $0xa58] sm:$0xff]
          %v1451 = vld [vmem:[%s649 + $0xa60] sm:$0xff]
          %v1452 = vld [vmem:[%s649 + $0xa68] sm:$0xff]
          %v1453 = vld [vmem:[%s649 + $0xa70] sm:$0xff]
          %v1454 = vld [vmem:[%s649 + $0xa78] sm:$0xff]
          %v1455 = vld [vmem:[%s649 + $0xa80] sm:$0xff]
          %v1456 = vld [vmem:[%s649 + $0xa88] sm:$0xff]
          %v1457 = vld [vmem:[%s649 + $0xa90] sm:$0xff]
          %v1458 = vld [vmem:[%s649 + $0xa98] sm:$0xff]
          %v1459 = vld [vmem:[%s649 + $0xaa0] sm:$0xff]
          %v1460 = vld [vmem:[%s649 + $0xaa8] sm:$0xff]
          %v1461 = vld [vmem:[%s649 + $0xab0] sm:$0xff]
          %v1462 = vld [vmem:[%s649 + $0xab8] sm:$0xff]
          %v1463 = vld [vmem:[%s649 + $0xac0] sm:$0xff]
          %v1464 = vld [vmem:[%s649 + $0xac8] sm:$0xff]
          %v1465 = vld [vmem:[%s649 + $0xad0] sm:$0xff]
          %v1466 = vld [vmem:[%s649 + $0xad8] sm:$0xff]
          %v1467 = vld [vmem:[%s649 + $0xae0] sm:$0xff]
          %v1468 = vld [vmem:[%s649 + $0xae8] sm:$0xff]
          %v1469 = vld [vmem:[%s649 + $0xaf0] sm:$0xff]
          %v1470 = vld [vmem:[%s649 + $0xaf8] sm:$0xff]
          %v1471 = vld [vmem:[%s649 + $0xb00] sm:$0xff]
          %v1472 = vld [vmem:[%s649 + $0xb08] sm:$0xff]
          %v1473 = vld [vmem:[%s649 + $0xb10] sm:$0xff]
          %v1474 = vld [vmem:[%s649 + $0xb18] sm:$0xff]
          %v1475 = vld [vmem:[%s649 + $0xb20] sm:$0xff]
          %v1476 = vld [vmem:[%s649 + $0xb28] sm:$0xff]
          %v1477 = vld [vmem:[%s649 + $0xb30] sm:$0xff]
          %v1478 = vld [vmem:[%s649 + $0xb38] sm:$0xff]
          %v1479 = vld [vmem:[%s649 + $0xb40] sm:$0xff]
          %v1480 = vld [vmem:[%s649 + $0xb48] sm:$0xff]
          %v1481 = vld [vmem:[%s649 + $0xb50] sm:$0xff]
          %v1482 = vld [vmem:[%s649 + $0xb58] sm:$0xff]
          %v1483 = vld [vmem:[%s649 + $0xb60] sm:$0xff]
          %v1484 = vld [vmem:[%s649 + $0xb68] sm:$0xff]
          %v1485 = vld [vmem:[%s649 + $0xb70] sm:$0xff]
          %v1486 = vld [vmem:[%s649 + $0xb78] sm:$0xff]
          %v1487 = vld [vmem:[%s649 + $0xb80] sm:$0xff]
          %v1488 = vld [vmem:[%s649 + $0xb88] sm:$0xff]
          %v1489 = vld [vmem:[%s649 + $0xb90] sm:$0xff]
          %v1490 = vld [vmem:[%s649 + $0xb98] sm:$0xff]
          %v1491 = vld [vmem:[%s649 + $0xba0] sm:$0xff]
          %v1492 = vld [vmem:[%s649 + $0xba8] sm:$0xff]
          %v1493 = vld [vmem:[%s649 + $0xbb0] sm:$0xff]
          %v1494 = vld [vmem:[%s649 + $0xbb8] sm:$0xff]
          %v1495 = vld [vmem:[%s649 + $0xbc0] sm:$0xff]
          %v1496 = vld [vmem:[%s649 + $0xbc8] sm:$0xff]
          %v1497 = vld [vmem:[%s649 + $0xbd0] sm:$0xff]
          %v1498 = vld [vmem:[%s649 + $0xbd8] sm:$0xff]
          %v1499 = vld [vmem:[%s649 + $0xbe0] sm:$0xff]
          %v1500 = vld [vmem:[%s649 + $0xbe8] sm:$0xff]
          %v1501 = vld [vmem:[%s649 + $0xbf0] sm:$0xff]
          %v1502 = vld [vmem:[%s649 + $0xbf8] sm:$0xff]
          %v1503 = vld [vmem:[%s649 + $0xc00] sm:$0xff]
          %v1504 = vld [vmem:[%s649 + $0xc08] sm:$0xff]
          %v1505 = vld [vmem:[%s649 + $0xc10] sm:$0xff]
          %v1506 = vld [vmem:[%s649 + $0xc18] sm:$0xff]
          %v1507 = vld [vmem:[%s649 + $0xc20] sm:$0xff]
          %v1508 = vld [vmem:[%s649 + $0xc28] sm:$0xff]
          %v1509 = vld [vmem:[%s649 + $0xc30] sm:$0xff]
          %v1510 = vld [vmem:[%s649 + $0xc38] sm:$0xff]
          %v1511 = vld [vmem:[%s649 + $0xc40] sm:$0xff]
          %v1512 = vld [vmem:[%s649 + $0xc48] sm:$0xff]
          %v1513 = vld [vmem:[%s649 + $0xc50] sm:$0xff]
          %v1514 = vld [vmem:[%s649 + $0xc58] sm:$0xff]
          %v1515 = vld [vmem:[%s649 + $0xc60] sm:$0xff]
          %v1516 = vld [vmem:[%s649 + $0xc68] sm:$0xff]
          %v1517 = vld [vmem:[%s649 + $0xc70] sm:$0xff]
          %v1518 = vld [vmem:[%s649 + $0xc78] sm:$0xff]
          %v1519 = vld [vmem:[%s649 + $0xc80] sm:$0xff]
          %v1520 = vld [vmem:[%s649 + $0xc88] sm:$0xff]
          %v1521 = vld [vmem:[%s649 + $0xc90] sm:$0xff]
          %v1522 = vld [vmem:[%s649 + $0xc98] sm:$0xff]
          %v1523 = vld [vmem:[%s649 + $0xca0] sm:$0xff]
          %v1524 = vld [vmem:[%s649 + $0xca8] sm:$0xff]
          %v1525 = vld [vmem:[%s649 + $0xcb0] sm:$0xff]
          %v1526 = vld [vmem:[%s649 + $0xcb8] sm:$0xff]
          %v1527 = vld [vmem:[%s649 + $0xcc0] sm:$0xff]
          %v1528 = vld [vmem:[%s649 + $0xcc8] sm:$0xff]
          %v1529 = vld [vmem:[%s649 + $0xcd0] sm:$0xff]
          %v1530 = vld [vmem:[%s649 + $0xcd8] sm:$0xff]
          %v1531 = vld [vmem:[%s649 + $0xce0] sm:$0xff]
          %v1532 = vld [vmem:[%s649 + $0xce8] sm:$0xff]
          %v1533 = vld [vmem:[%s649 + $0xcf0] sm:$0xff]
          %v1534 = vld [vmem:[%s649 + $0xcf8] sm:$0xff]
          %v1535 = vld [vmem:[%s649 + $0xd00] sm:$0xff]
          %v1536 = vld [vmem:[%s649 + $0xd08] sm:$0xff]
          %v1537 = vld [vmem:[%s649 + $0xd10] sm:$0xff]
          %v1538 = vld [vmem:[%s649 + $0xd18] sm:$0xff]
          %v1539 = vld [vmem:[%s649 + $0xd20] sm:$0xff]
          %v1540 = vld [vmem:[%s649 + $0xd28] sm:$0xff]
          %v1541 = vld [vmem:[%s649 + $0xd30] sm:$0xff]
          %v1542 = vld [vmem:[%s649 + $0xd38] sm:$0xff]
          %v1543 = vld [vmem:[%s649 + $0xd40] sm:$0xff]
          %v1544 = vld [vmem:[%s649 + $0xd48] sm:$0xff]
          %v1545 = vld [vmem:[%s649 + $0xd50] sm:$0xff]
          %v1546 = vld [vmem:[%s649 + $0xd58] sm:$0xff]
          %v1547 = vld [vmem:[%s649 + $0xd60] sm:$0xff]
          %v1548 = vld [vmem:[%s649 + $0xd68] sm:$0xff]
          %v1549 = vld [vmem:[%s649 + $0xd70] sm:$0xff]
          %v1550 = vld [vmem:[%s649 + $0xd78] sm:$0xff]
          %v1551 = vld [vmem:[%s649 + $0xd80] sm:$0xff]
          %v1552 = vld [vmem:[%s649 + $0xd88] sm:$0xff]
          %v1553 = vld [vmem:[%s649 + $0xd90] sm:$0xff]
          %v1554 = vld [vmem:[%s649 + $0xd98] sm:$0xff]
          %v1555 = vld [vmem:[%s649 + $0xda0] sm:$0xff]
          %v1556 = vld [vmem:[%s649 + $0xda8] sm:$0xff]
          %v1557 = vld [vmem:[%s649 + $0xdb0] sm:$0xff]
          %v1558 = vld [vmem:[%s649 + $0xdb8] sm:$0xff]
          %v1559 = vld [vmem:[%s649 + $0xdc0] sm:$0xff]
          %v1560 = vld [vmem:[%s649 + $0xdc8] sm:$0xff]
          %v1561 = vld [vmem:[%s649 + $0xdd0] sm:$0xff]
          %v1562 = vld [vmem:[%s649 + $0xdd8] sm:$0xff]
          %v1563 = vld [vmem:[%s649 + $0xde0] sm:$0xff]
          %v1564 = vld [vmem:[%s649 + $0xde8] sm:$0xff]
          %v1565 = vld [vmem:[%s649 + $0xdf0] sm:$0xff]
          %v1566 = vld [vmem:[%s649 + $0xdf8] sm:$0xff]
          %v1567 = vld [vmem:[%s649 + $0xe00] sm:$0xff]
          %v1568 = vld [vmem:[%s649 + $0xe08] sm:$0xff]
          %v1569 = vld [vmem:[%s649 + $0xe10] sm:$0xff]
          %v1570 = vld [vmem:[%s649 + $0xe18] sm:$0xff]
          %v1571 = vld [vmem:[%s649 + $0xe20] sm:$0xff]
          %v1572 = vld [vmem:[%s649 + $0xe28] sm:$0xff]
          %v1573 = vld [vmem:[%s649 + $0xe30] sm:$0xff]
          %v1574 = vld [vmem:[%s649 + $0xe38] sm:$0xff]
          %v1575 = vld [vmem:[%s649 + $0xe40] sm:$0xff]
          %v1576 = vld [vmem:[%s649 + $0xe48] sm:$0xff]
          %v1577 = vld [vmem:[%s649 + $0xe50] sm:$0xff]
          %v1578 = vld [vmem:[%s649 + $0xe58] sm:$0xff]
          %v1579 = vld [vmem:[%s649 + $0xe60] sm:$0xff]
          %v1580 = vld [vmem:[%s649 + $0xe68] sm:$0xff]
          %v1581 = vld [vmem:[%s649 + $0xe70] sm:$0xff]
          %v1582 = vld [vmem:[%s649 + $0xe78] sm:$0xff]
          %v1583 = vld [vmem:[%s649 + $0xe80] sm:$0xff]
          %v1584 = vld [vmem:[%s649 + $0xe88] sm:$0xff]
          %v1585 = vld [vmem:[%s649 + $0xe90] sm:$0xff]
          %v1586 = vld [vmem:[%s649 + $0xe98] sm:$0xff]
          %v1587 = vld [vmem:[%s649 + $0xea0] sm:$0xff]
          %v1588 = vld [vmem:[%s649 + $0xea8] sm:$0xff]
          %v1589 = vld [vmem:[%s649 + $0xeb0] sm:$0xff]
          %v1590 = vld [vmem:[%s649 + $0xeb8] sm:$0xff]
          %v1591 = vld [vmem:[%s649 + $0xec0] sm:$0xff]
          %v1592 = vld [vmem:[%s649 + $0xec8] sm:$0xff]
          %v1593 = vld [vmem:[%s649 + $0xed0] sm:$0xff]
          %v1594 = vld [vmem:[%s649 + $0xed8] sm:$0xff]
          %v1595 = vld [vmem:[%s649 + $0xee0] sm:$0xff]
          %v1596 = vld [vmem:[%s649 + $0xee8] sm:$0xff]
          %v1597 = vld [vmem:[%s649 + $0xef0] sm:$0xff]
          %v1598 = vld [vmem:[%s649 + $0xef8] sm:$0xff]
          %v1599 = vld [vmem:[%s649 + $0xf00] sm:$0xff]
          %v1600 = vld [vmem:[%s649 + $0xf08] sm:$0xff]
          %v1601 = vld [vmem:[%s649 + $0xf10] sm:$0xff]
          %v1602 = vld [vmem:[%s649 + $0xf18] sm:$0xff]
          %v1603 = vld [vmem:[%s649 + $0xf20] sm:$0xff]
          %v1604 = vld [vmem:[%s649 + $0xf28] sm:$0xff]
          %v1605 = vld [vmem:[%s649 + $0xf30] sm:$0xff]
          %v1606 = vld [vmem:[%s649 + $0xf38] sm:$0xff]
          %v1607 = vld [vmem:[%s649 + $0xf40] sm:$0xff]
          %v1608 = vld [vmem:[%s649 + $0xf48] sm:$0xff]
          %v1609 = vld [vmem:[%s649 + $0xf50] sm:$0xff]
          %v1610 = vld [vmem:[%s649 + $0xf58] sm:$0xff]
          %v1611 = vld [vmem:[%s649 + $0xf60] sm:$0xff]
          %v1612 = vld [vmem:[%s649 + $0xf68] sm:$0xff]
          %v1613 = vld [vmem:[%s649 + $0xf70] sm:$0xff]
          %v1614 = vld [vmem:[%s649 + $0xf78] sm:$0xff]
          %v1615 = vld [vmem:[%s649 + $0xf80] sm:$0xff]
          %v1616 = vld [vmem:[%s649 + $0xf88] sm:$0xff]
          %v1617 = vld [vmem:[%s649 + $0xf90] sm:$0xff]
          %v1618 = vld [vmem:[%s649 + $0xf98] sm:$0xff]
          %v1619 = vld [vmem:[%s649 + $0xfa0] sm:$0xff]
          %v1620 = vld [vmem:[%s649 + $0xfa8] sm:$0xff]
          %v1621 = vld [vmem:[%s649 + $0xfb0] sm:$0xff]
          %v1622 = vld [vmem:[%s649 + $0xfb8] sm:$0xff]
          %v1623 = vld [vmem:[%s649 + $0xfc0] sm:$0xff]
          %v1624 = vld [vmem:[%s649 + $0xfc8] sm:$0xff]
          %v1625 = vld [vmem:[%s649 + $0xfd0] sm:$0xff]
          %v1626 = vld [vmem:[%s649 + $0xfd8] sm:$0xff]
          %v1627 = vld [vmem:[%s649 + $0xfe0] sm:$0xff]
          %v1628 = vld [vmem:[%s649 + $0xfe8] sm:$0xff]
          %v1629 = vld [vmem:[%s649 + $0xff0] sm:$0xff]
          %v1630 = vld [vmem:[%s649 + $0xff8] sm:$0xff]
          %v1633 = vcombine.high %v1116, %v1116
          %v1635 = vunpack.c.l.s4 1966171168
          %v1636 = vunpack.c.0.s8 %v1635
          %v1637 = vlaneseq
          %v1638 = vshrl.u32 %v1637, 7
          %v1639 = vsub.s32 %v1636, %v1638
          %v1640 = vrot.slane %v1116, %v1639
          %v1642 = vunpack.c.l.s4 1966171168
          %v1643 = vunpack.c.0.s8 %v1642
          %v1644 = vlaneseq
          %v1645 = vshrl.u32 %v1644, 7
          %v1646 = vsub.s32 %v1643, %v1645
          %v1647 = vrot.slane %v1633, %v1646
          %v1648 = vcombine.high %v1640, %v1640
          %v1649 = vcombine.high %v1647, %v1647
          %v1651 = vunpack.c.l.s4 1966171168
          %v1652 = vunpack.c.0.s8 %v1651
          %v1653 = vlaneseq
          %v1654 = vshrl.u32 %v1653, 7
          %v1655 = vsub.s32 %v1652, %v1654
          %v1656 = vrot.slane %v1640, %v1655
          %v1658 = vunpack.c.l.s4 1966171168
          %v1659 = vunpack.c.0.s8 %v1658
          %v1660 = vlaneseq
          %v1661 = vshrl.u32 %v1660, 7
          %v1662 = vsub.s32 %v1659, %v1661
          %v1663 = vrot.slane %v1647, %v1662
          %v1665 = vunpack.c.l.s4 1966171168
          %v1666 = vunpack.c.0.s8 %v1665
          %v1667 = vlaneseq
          %v1668 = vshrl.u32 %v1667, 7
          %v1669 = vsub.s32 %v1666, %v1668
          %v1670 = vrot.slane %v1648, %v1669
          %v1672 = vunpack.c.l.s4 1966171168
          %v1673 = vunpack.c.0.s8 %v1672
          %v1674 = vlaneseq
          %v1675 = vshrl.u32 %v1674, 7
          %v1676 = vsub.s32 %v1673, %v1675
          %v1677 = vrot.slane %v1649, %v1676
          %v1678 = vcombine.high %v1656, %v1656
          %v1679 = vcombine.high %v1663, %v1663
          %v1680 = vcombine.high %v1670, %v1670
          %v1681 = vcombine.high %v1677, %v1677
          %v1682 = vcombine.high %v1117, %v1117
          %v1684 = vunpack.c.l.s4 1966171168
          %v1685 = vunpack.c.0.s8 %v1684
          %v1686 = vlaneseq
          %v1687 = vshrl.u32 %v1686, 7
          %v1688 = vsub.s32 %v1685, %v1687
          %v1689 = vrot.slane %v1117, %v1688
          %v1691 = vunpack.c.l.s4 1966171168
          %v1692 = vunpack.c.0.s8 %v1691
          %v1693 = vlaneseq
          %v1694 = vshrl.u32 %v1693, 7
          %v1695 = vsub.s32 %v1692, %v1694
          %v1696 = vrot.slane %v1682, %v1695
          %v1697 = vcombine.high %v1689, %v1689
          %v1698 = vcombine.high %v1696, %v1696
          %v1700 = vunpack.c.l.s4 1966171168
          %v1701 = vunpack.c.0.s8 %v1700
          %v1702 = vlaneseq
          %v1703 = vshrl.u32 %v1702, 7
          %v1704 = vsub.s32 %v1701, %v1703
          %v1705 = vrot.slane %v1689, %v1704
          %v1707 = vunpack.c.l.s4 1966171168
          %v1708 = vunpack.c.0.s8 %v1707
          %v1709 = vlaneseq
          %v1710 = vshrl.u32 %v1709, 7
          %v1711 = vsub.s32 %v1708, %v1710
          %v1712 = vrot.slane %v1696, %v1711
          %v1714 = vunpack.c.l.s4 1966171168
          %v1715 = vunpack.c.0.s8 %v1714
          %v1716 = vlaneseq
          %v1717 = vshrl.u32 %v1716, 7
          %v1718 = vsub.s32 %v1715, %v1717
          %v1719 = vrot.slane %v1697, %v1718
          %v1721 = vunpack.c.l.s4 1966171168
          %v1722 = vunpack.c.0.s8 %v1721
          %v1723 = vlaneseq
          %v1724 = vshrl.u32 %v1723, 7
          %v1725 = vsub.s32 %v1722, %v1724
          %v1726 = vrot.slane %v1698, %v1725
          %v1727 = vcombine.high %v1705, %v1705
          %v1728 = vcombine.high %v1712, %v1712
          %v1729 = vcombine.high %v1719, %v1719
          %v1730 = vcombine.high %v1726, %v1726
          %v2259 = vunpack.c.l.b16 %v1119
          %v2260 = vunpack.c.h.b16 %v1119
          %v2261 = vunpack.c.l.b16 %v1120
          %v2262 = vunpack.c.h.b16 %v1120
          %v2263 = vunpack.c.l.b16 %v1121
          %v2264 = vunpack.c.h.b16 %v1121
          %v2265 = vunpack.c.l.b16 %v1122
          %v2266 = vunpack.c.h.b16 %v1122
          %v2267 = vunpack.c.l.b16 %v1123
          %v2268 = vunpack.c.h.b16 %v1123
          %v2269 = vunpack.c.l.b16 %v1124
          %v2270 = vunpack.c.h.b16 %v1124
          %v2271 = vunpack.c.l.b16 %v1125
          %v2272 = vunpack.c.h.b16 %v1125
          %v2273 = vunpack.c.l.b16 %v1126
          %v2274 = vunpack.c.h.b16 %v1126
          %v2275 = vunpack.c.l.b16 %v1127
          %v2276 = vunpack.c.h.b16 %v1127
          %v2277 = vunpack.c.l.b16 %v1128
          %v2278 = vunpack.c.h.b16 %v1128
          %v2279 = vunpack.c.l.b16 %v1129
          %v2280 = vunpack.c.h.b16 %v1129
          %v2281 = vunpack.c.l.b16 %v1130
          %v2282 = vunpack.c.h.b16 %v1130
          %v2283 = vunpack.c.l.b16 %v1131
          %v2284 = vunpack.c.h.b16 %v1131
          %v2285 = vunpack.c.l.b16 %v1132
          %v2286 = vunpack.c.h.b16 %v1132
          %v2287 = vunpack.c.l.b16 %v1133
          %v2288 = vunpack.c.h.b16 %v1133
          %v2289 = vunpack.c.l.b16 %v1134
          %v2290 = vunpack.c.h.b16 %v1134
          %v2291 = vunpack.c.l.b16 %v1135
          %v2292 = vunpack.c.h.b16 %v1135
          %v2293 = vunpack.c.l.b16 %v1136
          %v2294 = vunpack.c.h.b16 %v1136
          %v2295 = vunpack.c.l.b16 %v1137
          %v2296 = vunpack.c.h.b16 %v1137
          %v2297 = vunpack.c.l.b16 %v1138
          %v2298 = vunpack.c.h.b16 %v1138
          %v2299 = vunpack.c.l.b16 %v1139
          %v2300 = vunpack.c.h.b16 %v1139
          %v2301 = vunpack.c.l.b16 %v1140
          %v2302 = vunpack.c.h.b16 %v1140
          %v2303 = vunpack.c.l.b16 %v1141
          %v2304 = vunpack.c.h.b16 %v1141
          %v2305 = vunpack.c.l.b16 %v1142
          %v2306 = vunpack.c.h.b16 %v1142
          %v2307 = vunpack.c.l.b16 %v1143
          %v2308 = vunpack.c.h.b16 %v1143
          %v2309 = vunpack.c.l.b16 %v1144
          %v2310 = vunpack.c.h.b16 %v1144
          %v2311 = vunpack.c.l.b16 %v1145
          %v2312 = vunpack.c.h.b16 %v1145
          %v2313 = vunpack.c.l.b16 %v1146
          %v2314 = vunpack.c.h.b16 %v1146
          %v2315 = vunpack.c.l.b16 %v1147
          %v2316 = vunpack.c.h.b16 %v1147
          %v2317 = vunpack.c.l.b16 %v1148
          %v2318 = vunpack.c.h.b16 %v1148
          %v2319 = vunpack.c.l.b16 %v1149
          %v2320 = vunpack.c.h.b16 %v1149
          %v2321 = vunpack.c.l.b16 %v1150
          %v2322 = vunpack.c.h.b16 %v1150
          %v2323 = vunpack.c.l.b16 %v1151
          %v2324 = vunpack.c.h.b16 %v1151
          %v2325 = vunpack.c.l.b16 %v1152
          %v2326 = vunpack.c.h.b16 %v1152
          %v2327 = vunpack.c.l.b16 %v1153
          %v2328 = vunpack.c.h.b16 %v1153
          %v2329 = vunpack.c.l.b16 %v1154
          %v2330 = vunpack.c.h.b16 %v1154
          %v2331 = vunpack.c.l.b16 %v1155
          %v2332 = vunpack.c.h.b16 %v1155
          %v2333 = vunpack.c.l.b16 %v1156
          %v2334 = vunpack.c.h.b16 %v1156
          %v2335 = vunpack.c.l.b16 %v1157
          %v2336 = vunpack.c.h.b16 %v1157
          %v2337 = vunpack.c.l.b16 %v1158
          %v2338 = vunpack.c.h.b16 %v1158
          %v2339 = vunpack.c.l.b16 %v1159
          %v2340 = vunpack.c.h.b16 %v1159
          %v2341 = vunpack.c.l.b16 %v1160
          %v2342 = vunpack.c.h.b16 %v1160
          %v2343 = vunpack.c.l.b16 %v1161
          %v2344 = vunpack.c.h.b16 %v1161
          %v2345 = vunpack.c.l.b16 %v1162
          %v2346 = vunpack.c.h.b16 %v1162
          %v2347 = vunpack.c.l.b16 %v1163
          %v2348 = vunpack.c.h.b16 %v1163
          %v2349 = vunpack.c.l.b16 %v1164
          %v2350 = vunpack.c.h.b16 %v1164
          %v2351 = vunpack.c.l.b16 %v1165
          %v2352 = vunpack.c.h.b16 %v1165
          %v2353 = vunpack.c.l.b16 %v1166
          %v2354 = vunpack.c.h.b16 %v1166
          %v2355 = vunpack.c.l.b16 %v1167
          %v2356 = vunpack.c.h.b16 %v1167
          %v2357 = vunpack.c.l.b16 %v1168
          %v2358 = vunpack.c.h.b16 %v1168
          %v2359 = vunpack.c.l.b16 %v1169
          %v2360 = vunpack.c.h.b16 %v1169
          %v2361 = vunpack.c.l.b16 %v1170
          %v2362 = vunpack.c.h.b16 %v1170
          %v2363 = vunpack.c.l.b16 %v1171
          %v2364 = vunpack.c.h.b16 %v1171
          %v2365 = vunpack.c.l.b16 %v1172
          %v2366 = vunpack.c.h.b16 %v1172
          %v2367 = vunpack.c.l.b16 %v1173
          %v2368 = vunpack.c.h.b16 %v1173
          %v2369 = vunpack.c.l.b16 %v1174
          %v2370 = vunpack.c.h.b16 %v1174
          %v2371 = vunpack.c.l.b16 %v1175
          %v2372 = vunpack.c.h.b16 %v1175
          %v2373 = vunpack.c.l.b16 %v1176
          %v2374 = vunpack.c.h.b16 %v1176
          %v2375 = vunpack.c.l.b16 %v1177
          %v2376 = vunpack.c.h.b16 %v1177
          %v2377 = vunpack.c.l.b16 %v1178
          %v2378 = vunpack.c.h.b16 %v1178
          %v2379 = vunpack.c.l.b16 %v1179
          %v2380 = vunpack.c.h.b16 %v1179
          %v2381 = vunpack.c.l.b16 %v1180
          %v2382 = vunpack.c.h.b16 %v1180
          %v2383 = vunpack.c.l.b16 %v1181
          %v2384 = vunpack.c.h.b16 %v1181
          %v2385 = vunpack.c.l.b16 %v1182
          %v2386 = vunpack.c.h.b16 %v1182
          %v2387 = vunpack.c.l.b16 %v1183
          %v2388 = vunpack.c.h.b16 %v1183
          %v2389 = vunpack.c.l.b16 %v1184
          %v2390 = vunpack.c.h.b16 %v1184
          %v2391 = vunpack.c.l.b16 %v1185
          %v2392 = vunpack.c.h.b16 %v1185
          %v2393 = vunpack.c.l.b16 %v1186
          %v2394 = vunpack.c.h.b16 %v1186
          %v2395 = vunpack.c.l.b16 %v1187
          %v2396 = vunpack.c.h.b16 %v1187
          %v2397 = vunpack.c.l.b16 %v1188
          %v2398 = vunpack.c.h.b16 %v1188
          %v2399 = vunpack.c.l.b16 %v1189
          %v2400 = vunpack.c.h.b16 %v1189
          %v2401 = vunpack.c.l.b16 %v1190
          %v2402 = vunpack.c.h.b16 %v1190
          %v2403 = vunpack.c.l.b16 %v1191
          %v2404 = vunpack.c.h.b16 %v1191
          %v2405 = vunpack.c.l.b16 %v1192
          %v2406 = vunpack.c.h.b16 %v1192
          %v2407 = vunpack.c.l.b16 %v1193
          %v2408 = vunpack.c.h.b16 %v1193
          %v2409 = vunpack.c.l.b16 %v1194
          %v2410 = vunpack.c.h.b16 %v1194
          %v2411 = vunpack.c.l.b16 %v1195
          %v2412 = vunpack.c.h.b16 %v1195
          %v2413 = vunpack.c.l.b16 %v1196
          %v2414 = vunpack.c.h.b16 %v1196
          %v2415 = vunpack.c.l.b16 %v1197
          %v2416 = vunpack.c.h.b16 %v1197
          %v2417 = vunpack.c.l.b16 %v1198
          %v2418 = vunpack.c.h.b16 %v1198
          %v2419 = vunpack.c.l.b16 %v1199
          %v2420 = vunpack.c.h.b16 %v1199
          %v2421 = vunpack.c.l.b16 %v1200
          %v2422 = vunpack.c.h.b16 %v1200
          %v2423 = vunpack.c.l.b16 %v1201
          %v2424 = vunpack.c.h.b16 %v1201
          %v2425 = vunpack.c.l.b16 %v1202
          %v2426 = vunpack.c.h.b16 %v1202
          %v2427 = vunpack.c.l.b16 %v1203
          %v2428 = vunpack.c.h.b16 %v1203
          %v2429 = vunpack.c.l.b16 %v1204
          %v2430 = vunpack.c.h.b16 %v1204
          %v2431 = vunpack.c.l.b16 %v1205
          %v2432 = vunpack.c.h.b16 %v1205
          %v2433 = vunpack.c.l.b16 %v1206
          %v2434 = vunpack.c.h.b16 %v1206
          %v2435 = vunpack.c.l.b16 %v1207
          %v2436 = vunpack.c.h.b16 %v1207
          %v2437 = vunpack.c.l.b16 %v1208
          %v2438 = vunpack.c.h.b16 %v1208
          %v2439 = vunpack.c.l.b16 %v1209
          %v2440 = vunpack.c.h.b16 %v1209
          %v2441 = vunpack.c.l.b16 %v1210
          %v2442 = vunpack.c.h.b16 %v1210
          %v2443 = vunpack.c.l.b16 %v1211
          %v2444 = vunpack.c.h.b16 %v1211
          %v2445 = vunpack.c.l.b16 %v1212
          %v2446 = vunpack.c.h.b16 %v1212
          %v2447 = vunpack.c.l.b16 %v1213
          %v2448 = vunpack.c.h.b16 %v1213
          %v2449 = vunpack.c.l.b16 %v1214
          %v2450 = vunpack.c.h.b16 %v1214
          %v2451 = vunpack.c.l.b16 %v1215
          %v2452 = vunpack.c.h.b16 %v1215
          %v2453 = vunpack.c.l.b16 %v1216
          %v2454 = vunpack.c.h.b16 %v1216
          %v2455 = vunpack.c.l.b16 %v1217
          %v2456 = vunpack.c.h.b16 %v1217
          %v2457 = vunpack.c.l.b16 %v1218
          %v2458 = vunpack.c.h.b16 %v1218
          %v2459 = vunpack.c.l.b16 %v1219
          %v2460 = vunpack.c.h.b16 %v1219
          %v2461 = vunpack.c.l.b16 %v1220
          %v2462 = vunpack.c.h.b16 %v1220
          %v2463 = vunpack.c.l.b16 %v1221
          %v2464 = vunpack.c.h.b16 %v1221
          %v2465 = vunpack.c.l.b16 %v1222
          %v2466 = vunpack.c.h.b16 %v1222
          %v2467 = vunpack.c.l.b16 %v1223
          %v2468 = vunpack.c.h.b16 %v1223
          %v2469 = vunpack.c.l.b16 %v1224
          %v2470 = vunpack.c.h.b16 %v1224
          %v2471 = vunpack.c.l.b16 %v1225
          %v2472 = vunpack.c.h.b16 %v1225
          %v2473 = vunpack.c.l.b16 %v1226
          %v2474 = vunpack.c.h.b16 %v1226
          %v2475 = vunpack.c.l.b16 %v1227
          %v2476 = vunpack.c.h.b16 %v1227
          %v2477 = vunpack.c.l.b16 %v1228
          %v2478 = vunpack.c.h.b16 %v1228
          %v2479 = vunpack.c.l.b16 %v1229
          %v2480 = vunpack.c.h.b16 %v1229
          %v2481 = vunpack.c.l.b16 %v1230
          %v2482 = vunpack.c.h.b16 %v1230
          %v2483 = vunpack.c.l.b16 %v1231
          %v2484 = vunpack.c.h.b16 %v1231
          %v2485 = vunpack.c.l.b16 %v1232
          %v2486 = vunpack.c.h.b16 %v1232
          %v2487 = vunpack.c.l.b16 %v1233
          %v2488 = vunpack.c.h.b16 %v1233
          %v2489 = vunpack.c.l.b16 %v1234
          %v2490 = vunpack.c.h.b16 %v1234
          %v2491 = vunpack.c.l.b16 %v1235
          %v2492 = vunpack.c.h.b16 %v1235
          %v2493 = vunpack.c.l.b16 %v1236
          %v2494 = vunpack.c.h.b16 %v1236
          %v2495 = vunpack.c.l.b16 %v1237
          %v2496 = vunpack.c.h.b16 %v1237
          %v2497 = vunpack.c.l.b16 %v1238
          %v2498 = vunpack.c.h.b16 %v1238
          %v2499 = vunpack.c.l.b16 %v1239
          %v2500 = vunpack.c.h.b16 %v1239
          %v2501 = vunpack.c.l.b16 %v1240
          %v2502 = vunpack.c.h.b16 %v1240
          %v2503 = vunpack.c.l.b16 %v1241
          %v2504 = vunpack.c.h.b16 %v1241
          %v2505 = vunpack.c.l.b16 %v1242
          %v2506 = vunpack.c.h.b16 %v1242
          %v2507 = vunpack.c.l.b16 %v1243
          %v2508 = vunpack.c.h.b16 %v1243
          %v2509 = vunpack.c.l.b16 %v1244
          %v2510 = vunpack.c.h.b16 %v1244
          %v2511 = vunpack.c.l.b16 %v1245
          %v2512 = vunpack.c.h.b16 %v1245
          %v2513 = vunpack.c.l.b16 %v1246
          %v2514 = vunpack.c.h.b16 %v1246
          %v2515 = vunpack.c.l.b16 %v1247
          %v2516 = vunpack.c.h.b16 %v1247
          %v2517 = vunpack.c.l.b16 %v1248
          %v2518 = vunpack.c.h.b16 %v1248
          %v2519 = vunpack.c.l.b16 %v1249
          %v2520 = vunpack.c.h.b16 %v1249
          %v2521 = vunpack.c.l.b16 %v1250
          %v2522 = vunpack.c.h.b16 %v1250
          %v2523 = vunpack.c.l.b16 %v1251
          %v2524 = vunpack.c.h.b16 %v1251
          %v2525 = vunpack.c.l.b16 %v1252
          %v2526 = vunpack.c.h.b16 %v1252
          %v2527 = vunpack.c.l.b16 %v1253
          %v2528 = vunpack.c.h.b16 %v1253
          %v2529 = vunpack.c.l.b16 %v1254
          %v2530 = vunpack.c.h.b16 %v1254
          %v2531 = vunpack.c.l.b16 %v1255
          %v2532 = vunpack.c.h.b16 %v1255
          %v2533 = vunpack.c.l.b16 %v1256
          %v2534 = vunpack.c.h.b16 %v1256
          %v2535 = vunpack.c.l.b16 %v1257
          %v2536 = vunpack.c.h.b16 %v1257
          %v2537 = vunpack.c.l.b16 %v1258
          %v2538 = vunpack.c.h.b16 %v1258
          %v2539 = vunpack.c.l.b16 %v1259
          %v2540 = vunpack.c.h.b16 %v1259
          %v2541 = vunpack.c.l.b16 %v1260
          %v2542 = vunpack.c.h.b16 %v1260
          %v2543 = vunpack.c.l.b16 %v1261
          %v2544 = vunpack.c.h.b16 %v1261
          %v2545 = vunpack.c.l.b16 %v1262
          %v2546 = vunpack.c.h.b16 %v1262
          %v2547 = vunpack.c.l.b16 %v1263
          %v2548 = vunpack.c.h.b16 %v1263
          %v2549 = vunpack.c.l.b16 %v1264
          %v2550 = vunpack.c.h.b16 %v1264
          %v2551 = vunpack.c.l.b16 %v1265
          %v2552 = vunpack.c.h.b16 %v1265
          %v2553 = vunpack.c.l.b16 %v1266
          %v2554 = vunpack.c.h.b16 %v1266
          %v2555 = vunpack.c.l.b16 %v1267
          %v2556 = vunpack.c.h.b16 %v1267
          %v2557 = vunpack.c.l.b16 %v1268
          %v2558 = vunpack.c.h.b16 %v1268
          %v2559 = vunpack.c.l.b16 %v1269
          %v2560 = vunpack.c.h.b16 %v1269
          %v2561 = vunpack.c.l.b16 %v1270
          %v2562 = vunpack.c.h.b16 %v1270
          %v2563 = vunpack.c.l.b16 %v1271
          %v2564 = vunpack.c.h.b16 %v1271
          %v2565 = vunpack.c.l.b16 %v1272
          %v2566 = vunpack.c.h.b16 %v1272
          %v2567 = vunpack.c.l.b16 %v1273
          %v2568 = vunpack.c.h.b16 %v1273
          %v2569 = vunpack.c.l.b16 %v1274
          %v2570 = vunpack.c.h.b16 %v1274
          %v2571 = vunpack.c.l.b16 %v1275
          %v2572 = vunpack.c.h.b16 %v1275
          %v2573 = vunpack.c.l.b16 %v1276
          %v2574 = vunpack.c.h.b16 %v1276
          %v2575 = vunpack.c.l.b16 %v1277
          %v2576 = vunpack.c.h.b16 %v1277
          %v2577 = vunpack.c.l.b16 %v1278
          %v2578 = vunpack.c.h.b16 %v1278
          %v2579 = vunpack.c.l.b16 %v1279
          %v2580 = vunpack.c.h.b16 %v1279
          %v2581 = vunpack.c.l.b16 %v1280
          %v2582 = vunpack.c.h.b16 %v1280
          %v2583 = vunpack.c.l.b16 %v1281
          %v2584 = vunpack.c.h.b16 %v1281
          %v2585 = vunpack.c.l.b16 %v1282
          %v2586 = vunpack.c.h.b16 %v1282
          %v2587 = vunpack.c.l.b16 %v1283
          %v2588 = vunpack.c.h.b16 %v1283
          %v2589 = vunpack.c.l.b16 %v1284
          %v2590 = vunpack.c.h.b16 %v1284
          %v2591 = vunpack.c.l.b16 %v1285
          %v2592 = vunpack.c.h.b16 %v1285
          %v2593 = vunpack.c.l.b16 %v1286
          %v2594 = vunpack.c.h.b16 %v1286
          %v2595 = vunpack.c.l.b16 %v1287
          %v2596 = vunpack.c.h.b16 %v1287
          %v2597 = vunpack.c.l.b16 %v1288
          %v2598 = vunpack.c.h.b16 %v1288
          %v2599 = vunpack.c.l.b16 %v1289
          %v2600 = vunpack.c.h.b16 %v1289
          %v2601 = vunpack.c.l.b16 %v1290
          %v2602 = vunpack.c.h.b16 %v1290
          %v2603 = vunpack.c.l.b16 %v1291
          %v2604 = vunpack.c.h.b16 %v1291
          %v2605 = vunpack.c.l.b16 %v1292
          %v2606 = vunpack.c.h.b16 %v1292
          %v2607 = vunpack.c.l.b16 %v1293
          %v2608 = vunpack.c.h.b16 %v1293
          %v2609 = vunpack.c.l.b16 %v1294
          %v2610 = vunpack.c.h.b16 %v1294
          %v2611 = vunpack.c.l.b16 %v1295
          %v2612 = vunpack.c.h.b16 %v1295
          %v2613 = vunpack.c.l.b16 %v1296
          %v2614 = vunpack.c.h.b16 %v1296
          %v2615 = vunpack.c.l.b16 %v1297
          %v2616 = vunpack.c.h.b16 %v1297
          %v2617 = vunpack.c.l.b16 %v1298
          %v2618 = vunpack.c.h.b16 %v1298
          %v2619 = vunpack.c.l.b16 %v1299
          %v2620 = vunpack.c.h.b16 %v1299
          %v2621 = vunpack.c.l.b16 %v1300
          %v2622 = vunpack.c.h.b16 %v1300
          %v2623 = vunpack.c.l.b16 %v1301
          %v2624 = vunpack.c.h.b16 %v1301
          %v2625 = vunpack.c.l.b16 %v1302
          %v2626 = vunpack.c.h.b16 %v1302
          %v2627 = vunpack.c.l.b16 %v1303
          %v2628 = vunpack.c.h.b16 %v1303
          %v2629 = vunpack.c.l.b16 %v1304
          %v2630 = vunpack.c.h.b16 %v1304
          %v2631 = vunpack.c.l.b16 %v1305
          %v2632 = vunpack.c.h.b16 %v1305
          %v2633 = vunpack.c.l.b16 %v1306
          %v2634 = vunpack.c.h.b16 %v1306
          %v2635 = vunpack.c.l.b16 %v1307
          %v2636 = vunpack.c.h.b16 %v1307
          %v2637 = vunpack.c.l.b16 %v1308
          %v2638 = vunpack.c.h.b16 %v1308
          %v2639 = vunpack.c.l.b16 %v1309
          %v2640 = vunpack.c.h.b16 %v1309
          %v2641 = vunpack.c.l.b16 %v1310
          %v2642 = vunpack.c.h.b16 %v1310
          %v2643 = vunpack.c.l.b16 %v1311
          %v2644 = vunpack.c.h.b16 %v1311
          %v2645 = vunpack.c.l.b16 %v1312
          %v2646 = vunpack.c.h.b16 %v1312
          %v2647 = vunpack.c.l.b16 %v1313
          %v2648 = vunpack.c.h.b16 %v1313
          %v2649 = vunpack.c.l.b16 %v1314
          %v2650 = vunpack.c.h.b16 %v1314
          %v2651 = vunpack.c.l.b16 %v1315
          %v2652 = vunpack.c.h.b16 %v1315
          %v2653 = vunpack.c.l.b16 %v1316
          %v2654 = vunpack.c.h.b16 %v1316
          %v2655 = vunpack.c.l.b16 %v1317
          %v2656 = vunpack.c.h.b16 %v1317
          %v2657 = vunpack.c.l.b16 %v1318
          %v2658 = vunpack.c.h.b16 %v1318
          %v2659 = vunpack.c.l.b16 %v1319
          %v2660 = vunpack.c.h.b16 %v1319
          %v2661 = vunpack.c.l.b16 %v1320
          %v2662 = vunpack.c.h.b16 %v1320
          %v2663 = vunpack.c.l.b16 %v1321
          %v2664 = vunpack.c.h.b16 %v1321
          %v2665 = vunpack.c.l.b16 %v1322
          %v2666 = vunpack.c.h.b16 %v1322
          %v2667 = vunpack.c.l.b16 %v1323
          %v2668 = vunpack.c.h.b16 %v1323
          %v2669 = vunpack.c.l.b16 %v1324
          %v2670 = vunpack.c.h.b16 %v1324
          %v2671 = vunpack.c.l.b16 %v1325
          %v2672 = vunpack.c.h.b16 %v1325
          %v2673 = vunpack.c.l.b16 %v1326
          %v2674 = vunpack.c.h.b16 %v1326
          %v2675 = vunpack.c.l.b16 %v1327
          %v2676 = vunpack.c.h.b16 %v1327
          %v2677 = vunpack.c.l.b16 %v1328
          %v2678 = vunpack.c.h.b16 %v1328
          %v2679 = vunpack.c.l.b16 %v1329
          %v2680 = vunpack.c.h.b16 %v1329
          %v2681 = vunpack.c.l.b16 %v1330
          %v2682 = vunpack.c.h.b16 %v1330
          %v2683 = vunpack.c.l.b16 %v1331
          %v2684 = vunpack.c.h.b16 %v1331
          %v2685 = vunpack.c.l.b16 %v1332
          %v2686 = vunpack.c.h.b16 %v1332
          %v2687 = vunpack.c.l.b16 %v1333
          %v2688 = vunpack.c.h.b16 %v1333
          %v2689 = vunpack.c.l.b16 %v1334
          %v2690 = vunpack.c.h.b16 %v1334
          %v2691 = vunpack.c.l.b16 %v1335
          %v2692 = vunpack.c.h.b16 %v1335
          %v2693 = vunpack.c.l.b16 %v1336
          %v2694 = vunpack.c.h.b16 %v1336
          %v2695 = vunpack.c.l.b16 %v1337
          %v2696 = vunpack.c.h.b16 %v1337
          %v2697 = vunpack.c.l.b16 %v1338
          %v2698 = vunpack.c.h.b16 %v1338
          %v2699 = vunpack.c.l.b16 %v1339
          %v2700 = vunpack.c.h.b16 %v1339
          %v2701 = vunpack.c.l.b16 %v1340
          %v2702 = vunpack.c.h.b16 %v1340
          %v2703 = vunpack.c.l.b16 %v1341
          %v2704 = vunpack.c.h.b16 %v1341
          %v2705 = vunpack.c.l.b16 %v1342
          %v2706 = vunpack.c.h.b16 %v1342
          %v2707 = vunpack.c.l.b16 %v1343
          %v2708 = vunpack.c.h.b16 %v1343
          %v2709 = vunpack.c.l.b16 %v1344
          %v2710 = vunpack.c.h.b16 %v1344
          %v2711 = vunpack.c.l.b16 %v1345
          %v2712 = vunpack.c.h.b16 %v1345
          %v2713 = vunpack.c.l.b16 %v1346
          %v2714 = vunpack.c.h.b16 %v1346
          %v2715 = vunpack.c.l.b16 %v1347
          %v2716 = vunpack.c.h.b16 %v1347
          %v2717 = vunpack.c.l.b16 %v1348
          %v2718 = vunpack.c.h.b16 %v1348
          %v2719 = vunpack.c.l.b16 %v1349
          %v2720 = vunpack.c.h.b16 %v1349
          %v2721 = vunpack.c.l.b16 %v1350
          %v2722 = vunpack.c.h.b16 %v1350
          %v2723 = vunpack.c.l.b16 %v1351
          %v2724 = vunpack.c.h.b16 %v1351
          %v2725 = vunpack.c.l.b16 %v1352
          %v2726 = vunpack.c.h.b16 %v1352
          %v2727 = vunpack.c.l.b16 %v1353
          %v2728 = vunpack.c.h.b16 %v1353
          %v2729 = vunpack.c.l.b16 %v1354
          %v2730 = vunpack.c.h.b16 %v1354
          %v2731 = vunpack.c.l.b16 %v1355
          %v2732 = vunpack.c.h.b16 %v1355
          %v2733 = vunpack.c.l.b16 %v1356
          %v2734 = vunpack.c.h.b16 %v1356
          %v2735 = vunpack.c.l.b16 %v1357
          %v2736 = vunpack.c.h.b16 %v1357
          %v2737 = vunpack.c.l.b16 %v1358
          %v2738 = vunpack.c.h.b16 %v1358
          %v2739 = vunpack.c.l.b16 %v1359
          %v2740 = vunpack.c.h.b16 %v1359
          %v2741 = vunpack.c.l.b16 %v1360
          %v2742 = vunpack.c.h.b16 %v1360
          %v2743 = vunpack.c.l.b16 %v1361
          %v2744 = vunpack.c.h.b16 %v1361
          %v2745 = vunpack.c.l.b16 %v1362
          %v2746 = vunpack.c.h.b16 %v1362
          %v2747 = vunpack.c.l.b16 %v1363
          %v2748 = vunpack.c.h.b16 %v1363
          %v2749 = vunpack.c.l.b16 %v1364
          %v2750 = vunpack.c.h.b16 %v1364
          %v2751 = vunpack.c.l.b16 %v1365
          %v2752 = vunpack.c.h.b16 %v1365
          %v2753 = vunpack.c.l.b16 %v1366
          %v2754 = vunpack.c.h.b16 %v1366
          %v2755 = vunpack.c.l.b16 %v1367
          %v2756 = vunpack.c.h.b16 %v1367
          %v2757 = vunpack.c.l.b16 %v1368
          %v2758 = vunpack.c.h.b16 %v1368
          %v2759 = vunpack.c.l.b16 %v1369
          %v2760 = vunpack.c.h.b16 %v1369
          %v2761 = vunpack.c.l.b16 %v1370
          %v2762 = vunpack.c.h.b16 %v1370
          %v2763 = vunpack.c.l.b16 %v1371
          %v2764 = vunpack.c.h.b16 %v1371
          %v2765 = vunpack.c.l.b16 %v1372
          %v2766 = vunpack.c.h.b16 %v1372
          %v2767 = vunpack.c.l.b16 %v1373
          %v2768 = vunpack.c.h.b16 %v1373
          %v2769 = vunpack.c.l.b16 %v1374
          %v2770 = vunpack.c.h.b16 %v1374
          %v2771 = vunpack.c.l.b16 %v1375
          %v2772 = vunpack.c.h.b16 %v1375
          %v2773 = vunpack.c.l.b16 %v1376
          %v2774 = vunpack.c.h.b16 %v1376
          %v2775 = vunpack.c.l.b16 %v1377
          %v2776 = vunpack.c.h.b16 %v1377
          %v2777 = vunpack.c.l.b16 %v1378
          %v2778 = vunpack.c.h.b16 %v1378
          %v2779 = vunpack.c.l.b16 %v1379
          %v2780 = vunpack.c.h.b16 %v1379
          %v2781 = vunpack.c.l.b16 %v1380
          %v2782 = vunpack.c.h.b16 %v1380
          %v2783 = vunpack.c.l.b16 %v1381
          %v2784 = vunpack.c.h.b16 %v1381
          %v2785 = vunpack.c.l.b16 %v1382
          %v2786 = vunpack.c.h.b16 %v1382
          %v2787 = vunpack.c.l.b16 %v1383
          %v2788 = vunpack.c.h.b16 %v1383
          %v2789 = vunpack.c.l.b16 %v1384
          %v2790 = vunpack.c.h.b16 %v1384
          %v2791 = vunpack.c.l.b16 %v1385
          %v2792 = vunpack.c.h.b16 %v1385
          %v2793 = vunpack.c.l.b16 %v1386
          %v2794 = vunpack.c.h.b16 %v1386
          %v2795 = vunpack.c.l.b16 %v1387
          %v2796 = vunpack.c.h.b16 %v1387
          %v2797 = vunpack.c.l.b16 %v1388
          %v2798 = vunpack.c.h.b16 %v1388
          %v2799 = vunpack.c.l.b16 %v1389
          %v2800 = vunpack.c.h.b16 %v1389
          %v2801 = vunpack.c.l.b16 %v1390
          %v2802 = vunpack.c.h.b16 %v1390
          %v2803 = vunpack.c.l.b16 %v1391
          %v2804 = vunpack.c.h.b16 %v1391
          %v2805 = vunpack.c.l.b16 %v1392
          %v2806 = vunpack.c.h.b16 %v1392
          %v2807 = vunpack.c.l.b16 %v1393
          %v2808 = vunpack.c.h.b16 %v1393
          %v2809 = vunpack.c.l.b16 %v1394
          %v2810 = vunpack.c.h.b16 %v1394
          %v2811 = vunpack.c.l.b16 %v1395
          %v2812 = vunpack.c.h.b16 %v1395
          %v2813 = vunpack.c.l.b16 %v1396
          %v2814 = vunpack.c.h.b16 %v1396
          %v2815 = vunpack.c.l.b16 %v1397
          %v2816 = vunpack.c.h.b16 %v1397
          %v2817 = vunpack.c.l.b16 %v1398
          %v2818 = vunpack.c.h.b16 %v1398
          %v2819 = vunpack.c.l.b16 %v1399
          %v2820 = vunpack.c.h.b16 %v1399
          %v2821 = vunpack.c.l.b16 %v1400
          %v2822 = vunpack.c.h.b16 %v1400
          %v2823 = vunpack.c.l.b16 %v1401
          %v2824 = vunpack.c.h.b16 %v1401
          %v2825 = vunpack.c.l.b16 %v1402
          %v2826 = vunpack.c.h.b16 %v1402
          %v2827 = vunpack.c.l.b16 %v1403
          %v2828 = vunpack.c.h.b16 %v1403
          %v2829 = vunpack.c.l.b16 %v1404
          %v2830 = vunpack.c.h.b16 %v1404
          %v2831 = vunpack.c.l.b16 %v1405
          %v2832 = vunpack.c.h.b16 %v1405
          %v2833 = vunpack.c.l.b16 %v1406
          %v2834 = vunpack.c.h.b16 %v1406
          %v2835 = vunpack.c.l.b16 %v1407
          %v2836 = vunpack.c.h.b16 %v1407
          %v2837 = vunpack.c.l.b16 %v1408
          %v2838 = vunpack.c.h.b16 %v1408
          %v2839 = vunpack.c.l.b16 %v1409
          %v2840 = vunpack.c.h.b16 %v1409
          %v2841 = vunpack.c.l.b16 %v1410
          %v2842 = vunpack.c.h.b16 %v1410
          %v2843 = vunpack.c.l.b16 %v1411
          %v2844 = vunpack.c.h.b16 %v1411
          %v2845 = vunpack.c.l.b16 %v1412
          %v2846 = vunpack.c.h.b16 %v1412
          %v2847 = vunpack.c.l.b16 %v1413
          %v2848 = vunpack.c.h.b16 %v1413
          %v2849 = vunpack.c.l.b16 %v1414
          %v2850 = vunpack.c.h.b16 %v1414
          %v2851 = vunpack.c.l.b16 %v1415
          %v2852 = vunpack.c.h.b16 %v1415
          %v2853 = vunpack.c.l.b16 %v1416
          %v2854 = vunpack.c.h.b16 %v1416
          %v2855 = vunpack.c.l.b16 %v1417
          %v2856 = vunpack.c.h.b16 %v1417
          %v2857 = vunpack.c.l.b16 %v1418
          %v2858 = vunpack.c.h.b16 %v1418
          %v2859 = vunpack.c.l.b16 %v1419
          %v2860 = vunpack.c.h.b16 %v1419
          %v2861 = vunpack.c.l.b16 %v1420
          %v2862 = vunpack.c.h.b16 %v1420
          %v2863 = vunpack.c.l.b16 %v1421
          %v2864 = vunpack.c.h.b16 %v1421
          %v2865 = vunpack.c.l.b16 %v1422
          %v2866 = vunpack.c.h.b16 %v1422
          %v2867 = vunpack.c.l.b16 %v1423
          %v2868 = vunpack.c.h.b16 %v1423
          %v2869 = vunpack.c.l.b16 %v1424
          %v2870 = vunpack.c.h.b16 %v1424
          %v2871 = vunpack.c.l.b16 %v1425
          %v2872 = vunpack.c.h.b16 %v1425
          %v2873 = vunpack.c.l.b16 %v1426
          %v2874 = vunpack.c.h.b16 %v1426
          %v2875 = vunpack.c.l.b16 %v1427
          %v2876 = vunpack.c.h.b16 %v1427
          %v2877 = vunpack.c.l.b16 %v1428
          %v2878 = vunpack.c.h.b16 %v1428
          %v2879 = vunpack.c.l.b16 %v1429
          %v2880 = vunpack.c.h.b16 %v1429
          %v2881 = vunpack.c.l.b16 %v1430
          %v2882 = vunpack.c.h.b16 %v1430
          %v2883 = vunpack.c.l.b16 %v1431
          %v2884 = vunpack.c.h.b16 %v1431
          %v2885 = vunpack.c.l.b16 %v1432
          %v2886 = vunpack.c.h.b16 %v1432
          %v2887 = vunpack.c.l.b16 %v1433
          %v2888 = vunpack.c.h.b16 %v1433
          %v2889 = vunpack.c.l.b16 %v1434
          %v2890 = vunpack.c.h.b16 %v1434
          %v2891 = vunpack.c.l.b16 %v1435
          %v2892 = vunpack.c.h.b16 %v1435
          %v2893 = vunpack.c.l.b16 %v1436
          %v2894 = vunpack.c.h.b16 %v1436
          %v2895 = vunpack.c.l.b16 %v1437
          %v2896 = vunpack.c.h.b16 %v1437
          %v2897 = vunpack.c.l.b16 %v1438
          %v2898 = vunpack.c.h.b16 %v1438
          %v2899 = vunpack.c.l.b16 %v1439
          %v2900 = vunpack.c.h.b16 %v1439
          %v2901 = vunpack.c.l.b16 %v1440
          %v2902 = vunpack.c.h.b16 %v1440
          %v2903 = vunpack.c.l.b16 %v1441
          %v2904 = vunpack.c.h.b16 %v1441
          %v2905 = vunpack.c.l.b16 %v1442
          %v2906 = vunpack.c.h.b16 %v1442
          %v2907 = vunpack.c.l.b16 %v1443
          %v2908 = vunpack.c.h.b16 %v1443
          %v2909 = vunpack.c.l.b16 %v1444
          %v2910 = vunpack.c.h.b16 %v1444
          %v2911 = vunpack.c.l.b16 %v1445
          %v2912 = vunpack.c.h.b16 %v1445
          %v2913 = vunpack.c.l.b16 %v1446
          %v2914 = vunpack.c.h.b16 %v1446
          %v2915 = vunpack.c.l.b16 %v1447
          %v2916 = vunpack.c.h.b16 %v1447
          %v2917 = vunpack.c.l.b16 %v1448
          %v2918 = vunpack.c.h.b16 %v1448
          %v2919 = vunpack.c.l.b16 %v1449
          %v2920 = vunpack.c.h.b16 %v1449
          %v2921 = vunpack.c.l.b16 %v1450
          %v2922 = vunpack.c.h.b16 %v1450
          %v2923 = vunpack.c.l.b16 %v1451
          %v2924 = vunpack.c.h.b16 %v1451
          %v2925 = vunpack.c.l.b16 %v1452
          %v2926 = vunpack.c.h.b16 %v1452
          %v2927 = vunpack.c.l.b16 %v1453
          %v2928 = vunpack.c.h.b16 %v1453
          %v2929 = vunpack.c.l.b16 %v1454
          %v2930 = vunpack.c.h.b16 %v1454
          %v2931 = vunpack.c.l.b16 %v1455
          %v2932 = vunpack.c.h.b16 %v1455
          %v2933 = vunpack.c.l.b16 %v1456
          %v2934 = vunpack.c.h.b16 %v1456
          %v2935 = vunpack.c.l.b16 %v1457
          %v2936 = vunpack.c.h.b16 %v1457
          %v2937 = vunpack.c.l.b16 %v1458
          %v2938 = vunpack.c.h.b16 %v1458
          %v2939 = vunpack.c.l.b16 %v1459
          %v2940 = vunpack.c.h.b16 %v1459
          %v2941 = vunpack.c.l.b16 %v1460
          %v2942 = vunpack.c.h.b16 %v1460
          %v2943 = vunpack.c.l.b16 %v1461
          %v2944 = vunpack.c.h.b16 %v1461
          %v2945 = vunpack.c.l.b16 %v1462
          %v2946 = vunpack.c.h.b16 %v1462
          %v2947 = vunpack.c.l.b16 %v1463
          %v2948 = vunpack.c.h.b16 %v1463
          %v2949 = vunpack.c.l.b16 %v1464
          %v2950 = vunpack.c.h.b16 %v1464
          %v2951 = vunpack.c.l.b16 %v1465
          %v2952 = vunpack.c.h.b16 %v1465
          %v2953 = vunpack.c.l.b16 %v1466
          %v2954 = vunpack.c.h.b16 %v1466
          %v2955 = vunpack.c.l.b16 %v1467
          %v2956 = vunpack.c.h.b16 %v1467
          %v2957 = vunpack.c.l.b16 %v1468
          %v2958 = vunpack.c.h.b16 %v1468
          %v2959 = vunpack.c.l.b16 %v1469
          %v2960 = vunpack.c.h.b16 %v1469
          %v2961 = vunpack.c.l.b16 %v1470
          %v2962 = vunpack.c.h.b16 %v1470
          %v2963 = vunpack.c.l.b16 %v1471
          %v2964 = vunpack.c.h.b16 %v1471
          %v2965 = vunpack.c.l.b16 %v1472
          %v2966 = vunpack.c.h.b16 %v1472
          %v2967 = vunpack.c.l.b16 %v1473
          %v2968 = vunpack.c.h.b16 %v1473
          %v2969 = vunpack.c.l.b16 %v1474
          %v2970 = vunpack.c.h.b16 %v1474
          %v2971 = vunpack.c.l.b16 %v1475
          %v2972 = vunpack.c.h.b16 %v1475
          %v2973 = vunpack.c.l.b16 %v1476
          %v2974 = vunpack.c.h.b16 %v1476
          %v2975 = vunpack.c.l.b16 %v1477
          %v2976 = vunpack.c.h.b16 %v1477
          %v2977 = vunpack.c.l.b16 %v1478
          %v2978 = vunpack.c.h.b16 %v1478
          %v2979 = vunpack.c.l.b16 %v1479
          %v2980 = vunpack.c.h.b16 %v1479
          %v2981 = vunpack.c.l.b16 %v1480
          %v2982 = vunpack.c.h.b16 %v1480
          %v2983 = vunpack.c.l.b16 %v1481
          %v2984 = vunpack.c.h.b16 %v1481
          %v2985 = vunpack.c.l.b16 %v1482
          %v2986 = vunpack.c.h.b16 %v1482
          %v2987 = vunpack.c.l.b16 %v1483
          %v2988 = vunpack.c.h.b16 %v1483
          %v2989 = vunpack.c.l.b16 %v1484
          %v2990 = vunpack.c.h.b16 %v1484
          %v2991 = vunpack.c.l.b16 %v1485
          %v2992 = vunpack.c.h.b16 %v1485
          %v2993 = vunpack.c.l.b16 %v1486
          %v2994 = vunpack.c.h.b16 %v1486
          %v2995 = vunpack.c.l.b16 %v1487
          %v2996 = vunpack.c.h.b16 %v1487
          %v2997 = vunpack.c.l.b16 %v1488
          %v2998 = vunpack.c.h.b16 %v1488
          %v2999 = vunpack.c.l.b16 %v1489
          %v3000 = vunpack.c.h.b16 %v1489
          %v3001 = vunpack.c.l.b16 %v1490
          %v3002 = vunpack.c.h.b16 %v1490
          %v3003 = vunpack.c.l.b16 %v1491
          %v3004 = vunpack.c.h.b16 %v1491
          %v3005 = vunpack.c.l.b16 %v1492
          %v3006 = vunpack.c.h.b16 %v1492
          %v3007 = vunpack.c.l.b16 %v1493
          %v3008 = vunpack.c.h.b16 %v1493
          %v3009 = vunpack.c.l.b16 %v1494
          %v3010 = vunpack.c.h.b16 %v1494
          %v3011 = vunpack.c.l.b16 %v1495
          %v3012 = vunpack.c.h.b16 %v1495
          %v3013 = vunpack.c.l.b16 %v1496
          %v3014 = vunpack.c.h.b16 %v1496
          %v3015 = vunpack.c.l.b16 %v1497
          %v3016 = vunpack.c.h.b16 %v1497
          %v3017 = vunpack.c.l.b16 %v1498
          %v3018 = vunpack.c.h.b16 %v1498
          %v3019 = vunpack.c.l.b16 %v1499
          %v3020 = vunpack.c.h.b16 %v1499
          %v3021 = vunpack.c.l.b16 %v1500
          %v3022 = vunpack.c.h.b16 %v1500
          %v3023 = vunpack.c.l.b16 %v1501
          %v3024 = vunpack.c.h.b16 %v1501
          %v3025 = vunpack.c.l.b16 %v1502
          %v3026 = vunpack.c.h.b16 %v1502
          %v3027 = vunpack.c.l.b16 %v1503
          %v3028 = vunpack.c.h.b16 %v1503
          %v3029 = vunpack.c.l.b16 %v1504
          %v3030 = vunpack.c.h.b16 %v1504
          %v3031 = vunpack.c.l.b16 %v1505
          %v3032 = vunpack.c.h.b16 %v1505
          %v3033 = vunpack.c.l.b16 %v1506
          %v3034 = vunpack.c.h.b16 %v1506
          %v3035 = vunpack.c.l.b16 %v1507
          %v3036 = vunpack.c.h.b16 %v1507
          %v3037 = vunpack.c.l.b16 %v1508
          %v3038 = vunpack.c.h.b16 %v1508
          %v3039 = vunpack.c.l.b16 %v1509
          %v3040 = vunpack.c.h.b16 %v1509
          %v3041 = vunpack.c.l.b16 %v1510
          %v3042 = vunpack.c.h.b16 %v1510
          %v3043 = vunpack.c.l.b16 %v1511
          %v3044 = vunpack.c.h.b16 %v1511
          %v3045 = vunpack.c.l.b16 %v1512
          %v3046 = vunpack.c.h.b16 %v1512
          %v3047 = vunpack.c.l.b16 %v1513
          %v3048 = vunpack.c.h.b16 %v1513
          %v3049 = vunpack.c.l.b16 %v1514
          %v3050 = vunpack.c.h.b16 %v1514
          %v3051 = vunpack.c.l.b16 %v1515
          %v3052 = vunpack.c.h.b16 %v1515
          %v3053 = vunpack.c.l.b16 %v1516
          %v3054 = vunpack.c.h.b16 %v1516
          %v3055 = vunpack.c.l.b16 %v1517
          %v3056 = vunpack.c.h.b16 %v1517
          %v3057 = vunpack.c.l.b16 %v1518
          %v3058 = vunpack.c.h.b16 %v1518
          %v3059 = vunpack.c.l.b16 %v1519
          %v3060 = vunpack.c.h.b16 %v1519
          %v3061 = vunpack.c.l.b16 %v1520
          %v3062 = vunpack.c.h.b16 %v1520
          %v3063 = vunpack.c.l.b16 %v1521
          %v3064 = vunpack.c.h.b16 %v1521
          %v3065 = vunpack.c.l.b16 %v1522
          %v3066 = vunpack.c.h.b16 %v1522
          %v3067 = vunpack.c.l.b16 %v1523
          %v3068 = vunpack.c.h.b16 %v1523
          %v3069 = vunpack.c.l.b16 %v1524
          %v3070 = vunpack.c.h.b16 %v1524
          %v3071 = vunpack.c.l.b16 %v1525
          %v3072 = vunpack.c.h.b16 %v1525
          %v3073 = vunpack.c.l.b16 %v1526
          %v3074 = vunpack.c.h.b16 %v1526
          %v3075 = vunpack.c.l.b16 %v1527
          %v3076 = vunpack.c.h.b16 %v1527
          %v3077 = vunpack.c.l.b16 %v1528
          %v3078 = vunpack.c.h.b16 %v1528
          %v3079 = vunpack.c.l.b16 %v1529
          %v3080 = vunpack.c.h.b16 %v1529
          %v3081 = vunpack.c.l.b16 %v1530
          %v3082 = vunpack.c.h.b16 %v1530
          %v3083 = vunpack.c.l.b16 %v1531
          %v3084 = vunpack.c.h.b16 %v1531
          %v3085 = vunpack.c.l.b16 %v1532
          %v3086 = vunpack.c.h.b16 %v1532
          %v3087 = vunpack.c.l.b16 %v1533
          %v3088 = vunpack.c.h.b16 %v1533
          %v3089 = vunpack.c.l.b16 %v1534
          %v3090 = vunpack.c.h.b16 %v1534
          %v3091 = vunpack.c.l.b16 %v1535
          %v3092 = vunpack.c.h.b16 %v1535
          %v3093 = vunpack.c.l.b16 %v1536
          %v3094 = vunpack.c.h.b16 %v1536
          %v3095 = vunpack.c.l.b16 %v1537
          %v3096 = vunpack.c.h.b16 %v1537
          %v3097 = vunpack.c.l.b16 %v1538
          %v3098 = vunpack.c.h.b16 %v1538
          %v3099 = vunpack.c.l.b16 %v1539
          %v3100 = vunpack.c.h.b16 %v1539
          %v3101 = vunpack.c.l.b16 %v1540
          %v3102 = vunpack.c.h.b16 %v1540
          %v3103 = vunpack.c.l.b16 %v1541
          %v3104 = vunpack.c.h.b16 %v1541
          %v3105 = vunpack.c.l.b16 %v1542
          %v3106 = vunpack.c.h.b16 %v1542
          %v3107 = vunpack.c.l.b16 %v1543
          %v3108 = vunpack.c.h.b16 %v1543
          %v3109 = vunpack.c.l.b16 %v1544
          %v3110 = vunpack.c.h.b16 %v1544
          %v3111 = vunpack.c.l.b16 %v1545
          %v3112 = vunpack.c.h.b16 %v1545
          %v3113 = vunpack.c.l.b16 %v1546
          %v3114 = vunpack.c.h.b16 %v1546
          %v3115 = vunpack.c.l.b16 %v1547
          %v3116 = vunpack.c.h.b16 %v1547
          %v3117 = vunpack.c.l.b16 %v1548
          %v3118 = vunpack.c.h.b16 %v1548
          %v3119 = vunpack.c.l.b16 %v1549
          %v3120 = vunpack.c.h.b16 %v1549
          %v3121 = vunpack.c.l.b16 %v1550
          %v3122 = vunpack.c.h.b16 %v1550
          %v3123 = vunpack.c.l.b16 %v1551
          %v3124 = vunpack.c.h.b16 %v1551
          %v3125 = vunpack.c.l.b16 %v1552
          %v3126 = vunpack.c.h.b16 %v1552
          %v3127 = vunpack.c.l.b16 %v1553
          %v3128 = vunpack.c.h.b16 %v1553
          %v3129 = vunpack.c.l.b16 %v1554
          %v3130 = vunpack.c.h.b16 %v1554
          %v3131 = vunpack.c.l.b16 %v1555
          %v3132 = vunpack.c.h.b16 %v1555
          %v3133 = vunpack.c.l.b16 %v1556
          %v3134 = vunpack.c.h.b16 %v1556
          %v3135 = vunpack.c.l.b16 %v1557
          %v3136 = vunpack.c.h.b16 %v1557
          %v3137 = vunpack.c.l.b16 %v1558
          %v3138 = vunpack.c.h.b16 %v1558
          %v3139 = vunpack.c.l.b16 %v1559
          %v3140 = vunpack.c.h.b16 %v1559
          %v3141 = vunpack.c.l.b16 %v1560
          %v3142 = vunpack.c.h.b16 %v1560
          %v3143 = vunpack.c.l.b16 %v1561
          %v3144 = vunpack.c.h.b16 %v1561
          %v3145 = vunpack.c.l.b16 %v1562
          %v3146 = vunpack.c.h.b16 %v1562
          %v3147 = vunpack.c.l.b16 %v1563
          %v3148 = vunpack.c.h.b16 %v1563
          %v3149 = vunpack.c.l.b16 %v1564
          %v3150 = vunpack.c.h.b16 %v1564
          %v3151 = vunpack.c.l.b16 %v1565
          %v3152 = vunpack.c.h.b16 %v1565
          %v3153 = vunpack.c.l.b16 %v1566
          %v3154 = vunpack.c.h.b16 %v1566
          %v3155 = vunpack.c.l.b16 %v1567
          %v3156 = vunpack.c.h.b16 %v1567
          %v3157 = vunpack.c.l.b16 %v1568
          %v3158 = vunpack.c.h.b16 %v1568
          %v3159 = vunpack.c.l.b16 %v1569
          %v3160 = vunpack.c.h.b16 %v1569
          %v3161 = vunpack.c.l.b16 %v1570
          %v3162 = vunpack.c.h.b16 %v1570
          %v3163 = vunpack.c.l.b16 %v1571
          %v3164 = vunpack.c.h.b16 %v1571
          %v3165 = vunpack.c.l.b16 %v1572
          %v3166 = vunpack.c.h.b16 %v1572
          %v3167 = vunpack.c.l.b16 %v1573
          %v3168 = vunpack.c.h.b16 %v1573
          %v3169 = vunpack.c.l.b16 %v1574
          %v3170 = vunpack.c.h.b16 %v1574
          %v3171 = vunpack.c.l.b16 %v1575
          %v3172 = vunpack.c.h.b16 %v1575
          %v3173 = vunpack.c.l.b16 %v1576
          %v3174 = vunpack.c.h.b16 %v1576
          %v3175 = vunpack.c.l.b16 %v1577
          %v3176 = vunpack.c.h.b16 %v1577
          %v3177 = vunpack.c.l.b16 %v1578
          %v3178 = vunpack.c.h.b16 %v1578
          %v3179 = vunpack.c.l.b16 %v1579
          %v3180 = vunpack.c.h.b16 %v1579
          %v3181 = vunpack.c.l.b16 %v1580
          %v3182 = vunpack.c.h.b16 %v1580
          %v3183 = vunpack.c.l.b16 %v1581
          %v3184 = vunpack.c.h.b16 %v1581
          %v3185 = vunpack.c.l.b16 %v1582
          %v3186 = vunpack.c.h.b16 %v1582
          %v3187 = vunpack.c.l.b16 %v1583
          %v3188 = vunpack.c.h.b16 %v1583
          %v3189 = vunpack.c.l.b16 %v1584
          %v3190 = vunpack.c.h.b16 %v1584
          %v3191 = vunpack.c.l.b16 %v1585
          %v3192 = vunpack.c.h.b16 %v1585
          %v3193 = vunpack.c.l.b16 %v1586
          %v3194 = vunpack.c.h.b16 %v1586
          %v3195 = vunpack.c.l.b16 %v1587
          %v3196 = vunpack.c.h.b16 %v1587
          %v3197 = vunpack.c.l.b16 %v1588
          %v3198 = vunpack.c.h.b16 %v1588
          %v3199 = vunpack.c.l.b16 %v1589
          %v3200 = vunpack.c.h.b16 %v1589
          %v3201 = vunpack.c.l.b16 %v1590
          %v3202 = vunpack.c.h.b16 %v1590
          %v3203 = vunpack.c.l.b16 %v1591
          %v3204 = vunpack.c.h.b16 %v1591
          %v3205 = vunpack.c.l.b16 %v1592
          %v3206 = vunpack.c.h.b16 %v1592
          %v3207 = vunpack.c.l.b16 %v1593
          %v3208 = vunpack.c.h.b16 %v1593
          %v3209 = vunpack.c.l.b16 %v1594
          %v3210 = vunpack.c.h.b16 %v1594
          %v3211 = vunpack.c.l.b16 %v1595
          %v3212 = vunpack.c.h.b16 %v1595
          %v3213 = vunpack.c.l.b16 %v1596
          %v3214 = vunpack.c.h.b16 %v1596
          %v3215 = vunpack.c.l.b16 %v1597
          %v3216 = vunpack.c.h.b16 %v1597
          %v3217 = vunpack.c.l.b16 %v1598
          %v3218 = vunpack.c.h.b16 %v1598
          %v3219 = vunpack.c.l.b16 %v1599
          %v3220 = vunpack.c.h.b16 %v1599
          %v3221 = vunpack.c.l.b16 %v1600
          %v3222 = vunpack.c.h.b16 %v1600
          %v3223 = vunpack.c.l.b16 %v1601
          %v3224 = vunpack.c.h.b16 %v1601
          %v3225 = vunpack.c.l.b16 %v1602
          %v3226 = vunpack.c.h.b16 %v1602
          %v3227 = vunpack.c.l.b16 %v1603
          %v3228 = vunpack.c.h.b16 %v1603
          %v3229 = vunpack.c.l.b16 %v1604
          %v3230 = vunpack.c.h.b16 %v1604
          %v3231 = vunpack.c.l.b16 %v1605
          %v3232 = vunpack.c.h.b16 %v1605
          %v3233 = vunpack.c.l.b16 %v1606
          %v3234 = vunpack.c.h.b16 %v1606
          %v3235 = vunpack.c.l.b16 %v1607
          %v3236 = vunpack.c.h.b16 %v1607
          %v3237 = vunpack.c.l.b16 %v1608
          %v3238 = vunpack.c.h.b16 %v1608
          %v3239 = vunpack.c.l.b16 %v1609
          %v3240 = vunpack.c.h.b16 %v1609
          %v3241 = vunpack.c.l.b16 %v1610
          %v3242 = vunpack.c.h.b16 %v1610
          %v3243 = vunpack.c.l.b16 %v1611
          %v3244 = vunpack.c.h.b16 %v1611
          %v3245 = vunpack.c.l.b16 %v1612
          %v3246 = vunpack.c.h.b16 %v1612
          %v3247 = vunpack.c.l.b16 %v1613
          %v3248 = vunpack.c.h.b16 %v1613
          %v3249 = vunpack.c.l.b16 %v1614
          %v3250 = vunpack.c.h.b16 %v1614
          %v3251 = vunpack.c.l.b16 %v1615
          %v3252 = vunpack.c.h.b16 %v1615
          %v3253 = vunpack.c.l.b16 %v1616
          %v3254 = vunpack.c.h.b16 %v1616
          %v3255 = vunpack.c.l.b16 %v1617
          %v3256 = vunpack.c.h.b16 %v1617
          %v3257 = vunpack.c.l.b16 %v1618
          %v3258 = vunpack.c.h.b16 %v1618
          %v3259 = vunpack.c.l.b16 %v1619
          %v3260 = vunpack.c.h.b16 %v1619
          %v3261 = vunpack.c.l.b16 %v1620
          %v3262 = vunpack.c.h.b16 %v1620
          %v3263 = vunpack.c.l.b16 %v1621
          %v3264 = vunpack.c.h.b16 %v1621
          %v3265 = vunpack.c.l.b16 %v1622
          %v3266 = vunpack.c.h.b16 %v1622
          %v3267 = vunpack.c.l.b16 %v1623
          %v3268 = vunpack.c.h.b16 %v1623
          %v3269 = vunpack.c.l.b16 %v1624
          %v3270 = vunpack.c.h.b16 %v1624
          %v3271 = vunpack.c.l.b16 %v1625
          %v3272 = vunpack.c.h.b16 %v1625
          %v3273 = vunpack.c.l.b16 %v1626
          %v3274 = vunpack.c.h.b16 %v1626
          %v3275 = vunpack.c.l.b16 %v1627
          %v3276 = vunpack.c.h.b16 %v1627
          %v3277 = vunpack.c.l.b16 %v1628
          %v3278 = vunpack.c.h.b16 %v1628
          %v3279 = vunpack.c.l.b16 %v1629
          %v3280 = vunpack.c.h.b16 %v1629
          %v3281 = vunpack.c.l.b16 %v1630
          %v3282 = vunpack.c.h.b16 %v1630
          %v3283 = vpack.c.b16 %v2263, %v2259
          %v3284 = vpack.c.b16 %v2264, %v2260
          %v3285 = vpack.c.b16 %v2265, %v2261
          %v3286 = vpack.c.b16 %v2266, %v2262
          %v3287 = vpack.c.b16 %v2271, %v2267
          %v3288 = vpack.c.b16 %v2272, %v2268
          %v3289 = vpack.c.b16 %v2273, %v2269
          %v3290 = vpack.c.b16 %v2274, %v2270
          %v3291 = vpack.c.b16 %v2279, %v2275
          %v3292 = vpack.c.b16 %v2280, %v2276
          %v3293 = vpack.c.b16 %v2281, %v2277
          %v3294 = vpack.c.b16 %v2282, %v2278
          %v3295 = vpack.c.b16 %v2287, %v2283
          %v3296 = vpack.c.b16 %v2288, %v2284
          %v3297 = vpack.c.b16 %v2289, %v2285
          %v3298 = vpack.c.b16 %v2290, %v2286
          %v3299 = vpack.c.b16 %v2295, %v2291
          %v3300 = vpack.c.b16 %v2296, %v2292
          %v3301 = vpack.c.b16 %v2297, %v2293
          %v3302 = vpack.c.b16 %v2298, %v2294
          %v3303 = vpack.c.b16 %v2303, %v2299
          %v3304 = vpack.c.b16 %v2304, %v2300
          %v3305 = vpack.c.b16 %v2305, %v2301
          %v3306 = vpack.c.b16 %v2306, %v2302
          %v3307 = vpack.c.b16 %v2311, %v2307
          %v3308 = vpack.c.b16 %v2312, %v2308
          %v3309 = vpack.c.b16 %v2313, %v2309
          %v3310 = vpack.c.b16 %v2314, %v2310
          %v3311 = vpack.c.b16 %v2319, %v2315
          %v3312 = vpack.c.b16 %v2320, %v2316
          %v3313 = vpack.c.b16 %v2321, %v2317
          %v3314 = vpack.c.b16 %v2322, %v2318
          %v3315 = vpack.c.b16 %v2327, %v2323
          %v3316 = vpack.c.b16 %v2328, %v2324
          %v3317 = vpack.c.b16 %v2329, %v2325
          %v3318 = vpack.c.b16 %v2330, %v2326
          %v3319 = vpack.c.b16 %v2335, %v2331
          %v3320 = vpack.c.b16 %v2336, %v2332
          %v3321 = vpack.c.b16 %v2337, %v2333
          %v3322 = vpack.c.b16 %v2338, %v2334
          %v3323 = vpack.c.b16 %v2343, %v2339
          %v3324 = vpack.c.b16 %v2344, %v2340
          %v3325 = vpack.c.b16 %v2345, %v2341
          %v3326 = vpack.c.b16 %v2346, %v2342
          %v3327 = vpack.c.b16 %v2351, %v2347
          %v3328 = vpack.c.b16 %v2352, %v2348
          %v3329 = vpack.c.b16 %v2353, %v2349
          %v3330 = vpack.c.b16 %v2354, %v2350
          %v3331 = vpack.c.b16 %v2359, %v2355
          %v3332 = vpack.c.b16 %v2360, %v2356
          %v3333 = vpack.c.b16 %v2361, %v2357
          %v3334 = vpack.c.b16 %v2362, %v2358
          %v3335 = vpack.c.b16 %v2367, %v2363
          %v3336 = vpack.c.b16 %v2368, %v2364
          %v3337 = vpack.c.b16 %v2369, %v2365
          %v3338 = vpack.c.b16 %v2370, %v2366
          %v3339 = vpack.c.b16 %v2375, %v2371
          %v3340 = vpack.c.b16 %v2376, %v2372
          %v3341 = vpack.c.b16 %v2377, %v2373
          %v3342 = vpack.c.b16 %v2378, %v2374
          %v3343 = vpack.c.b16 %v2383, %v2379
          %v3344 = vpack.c.b16 %v2384, %v2380
          %v3345 = vpack.c.b16 %v2385, %v2381
          %v3346 = vpack.c.b16 %v2386, %v2382
          %v3347 = vpack.c.b16 %v2391, %v2387
          %v3348 = vpack.c.b16 %v2392, %v2388
          %v3349 = vpack.c.b16 %v2393, %v2389
          %v3350 = vpack.c.b16 %v2394, %v2390
          %v3351 = vpack.c.b16 %v2399, %v2395
          %v3352 = vpack.c.b16 %v2400, %v2396
          %v3353 = vpack.c.b16 %v2401, %v2397
          %v3354 = vpack.c.b16 %v2402, %v2398
          %v3355 = vpack.c.b16 %v2407, %v2403
          %v3356 = vpack.c.b16 %v2408, %v2404
          %v3357 = vpack.c.b16 %v2409, %v2405
          %v3358 = vpack.c.b16 %v2410, %v2406
          %v3359 = vpack.c.b16 %v2415, %v2411
          %v3360 = vpack.c.b16 %v2416, %v2412
          %v3361 = vpack.c.b16 %v2417, %v2413
          %v3362 = vpack.c.b16 %v2418, %v2414
          %v3363 = vpack.c.b16 %v2423, %v2419
          %v3364 = vpack.c.b16 %v2424, %v2420
          %v3365 = vpack.c.b16 %v2425, %v2421
          %v3366 = vpack.c.b16 %v2426, %v2422
          %v3367 = vpack.c.b16 %v2431, %v2427
          %v3368 = vpack.c.b16 %v2432, %v2428
          %v3369 = vpack.c.b16 %v2433, %v2429
          %v3370 = vpack.c.b16 %v2434, %v2430
          %v3371 = vpack.c.b16 %v2439, %v2435
          %v3372 = vpack.c.b16 %v2440, %v2436
          %v3373 = vpack.c.b16 %v2441, %v2437
          %v3374 = vpack.c.b16 %v2442, %v2438
          %v3375 = vpack.c.b16 %v2447, %v2443
          %v3376 = vpack.c.b16 %v2448, %v2444
          %v3377 = vpack.c.b16 %v2449, %v2445
          %v3378 = vpack.c.b16 %v2450, %v2446
          %v3379 = vpack.c.b16 %v2455, %v2451
          %v3380 = vpack.c.b16 %v2456, %v2452
          %v3381 = vpack.c.b16 %v2457, %v2453
          %v3382 = vpack.c.b16 %v2458, %v2454
          %v3383 = vpack.c.b16 %v2463, %v2459
          %v3384 = vpack.c.b16 %v2464, %v2460
          %v3385 = vpack.c.b16 %v2465, %v2461
          %v3386 = vpack.c.b16 %v2466, %v2462
          %v3387 = vpack.c.b16 %v2471, %v2467
          %v3388 = vpack.c.b16 %v2472, %v2468
          %v3389 = vpack.c.b16 %v2473, %v2469
          %v3390 = vpack.c.b16 %v2474, %v2470
          %v3391 = vpack.c.b16 %v2479, %v2475
          %v3392 = vpack.c.b16 %v2480, %v2476
          %v3393 = vpack.c.b16 %v2481, %v2477
          %v3394 = vpack.c.b16 %v2482, %v2478
          %v3395 = vpack.c.b16 %v2487, %v2483
          %v3396 = vpack.c.b16 %v2488, %v2484
          %v3397 = vpack.c.b16 %v2489, %v2485
          %v3398 = vpack.c.b16 %v2490, %v2486
          %v3399 = vpack.c.b16 %v2495, %v2491
          %v3400 = vpack.c.b16 %v2496, %v2492
          %v3401 = vpack.c.b16 %v2497, %v2493
          %v3402 = vpack.c.b16 %v2498, %v2494
          %v3403 = vpack.c.b16 %v2503, %v2499
          %v3404 = vpack.c.b16 %v2504, %v2500
          %v3405 = vpack.c.b16 %v2505, %v2501
          %v3406 = vpack.c.b16 %v2506, %v2502
          %v3407 = vpack.c.b16 %v2511, %v2507
          %v3408 = vpack.c.b16 %v2512, %v2508
          %v3409 = vpack.c.b16 %v2513, %v2509
          %v3410 = vpack.c.b16 %v2514, %v2510
          %v3411 = vpack.c.b16 %v2519, %v2515
          %v3412 = vpack.c.b16 %v2520, %v2516
          %v3413 = vpack.c.b16 %v2521, %v2517
          %v3414 = vpack.c.b16 %v2522, %v2518
          %v3415 = vpack.c.b16 %v2527, %v2523
          %v3416 = vpack.c.b16 %v2528, %v2524
          %v3417 = vpack.c.b16 %v2529, %v2525
          %v3418 = vpack.c.b16 %v2530, %v2526
          %v3419 = vpack.c.b16 %v2535, %v2531
          %v3420 = vpack.c.b16 %v2536, %v2532
          %v3421 = vpack.c.b16 %v2537, %v2533
          %v3422 = vpack.c.b16 %v2538, %v2534
          %v3423 = vpack.c.b16 %v2543, %v2539
          %v3424 = vpack.c.b16 %v2544, %v2540
          %v3425 = vpack.c.b16 %v2545, %v2541
          %v3426 = vpack.c.b16 %v2546, %v2542
          %v3427 = vpack.c.b16 %v2551, %v2547
          %v3428 = vpack.c.b16 %v2552, %v2548
          %v3429 = vpack.c.b16 %v2553, %v2549
          %v3430 = vpack.c.b16 %v2554, %v2550
          %v3431 = vpack.c.b16 %v2559, %v2555
          %v3432 = vpack.c.b16 %v2560, %v2556
          %v3433 = vpack.c.b16 %v2561, %v2557
          %v3434 = vpack.c.b16 %v2562, %v2558
          %v3435 = vpack.c.b16 %v2567, %v2563
          %v3436 = vpack.c.b16 %v2568, %v2564
          %v3437 = vpack.c.b16 %v2569, %v2565
          %v3438 = vpack.c.b16 %v2570, %v2566
          %v3439 = vpack.c.b16 %v2575, %v2571
          %v3440 = vpack.c.b16 %v2576, %v2572
          %v3441 = vpack.c.b16 %v2577, %v2573
          %v3442 = vpack.c.b16 %v2578, %v2574
          %v3443 = vpack.c.b16 %v2583, %v2579
          %v3444 = vpack.c.b16 %v2584, %v2580
          %v3445 = vpack.c.b16 %v2585, %v2581
          %v3446 = vpack.c.b16 %v2586, %v2582
          %v3447 = vpack.c.b16 %v2591, %v2587
          %v3448 = vpack.c.b16 %v2592, %v2588
          %v3449 = vpack.c.b16 %v2593, %v2589
          %v3450 = vpack.c.b16 %v2594, %v2590
          %v3451 = vpack.c.b16 %v2599, %v2595
          %v3452 = vpack.c.b16 %v2600, %v2596
          %v3453 = vpack.c.b16 %v2601, %v2597
          %v3454 = vpack.c.b16 %v2602, %v2598
          %v3455 = vpack.c.b16 %v2607, %v2603
          %v3456 = vpack.c.b16 %v2608, %v2604
          %v3457 = vpack.c.b16 %v2609, %v2605
          %v3458 = vpack.c.b16 %v2610, %v2606
          %v3459 = vpack.c.b16 %v2615, %v2611
          %v3460 = vpack.c.b16 %v2616, %v2612
          %v3461 = vpack.c.b16 %v2617, %v2613
          %v3462 = vpack.c.b16 %v2618, %v2614
          %v3463 = vpack.c.b16 %v2623, %v2619
          %v3464 = vpack.c.b16 %v2624, %v2620
          %v3465 = vpack.c.b16 %v2625, %v2621
          %v3466 = vpack.c.b16 %v2626, %v2622
          %v3467 = vpack.c.b16 %v2631, %v2627
          %v3468 = vpack.c.b16 %v2632, %v2628
          %v3469 = vpack.c.b16 %v2633, %v2629
          %v3470 = vpack.c.b16 %v2634, %v2630
          %v3471 = vpack.c.b16 %v2639, %v2635
          %v3472 = vpack.c.b16 %v2640, %v2636
          %v3473 = vpack.c.b16 %v2641, %v2637
          %v3474 = vpack.c.b16 %v2642, %v2638
          %v3475 = vpack.c.b16 %v2647, %v2643
          %v3476 = vpack.c.b16 %v2648, %v2644
          %v3477 = vpack.c.b16 %v2649, %v2645
          %v3478 = vpack.c.b16 %v2650, %v2646
          %v3479 = vpack.c.b16 %v2655, %v2651
          %v3480 = vpack.c.b16 %v2656, %v2652
          %v3481 = vpack.c.b16 %v2657, %v2653
          %v3482 = vpack.c.b16 %v2658, %v2654
          %v3483 = vpack.c.b16 %v2663, %v2659
          %v3484 = vpack.c.b16 %v2664, %v2660
          %v3485 = vpack.c.b16 %v2665, %v2661
          %v3486 = vpack.c.b16 %v2666, %v2662
          %v3487 = vpack.c.b16 %v2671, %v2667
          %v3488 = vpack.c.b16 %v2672, %v2668
          %v3489 = vpack.c.b16 %v2673, %v2669
          %v3490 = vpack.c.b16 %v2674, %v2670
          %v3491 = vpack.c.b16 %v2679, %v2675
          %v3492 = vpack.c.b16 %v2680, %v2676
          %v3493 = vpack.c.b16 %v2681, %v2677
          %v3494 = vpack.c.b16 %v2682, %v2678
          %v3495 = vpack.c.b16 %v2687, %v2683
          %v3496 = vpack.c.b16 %v2688, %v2684
          %v3497 = vpack.c.b16 %v2689, %v2685
          %v3498 = vpack.c.b16 %v2690, %v2686
          %v3499 = vpack.c.b16 %v2695, %v2691
          %v3500 = vpack.c.b16 %v2696, %v2692
          %v3501 = vpack.c.b16 %v2697, %v2693
          %v3502 = vpack.c.b16 %v2698, %v2694
          %v3503 = vpack.c.b16 %v2703, %v2699
          %v3504 = vpack.c.b16 %v2704, %v2700
          %v3505 = vpack.c.b16 %v2705, %v2701
          %v3506 = vpack.c.b16 %v2706, %v2702
          %v3507 = vpack.c.b16 %v2711, %v2707
          %v3508 = vpack.c.b16 %v2712, %v2708
          %v3509 = vpack.c.b16 %v2713, %v2709
          %v3510 = vpack.c.b16 %v2714, %v2710
          %v3511 = vpack.c.b16 %v2719, %v2715
          %v3512 = vpack.c.b16 %v2720, %v2716
          %v3513 = vpack.c.b16 %v2721, %v2717
          %v3514 = vpack.c.b16 %v2722, %v2718
          %v3515 = vpack.c.b16 %v2727, %v2723
          %v3516 = vpack.c.b16 %v2728, %v2724
          %v3517 = vpack.c.b16 %v2729, %v2725
          %v3518 = vpack.c.b16 %v2730, %v2726
          %v3519 = vpack.c.b16 %v2735, %v2731
          %v3520 = vpack.c.b16 %v2736, %v2732
          %v3521 = vpack.c.b16 %v2737, %v2733
          %v3522 = vpack.c.b16 %v2738, %v2734
          %v3523 = vpack.c.b16 %v2743, %v2739
          %v3524 = vpack.c.b16 %v2744, %v2740
          %v3525 = vpack.c.b16 %v2745, %v2741
          %v3526 = vpack.c.b16 %v2746, %v2742
          %v3527 = vpack.c.b16 %v2751, %v2747
          %v3528 = vpack.c.b16 %v2752, %v2748
          %v3529 = vpack.c.b16 %v2753, %v2749
          %v3530 = vpack.c.b16 %v2754, %v2750
          %v3531 = vpack.c.b16 %v2759, %v2755
          %v3532 = vpack.c.b16 %v2760, %v2756
          %v3533 = vpack.c.b16 %v2761, %v2757
          %v3534 = vpack.c.b16 %v2762, %v2758
          %v3535 = vpack.c.b16 %v2767, %v2763
          %v3536 = vpack.c.b16 %v2768, %v2764
          %v3537 = vpack.c.b16 %v2769, %v2765
          %v3538 = vpack.c.b16 %v2770, %v2766
          %v3539 = vpack.c.b16 %v2775, %v2771
          %v3540 = vpack.c.b16 %v2776, %v2772
          %v3541 = vpack.c.b16 %v2777, %v2773
          %v3542 = vpack.c.b16 %v2778, %v2774
          %v3543 = vpack.c.b16 %v2783, %v2779
          %v3544 = vpack.c.b16 %v2784, %v2780
          %v3545 = vpack.c.b16 %v2785, %v2781
          %v3546 = vpack.c.b16 %v2786, %v2782
          %v3547 = vpack.c.b16 %v2791, %v2787
          %v3548 = vpack.c.b16 %v2792, %v2788
          %v3549 = vpack.c.b16 %v2793, %v2789
          %v3550 = vpack.c.b16 %v2794, %v2790
          %v3551 = vpack.c.b16 %v2799, %v2795
          %v3552 = vpack.c.b16 %v2800, %v2796
          %v3553 = vpack.c.b16 %v2801, %v2797
          %v3554 = vpack.c.b16 %v2802, %v2798
          %v3555 = vpack.c.b16 %v2807, %v2803
          %v3556 = vpack.c.b16 %v2808, %v2804
          %v3557 = vpack.c.b16 %v2809, %v2805
          %v3558 = vpack.c.b16 %v2810, %v2806
          %v3559 = vpack.c.b16 %v2815, %v2811
          %v3560 = vpack.c.b16 %v2816, %v2812
          %v3561 = vpack.c.b16 %v2817, %v2813
          %v3562 = vpack.c.b16 %v2818, %v2814
          %v3563 = vpack.c.b16 %v2823, %v2819
          %v3564 = vpack.c.b16 %v2824, %v2820
          %v3565 = vpack.c.b16 %v2825, %v2821
          %v3566 = vpack.c.b16 %v2826, %v2822
          %v3567 = vpack.c.b16 %v2831, %v2827
          %v3568 = vpack.c.b16 %v2832, %v2828
          %v3569 = vpack.c.b16 %v2833, %v2829
          %v3570 = vpack.c.b16 %v2834, %v2830
          %v3571 = vpack.c.b16 %v2839, %v2835
          %v3572 = vpack.c.b16 %v2840, %v2836
          %v3573 = vpack.c.b16 %v2841, %v2837
          %v3574 = vpack.c.b16 %v2842, %v2838
          %v3575 = vpack.c.b16 %v2847, %v2843
          %v3576 = vpack.c.b16 %v2848, %v2844
          %v3577 = vpack.c.b16 %v2849, %v2845
          %v3578 = vpack.c.b16 %v2850, %v2846
          %v3579 = vpack.c.b16 %v2855, %v2851
          %v3580 = vpack.c.b16 %v2856, %v2852
          %v3581 = vpack.c.b16 %v2857, %v2853
          %v3582 = vpack.c.b16 %v2858, %v2854
          %v3583 = vpack.c.b16 %v2863, %v2859
          %v3584 = vpack.c.b16 %v2864, %v2860
          %v3585 = vpack.c.b16 %v2865, %v2861
          %v3586 = vpack.c.b16 %v2866, %v2862
          %v3587 = vpack.c.b16 %v2871, %v2867
          %v3588 = vpack.c.b16 %v2872, %v2868
          %v3589 = vpack.c.b16 %v2873, %v2869
          %v3590 = vpack.c.b16 %v2874, %v2870
          %v3591 = vpack.c.b16 %v2879, %v2875
          %v3592 = vpack.c.b16 %v2880, %v2876
          %v3593 = vpack.c.b16 %v2881, %v2877
          %v3594 = vpack.c.b16 %v2882, %v2878
          %v3595 = vpack.c.b16 %v2887, %v2883
          %v3596 = vpack.c.b16 %v2888, %v2884
          %v3597 = vpack.c.b16 %v2889, %v2885
          %v3598 = vpack.c.b16 %v2890, %v2886
          %v3599 = vpack.c.b16 %v2895, %v2891
          %v3600 = vpack.c.b16 %v2896, %v2892
          %v3601 = vpack.c.b16 %v2897, %v2893
          %v3602 = vpack.c.b16 %v2898, %v2894
          %v3603 = vpack.c.b16 %v2903, %v2899
          %v3604 = vpack.c.b16 %v2904, %v2900
          %v3605 = vpack.c.b16 %v2905, %v2901
          %v3606 = vpack.c.b16 %v2906, %v2902
          %v3607 = vpack.c.b16 %v2911, %v2907
          %v3608 = vpack.c.b16 %v2912, %v2908
          %v3609 = vpack.c.b16 %v2913, %v2909
          %v3610 = vpack.c.b16 %v2914, %v2910
          %v3611 = vpack.c.b16 %v2919, %v2915
          %v3612 = vpack.c.b16 %v2920, %v2916
          %v3613 = vpack.c.b16 %v2921, %v2917
          %v3614 = vpack.c.b16 %v2922, %v2918
          %v3615 = vpack.c.b16 %v2927, %v2923
          %v3616 = vpack.c.b16 %v2928, %v2924
          %v3617 = vpack.c.b16 %v2929, %v2925
          %v3618 = vpack.c.b16 %v2930, %v2926
          %v3619 = vpack.c.b16 %v2935, %v2931
          %v3620 = vpack.c.b16 %v2936, %v2932
          %v3621 = vpack.c.b16 %v2937, %v2933
          %v3622 = vpack.c.b16 %v2938, %v2934
          %v3623 = vpack.c.b16 %v2943, %v2939
          %v3624 = vpack.c.b16 %v2944, %v2940
          %v3625 = vpack.c.b16 %v2945, %v2941
          %v3626 = vpack.c.b16 %v2946, %v2942
          %v3627 = vpack.c.b16 %v2951, %v2947
          %v3628 = vpack.c.b16 %v2952, %v2948
          %v3629 = vpack.c.b16 %v2953, %v2949
          %v3630 = vpack.c.b16 %v2954, %v2950
          %v3631 = vpack.c.b16 %v2959, %v2955
          %v3632 = vpack.c.b16 %v2960, %v2956
          %v3633 = vpack.c.b16 %v2961, %v2957
          %v3634 = vpack.c.b16 %v2962, %v2958
          %v3635 = vpack.c.b16 %v2967, %v2963
          %v3636 = vpack.c.b16 %v2968, %v2964
          %v3637 = vpack.c.b16 %v2969, %v2965
          %v3638 = vpack.c.b16 %v2970, %v2966
          %v3639 = vpack.c.b16 %v2975, %v2971
          %v3640 = vpack.c.b16 %v2976, %v2972
          %v3641 = vpack.c.b16 %v2977, %v2973
          %v3642 = vpack.c.b16 %v2978, %v2974
          %v3643 = vpack.c.b16 %v2983, %v2979
          %v3644 = vpack.c.b16 %v2984, %v2980
          %v3645 = vpack.c.b16 %v2985, %v2981
          %v3646 = vpack.c.b16 %v2986, %v2982
          %v3647 = vpack.c.b16 %v2991, %v2987
          %v3648 = vpack.c.b16 %v2992, %v2988
          %v3649 = vpack.c.b16 %v2993, %v2989
          %v3650 = vpack.c.b16 %v2994, %v2990
          %v3651 = vpack.c.b16 %v2999, %v2995
          %v3652 = vpack.c.b16 %v3000, %v2996
          %v3653 = vpack.c.b16 %v3001, %v2997
          %v3654 = vpack.c.b16 %v3002, %v2998
          %v3655 = vpack.c.b16 %v3007, %v3003
          %v3656 = vpack.c.b16 %v3008, %v3004
          %v3657 = vpack.c.b16 %v3009, %v3005
          %v3658 = vpack.c.b16 %v3010, %v3006
          %v3659 = vpack.c.b16 %v3015, %v3011
          %v3660 = vpack.c.b16 %v3016, %v3012
          %v3661 = vpack.c.b16 %v3017, %v3013
          %v3662 = vpack.c.b16 %v3018, %v3014
          %v3663 = vpack.c.b16 %v3023, %v3019
          %v3664 = vpack.c.b16 %v3024, %v3020
          %v3665 = vpack.c.b16 %v3025, %v3021
          %v3666 = vpack.c.b16 %v3026, %v3022
          %v3667 = vpack.c.b16 %v3031, %v3027
          %v3668 = vpack.c.b16 %v3032, %v3028
          %v3669 = vpack.c.b16 %v3033, %v3029
          %v3670 = vpack.c.b16 %v3034, %v3030
          %v3671 = vpack.c.b16 %v3039, %v3035
          %v3672 = vpack.c.b16 %v3040, %v3036
          %v3673 = vpack.c.b16 %v3041, %v3037
          %v3674 = vpack.c.b16 %v3042, %v3038
          %v3675 = vpack.c.b16 %v3047, %v3043
          %v3676 = vpack.c.b16 %v3048, %v3044
          %v3677 = vpack.c.b16 %v3049, %v3045
          %v3678 = vpack.c.b16 %v3050, %v3046
          %v3679 = vpack.c.b16 %v3055, %v3051
          %v3680 = vpack.c.b16 %v3056, %v3052
          %v3681 = vpack.c.b16 %v3057, %v3053
          %v3682 = vpack.c.b16 %v3058, %v3054
          %v3683 = vpack.c.b16 %v3063, %v3059
          %v3684 = vpack.c.b16 %v3064, %v3060
          %v3685 = vpack.c.b16 %v3065, %v3061
          %v3686 = vpack.c.b16 %v3066, %v3062
          %v3687 = vpack.c.b16 %v3071, %v3067
          %v3688 = vpack.c.b16 %v3072, %v3068
          %v3689 = vpack.c.b16 %v3073, %v3069
          %v3690 = vpack.c.b16 %v3074, %v3070
          %v3691 = vpack.c.b16 %v3079, %v3075
          %v3692 = vpack.c.b16 %v3080, %v3076
          %v3693 = vpack.c.b16 %v3081, %v3077
          %v3694 = vpack.c.b16 %v3082, %v3078
          %v3695 = vpack.c.b16 %v3087, %v3083
          %v3696 = vpack.c.b16 %v3088, %v3084
          %v3697 = vpack.c.b16 %v3089, %v3085
          %v3698 = vpack.c.b16 %v3090, %v3086
          %v3699 = vpack.c.b16 %v3095, %v3091
          %v3700 = vpack.c.b16 %v3096, %v3092
          %v3701 = vpack.c.b16 %v3097, %v3093
          %v3702 = vpack.c.b16 %v3098, %v3094
          %v3703 = vpack.c.b16 %v3103, %v3099
          %v3704 = vpack.c.b16 %v3104, %v3100
          %v3705 = vpack.c.b16 %v3105, %v3101
          %v3706 = vpack.c.b16 %v3106, %v3102
          %v3707 = vpack.c.b16 %v3111, %v3107
          %v3708 = vpack.c.b16 %v3112, %v3108
          %v3709 = vpack.c.b16 %v3113, %v3109
          %v3710 = vpack.c.b16 %v3114, %v3110
          %v3711 = vpack.c.b16 %v3119, %v3115
          %v3712 = vpack.c.b16 %v3120, %v3116
          %v3713 = vpack.c.b16 %v3121, %v3117
          %v3714 = vpack.c.b16 %v3122, %v3118
          %v3715 = vpack.c.b16 %v3127, %v3123
          %v3716 = vpack.c.b16 %v3128, %v3124
          %v3717 = vpack.c.b16 %v3129, %v3125
          %v3718 = vpack.c.b16 %v3130, %v3126
          %v3719 = vpack.c.b16 %v3135, %v3131
          %v3720 = vpack.c.b16 %v3136, %v3132
          %v3721 = vpack.c.b16 %v3137, %v3133
          %v3722 = vpack.c.b16 %v3138, %v3134
          %v3723 = vpack.c.b16 %v3143, %v3139
          %v3724 = vpack.c.b16 %v3144, %v3140
          %v3725 = vpack.c.b16 %v3145, %v3141
          %v3726 = vpack.c.b16 %v3146, %v3142
          %v3727 = vpack.c.b16 %v3151, %v3147
          %v3728 = vpack.c.b16 %v3152, %v3148
          %v3729 = vpack.c.b16 %v3153, %v3149
          %v3730 = vpack.c.b16 %v3154, %v3150
          %v3731 = vpack.c.b16 %v3159, %v3155
          %v3732 = vpack.c.b16 %v3160, %v3156
          %v3733 = vpack.c.b16 %v3161, %v3157
          %v3734 = vpack.c.b16 %v3162, %v3158
          %v3735 = vpack.c.b16 %v3167, %v3163
          %v3736 = vpack.c.b16 %v3168, %v3164
          %v3737 = vpack.c.b16 %v3169, %v3165
          %v3738 = vpack.c.b16 %v3170, %v3166
          %v3739 = vpack.c.b16 %v3175, %v3171
          %v3740 = vpack.c.b16 %v3176, %v3172
          %v3741 = vpack.c.b16 %v3177, %v3173
          %v3742 = vpack.c.b16 %v3178, %v3174
          %v3743 = vpack.c.b16 %v3183, %v3179
          %v3744 = vpack.c.b16 %v3184, %v3180
          %v3745 = vpack.c.b16 %v3185, %v3181
          %v3746 = vpack.c.b16 %v3186, %v3182
          %v3747 = vpack.c.b16 %v3191, %v3187
          %v3748 = vpack.c.b16 %v3192, %v3188
          %v3749 = vpack.c.b16 %v3193, %v3189
          %v3750 = vpack.c.b16 %v3194, %v3190
          %v3751 = vpack.c.b16 %v3199, %v3195
          %v3752 = vpack.c.b16 %v3200, %v3196
          %v3753 = vpack.c.b16 %v3201, %v3197
          %v3754 = vpack.c.b16 %v3202, %v3198
          %v3755 = vpack.c.b16 %v3207, %v3203
          %v3756 = vpack.c.b16 %v3208, %v3204
          %v3757 = vpack.c.b16 %v3209, %v3205
          %v3758 = vpack.c.b16 %v3210, %v3206
          %v3759 = vpack.c.b16 %v3215, %v3211
          %v3760 = vpack.c.b16 %v3216, %v3212
          %v3761 = vpack.c.b16 %v3217, %v3213
          %v3762 = vpack.c.b16 %v3218, %v3214
          %v3763 = vpack.c.b16 %v3223, %v3219
          %v3764 = vpack.c.b16 %v3224, %v3220
          %v3765 = vpack.c.b16 %v3225, %v3221
          %v3766 = vpack.c.b16 %v3226, %v3222
          %v3767 = vpack.c.b16 %v3231, %v3227
          %v3768 = vpack.c.b16 %v3232, %v3228
          %v3769 = vpack.c.b16 %v3233, %v3229
          %v3770 = vpack.c.b16 %v3234, %v3230
          %v3771 = vpack.c.b16 %v3239, %v3235
          %v3772 = vpack.c.b16 %v3240, %v3236
          %v3773 = vpack.c.b16 %v3241, %v3237
          %v3774 = vpack.c.b16 %v3242, %v3238
          %v3775 = vpack.c.b16 %v3247, %v3243
          %v3776 = vpack.c.b16 %v3248, %v3244
          %v3777 = vpack.c.b16 %v3249, %v3245
          %v3778 = vpack.c.b16 %v3250, %v3246
          %v3779 = vpack.c.b16 %v3255, %v3251
          %v3780 = vpack.c.b16 %v3256, %v3252
          %v3781 = vpack.c.b16 %v3257, %v3253
          %v3782 = vpack.c.b16 %v3258, %v3254
          %v3783 = vpack.c.b16 %v3263, %v3259
          %v3784 = vpack.c.b16 %v3264, %v3260
          %v3785 = vpack.c.b16 %v3265, %v3261
          %v3786 = vpack.c.b16 %v3266, %v3262
          %v3787 = vpack.c.b16 %v3271, %v3267
          %v3788 = vpack.c.b16 %v3272, %v3268
          %v3789 = vpack.c.b16 %v3273, %v3269
          %v3790 = vpack.c.b16 %v3274, %v3270
          %v3791 = vpack.c.b16 %v3279, %v3275
          %v3792 = vpack.c.b16 %v3280, %v3276
          %v3793 = vpack.c.b16 %v3281, %v3277
          %v3794 = vpack.c.b16 %v3282, %v3278
          %4307 = vmatprep.subr.bf16.mxu0 %v3284
          %4308 = vmatpush1.bf16.msra.mxu0 %v3283
          %4309 = vmatprep.subr.bf16.mxu0 %v3288
          %4310 = vmatpush1.bf16.msra.mxu0 %v3287
          %4311 = vmatprep.subr.bf16.mxu0 %v3292
          %4312 = vmatpush1.bf16.msra.mxu0 %v3291
          %4313 = vmatprep.subr.bf16.mxu0 %v3296
          %4314 = vmatpush1.bf16.msra.mxu0 %v3295
          %4315 = vmatprep.subr.bf16.mxu0 %v3300
          %4316 = vmatpush1.bf16.msra.mxu0 %v3299
          %4317 = vmatprep.subr.bf16.mxu0 %v3304
          %4318 = vmatpush1.bf16.msra.mxu0 %v3303
          %4319 = vmatprep.subr.bf16.mxu0 %v3308
          %4320 = vmatpush1.bf16.msra.mxu0 %v3307
          %4321 = vmatprep.subr.bf16.mxu0 %v3312
          %4322 = vmatpush1.bf16.msra.mxu0 %v3311
          %4323 = vmatprep.subr.bf16.mxu0 %v3316
          %4324 = vmatpush1.bf16.msra.mxu0 %v3315
          %4325 = vmatprep.subr.bf16.mxu0 %v3320
          %4326 = vmatpush1.bf16.msra.mxu0 %v3319
          %4327 = vmatprep.subr.bf16.mxu0 %v3324
          %4328 = vmatpush1.bf16.msra.mxu0 %v3323
          %4329 = vmatprep.subr.bf16.mxu0 %v3328
          %4330 = vmatpush1.bf16.msra.mxu0 %v3327
          %4331 = vmatprep.subr.bf16.mxu0 %v3332
          %4332 = vmatpush1.bf16.msra.mxu0 %v3331
          %4333 = vmatprep.subr.bf16.mxu0 %v3336
          %4334 = vmatpush1.bf16.msra.mxu0 %v3335
          %4335 = vmatprep.subr.bf16.mxu0 %v3340
          %4336 = vmatpush1.bf16.msra.mxu0 %v3339
          %4337 = vmatprep.subr.bf16.mxu0 %v3344
          %4338 = vmatpush1.bf16.msra.mxu0 %v3343
          %4339 = vmatprep.mubr.bf16.mxu0 %v1670
          %4340 = vmatmul.mubr.bf16.gmra.mrb[0].mxu0 %v1656
          %v4341 = vpop.f32.mrb[0].mxu0
          %v4342 = vadd.f32 0.0, %v4341
          %v4343 = vpop.f32.mrb[0].mxu0
          %v4344 = vadd.f32 0.0, %v4343
          %v4345 = vpop.f32.mrb[0].mxu0
          %v4346 = vpop.f32.mrb[0].mxu0
          %4347 = vdwg.mxu0
          %4348 = vmatprep.subr.bf16.mxu0 %v3348
          %4349 = vmatpush1.bf16.msra.mxu0 %v3347
          %4350 = vmatprep.subr.bf16.mxu0 %v3352
          %4351 = vmatpush1.bf16.msra.mxu0 %v3351
          %4352 = vmatprep.subr.bf16.mxu0 %v3356
          %4353 = vmatpush1.bf16.msra.mxu0 %v3355
          %4354 = vmatprep.subr.bf16.mxu0 %v3360
          %4355 = vmatpush1.bf16.msra.mxu0 %v3359
          %4356 = vmatprep.subr.bf16.mxu0 %v3364
          %4357 = vmatpush1.bf16.msra.mxu0 %v3363
          %4358 = vmatprep.subr.bf16.mxu0 %v3368
          %4359 = vmatpush1.bf16.msra.mxu0 %v3367
          %4360 = vmatprep.subr.bf16.mxu0 %v3372
          %4361 = vmatpush1.bf16.msra.mxu0 %v3371
          %4362 = vmatprep.subr.bf16.mxu0 %v3376
          %4363 = vmatpush1.bf16.msra.mxu0 %v3375
          %4364 = vmatprep.subr.bf16.mxu0 %v3380
          %4365 = vmatpush1.bf16.msra.mxu0 %v3379
          %4366 = vmatprep.subr.bf16.mxu0 %v3384
          %4367 = vmatpush1.bf16.msra.mxu0 %v3383
          %4368 = vmatprep.subr.bf16.mxu0 %v3388
          %4369 = vmatpush1.bf16.msra.mxu0 %v3387
          %4370 = vmatprep.subr.bf16.mxu0 %v3392
          %4371 = vmatpush1.bf16.msra.mxu0 %v3391
          %4372 = vmatprep.subr.bf16.mxu0 %v3396
          %4373 = vmatpush1.bf16.msra.mxu0 %v3395
          %4374 = vmatprep.subr.bf16.mxu0 %v3400
          %4375 = vmatpush1.bf16.msra.mxu0 %v3399
          %4376 = vmatprep.subr.bf16.mxu0 %v3404
          %4377 = vmatpush1.bf16.msra.mxu0 %v3403
          %4378 = vmatprep.subr.bf16.mxu0 %v3408
          %4379 = vmatpush1.bf16.msra.mxu0 %v3407
          %4380 = vmatprep.mubr.bf16.mxu0 %v1680
          %4381 = vmatmul.mubr.bf16.gmra.mrb[0].mxu0 %v1678
          %v4382 = vpop.f32.mrb[0].mxu0
          %v4383 = vadd.f32 %v4342, %v4382
          %v4384 = vpop.f32.mrb[0].mxu0
          %v4385 = vadd.f32 %v4344, %v4384
          %v4386 = vpop.f32.mrb[0].mxu0
          %v4387 = vpop.f32.mrb[0].mxu0
          %4388 = vdwg.mxu0
          %4389 = vmatprep.subr.bf16.mxu0 %v3412
          %4390 = vmatpush1.bf16.msra.mxu0 %v3411
          %4391 = vmatprep.subr.bf16.mxu0 %v3416
          %4392 = vmatpush1.bf16.msra.mxu0 %v3415
          %4393 = vmatprep.subr.bf16.mxu0 %v3420
          %4394 = vmatpush1.bf16.msra.mxu0 %v3419
          %4395 = vmatprep.subr.bf16.mxu0 %v3424
          %4396 = vmatpush1.bf16.msra.mxu0 %v3423
          %4397 = vmatprep.subr.bf16.mxu0 %v3428
          %4398 = vmatpush1.bf16.msra.mxu0 %v3427
          %4399 = vmatprep.subr.bf16.mxu0 %v3432
          %4400 = vmatpush1.bf16.msra.mxu0 %v3431
          %4401 = vmatprep.subr.bf16.mxu0 %v3436
          %4402 = vmatpush1.bf16.msra.mxu0 %v3435
          %4403 = vmatprep.subr.bf16.mxu0 %v3440
          %4404 = vmatpush1.bf16.msra.mxu0 %v3439
          %4405 = vmatprep.subr.bf16.mxu0 %v3444
          %4406 = vmatpush1.bf16.msra.mxu0 %v3443
          %4407 = vmatprep.subr.bf16.mxu0 %v3448
          %4408 = vmatpush1.bf16.msra.mxu0 %v3447
          %4409 = vmatprep.subr.bf16.mxu0 %v3452
          %4410 = vmatpush1.bf16.msra.mxu0 %v3451
          %4411 = vmatprep.subr.bf16.mxu0 %v3456
          %4412 = vmatpush1.bf16.msra.mxu0 %v3455
          %4413 = vmatprep.subr.bf16.mxu0 %v3460
          %4414 = vmatpush1.bf16.msra.mxu0 %v3459
          %4415 = vmatprep.subr.bf16.mxu0 %v3464
          %4416 = vmatpush1.bf16.msra.mxu0 %v3463
          %4417 = vmatprep.subr.bf16.mxu0 %v3468
          %4418 = vmatpush1.bf16.msra.mxu0 %v3467
          %4419 = vmatprep.subr.bf16.mxu0 %v3472
          %4420 = vmatpush1.bf16.msra.mxu0 %v3471
          %4421 = vmatprep.mubr.bf16.mxu0 %v1677
          %4422 = vmatmul.mubr.bf16.gmra.mrb[0].mxu0 %v1663
          %v4423 = vpop.f32.mrb[0].mxu0
          %v4424 = vadd.f32 %v4383, %v4423
          %v4425 = vpop.f32.mrb[0].mxu0
          %v4426 = vadd.f32 %v4385, %v4425
          %v4427 = vpop.f32.mrb[0].mxu0
          %v4428 = vpop.f32.mrb[0].mxu0
          %4429 = vdwg.mxu0
          %4430 = vmatprep.subr.bf16.mxu0 %v3476
          %4431 = vmatpush1.bf16.msra.mxu0 %v3475
          %4432 = vmatprep.subr.bf16.mxu0 %v3480
          %4433 = vmatpush1.bf16.msra.mxu0 %v3479
          %4434 = vmatprep.subr.bf16.mxu0 %v3484
          %4435 = vmatpush1.bf16.msra.mxu0 %v3483
          %4436 = vmatprep.subr.bf16.mxu0 %v3488
          %4437 = vmatpush1.bf16.msra.mxu0 %v3487
          %4438 = vmatprep.subr.bf16.mxu0 %v3492
          %4439 = vmatpush1.bf16.msra.mxu0 %v3491
          %4440 = vmatprep.subr.bf16.mxu0 %v3496
          %4441 = vmatpush1.bf16.msra.mxu0 %v3495
          %4442 = vmatprep.subr.bf16.mxu0 %v3500
          %4443 = vmatpush1.bf16.msra.mxu0 %v3499
          %4444 = vmatprep.subr.bf16.mxu0 %v3504
          %4445 = vmatpush1.bf16.msra.mxu0 %v3503
          %4446 = vmatprep.subr.bf16.mxu0 %v3508
          %4447 = vmatpush1.bf16.msra.mxu0 %v3507
          %4448 = vmatprep.subr.bf16.mxu0 %v3512
          %4449 = vmatpush1.bf16.msra.mxu0 %v3511
          %4450 = vmatprep.subr.bf16.mxu0 %v3516
          %4451 = vmatpush1.bf16.msra.mxu0 %v3515
          %4452 = vmatprep.subr.bf16.mxu0 %v3520
          %4453 = vmatpush1.bf16.msra.mxu0 %v3519
          %4454 = vmatprep.subr.bf16.mxu0 %v3524
          %4455 = vmatpush1.bf16.msra.mxu0 %v3523
          %4456 = vmatprep.subr.bf16.mxu0 %v3528
          %4457 = vmatpush1.bf16.msra.mxu0 %v3527
          %4458 = vmatprep.subr.bf16.mxu0 %v3532
          %4459 = vmatpush1.bf16.msra.mxu0 %v3531
          %4460 = vmatprep.subr.bf16.mxu0 %v3536
          %4461 = vmatpush1.bf16.msra.mxu0 %v3535
          %4462 = vmatprep.mubr.bf16.mxu0 %v1681
          %4463 = vmatmul.mubr.bf16.gmra.mrb[0].mxu0 %v1679
          %v4464 = vpop.f32.mrb[0].mxu0
          %v4465 = vadd.f32 %v4424, %v4464
          %v4466 = vpop.f32.mrb[0].mxu0
          %v4467 = vadd.f32 %v4426, %v4466
          %v4468 = vpop.f32.mrb[0].mxu0
          %v4469 = vpop.f32.mrb[0].mxu0
          %4470 = vdwg.mxu0
          %4471 = vmatprep.subr.bf16.mxu0 %v3540
          %4472 = vmatpush1.bf16.msra.mxu0 %v3539
          %4473 = vmatprep.subr.bf16.mxu0 %v3544
          %4474 = vmatpush1.bf16.msra.mxu0 %v3543
          %4475 = vmatprep.subr.bf16.mxu0 %v3548
          %4476 = vmatpush1.bf16.msra.mxu0 %v3547
          %4477 = vmatprep.subr.bf16.mxu0 %v3552
          %4478 = vmatpush1.bf16.msra.mxu0 %v3551
          %4479 = vmatprep.subr.bf16.mxu0 %v3556
          %4480 = vmatpush1.bf16.msra.mxu0 %v3555
          %4481 = vmatprep.subr.bf16.mxu0 %v3560
          %4482 = vmatpush1.bf16.msra.mxu0 %v3559
          %4483 = vmatprep.subr.bf16.mxu0 %v3564
          %4484 = vmatpush1.bf16.msra.mxu0 %v3563
          %4485 = vmatprep.subr.bf16.mxu0 %v3568
          %4486 = vmatpush1.bf16.msra.mxu0 %v3567
          %4487 = vmatprep.subr.bf16.mxu0 %v3572
          %4488 = vmatpush1.bf16.msra.mxu0 %v3571
          %4489 = vmatprep.subr.bf16.mxu0 %v3576
          %4490 = vmatpush1.bf16.msra.mxu0 %v3575
          %4491 = vmatprep.subr.bf16.mxu0 %v3580
          %4492 = vmatpush1.bf16.msra.mxu0 %v3579
          %4493 = vmatprep.subr.bf16.mxu0 %v3584
          %4494 = vmatpush1.bf16.msra.mxu0 %v3583
          %4495 = vmatprep.subr.bf16.mxu0 %v3588
          %4496 = vmatpush1.bf16.msra.mxu0 %v3587
          %4497 = vmatprep.subr.bf16.mxu0 %v3592
          %4498 = vmatpush1.bf16.msra.mxu0 %v3591
          %4499 = vmatprep.subr.bf16.mxu0 %v3596
          %4500 = vmatpush1.bf16.msra.mxu0 %v3595
          %4501 = vmatprep.subr.bf16.mxu0 %v3600
          %4502 = vmatpush1.bf16.msra.mxu0 %v3599
          %4503 = vmatprep.mubr.bf16.mxu0 %v1719
          %4504 = vmatmul.mubr.bf16.gmra.mrb[0].mxu0 %v1705
          %v4505 = vpop.f32.mrb[0].mxu0
          %v4506 = vadd.f32 %v4465, %v4505
          %v4507 = vpop.f32.mrb[0].mxu0
          %v4508 = vadd.f32 %v4467, %v4507
          %v4509 = vpop.f32.mrb[0].mxu0
          %v4510 = vpop.f32.mrb[0].mxu0
          %4511 = vdwg.mxu0
          %4512 = vmatprep.subr.bf16.mxu0 %v3604
          %4513 = vmatpush1.bf16.msra.mxu0 %v3603
          %4514 = vmatprep.subr.bf16.mxu0 %v3608
          %4515 = vmatpush1.bf16.msra.mxu0 %v3607
          %4516 = vmatprep.subr.bf16.mxu0 %v3612
          %4517 = vmatpush1.bf16.msra.mxu0 %v3611
          %4518 = vmatprep.subr.bf16.mxu0 %v3616
          %4519 = vmatpush1.bf16.msra.mxu0 %v3615
          %4520 = vmatprep.subr.bf16.mxu0 %v3620
          %4521 = vmatpush1.bf16.msra.mxu0 %v3619
          %4522 = vmatprep.subr.bf16.mxu0 %v3624
          %4523 = vmatpush1.bf16.msra.mxu0 %v3623
          %4524 = vmatprep.subr.bf16.mxu0 %v3628
          %4525 = vmatpush1.bf16.msra.mxu0 %v3627
          %4526 = vmatprep.subr.bf16.mxu0 %v3632
          %4527 = vmatpush1.bf16.msra.mxu0 %v3631
          %4528 = vmatprep.subr.bf16.mxu0 %v3636
          %4529 = vmatpush1.bf16.msra.mxu0 %v3635
          %4530 = vmatprep.subr.bf16.mxu0 %v3640
          %4531 = vmatpush1.bf16.msra.mxu0 %v3639
          %4532 = vmatprep.subr.bf16.mxu0 %v3644
          %4533 = vmatpush1.bf16.msra.mxu0 %v3643
          %4534 = vmatprep.subr.bf16.mxu0 %v3648
          %4535 = vmatpush1.bf16.msra.mxu0 %v3647
          %4536 = vmatprep.subr.bf16.mxu0 %v3652
          %4537 = vmatpush1.bf16.msra.mxu0 %v3651
          %4538 = vmatprep.subr.bf16.mxu0 %v3656
          %4539 = vmatpush1.bf16.msra.mxu0 %v3655
          %4540 = vmatprep.subr.bf16.mxu0 %v3660
          %4541 = vmatpush1.bf16.msra.mxu0 %v3659
          %4542 = vmatprep.subr.bf16.mxu0 %v3664
          %4543 = vmatpush1.bf16.msra.mxu0 %v3663
          %4544 = vmatprep.mubr.bf16.mxu0 %v1729
          %4545 = vmatmul.mubr.bf16.gmra.mrb[0].mxu0 %v1727
          %v4546 = vpop.f32.mrb[0].mxu0
          %v4547 = vadd.f32 %v4506, %v4546
          %v4548 = vpop.f32.mrb[0].mxu0
          %v4549 = vadd.f32 %v4508, %v4548
          %v4550 = vpop.f32.mrb[0].mxu0
          %v4551 = vpop.f32.mrb[0].mxu0
          %4552 = vdwg.mxu0
          %4553 = vmatprep.subr.bf16.mxu0 %v3668
          %4554 = vmatpush1.bf16.msra.mxu0 %v3667
          %4555 = vmatprep.subr.bf16.mxu0 %v3672
          %4556 = vmatpush1.bf16.msra.mxu0 %v3671
          %4557 = vmatprep.subr.bf16.mxu0 %v3676
          %4558 = vmatpush1.bf16.msra.mxu0 %v3675
          %4559 = vmatprep.subr.bf16.mxu0 %v3680
          %4560 = vmatpush1.bf16.msra.mxu0 %v3679
          %4561 = vmatprep.subr.bf16.mxu0 %v3684
          %4562 = vmatpush1.bf16.msra.mxu0 %v3683
          %4563 = vmatprep.subr.bf16.mxu0 %v3688
          %4564 = vmatpush1.bf16.msra.mxu0 %v3687
          %4565 = vmatprep.subr.bf16.mxu0 %v3692
          %4566 = vmatpush1.bf16.msra.mxu0 %v3691
          %4567 = vmatprep.subr.bf16.mxu0 %v3696
          %4568 = vmatpush1.bf16.msra.mxu0 %v3695
          %4569 = vmatprep.subr.bf16.mxu0 %v3700
          %4570 = vmatpush1.bf16.msra.mxu0 %v3699
          %4571 = vmatprep.subr.bf16.mxu0 %v3704
          %4572 = vmatpush1.bf16.msra.mxu0 %v3703
          %4573 = vmatprep.subr.bf16.mxu0 %v3708
          %4574 = vmatpush1.bf16.msra.mxu0 %v3707
          %4575 = vmatprep.subr.bf16.mxu0 %v3712
          %4576 = vmatpush1.bf16.msra.mxu0 %v3711
          %4577 = vmatprep.subr.bf16.mxu0 %v3716
          %4578 = vmatpush1.bf16.msra.mxu0 %v3715
          %4579 = vmatprep.subr.bf16.mxu0 %v3720
          %4580 = vmatpush1.bf16.msra.mxu0 %v3719
          %4581 = vmatprep.subr.bf16.mxu0 %v3724
          %4582 = vmatpush1.bf16.msra.mxu0 %v3723
          %4583 = vmatprep.subr.bf16.mxu0 %v3728
          %4584 = vmatpush1.bf16.msra.mxu0 %v3727
          %4585 = vmatprep.mubr.bf16.mxu0 %v1726
          %4586 = vmatmul.mubr.bf16.gmra.mrb[0].mxu0 %v1712
          %v4587 = vpop.f32.mrb[0].mxu0
          %v4588 = vadd.f32 %v4547, %v4587
          %v4589 = vpop.f32.mrb[0].mxu0
          %v4590 = vadd.f32 %v4549, %v4589
          %v4591 = vpop.f32.mrb[0].mxu0
          %v4592 = vpop.f32.mrb[0].mxu0
          %4593 = vdwg.mxu0
          %4594 = vmatprep.subr.bf16.mxu0 %v3732
          %4595 = vmatpush1.bf16.msra.mxu0 %v3731
          %4596 = vmatprep.subr.bf16.mxu0 %v3736
          %4597 = vmatpush1.bf16.msra.mxu0 %v3735
          %4598 = vmatprep.subr.bf16.mxu0 %v3740
          %4599 = vmatpush1.bf16.msra.mxu0 %v3739
          %4600 = vmatprep.subr.bf16.mxu0 %v3744
          %4601 = vmatpush1.bf16.msra.mxu0 %v3743
          %4602 = vmatprep.subr.bf16.mxu0 %v3748
          %4603 = vmatpush1.bf16.msra.mxu0 %v3747
          %4604 = vmatprep.subr.bf16.mxu0 %v3752
          %4605 = vmatpush1.bf16.msra.mxu0 %v3751
          %4606 = vmatprep.subr.bf16.mxu0 %v3756
          %4607 = vmatpush1.bf16.msra.mxu0 %v3755
          %4608 = vmatprep.subr.bf16.mxu0 %v3760
          %4609 = vmatpush1.bf16.msra.mxu0 %v3759
          %4610 = vmatprep.subr.bf16.mxu0 %v3764
          %4611 = vmatpush1.bf16.msra.mxu0 %v3763
          %4612 = vmatprep.subr.bf16.mxu0 %v3768
          %4613 = vmatpush1.bf16.msra.mxu0 %v3767
          %4614 = vmatprep.subr.bf16.mxu0 %v3772
          %4615 = vmatpush1.bf16.msra.mxu0 %v3771
          %4616 = vmatprep.subr.bf16.mxu0 %v3776
          %4617 = vmatpush1.bf16.msra.mxu0 %v3775
          %4618 = vmatprep.subr.bf16.mxu0 %v3780
          %4619 = vmatpush1.bf16.msra.mxu0 %v3779
          %4620 = vmatprep.subr.bf16.mxu0 %v3784
          %4621 = vmatpush1.bf16.msra.mxu0 %v3783
          %4622 = vmatprep.subr.bf16.mxu0 %v3788
          %4623 = vmatpush1.bf16.msra.mxu0 %v3787
          %4624 = vmatprep.subr.bf16.mxu0 %v3792
          %4625 = vmatpush1.bf16.msra.mxu0 %v3791
          %4626 = vmatprep.mubr.bf16.mxu0 %v1730
          %4627 = vmatmul.mubr.bf16.gmra.mrb[0].mxu0 %v1728
          %v4628 = vpop.f32.mrb[0].mxu0
          %v4629 = vadd.f32 %v4588, %v4628
          %v4630 = vpop.f32.mrb[0].mxu0
          %v4631 = vadd.f32 %v4590, %v4630
          %v4632 = vpop.f32.mrb[0].mxu0
          %v4633 = vpop.f32.mrb[0].mxu0
          %4634 = vdwg.mxu0
          %4635 = vmatprep.subr.bf16.mxu0 %v3286
          %4636 = vmatpush1.bf16.msra.mxu0 %v3285
          %4637 = vmatprep.subr.bf16.mxu0 %v3290
          %4638 = vmatpush1.bf16.msra.mxu0 %v3289
          %4639 = vmatprep.subr.bf16.mxu0 %v3294
          %4640 = vmatpush1.bf16.msra.mxu0 %v3293
          %4641 = vmatprep.subr.bf16.mxu0 %v3298
          %4642 = vmatpush1.bf16.msra.mxu0 %v3297
          %4643 = vmatprep.subr.bf16.mxu0 %v3302
          %4644 = vmatpush1.bf16.msra.mxu0 %v3301
          %4645 = vmatprep.subr.bf16.mxu0 %v3306
          %4646 = vmatpush1.bf16.msra.mxu0 %v3305
          %4647 = vmatprep.subr.bf16.mxu0 %v3310
          %4648 = vmatpush1.bf16.msra.mxu0 %v3309
          %4649 = vmatprep.subr.bf16.mxu0 %v3314
          %4650 = vmatpush1.bf16.msra.mxu0 %v3313
          %4651 = vmatprep.subr.bf16.mxu0 %v3318
          %4652 = vmatpush1.bf16.msra.mxu0 %v3317
          %4653 = vmatprep.subr.bf16.mxu0 %v3322
          %4654 = vmatpush1.bf16.msra.mxu0 %v3321
          %4655 = vmatprep.subr.bf16.mxu0 %v3326
          %4656 = vmatpush1.bf16.msra.mxu0 %v3325
          %4657 = vmatprep.subr.bf16.mxu0 %v3330
          %4658 = vmatpush1.bf16.msra.mxu0 %v3329
          %4659 = vmatprep.subr.bf16.mxu0 %v3334
          %4660 = vmatpush1.bf16.msra.mxu0 %v3333
          %4661 = vmatprep.subr.bf16.mxu0 %v3338
          %4662 = vmatpush1.bf16.msra.mxu0 %v3337
          %4663 = vmatprep.subr.bf16.mxu0 %v3342
          %4664 = vmatpush1.bf16.msra.mxu0 %v3341
          %4665 = vmatprep.subr.bf16.mxu0 %v3346
          %4666 = vmatpush1.bf16.msra.mxu0 %v3345
          %4667 = vmatprep.mubr.bf16.mxu0 %v1670
          %4668 = vmatmul.mubr.bf16.gmra.mrb[0].mxu0 %v1656
          %v4669 = vpop.f32.mrb[0].mxu0
          %v4670 = vadd.f32 0.0, %v4669
          %v4671 = vpop.f32.mrb[0].mxu0
          %v4672 = vadd.f32 0.0, %v4671
          %v4673 = vpop.f32.mrb[0].mxu0
          %v4674 = vpop.f32.mrb[0].mxu0
          %4675 = vdwg.mxu0
          %4676 = vmatprep.subr.bf16.mxu0 %v3350
          %4677 = vmatpush1.bf16.msra.mxu0 %v3349
          %4678 = vmatprep.subr.bf16.mxu0 %v3354
          %4679 = vmatpush1.bf16.msra.mxu0 %v3353
          %4680 = vmatprep.subr.bf16.mxu0 %v3358
          %4681 = vmatpush1.bf16.msra.mxu0 %v3357
          %4682 = vmatprep.subr.bf16.mxu0 %v3362
          %4683 = vmatpush1.bf16.msra.mxu0 %v3361
          %4684 = vmatprep.subr.bf16.mxu0 %v3366
          %4685 = vmatpush1.bf16.msra.mxu0 %v3365
          %4686 = vmatprep.subr.bf16.mxu0 %v3370
          %4687 = vmatpush1.bf16.msra.mxu0 %v3369
          %4688 = vmatprep.subr.bf16.mxu0 %v3374
          %4689 = vmatpush1.bf16.msra.mxu0 %v3373
          %4690 = vmatprep.subr.bf16.mxu0 %v3378
          %4691 = vmatpush1.bf16.msra.mxu0 %v3377
          %4692 = vmatprep.subr.bf16.mxu0 %v3382
          %4693 = vmatpush1.bf16.msra.mxu0 %v3381
          %4694 = vmatprep.subr.bf16.mxu0 %v3386
          %4695 = vmatpush1.bf16.msra.mxu0 %v3385
          %4696 = vmatprep.subr.bf16.mxu0 %v3390
          %4697 = vmatpush1.bf16.msra.mxu0 %v3389
          %4698 = vmatprep.subr.bf16.mxu0 %v3394
          %4699 = vmatpush1.bf16.msra.mxu0 %v3393
          %4700 = vmatprep.subr.bf16.mxu0 %v3398
          %4701 = vmatpush1.bf16.msra.mxu0 %v3397
          %4702 = vmatprep.subr.bf16.mxu0 %v3402
          %4703 = vmatpush1.bf16.msra.mxu0 %v3401
          %4704 = vmatprep.subr.bf16.mxu0 %v3406
          %4705 = vmatpush1.bf16.msra.mxu0 %v3405
          %4706 = vmatprep.subr.bf16.mxu0 %v3410
          %4707 = vmatpush1.bf16.msra.mxu0 %v3409
          %4708 = vmatprep.mubr.bf16.mxu0 %v1680
          %4709 = vmatmul.mubr.bf16.gmra.mrb[0].mxu0 %v1678
          %v4710 = vpop.f32.mrb[0].mxu0
          %v4711 = vadd.f32 %v4670, %v4710
          %v4712 = vpop.f32.mrb[0].mxu0
          %v4713 = vadd.f32 %v4672, %v4712
          %v4714 = vpop.f32.mrb[0].mxu0
          %v4715 = vpop.f32.mrb[0].mxu0
          %4716 = vdwg.mxu0
          %4717 = vmatprep.subr.bf16.mxu0 %v3414
          %4718 = vmatpush1.bf16.msra.mxu0 %v3413
          %4719 = vmatprep.subr.bf16.mxu0 %v3418
          %4720 = vmatpush1.bf16.msra.mxu0 %v3417
          %4721 = vmatprep.subr.bf16.mxu0 %v3422
          %4722 = vmatpush1.bf16.msra.mxu0 %v3421
          %4723 = vmatprep.subr.bf16.mxu0 %v3426
          %4724 = vmatpush1.bf16.msra.mxu0 %v3425
          %4725 = vmatprep.subr.bf16.mxu0 %v3430
          %4726 = vmatpush1.bf16.msra.mxu0 %v3429
          %4727 = vmatprep.subr.bf16.mxu0 %v3434
          %4728 = vmatpush1.bf16.msra.mxu0 %v3433
          %4729 = vmatprep.subr.bf16.mxu0 %v3438
          %4730 = vmatpush1.bf16.msra.mxu0 %v3437
          %4731 = vmatprep.subr.bf16.mxu0 %v3442
          %4732 = vmatpush1.bf16.msra.mxu0 %v3441
          %4733 = vmatprep.subr.bf16.mxu0 %v3446
          %4734 = vmatpush1.bf16.msra.mxu0 %v3445
          %4735 = vmatprep.subr.bf16.mxu0 %v3450
          %4736 = vmatpush1.bf16.msra.mxu0 %v3449
          %4737 = vmatprep.subr.bf16.mxu0 %v3454
          %4738 = vmatpush1.bf16.msra.mxu0 %v3453
          %4739 = vmatprep.subr.bf16.mxu0 %v3458
          %4740 = vmatpush1.bf16.msra.mxu0 %v3457
          %4741 = vmatprep.subr.bf16.mxu0 %v3462
          %4742 = vmatpush1.bf16.msra.mxu0 %v3461
          %4743 = vmatprep.subr.bf16.mxu0 %v3466
          %4744 = vmatpush1.bf16.msra.mxu0 %v3465
          %4745 = vmatprep.subr.bf16.mxu0 %v3470
          %4746 = vmatpush1.bf16.msra.mxu0 %v3469
          %4747 = vmatprep.subr.bf16.mxu0 %v3474
          %4748 = vmatpush1.bf16.msra.mxu0 %v3473
          %4749 = vmatprep.mubr.bf16.mxu0 %v1677
          %4750 = vmatmul.mubr.bf16.gmra.mrb[0].mxu0 %v1663
          %v4751 = vpop.f32.mrb[0].mxu0
          %v4752 = vadd.f32 %v4711, %v4751
          %v4753 = vpop.f32.mrb[0].mxu0
          %v4754 = vadd.f32 %v4713, %v4753
          %v4755 = vpop.f32.mrb[0].mxu0
          %v4756 = vpop.f32.mrb[0].mxu0
          %4757 = vdwg.mxu0
          %4758 = vmatprep.subr.bf16.mxu0 %v3478
          %4759 = vmatpush1.bf16.msra.mxu0 %v3477
          %4760 = vmatprep.subr.bf16.mxu0 %v3482
          %4761 = vmatpush1.bf16.msra.mxu0 %v3481
          %4762 = vmatprep.subr.bf16.mxu0 %v3486
          %4763 = vmatpush1.bf16.msra.mxu0 %v3485
          %4764 = vmatprep.subr.bf16.mxu0 %v3490
          %4765 = vmatpush1.bf16.msra.mxu0 %v3489
          %4766 = vmatprep.subr.bf16.mxu0 %v3494
          %4767 = vmatpush1.bf16.msra.mxu0 %v3493
          %4768 = vmatprep.subr.bf16.mxu0 %v3498
          %4769 = vmatpush1.bf16.msra.mxu0 %v3497
          %4770 = vmatprep.subr.bf16.mxu0 %v3502
          %4771 = vmatpush1.bf16.msra.mxu0 %v3501
          %4772 = vmatprep.subr.bf16.mxu0 %v3506
          %4773 = vmatpush1.bf16.msra.mxu0 %v3505
          %4774 = vmatprep.subr.bf16.mxu0 %v3510
          %4775 = vmatpush1.bf16.msra.mxu0 %v3509
          %4776 = vmatprep.subr.bf16.mxu0 %v3514
          %4777 = vmatpush1.bf16.msra.mxu0 %v3513
          %4778 = vmatprep.subr.bf16.mxu0 %v3518
          %4779 = vmatpush1.bf16.msra.mxu0 %v3517
          %4780 = vmatprep.subr.bf16.mxu0 %v3522
          %4781 = vmatpush1.bf16.msra.mxu0 %v3521
          %4782 = vmatprep.subr.bf16.mxu0 %v3526
          %4783 = vmatpush1.bf16.msra.mxu0 %v3525
          %4784 = vmatprep.subr.bf16.mxu0 %v3530
          %4785 = vmatpush1.bf16.msra.mxu0 %v3529
          %4786 = vmatprep.subr.bf16.mxu0 %v3534
          %4787 = vmatpush1.bf16.msra.mxu0 %v3533
          %4788 = vmatprep.subr.bf16.mxu0 %v3538
          %4789 = vmatpush1.bf16.msra.mxu0 %v3537
          %4790 = vmatprep.mubr.bf16.mxu0 %v1681
          %4791 = vmatmul.mubr.bf16.gmra.mrb[0].mxu0 %v1679
          %v4792 = vpop.f32.mrb[0].mxu0
          %v4793 = vadd.f32 %v4752, %v4792
          %v4794 = vpop.f32.mrb[0].mxu0
          %v4795 = vadd.f32 %v4754, %v4794
          %v4796 = vpop.f32.mrb[0].mxu0
          %v4797 = vpop.f32.mrb[0].mxu0
          %4798 = vdwg.mxu0
          %4799 = vmatprep.subr.bf16.mxu0 %v3542
          %4800 = vmatpush1.bf16.msra.mxu0 %v3541
          %4801 = vmatprep.subr.bf16.mxu0 %v3546
          %4802 = vmatpush1.bf16.msra.mxu0 %v3545
          %4803 = vmatprep.subr.bf16.mxu0 %v3550
          %4804 = vmatpush1.bf16.msra.mxu0 %v3549
          %4805 = vmatprep.subr.bf16.mxu0 %v3554
          %4806 = vmatpush1.bf16.msra.mxu0 %v3553
          %4807 = vmatprep.subr.bf16.mxu0 %v3558
          %4808 = vmatpush1.bf16.msra.mxu0 %v3557
          %4809 = vmatprep.subr.bf16.mxu0 %v3562
          %4810 = vmatpush1.bf16.msra.mxu0 %v3561
          %4811 = vmatprep.subr.bf16.mxu0 %v3566
          %4812 = vmatpush1.bf16.msra.mxu0 %v3565
          %4813 = vmatprep.subr.bf16.mxu0 %v3570
          %4814 = vmatpush1.bf16.msra.mxu0 %v3569
          %4815 = vmatprep.subr.bf16.mxu0 %v3574
          %4816 = vmatpush1.bf16.msra.mxu0 %v3573
          %4817 = vmatprep.subr.bf16.mxu0 %v3578
          %4818 = vmatpush1.bf16.msra.mxu0 %v3577
          %4819 = vmatprep.subr.bf16.mxu0 %v3582
          %4820 = vmatpush1.bf16.msra.mxu0 %v3581
          %4821 = vmatprep.subr.bf16.mxu0 %v3586
          %4822 = vmatpush1.bf16.msra.mxu0 %v3585
          %4823 = vmatprep.subr.bf16.mxu0 %v3590
          %4824 = vmatpush1.bf16.msra.mxu0 %v3589
          %4825 = vmatprep.subr.bf16.mxu0 %v3594
          %4826 = vmatpush1.bf16.msra.mxu0 %v3593
          %4827 = vmatprep.subr.bf16.mxu0 %v3598
          %4828 = vmatpush1.bf16.msra.mxu0 %v3597
          %4829 = vmatprep.subr.bf16.mxu0 %v3602
          %4830 = vmatpush1.bf16.msra.mxu0 %v3601
          %4831 = vmatprep.mubr.bf16.mxu0 %v1719
          %4832 = vmatmul.mubr.bf16.gmra.mrb[0].mxu0 %v1705
          %v4833 = vpop.f32.mrb[0].mxu0
          %v4834 = vadd.f32 %v4793, %v4833
          %v4835 = vpop.f32.mrb[0].mxu0
          %v4836 = vadd.f32 %v4795, %v4835
          %v4837 = vpop.f32.mrb[0].mxu0
          %v4838 = vpop.f32.mrb[0].mxu0
          %4839 = vdwg.mxu0
          %4840 = vmatprep.subr.bf16.mxu0 %v3606
          %4841 = vmatpush1.bf16.msra.mxu0 %v3605
          %4842 = vmatprep.subr.bf16.mxu0 %v3610
          %4843 = vmatpush1.bf16.msra.mxu0 %v3609
          %4844 = vmatprep.subr.bf16.mxu0 %v3614
          %4845 = vmatpush1.bf16.msra.mxu0 %v3613
          %4846 = vmatprep.subr.bf16.mxu0 %v3618
          %4847 = vmatpush1.bf16.msra.mxu0 %v3617
          %4848 = vmatprep.subr.bf16.mxu0 %v3622
          %4849 = vmatpush1.bf16.msra.mxu0 %v3621
          %4850 = vmatprep.subr.bf16.mxu0 %v3626
          %4851 = vmatpush1.bf16.msra.mxu0 %v3625
          %4852 = vmatprep.subr.bf16.mxu0 %v3630
          %4853 = vmatpush1.bf16.msra.mxu0 %v3629
          %4854 = vmatprep.subr.bf16.mxu0 %v3634
          %4855 = vmatpush1.bf16.msra.mxu0 %v3633
          %4856 = vmatprep.subr.bf16.mxu0 %v3638
          %4857 = vmatpush1.bf16.msra.mxu0 %v3637
          %4858 = vmatprep.subr.bf16.mxu0 %v3642
          %4859 = vmatpush1.bf16.msra.mxu0 %v3641
          %4860 = vmatprep.subr.bf16.mxu0 %v3646
          %4861 = vmatpush1.bf16.msra.mxu0 %v3645
          %4862 = vmatprep.subr.bf16.mxu0 %v3650
          %4863 = vmatpush1.bf16.msra.mxu0 %v3649
          %4864 = vmatprep.subr.bf16.mxu0 %v3654
          %4865 = vmatpush1.bf16.msra.mxu0 %v3653
          %4866 = vmatprep.subr.bf16.mxu0 %v3658
          %4867 = vmatpush1.bf16.msra.mxu0 %v3657
          %4868 = vmatprep.subr.bf16.mxu0 %v3662
          %4869 = vmatpush1.bf16.msra.mxu0 %v3661
          %4870 = vmatprep.subr.bf16.mxu0 %v3666
          %4871 = vmatpush1.bf16.msra.mxu0 %v3665
          %4872 = vmatprep.mubr.bf16.mxu0 %v1729
          %4873 = vmatmul.mubr.bf16.gmra.mrb[0].mxu0 %v1727
          %v4874 = vpop.f32.mrb[0].mxu0
          %v4875 = vadd.f32 %v4834, %v4874
          %v4876 = vpop.f32.mrb[0].mxu0
          %v4877 = vadd.f32 %v4836, %v4876
          %v4878 = vpop.f32.mrb[0].mxu0
          %v4879 = vpop.f32.mrb[0].mxu0
          %4880 = vdwg.mxu0
          %4881 = vmatprep.subr.bf16.mxu0 %v3670
          %4882 = vmatpush1.bf16.msra.mxu0 %v3669
          %4883 = vmatprep.subr.bf16.mxu0 %v3674
          %4884 = vmatpush1.bf16.msra.mxu0 %v3673
          %4885 = vmatprep.subr.bf16.mxu0 %v3678
          %4886 = vmatpush1.bf16.msra.mxu0 %v3677
          %4887 = vmatprep.subr.bf16.mxu0 %v3682
          %4888 = vmatpush1.bf16.msra.mxu0 %v3681
          %4889 = vmatprep.subr.bf16.mxu0 %v3686
          %4890 = vmatpush1.bf16.msra.mxu0 %v3685
          %4891 = vmatprep.subr.bf16.mxu0 %v3690
          %4892 = vmatpush1.bf16.msra.mxu0 %v3689
          %4893 = vmatprep.subr.bf16.mxu0 %v3694
          %4894 = vmatpush1.bf16.msra.mxu0 %v3693
          %4895 = vmatprep.subr.bf16.mxu0 %v3698
          %4896 = vmatpush1.bf16.msra.mxu0 %v3697
          %4897 = vmatprep.subr.bf16.mxu0 %v3702
          %4898 = vmatpush1.bf16.msra.mxu0 %v3701
          %4899 = vmatprep.subr.bf16.mxu0 %v3706
          %4900 = vmatpush1.bf16.msra.mxu0 %v3705
          %4901 = vmatprep.subr.bf16.mxu0 %v3710
          %4902 = vmatpush1.bf16.msra.mxu0 %v3709
          %4903 = vmatprep.subr.bf16.mxu0 %v3714
          %4904 = vmatpush1.bf16.msra.mxu0 %v3713
          %4905 = vmatprep.subr.bf16.mxu0 %v3718
          %4906 = vmatpush1.bf16.msra.mxu0 %v3717
          %4907 = vmatprep.subr.bf16.mxu0 %v3722
          %4908 = vmatpush1.bf16.msra.mxu0 %v3721
          %4909 = vmatprep.subr.bf16.mxu0 %v3726
          %4910 = vmatpush1.bf16.msra.mxu0 %v3725
          %4911 = vmatprep.subr.bf16.mxu0 %v3730
          %4912 = vmatpush1.bf16.msra.mxu0 %v3729
          %4913 = vmatprep.mubr.bf16.mxu0 %v1726
          %4914 = vmatmul.mubr.bf16.gmra.mrb[0].mxu0 %v1712
          %v4915 = vpop.f32.mrb[0].mxu0
          %v4916 = vadd.f32 %v4875, %v4915
          %v4917 = vpop.f32.mrb[0].mxu0
          %v4918 = vadd.f32 %v4877, %v4917
          %v4919 = vpop.f32.mrb[0].mxu0
          %v4920 = vpop.f32.mrb[0].mxu0
          %4921 = vdwg.mxu0
          %4922 = vmatprep.subr.bf16.mxu0 %v3734
          %4923 = vmatpush1.bf16.msra.mxu0 %v3733
          %4924 = vmatprep.subr.bf16.mxu0 %v3738
          %4925 = vmatpush1.bf16.msra.mxu0 %v3737
          %4926 = vmatprep.subr.bf16.mxu0 %v3742
          %4927 = vmatpush1.bf16.msra.mxu0 %v3741
          %4928 = vmatprep.subr.bf16.mxu0 %v3746
          %4929 = vmatpush1.bf16.msra.mxu0 %v3745
          %4930 = vmatprep.subr.bf16.mxu0 %v3750
          %4931 = vmatpush1.bf16.msra.mxu0 %v3749
          %4932 = vmatprep.subr.bf16.mxu0 %v3754
          %4933 = vmatpush1.bf16.msra.mxu0 %v3753
          %4934 = vmatprep.subr.bf16.mxu0 %v3758
          %4935 = vmatpush1.bf16.msra.mxu0 %v3757
          %4936 = vmatprep.subr.bf16.mxu0 %v3762
          %4937 = vmatpush1.bf16.msra.mxu0 %v3761
          %4938 = vmatprep.subr.bf16.mxu0 %v3766
          %4939 = vmatpush1.bf16.msra.mxu0 %v3765
          %4940 = vmatprep.subr.bf16.mxu0 %v3770
          %4941 = vmatpush1.bf16.msra.mxu0 %v3769
          %4942 = vmatprep.subr.bf16.mxu0 %v3774
          %4943 = vmatpush1.bf16.msra.mxu0 %v3773
          %4944 = vmatprep.subr.bf16.mxu0 %v3778
          %4945 = vmatpush1.bf16.msra.mxu0 %v3777
          %4946 = vmatprep.subr.bf16.mxu0 %v3782
          %4947 = vmatpush1.bf16.msra.mxu0 %v3781
          %4948 = vmatprep.subr.bf16.mxu0 %v3786
          %4949 = vmatpush1.bf16.msra.mxu0 %v3785
          %4950 = vmatprep.subr.bf16.mxu0 %v3790
          %4951 = vmatpush1.bf16.msra.mxu0 %v3789
          %4952 = vmatprep.subr.bf16.mxu0 %v3794
          %4953 = vmatpush1.bf16.msra.mxu0 %v3793
          %4954 = vmatprep.mubr.bf16.mxu0 %v1730
          %4955 = vmatmul.mubr.bf16.gmra.mrb[0].mxu0 %v1728
          %v4956 = vpop.f32.mrb[0].mxu0
          %v4957 = vadd.f32 %v4916, %v4956
          %v4958 = vpop.f32.mrb[0].mxu0
          %v4959 = vadd.f32 %v4918, %v4958
          %v4960 = vpop.f32.mrb[0].mxu0
          %v4961 = vpop.f32.mrb[0].mxu0
          %4962 = vdwg.mxu0
          %v4967 = vcombine.low %v4629, %v4631
          %v4968 = vcombine.low %v4957, %v4959
          %v4970 = vunpack.c.l.s4 1983009808
          %v4971 = vunpack.c.0.s8 %v4970
          %v4972 = vlaneseq
          %v4973 = vshrl.u32 %v4972, 7
          %v4974 = vsub.s32 %v4971, %v4973
          %v4975 = vrot.slane %v4967, %v4974
          %v4977 = vunpack.c.l.s4 1983009808
          %v4978 = vunpack.c.0.s8 %v4977
          %v4979 = vlaneseq
          %v4980 = vshrl.u32 %v4979, 7
          %v4981 = vsub.s32 %v4978, %v4980
          %v4982 = vrot.slane %v4968, %v4981
          %v4983 = vcombine.low %v4975, %v4982
          %v4985 = vadd.f32 %v1118, %v4983
          %4986 = vst [vmem:[#allocation2] sm:$0xff] %v4985
          %p4987 = scmp.eq.s32.totalorder %s44, 1
          // Predicated region
          $region129: #{tpu_custom_call.1} parent=123 // pred_check
            %p4988 = pneg %p4987
          $region130: #{tpu_custom_call.1} parent=123 // pred_check_branch
            %4990 = sbr.rel (%p4988) target = $region132
          $region131: #{tpu_custom_call.1} parent=123 // pred_region
            %v4991 = vld [vmem:[#allocation2] sm:$0xff]
            %v4992 = vld [vmem:[#allocation10] sm:$0xf]
            %v4994 = vlaneseq
            %v4995 = vshrl.u32 %v4994, 7
            %v4996 = vsub.s32 0, %v4995
            %v4997 = vrot.slane %v4992, %v4996
            %v4998 = vlaneseq
            %v4999 = vshrl.u32 %v4998, 7
            %v5000 = vsub.s32 1, %v4999
            %v5001 = vrot.slane %v4992, %v5000
            %v5002 = vlaneseq
            %v5003 = vshrl.u32 %v5002, 7
            %v5004 = vsub.s32 2, %v5003
            %v5005 = vrot.slane %v4992, %v5004
            %v5006 = vlaneseq
            %v5007 = vshrl.u32 %v5006, 7
            %v5008 = vsub.s32 3, %v5007
            %v5009 = vrot.slane %v4992, %v5008
            %v5010 = vcombine.low %v4997, %v5001
            %v5011 = vcombine.low %v5005, %v5009
            %v5013 = vunpack.c.l.s4 1983009808
            %v5014 = vunpack.c.0.s8 %v5013
            %v5015 = vlaneseq
            %v5016 = vshrl.u32 %v5015, 7
            %v5017 = vsub.s32 %v5014, %v5016
            %v5018 = vrot.slane %v5010, %v5017
            %v5020 = vunpack.c.l.s4 1983009808
            %v5021 = vunpack.c.0.s8 %v5020
            %v5022 = vlaneseq
            %v5023 = vshrl.u32 %v5022, 7
            %v5024 = vsub.s32 %v5021, %v5023
            %v5025 = vrot.slane %v5011, %v5024
            %v5026 = vcombine.low %v5018, %v5025
            %v5028 = vadd.f32 %v4991, %v5026
            %v5029 = vmax.f32 %v5028, 0.0
            %v5030 = vld [vmem:[%s4] sm:$0xff]
            %v5031 = vld [vmem:[%s4 + $0x8] sm:$0xff]
            %v5032 = vld [vmem:[%s4 + $0x10] sm:$0xff]
            %v5033 = vld [vmem:[%s4 + $0x18] sm:$0xff]
            %v5034 = vld [vmem:[%s4 + $0x20] sm:$0xff]
            %v5035 = vld [vmem:[%s4 + $0x28] sm:$0xff]
            %v5036 = vld [vmem:[%s4 + $0x30] sm:$0xff]
            %v5037 = vld [vmem:[%s4 + $0x38] sm:$0xff]
            %v5038 = vld [vmem:[%s4 + $0x40] sm:$0xff]
            %v5039 = vld [vmem:[%s4 + $0x48] sm:$0xff]
            %v5040 = vld [vmem:[%s4 + $0x50] sm:$0xff]
            %v5041 = vld [vmem:[%s4 + $0x58] sm:$0xff]
            %v5042 = vld [vmem:[%s4 + $0x60] sm:$0xff]
            %v5043 = vld [vmem:[%s4 + $0x68] sm:$0xff]
            %v5044 = vld [vmem:[%s4 + $0x70] sm:$0xff]
            %v5045 = vld [vmem:[%s4 + $0x78] sm:$0xff]
            %v5046 = vld [vmem:[%s4 + $0x80] sm:$0xff]
            %v5047 = vld [vmem:[%s4 + $0x88] sm:$0xff]
            %v5048 = vld [vmem:[%s4 + $0x90] sm:$0xff]
            %v5049 = vld [vmem:[%s4 + $0x98] sm:$0xff]
            %v5050 = vld [vmem:[%s4 + $0xa0] sm:$0xff]
            %v5051 = vld [vmem:[%s4 + $0xa8] sm:$0xff]
            %v5052 = vld [vmem:[%s4 + $0xb0] sm:$0xff]
            %v5053 = vld [vmem:[%s4 + $0xb8] sm:$0xff]
            %v5054 = vld [vmem:[%s4 + $0xc0] sm:$0xff]
            %v5055 = vld [vmem:[%s4 + $0xc8] sm:$0xff]
            %v5056 = vld [vmem:[%s4 + $0xd0] sm:$0xff]
            %v5057 = vld [vmem:[%s4 + $0xd8] sm:$0xff]
            %v5058 = vld [vmem:[%s4 + $0xe0] sm:$0xff]
            %v5059 = vld [vmem:[%s4 + $0xe8] sm:$0xff]
            %v5060 = vld [vmem:[%s4 + $0xf0] sm:$0xff]
            %v5061 = vld [vmem:[%s4 + $0xf8] sm:$0xff]
            %v5062 = vld [vmem:[%s4 + $0x100] sm:$0xff]
            %v5063 = vld [vmem:[%s4 + $0x108] sm:$0xff]
            %v5064 = vld [vmem:[%s4 + $0x110] sm:$0xff]
            %v5065 = vld [vmem:[%s4 + $0x118] sm:$0xff]
            %v5066 = vld [vmem:[%s4 + $0x120] sm:$0xff]
            %v5067 = vld [vmem:[%s4 + $0x128] sm:$0xff]
            %v5068 = vld [vmem:[%s4 + $0x130] sm:$0xff]
            %v5069 = vld [vmem:[%s4 + $0x138] sm:$0xff]
            %v5070 = vld [vmem:[%s4 + $0x140] sm:$0xff]
            %v5071 = vld [vmem:[%s4 + $0x148] sm:$0xff]
            %v5072 = vld [vmem:[%s4 + $0x150] sm:$0xff]
            %v5073 = vld [vmem:[%s4 + $0x158] sm:$0xff]
            %v5074 = vld [vmem:[%s4 + $0x160] sm:$0xff]
            %v5075 = vld [vmem:[%s4 + $0x168] sm:$0xff]
            %v5076 = vld [vmem:[%s4 + $0x170] sm:$0xff]
            %v5077 = vld [vmem:[%s4 + $0x178] sm:$0xff]
            %v5078 = vld [vmem:[%s4 + $0x180] sm:$0xff]
            %v5079 = vld [vmem:[%s4 + $0x188] sm:$0xff]
            %v5080 = vld [vmem:[%s4 + $0x190] sm:$0xff]
            %v5081 = vld [vmem:[%s4 + $0x198] sm:$0xff]
            %v5082 = vld [vmem:[%s4 + $0x1a0] sm:$0xff]
            %v5083 = vld [vmem:[%s4 + $0x1a8] sm:$0xff]
            %v5084 = vld [vmem:[%s4 + $0x1b0] sm:$0xff]
            %v5085 = vld [vmem:[%s4 + $0x1b8] sm:$0xff]
            %v5086 = vld [vmem:[%s4 + $0x1c0] sm:$0xff]
            %v5087 = vld [vmem:[%s4 + $0x1c8] sm:$0xff]
            %v5088 = vld [vmem:[%s4 + $0x1d0] sm:$0xff]
            %v5089 = vld [vmem:[%s4 + $0x1d8] sm:$0xff]
            %v5090 = vld [vmem:[%s4 + $0x1e0] sm:$0xff]
            %v5091 = vld [vmem:[%s4 + $0x1e8] sm:$0xff]
            %v5092 = vld [vmem:[%s4 + $0x1f0] sm:$0xff]
            %v5093 = vld [vmem:[%s4 + $0x1f8] sm:$0xff]
            %v5094 = vld [vmem:[#allocation12] sm:$0x1]
            %v5096 = vlaneseq
            %v5097 = vshrl.u32 %v5096, 7
            %v5098 = vsub.s32 0, %v5097
            %v5099 = vrot.slane %v5094, %v5098
            %v5102 = vcombine.high %v5029, %v5029
            %v5104 = vunpack.c.l.s4 1983009808
            %v5105 = vunpack.c.0.s8 %v5104
            %v5106 = vlaneseq
            %v5107 = vshrl.u32 %v5106, 7
            %v5108 = vsub.s32 %v5105, %v5107
            %v5109 = vrot.slane %v5029, %v5108
            %v5111 = vunpack.c.l.s4 1983009808
            %v5112 = vunpack.c.0.s8 %v5111
            %v5113 = vlaneseq
            %v5114 = vshrl.u32 %v5113, 7
            %v5115 = vsub.s32 %v5112, %v5114
            %v5116 = vrot.slane %v5102, %v5115
            %v5117 = vcombine.high %v5109, %v5109
            %v5118 = vcombine.high %v5116, %v5116
            %5123 = vmatprep.subr.mxu0 0.0
            %5124 = vmatpush1.msra.mxu0 %v5030
            %5125 = vmatprep.subr.mxu0 0.0
            %5126 = vmatpush1.msra.mxu0 %v5031
            %5127 = vmatprep.subr.mxu0 0.0
            %5128 = vmatpush1.msra.mxu0 %v5032
            %5129 = vmatprep.subr.mxu0 0.0
            %5130 = vmatpush1.msra.mxu0 %v5033
            %5131 = vmatprep.subr.mxu0 0.0
            %5132 = vmatpush1.msra.mxu0 %v5034
            %5133 = vmatprep.subr.mxu0 0.0
            %5134 = vmatpush1.msra.mxu0 %v5035
            %5135 = vmatprep.subr.mxu0 0.0
            %5136 = vmatpush1.msra.mxu0 %v5036
            %5137 = vmatprep.subr.mxu0 0.0
            %5138 = vmatpush1.msra.mxu0 %v5037
            %5139 = vmatprep.subr.mxu0 0.0
            %5140 = vmatpush1.msra.mxu0 %v5038
            %5141 = vmatprep.subr.mxu0 0.0
            %5142 = vmatpush1.msra.mxu0 %v5039
            %5143 = vmatprep.subr.mxu0 0.0
            %5144 = vmatpush1.msra.mxu0 %v5040
            %5145 = vmatprep.subr.mxu0 0.0
            %5146 = vmatpush1.msra.mxu0 %v5041
            %5147 = vmatprep.subr.mxu0 0.0
            %5148 = vmatpush1.msra.mxu0 %v5042
            %5149 = vmatprep.subr.mxu0 0.0
            %5150 = vmatpush1.msra.mxu0 %v5043
            %5151 = vmatprep.subr.mxu0 0.0
            %5152 = vmatpush1.msra.mxu0 %v5044
            %5153 = vmatprep.subr.mxu0 0.0
            %5154 = vmatpush1.msra.mxu0 %v5045
            %5155 = vmatprep.subr.mxu0 0.0
            %5156 = vmatpush1.msra.mxu0 %v5046
            %5157 = vmatprep.subr.mxu0 0.0
            %5158 = vmatpush1.msra.mxu0 %v5047
            %5159 = vmatprep.subr.mxu0 0.0
            %5160 = vmatpush1.msra.mxu0 %v5048
            %5161 = vmatprep.subr.mxu0 0.0
            %5162 = vmatpush1.msra.mxu0 %v5049
            %5163 = vmatprep.subr.mxu0 0.0
            %5164 = vmatpush1.msra.mxu0 %v5050
            %5165 = vmatprep.subr.mxu0 0.0
            %5166 = vmatpush1.msra.mxu0 %v5051
            %5167 = vmatprep.subr.mxu0 0.0
            %5168 = vmatpush1.msra.mxu0 %v5052
            %5169 = vmatprep.subr.mxu0 0.0
            %5170 = vmatpush1.msra.mxu0 %v5053
            %5171 = vmatprep.subr.mxu0 0.0
            %5172 = vmatpush1.msra.mxu0 %v5054
            %5173 = vmatprep.subr.mxu0 0.0
            %5174 = vmatpush1.msra.mxu0 %v5055
            %5175 = vmatprep.subr.mxu0 0.0
            %5176 = vmatpush1.msra.mxu0 %v5056
            %5177 = vmatprep.subr.mxu0 0.0
            %5178 = vmatpush1.msra.mxu0 %v5057
            %5179 = vmatprep.subr.mxu0 0.0
            %5180 = vmatpush1.msra.mxu0 %v5058
            %5181 = vmatprep.subr.mxu0 0.0
            %5182 = vmatpush1.msra.mxu0 %v5059
            %5183 = vmatprep.subr.mxu0 0.0
            %5184 = vmatpush1.msra.mxu0 %v5060
            %5185 = vmatprep.subr.mxu0 0.0
            %5186 = vmatpush1.msra.mxu0 %v5061
            %5187 = vmatprep.mubr.f32.mxu0 %v5117
            %5188 = vmatmul.mubr.f32.gmra.mrb[0].mxu0 %v5109
            %v5189 = vpop.f32.mrb[0].mxu0
            %v5190 = vadd.f32 %v5099, %v5189
            %v5191 = vpop.f32.mrb[0].mxu0
            %5192 = vdwg.mxu0
            %5193 = vmatprep.subr.mxu0 0.0
            %5194 = vmatpush1.msra.mxu0 %v5062
            %5195 = vmatprep.subr.mxu0 0.0
            %5196 = vmatpush1.msra.mxu0 %v5063
            %5197 = vmatprep.subr.mxu0 0.0
            %5198 = vmatpush1.msra.mxu0 %v5064
            %5199 = vmatprep.subr.mxu0 0.0
            %5200 = vmatpush1.msra.mxu0 %v5065
            %5201 = vmatprep.subr.mxu0 0.0
            %5202 = vmatpush1.msra.mxu0 %v5066
            %5203 = vmatprep.subr.mxu0 0.0
            %5204 = vmatpush1.msra.mxu0 %v5067
            %5205 = vmatprep.subr.mxu0 0.0
            %5206 = vmatpush1.msra.mxu0 %v5068
            %5207 = vmatprep.subr.mxu0 0.0
            %5208 = vmatpush1.msra.mxu0 %v5069
            %5209 = vmatprep.subr.mxu0 0.0
            %5210 = vmatpush1.msra.mxu0 %v5070
            %5211 = vmatprep.subr.mxu0 0.0
            %5212 = vmatpush1.msra.mxu0 %v5071
            %5213 = vmatprep.subr.mxu0 0.0
            %5214 = vmatpush1.msra.mxu0 %v5072
            %5215 = vmatprep.subr.mxu0 0.0
            %5216 = vmatpush1.msra.mxu0 %v5073
            %5217 = vmatprep.subr.mxu0 0.0
            %5218 = vmatpush1.msra.mxu0 %v5074
            %5219 = vmatprep.subr.mxu0 0.0
            %5220 = vmatpush1.msra.mxu0 %v5075
            %5221 = vmatprep.subr.mxu0 0.0
            %5222 = vmatpush1.msra.mxu0 %v5076
            %5223 = vmatprep.subr.mxu0 0.0
            %5224 = vmatpush1.msra.mxu0 %v5077
            %5225 = vmatprep.subr.mxu0 0.0
            %5226 = vmatpush1.msra.mxu0 %v5078
            %5227 = vmatprep.subr.mxu0 0.0
            %5228 = vmatpush1.msra.mxu0 %v5079
            %5229 = vmatprep.subr.mxu0 0.0
            %5230 = vmatpush1.msra.mxu0 %v5080
            %5231 = vmatprep.subr.mxu0 0.0
            %5232 = vmatpush1.msra.mxu0 %v5081
            %5233 = vmatprep.subr.mxu0 0.0
            %5234 = vmatpush1.msra.mxu0 %v5082
            %5235 = vmatprep.subr.mxu0 0.0
            %5236 = vmatpush1.msra.mxu0 %v5083
            %5237 = vmatprep.subr.mxu0 0.0
            %5238 = vmatpush1.msra.mxu0 %v5084
            %5239 = vmatprep.subr.mxu0 0.0
            %5240 = vmatpush1.msra.mxu0 %v5085
            %5241 = vmatprep.subr.mxu0 0.0
            %5242 = vmatpush1.msra.mxu0 %v5086
            %5243 = vmatprep.subr.mxu0 0.0
            %5244 = vmatpush1.msra.mxu0 %v5087
            %5245 = vmatprep.subr.mxu0 0.0
            %5246 = vmatpush1.msra.mxu0 %v5088
            %5247 = vmatprep.subr.mxu0 0.0
            %5248 = vmatpush1.msra.mxu0 %v5089
            %5249 = vmatprep.subr.mxu0 0.0
            %5250 = vmatpush1.msra.mxu0 %v5090
            %5251 = vmatprep.subr.mxu0 0.0
            %5252 = vmatpush1.msra.mxu0 %v5091
            %5253 = vmatprep.subr.mxu0 0.0
            %5254 = vmatpush1.msra.mxu0 %v5092
            %5255 = vmatprep.subr.mxu0 0.0
            %5256 = vmatpush1.msra.mxu0 %v5093
            %5257 = vmatprep.mubr.f32.mxu0 %v5118
            %5258 = vmatmul.mubr.f32.gmra.mrb[0].mxu0 %v5116
            %v5259 = vpop.f32.mrb[0].mxu0
            %v5260 = vadd.f32 %v5190, %v5259
            %v5261 = vpop.f32.mrb[0].mxu0
            %5262 = vdwg.mxu0
            %vm5263 = vcmask 517120
            %5264 = vst.msk [vmem:[#allocation22] sm:$0x3] %vm5263, %v5260
            %v5265 = vld [vmem:[#allocation13] sm:$0x3]
            %v5266 = vmul.f32 %v5260, 0.5
            %v5267 = vmul.f32 %v5266, 1.442695
            %v5268 = vpow.pop %v5267
            %5270 = vrot.lane.b32.xlu0 %v5268, 96
            %v5271 = vpop.permute.xlu0 %5270
            %v5273 = vmul.f32 %v5265, %v5271
            %v5274 = vadd.f32 %v5260, %v5273
            %v5275 = vld [vmem:[#allocation15] sm:$0xff]
            %v5276 = vld [vmem:[#allocation15 + $0x8] sm:$0xff]
            %v5277 = vld [vmem:[#allocation15 + $0x10] sm:$0xff]
            %v5278 = vld [vmem:[#allocation15 + $0x18] sm:$0xff]
            %v5279 = vld [vmem:[#allocation15 + $0x20] sm:$0xff]
            %v5280 = vld [vmem:[#allocation15 + $0x28] sm:$0xff]
            %v5281 = vld [vmem:[#allocation15 + $0x30] sm:$0xff]
            %v5282 = vld [vmem:[#allocation15 + $0x38] sm:$0xff]
            %v5283 = vld [vmem:[#allocation15 + $0x40] sm:$0xff]
            %v5284 = vld [vmem:[#allocation15 + $0x48] sm:$0xff]
            %v5285 = vld [vmem:[#allocation15 + $0x50] sm:$0xff]
            %v5286 = vld [vmem:[#allocation15 + $0x58] sm:$0xff]
            %v5287 = vld [vmem:[#allocation15 + $0x60] sm:$0xff]
            %v5288 = vld [vmem:[#allocation15 + $0x68] sm:$0xff]
            %v5289 = vld [vmem:[#allocation15 + $0x70] sm:$0xff]
            %v5290 = vld [vmem:[#allocation15 + $0x78] sm:$0xff]
            %v5291 = vld [vmem:[#allocation16] sm:$0xf]
            %v5293 = vlaneseq
            %v5294 = vshrl.u32 %v5293, 7
            %v5295 = vsub.s32 0, %v5294
            %v5296 = vrot.slane %v5291, %v5295
            %v5297 = vlaneseq
            %v5298 = vshrl.u32 %v5297, 7
            %v5299 = vsub.s32 1, %v5298
            %v5300 = vrot.slane %v5291, %v5299
            %v5301 = vlaneseq
            %v5302 = vshrl.u32 %v5301, 7
            %v5303 = vsub.s32 2, %v5302
            %v5304 = vrot.slane %v5291, %v5303
            %v5305 = vlaneseq
            %v5306 = vshrl.u32 %v5305, 7
            %v5307 = vsub.s32 3, %v5306
            %v5308 = vrot.slane %v5291, %v5307
            %vm5313 = vcmask 261120
            %v5315 = vsel %vm5313, %v5274, 0
            %5317 = vmatprep.subr.mxu0 %v5276
            %5318 = vmatpush1.msra.mxu0 %v5275
            %5319 = vmatprep.subr.mxu0 %v5280
            %5320 = vmatpush1.msra.mxu0 %v5279
            %5321 = vmatprep.subr.mxu0 %v5284
            %5322 = vmatpush1.msra.mxu0 %v5283
            %5323 = vmatprep.subr.mxu0 %v5288
            %5324 = vmatpush1.msra.mxu0 %v5287
            %5325 = vmatprep.subr.mxu0 0.0
            %5326 = vmatpush1.msra.mxu0 0.0
            %5327 = vmatprep.subr.mxu0 0.0
            %5328 = vmatpush1.msra.mxu0 0.0
            %5329 = vmatprep.subr.mxu0 0.0
            %5330 = vmatpush1.msra.mxu0 0.0
            %5331 = vmatprep.subr.mxu0 0.0
            %5332 = vmatpush1.msra.mxu0 0.0
            %5333 = vmatprep.subr.mxu0 0.0
            %5334 = vmatpush1.msra.mxu0 0.0
            %5335 = vmatprep.subr.mxu0 0.0
            %5336 = vmatpush1.msra.mxu0 0.0
            %5337 = vmatprep.subr.mxu0 0.0
            %5338 = vmatpush1.msra.mxu0 0.0
            %5339 = vmatprep.subr.mxu0 0.0
            %5340 = vmatpush1.msra.mxu0 0.0
            %5341 = vmatprep.subr.mxu0 0.0
            %5342 = vmatpush1.msra.mxu0 0.0
            %5343 = vmatprep.subr.mxu0 0.0
            %5344 = vmatpush1.msra.mxu0 0.0
            %5345 = vmatprep.subr.mxu0 0.0
            %5346 = vmatpush1.msra.mxu0 0.0
            %5347 = vmatprep.subr.mxu0 0.0
            %5348 = vmatpush1.msra.mxu0 0.0
            %5349 = vmatprep.subr.mxu0 0.0
            %5350 = vmatpush1.msra.mxu0 0.0
            %5351 = vmatprep.subr.mxu0 0.0
            %5352 = vmatpush1.msra.mxu0 0.0
            %5353 = vmatprep.subr.mxu0 0.0
            %5354 = vmatpush1.msra.mxu0 0.0
            %5355 = vmatprep.subr.mxu0 0.0
            %5356 = vmatpush1.msra.mxu0 0.0
            %5357 = vmatprep.subr.mxu0 0.0
            %5358 = vmatpush1.msra.mxu0 0.0
            %5359 = vmatprep.subr.mxu0 0.0
            %5360 = vmatpush1.msra.mxu0 0.0
            %5361 = vmatprep.subr.mxu0 0.0
            %5362 = vmatpush1.msra.mxu0 0.0
            %5363 = vmatprep.subr.mxu0 0.0
            %5364 = vmatpush1.msra.mxu0 0.0
            %5365 = vmatprep.subr.mxu0 0.0
            %5366 = vmatpush1.msra.mxu0 0.0
            %5367 = vmatprep.subr.mxu0 0.0
            %5368 = vmatpush1.msra.mxu0 0.0
            %5369 = vmatprep.subr.mxu0 0.0
            %5370 = vmatpush1.msra.mxu0 0.0
            %5371 = vmatprep.subr.mxu0 0.0
            %5372 = vmatpush1.msra.mxu0 0.0
            %5373 = vmatprep.subr.mxu0 0.0
            %5374 = vmatpush1.msra.mxu0 0.0
            %5375 = vmatprep.subr.mxu0 0.0
            %5376 = vmatpush1.msra.mxu0 0.0
            %5377 = vmatprep.subr.mxu0 0.0
            %5378 = vmatpush1.msra.mxu0 0.0
            %5379 = vmatprep.subr.mxu0 0.0
            %5380 = vmatpush1.msra.mxu0 0.0
            %5381 = vmatprep.mubr.f32.mxu0 0.0
            %5382 = vmatmul.mubr.f32.gmra.mrb[0].mxu0 %v5315
            %v5383 = vpop.f32.mrb[0].mxu0
            %v5384 = vadd.f32 %v5296, %v5383
            %v5385 = vpop.f32.mrb[0].mxu0
            %v5386 = vadd.f32 %v5300, %v5385
            %5387 = vdwg.mxu0
            %5388 = vmatprep.subr.mxu0 %v5278
            %5389 = vmatpush1.msra.mxu0 %v5277
            %5390 = vmatprep.subr.mxu0 %v5282
            %5391 = vmatpush1.msra.mxu0 %v5281
            %5392 = vmatprep.subr.mxu0 %v5286
            %5393 = vmatpush1.msra.mxu0 %v5285
            %5394 = vmatprep.subr.mxu0 %v5290
            %5395 = vmatpush1.msra.mxu0 %v5289
            %5396 = vmatprep.subr.mxu0 0.0
            %5397 = vmatpush1.msra.mxu0 0.0
            %5398 = vmatprep.subr.mxu0 0.0
            %5399 = vmatpush1.msra.mxu0 0.0
            %5400 = vmatprep.subr.mxu0 0.0
            %5401 = vmatpush1.msra.mxu0 0.0
            %5402 = vmatprep.subr.mxu0 0.0
            %5403 = vmatpush1.msra.mxu0 0.0
            %5404 = vmatprep.subr.mxu0 0.0
            %5405 = vmatpush1.msra.mxu0 0.0
            %5406 = vmatprep.subr.mxu0 0.0
            %5407 = vmatpush1.msra.mxu0 0.0
            %5408 = vmatprep.subr.mxu0 0.0
            %5409 = vmatpush1.msra.mxu0 0.0
            %5410 = vmatprep.subr.mxu0 0.0
            %5411 = vmatpush1.msra.mxu0 0.0
            %5412 = vmatprep.subr.mxu0 0.0
            %5413 = vmatpush1.msra.mxu0 0.0
            %5414 = vmatprep.subr.mxu0 0.0
            %5415 = vmatpush1.msra.mxu0 0.0
            %5416 = vmatprep.subr.mxu0 0.0
            %5417 = vmatpush1.msra.mxu0 0.0
            %5418 = vmatprep.subr.mxu0 0.0
            %5419 = vmatpush1.msra.mxu0 0.0
            %5420 = vmatprep.subr.mxu0 0.0
            %5421 = vmatpush1.msra.mxu0 0.0
            %5422 = vmatprep.subr.mxu0 0.0
            %5423 = vmatpush1.msra.mxu0 0.0
            %5424 = vmatprep.subr.mxu0 0.0
            %5425 = vmatpush1.msra.mxu0 0.0
            %5426 = vmatprep.subr.mxu0 0.0
            %5427 = vmatpush1.msra.mxu0 0.0
            %5428 = vmatprep.subr.mxu0 0.0
            %5429 = vmatpush1.msra.mxu0 0.0
            %5430 = vmatprep.subr.mxu0 0.0
            %5431 = vmatpush1.msra.mxu0 0.0
            %5432 = vmatprep.subr.mxu0 0.0
            %5433 = vmatpush1.msra.mxu0 0.0
            %5434 = vmatprep.subr.mxu0 0.0
            %5435 = vmatpush1.msra.mxu0 0.0
            %5436 = vmatprep.subr.mxu0 0.0
            %5437 = vmatpush1.msra.mxu0 0.0
            %5438 = vmatprep.subr.mxu0 0.0
            %5439 = vmatpush1.msra.mxu0 0.0
            %5440 = vmatprep.subr.mxu0 0.0
            %5441 = vmatpush1.msra.mxu0 0.0
            %5442 = vmatprep.subr.mxu0 0.0
            %5443 = vmatpush1.msra.mxu0 0.0
            %5444 = vmatprep.subr.mxu0 0.0
            %5445 = vmatpush1.msra.mxu0 0.0
            %5446 = vmatprep.subr.mxu0 0.0
            %5447 = vmatpush1.msra.mxu0 0.0
            %5448 = vmatprep.subr.mxu0 0.0
            %5449 = vmatpush1.msra.mxu0 0.0
            %5450 = vmatprep.subr.mxu0 0.0
            %5451 = vmatpush1.msra.mxu0 0.0
            %5452 = vmatprep.mubr.f32.mxu0 0.0
            %5453 = vmatmul.mubr.f32.gmra.mrb[0].mxu0 %v5315
            %v5454 = vpop.f32.mrb[0].mxu0
            %v5455 = vadd.f32 %v5304, %v5454
            %v5456 = vpop.f32.mrb[0].mxu0
            %v5457 = vadd.f32 %v5308, %v5456
            %5458 = vdwg.mxu0
            %v5459 = vmax.f32 %v5384, 0.0
            %v5460 = vmax.f32 %v5386, 0.0
            %v5461 = vmax.f32 %v5455, 0.0
            %v5462 = vmax.f32 %v5457, 0.0
            %v5463 = vpack.c.bf16 %v5459, %v5459
            %v5464 = vpack.c.bf16 %v5460, %v5460
            %v5465 = vpack.c.bf16 %v5461, %v5461
            %v5466 = vpack.c.bf16 %v5462, %v5462
            %v5471 = vcombine.low %v5463, %v5464
            %v5472 = vcombine.low %v5465, %v5466
            %v5474 = vunpack.c.l.s4 1966171168
            %v5475 = vunpack.c.0.s8 %v5474
            %v5476 = vlaneseq
            %v5477 = vshrl.u32 %v5476, 7
            %v5478 = vsub.s32 %v5475, %v5477
            %v5479 = vrot.slane %v5471, %v5478
            %v5481 = vunpack.c.l.s4 1966171168
            %v5482 = vunpack.c.0.s8 %v5481
            %v5483 = vlaneseq
            %v5484 = vshrl.u32 %v5483, 7
            %v5485 = vsub.s32 %v5482, %v5484
            %v5486 = vrot.slane %v5472, %v5485
            %v5487 = vcombine.low %v5479, %v5486
            %v5489 = vunpack.c.l.s4 1966171168
            %v5490 = vunpack.c.0.s8 %v5489
            %v5491 = vlaneseq
            %v5492 = vshrl.u32 %v5491, 7
            %v5493 = vsub.s32 %v5490, %v5492
            %v5494 = vrot.slane %v5487, %v5493
            %5496 = vst [vmem:[#allocation3] sm:$0xf] %v5494
          $region132: #{tpu_custom_call.1} parent=123 // pred_fallthru
            _
        $region124: #{tpu_custom_call.1} parent=71 // pred_fallthru
          _
        %p5497 = scmp.eq.s32.totalorder %s43, 1
        // Predicated region
        $region133: #{tpu_custom_call.1} parent=71 // pred_check
          %p5498 = pneg %p5497
        $region134: #{tpu_custom_call.1} parent=71 // pred_check_branch
          %5500 = sbr.rel (%p5498) target = $region136
        $region135: #{tpu_custom_call.1} parent=71 // pred_region
          %v5501 = vld [vmem:[#allocation3] sm:$0xf]
          %v5502 = vld [vmem:[%s678] sm:$0xff]
          %v5503 = vld [vmem:[%s678 + $0x8] sm:$0xff]
          %v5504 = vld [vmem:[%s678 + $0x10] sm:$0xff]
          %v5505 = vld [vmem:[%s678 + $0x18] sm:$0xff]
          %v5506 = vld [vmem:[%s678 + $0x20] sm:$0xff]
          %v5507 = vld [vmem:[%s678 + $0x28] sm:$0xff]
          %v5508 = vld [vmem:[%s678 + $0x30] sm:$0xff]
          %v5509 = vld [vmem:[%s678 + $0x38] sm:$0xff]
          %v5510 = vld [vmem:[%s678 + $0x40] sm:$0xff]
          %v5511 = vld [vmem:[%s678 + $0x48] sm:$0xff]
          %v5512 = vld [vmem:[%s678 + $0x50] sm:$0xff]
          %v5513 = vld [vmem:[%s678 + $0x58] sm:$0xff]
          %v5514 = vld [vmem:[%s678 + $0x60] sm:$0xff]
          %v5515 = vld [vmem:[%s678 + $0x68] sm:$0xff]
          %v5516 = vld [vmem:[%s678 + $0x70] sm:$0xff]
          %v5517 = vld [vmem:[%s678 + $0x78] sm:$0xff]
          %v5518 = vld [vmem:[%s678 + $0x80] sm:$0xff]
          %v5519 = vld [vmem:[%s678 + $0x88] sm:$0xff]
          %v5520 = vld [vmem:[%s678 + $0x90] sm:$0xff]
          %v5521 = vld [vmem:[%s678 + $0x98] sm:$0xff]
          %v5522 = vld [vmem:[%s678 + $0xa0] sm:$0xff]
          %v5523 = vld [vmem:[%s678 + $0xa8] sm:$0xff]
          %v5524 = vld [vmem:[%s678 + $0xb0] sm:$0xff]
          %v5525 = vld [vmem:[%s678 + $0xb8] sm:$0xff]
          %v5526 = vld [vmem:[%s678 + $0xc0] sm:$0xff]
          %v5527 = vld [vmem:[%s678 + $0xc8] sm:$0xff]
          %v5528 = vld [vmem:[%s678 + $0xd0] sm:$0xff]
          %v5529 = vld [vmem:[%s678 + $0xd8] sm:$0xff]
          %v5530 = vld [vmem:[%s678 + $0xe0] sm:$0xff]
          %v5531 = vld [vmem:[%s678 + $0xe8] sm:$0xff]
          %v5532 = vld [vmem:[%s678 + $0xf0] sm:$0xff]
          %v5533 = vld [vmem:[%s678 + $0xf8] sm:$0xff]
          %v5534 = vld [vmem:[%s678 + $0x100] sm:$0xff]
          %v5535 = vld [vmem:[%s678 + $0x108] sm:$0xff]
          %v5536 = vld [vmem:[%s678 + $0x110] sm:$0xff]
          %v5537 = vld [vmem:[%s678 + $0x118] sm:$0xff]
          %v5538 = vld [vmem:[%s678 + $0x120] sm:$0xff]
          %v5539 = vld [vmem:[%s678 + $0x128] sm:$0xff]
          %v5540 = vld [vmem:[%s678 + $0x130] sm:$0xff]
          %v5541 = vld [vmem:[%s678 + $0x138] sm:$0xff]
          %v5542 = vld [vmem:[%s678 + $0x140] sm:$0xff]
          %v5543 = vld [vmem:[%s678 + $0x148] sm:$0xff]
          %v5544 = vld [vmem:[%s678 + $0x150] sm:$0xff]
          %v5545 = vld [vmem:[%s678 + $0x158] sm:$0xff]
          %v5546 = vld [vmem:[%s678 + $0x160] sm:$0xff]
          %v5547 = vld [vmem:[%s678 + $0x168] sm:$0xff]
          %v5548 = vld [vmem:[%s678 + $0x170] sm:$0xff]
          %v5549 = vld [vmem:[%s678 + $0x178] sm:$0xff]
          %v5550 = vld [vmem:[%s678 + $0x180] sm:$0xff]
          %v5551 = vld [vmem:[%s678 + $0x188] sm:$0xff]
          %v5552 = vld [vmem:[%s678 + $0x190] sm:$0xff]
          %v5553 = vld [vmem:[%s678 + $0x198] sm:$0xff]
          %v5554 = vld [vmem:[%s678 + $0x1a0] sm:$0xff]
          %v5555 = vld [vmem:[%s678 + $0x1a8] sm:$0xff]
          %v5556 = vld [vmem:[%s678 + $0x1b0] sm:$0xff]
          %v5557 = vld [vmem:[%s678 + $0x1b8] sm:$0xff]
          %v5558 = vld [vmem:[%s678 + $0x1c0] sm:$0xff]
          %v5559 = vld [vmem:[%s678 + $0x1c8] sm:$0xff]
          %v5560 = vld [vmem:[%s678 + $0x1d0] sm:$0xff]
          %v5561 = vld [vmem:[%s678 + $0x1d8] sm:$0xff]
          %v5562 = vld [vmem:[%s678 + $0x1e0] sm:$0xff]
          %v5563 = vld [vmem:[%s678 + $0x1e8] sm:$0xff]
          %v5564 = vld [vmem:[%s678 + $0x1f0] sm:$0xff]
          %v5565 = vld [vmem:[%s678 + $0x1f8] sm:$0xff]
          %v5566 = vld [vmem:[%s678 + $0x200] sm:$0xff]
          %v5567 = vld [vmem:[%s678 + $0x208] sm:$0xff]
          %v5568 = vld [vmem:[%s678 + $0x210] sm:$0xff]
          %v5569 = vld [vmem:[%s678 + $0x218] sm:$0xff]
          %v5570 = vld [vmem:[%s678 + $0x220] sm:$0xff]
          %v5571 = vld [vmem:[%s678 + $0x228] sm:$0xff]
          %v5572 = vld [vmem:[%s678 + $0x230] sm:$0xff]
          %v5573 = vld [vmem:[%s678 + $0x238] sm:$0xff]
          %v5574 = vld [vmem:[%s678 + $0x240] sm:$0xff]
          %v5575 = vld [vmem:[%s678 + $0x248] sm:$0xff]
          %v5576 = vld [vmem:[%s678 + $0x250] sm:$0xff]
          %v5577 = vld [vmem:[%s678 + $0x258] sm:$0xff]
          %v5578 = vld [vmem:[%s678 + $0x260] sm:$0xff]
          %v5579 = vld [vmem:[%s678 + $0x268] sm:$0xff]
          %v5580 = vld [vmem:[%s678 + $0x270] sm:$0xff]
          %v5581 = vld [vmem:[%s678 + $0x278] sm:$0xff]
          %v5582 = vld [vmem:[%s678 + $0x280] sm:$0xff]
          %v5583 = vld [vmem:[%s678 + $0x288] sm:$0xff]
          %v5584 = vld [vmem:[%s678 + $0x290] sm:$0xff]
          %v5585 = vld [vmem:[%s678 + $0x298] sm:$0xff]
          %v5586 = vld [vmem:[%s678 + $0x2a0] sm:$0xff]
          %v5587 = vld [vmem:[%s678 + $0x2a8] sm:$0xff]
          %v5588 = vld [vmem:[%s678 + $0x2b0] sm:$0xff]
          %v5589 = vld [vmem:[%s678 + $0x2b8] sm:$0xff]
          %v5590 = vld [vmem:[%s678 + $0x2c0] sm:$0xff]
          %v5591 = vld [vmem:[%s678 + $0x2c8] sm:$0xff]
          %v5592 = vld [vmem:[%s678 + $0x2d0] sm:$0xff]
          %v5593 = vld [vmem:[%s678 + $0x2d8] sm:$0xff]
          %v5594 = vld [vmem:[%s678 + $0x2e0] sm:$0xff]
          %v5595 = vld [vmem:[%s678 + $0x2e8] sm:$0xff]
          %v5596 = vld [vmem:[%s678 + $0x2f0] sm:$0xff]
          %v5597 = vld [vmem:[%s678 + $0x2f8] sm:$0xff]
          %v5598 = vld [vmem:[%s678 + $0x300] sm:$0xff]
          %v5599 = vld [vmem:[%s678 + $0x308] sm:$0xff]
          %v5600 = vld [vmem:[%s678 + $0x310] sm:$0xff]
          %v5601 = vld [vmem:[%s678 + $0x318] sm:$0xff]
          %v5602 = vld [vmem:[%s678 + $0x320] sm:$0xff]
          %v5603 = vld [vmem:[%s678 + $0x328] sm:$0xff]
          %v5604 = vld [vmem:[%s678 + $0x330] sm:$0xff]
          %v5605 = vld [vmem:[%s678 + $0x338] sm:$0xff]
          %v5606 = vld [vmem:[%s678 + $0x340] sm:$0xff]
          %v5607 = vld [vmem:[%s678 + $0x348] sm:$0xff]
          %v5608 = vld [vmem:[%s678 + $0x350] sm:$0xff]
          %v5609 = vld [vmem:[%s678 + $0x358] sm:$0xff]
          %v5610 = vld [vmem:[%s678 + $0x360] sm:$0xff]
          %v5611 = vld [vmem:[%s678 + $0x368] sm:$0xff]
          %v5612 = vld [vmem:[%s678 + $0x370] sm:$0xff]
          %v5613 = vld [vmem:[%s678 + $0x378] sm:$0xff]
          %v5614 = vld [vmem:[%s678 + $0x380] sm:$0xff]
          %v5615 = vld [vmem:[%s678 + $0x388] sm:$0xff]
          %v5616 = vld [vmem:[%s678 + $0x390] sm:$0xff]
          %v5617 = vld [vmem:[%s678 + $0x398] sm:$0xff]
          %v5618 = vld [vmem:[%s678 + $0x3a0] sm:$0xff]
          %v5619 = vld [vmem:[%s678 + $0x3a8] sm:$0xff]
          %v5620 = vld [vmem:[%s678 + $0x3b0] sm:$0xff]
          %v5621 = vld [vmem:[%s678 + $0x3b8] sm:$0xff]
          %v5622 = vld [vmem:[%s678 + $0x3c0] sm:$0xff]
          %v5623 = vld [vmem:[%s678 + $0x3c8] sm:$0xff]
          %v5624 = vld [vmem:[%s678 + $0x3d0] sm:$0xff]
          %v5625 = vld [vmem:[%s678 + $0x3d8] sm:$0xff]
          %v5626 = vld [vmem:[%s678 + $0x3e0] sm:$0xff]
          %v5627 = vld [vmem:[%s678 + $0x3e8] sm:$0xff]
          %v5628 = vld [vmem:[%s678 + $0x3f0] sm:$0xff]
          %v5629 = vld [vmem:[%s678 + $0x3f8] sm:$0xff]
          %v5630 = vld [vmem:[%s678 + $0x400] sm:$0xff]
          %v5631 = vld [vmem:[%s678 + $0x408] sm:$0xff]
          %v5632 = vld [vmem:[%s678 + $0x410] sm:$0xff]
          %v5633 = vld [vmem:[%s678 + $0x418] sm:$0xff]
          %v5634 = vld [vmem:[%s678 + $0x420] sm:$0xff]
          %v5635 = vld [vmem:[%s678 + $0x428] sm:$0xff]
          %v5636 = vld [vmem:[%s678 + $0x430] sm:$0xff]
          %v5637 = vld [vmem:[%s678 + $0x438] sm:$0xff]
          %v5638 = vld [vmem:[%s678 + $0x440] sm:$0xff]
          %v5639 = vld [vmem:[%s678 + $0x448] sm:$0xff]
          %v5640 = vld [vmem:[%s678 + $0x450] sm:$0xff]
          %v5641 = vld [vmem:[%s678 + $0x458] sm:$0xff]
          %v5642 = vld [vmem:[%s678 + $0x460] sm:$0xff]
          %v5643 = vld [vmem:[%s678 + $0x468] sm:$0xff]
          %v5644 = vld [vmem:[%s678 + $0x470] sm:$0xff]
          %v5645 = vld [vmem:[%s678 + $0x478] sm:$0xff]
          %v5646 = vld [vmem:[%s678 + $0x480] sm:$0xff]
          %v5647 = vld [vmem:[%s678 + $0x488] sm:$0xff]
          %v5648 = vld [vmem:[%s678 + $0x490] sm:$0xff]
          %v5649 = vld [vmem:[%s678 + $0x498] sm:$0xff]
          %v5650 = vld [vmem:[%s678 + $0x4a0] sm:$0xff]
          %v5651 = vld [vmem:[%s678 + $0x4a8] sm:$0xff]
          %v5652 = vld [vmem:[%s678 + $0x4b0] sm:$0xff]
          %v5653 = vld [vmem:[%s678 + $0x4b8] sm:$0xff]
          %v5654 = vld [vmem:[%s678 + $0x4c0] sm:$0xff]
          %v5655 = vld [vmem:[%s678 + $0x4c8] sm:$0xff]
          %v5656 = vld [vmem:[%s678 + $0x4d0] sm:$0xff]
          %v5657 = vld [vmem:[%s678 + $0x4d8] sm:$0xff]
          %v5658 = vld [vmem:[%s678 + $0x4e0] sm:$0xff]
          %v5659 = vld [vmem:[%s678 + $0x4e8] sm:$0xff]
          %v5660 = vld [vmem:[%s678 + $0x4f0] sm:$0xff]
          %v5661 = vld [vmem:[%s678 + $0x4f8] sm:$0xff]
          %v5662 = vld [vmem:[%s678 + $0x500] sm:$0xff]
          %v5663 = vld [vmem:[%s678 + $0x508] sm:$0xff]
          %v5664 = vld [vmem:[%s678 + $0x510] sm:$0xff]
          %v5665 = vld [vmem:[%s678 + $0x518] sm:$0xff]
          %v5666 = vld [vmem:[%s678 + $0x520] sm:$0xff]
          %v5667 = vld [vmem:[%s678 + $0x528] sm:$0xff]
          %v5668 = vld [vmem:[%s678 + $0x530] sm:$0xff]
          %v5669 = vld [vmem:[%s678 + $0x538] sm:$0xff]
          %v5670 = vld [vmem:[%s678 + $0x540] sm:$0xff]
          %v5671 = vld [vmem:[%s678 + $0x548] sm:$0xff]
          %v5672 = vld [vmem:[%s678 + $0x550] sm:$0xff]
          %v5673 = vld [vmem:[%s678 + $0x558] sm:$0xff]
          %v5674 = vld [vmem:[%s678 + $0x560] sm:$0xff]
          %v5675 = vld [vmem:[%s678 + $0x568] sm:$0xff]
          %v5676 = vld [vmem:[%s678 + $0x570] sm:$0xff]
          %v5677 = vld [vmem:[%s678 + $0x578] sm:$0xff]
          %v5678 = vld [vmem:[%s678 + $0x580] sm:$0xff]
          %v5679 = vld [vmem:[%s678 + $0x588] sm:$0xff]
          %v5680 = vld [vmem:[%s678 + $0x590] sm:$0xff]
          %v5681 = vld [vmem:[%s678 + $0x598] sm:$0xff]
          %v5682 = vld [vmem:[%s678 + $0x5a0] sm:$0xff]
          %v5683 = vld [vmem:[%s678 + $0x5a8] sm:$0xff]
          %v5684 = vld [vmem:[%s678 + $0x5b0] sm:$0xff]
          %v5685 = vld [vmem:[%s678 + $0x5b8] sm:$0xff]
          %v5686 = vld [vmem:[%s678 + $0x5c0] sm:$0xff]
          %v5687 = vld [vmem:[%s678 + $0x5c8] sm:$0xff]
          %v5688 = vld [vmem:[%s678 + $0x5d0] sm:$0xff]
          %v5689 = vld [vmem:[%s678 + $0x5d8] sm:$0xff]
          %v5690 = vld [vmem:[%s678 + $0x5e0] sm:$0xff]
          %v5691 = vld [vmem:[%s678 + $0x5e8] sm:$0xff]
          %v5692 = vld [vmem:[%s678 + $0x5f0] sm:$0xff]
          %v5693 = vld [vmem:[%s678 + $0x5f8] sm:$0xff]
          %v5694 = vld [vmem:[%s678 + $0x600] sm:$0xff]
          %v5695 = vld [vmem:[%s678 + $0x608] sm:$0xff]
          %v5696 = vld [vmem:[%s678 + $0x610] sm:$0xff]
          %v5697 = vld [vmem:[%s678 + $0x618] sm:$0xff]
          %v5698 = vld [vmem:[%s678 + $0x620] sm:$0xff]
          %v5699 = vld [vmem:[%s678 + $0x628] sm:$0xff]
          %v5700 = vld [vmem:[%s678 + $0x630] sm:$0xff]
          %v5701 = vld [vmem:[%s678 + $0x638] sm:$0xff]
          %v5702 = vld [vmem:[%s678 + $0x640] sm:$0xff]
          %v5703 = vld [vmem:[%s678 + $0x648] sm:$0xff]
          %v5704 = vld [vmem:[%s678 + $0x650] sm:$0xff]
          %v5705 = vld [vmem:[%s678 + $0x658] sm:$0xff]
          %v5706 = vld [vmem:[%s678 + $0x660] sm:$0xff]
          %v5707 = vld [vmem:[%s678 + $0x668] sm:$0xff]
          %v5708 = vld [vmem:[%s678 + $0x670] sm:$0xff]
          %v5709 = vld [vmem:[%s678 + $0x678] sm:$0xff]
          %v5710 = vld [vmem:[%s678 + $0x680] sm:$0xff]
          %v5711 = vld [vmem:[%s678 + $0x688] sm:$0xff]
          %v5712 = vld [vmem:[%s678 + $0x690] sm:$0xff]
          %v5713 = vld [vmem:[%s678 + $0x698] sm:$0xff]
          %v5714 = vld [vmem:[%s678 + $0x6a0] sm:$0xff]
          %v5715 = vld [vmem:[%s678 + $0x6a8] sm:$0xff]
          %v5716 = vld [vmem:[%s678 + $0x6b0] sm:$0xff]
          %v5717 = vld [vmem:[%s678 + $0x6b8] sm:$0xff]
          %v5718 = vld [vmem:[%s678 + $0x6c0] sm:$0xff]
          %v5719 = vld [vmem:[%s678 + $0x6c8] sm:$0xff]
          %v5720 = vld [vmem:[%s678 + $0x6d0] sm:$0xff]
          %v5721 = vld [vmem:[%s678 + $0x6d8] sm:$0xff]
          %v5722 = vld [vmem:[%s678 + $0x6e0] sm:$0xff]
          %v5723 = vld [vmem:[%s678 + $0x6e8] sm:$0xff]
          %v5724 = vld [vmem:[%s678 + $0x6f0] sm:$0xff]
          %v5725 = vld [vmem:[%s678 + $0x6f8] sm:$0xff]
          %v5726 = vld [vmem:[%s678 + $0x700] sm:$0xff]
          %v5727 = vld [vmem:[%s678 + $0x708] sm:$0xff]
          %v5728 = vld [vmem:[%s678 + $0x710] sm:$0xff]
          %v5729 = vld [vmem:[%s678 + $0x718] sm:$0xff]
          %v5730 = vld [vmem:[%s678 + $0x720] sm:$0xff]
          %v5731 = vld [vmem:[%s678 + $0x728] sm:$0xff]
          %v5732 = vld [vmem:[%s678 + $0x730] sm:$0xff]
          %v5733 = vld [vmem:[%s678 + $0x738] sm:$0xff]
          %v5734 = vld [vmem:[%s678 + $0x740] sm:$0xff]
          %v5735 = vld [vmem:[%s678 + $0x748] sm:$0xff]
          %v5736 = vld [vmem:[%s678 + $0x750] sm:$0xff]
          %v5737 = vld [vmem:[%s678 + $0x758] sm:$0xff]
          %v5738 = vld [vmem:[%s678 + $0x760] sm:$0xff]
          %v5739 = vld [vmem:[%s678 + $0x768] sm:$0xff]
          %v5740 = vld [vmem:[%s678 + $0x770] sm:$0xff]
          %v5741 = vld [vmem:[%s678 + $0x778] sm:$0xff]
          %v5742 = vld [vmem:[%s678 + $0x780] sm:$0xff]
          %v5743 = vld [vmem:[%s678 + $0x788] sm:$0xff]
          %v5744 = vld [vmem:[%s678 + $0x790] sm:$0xff]
          %v5745 = vld [vmem:[%s678 + $0x798] sm:$0xff]
          %v5746 = vld [vmem:[%s678 + $0x7a0] sm:$0xff]
          %v5747 = vld [vmem:[%s678 + $0x7a8] sm:$0xff]
          %v5748 = vld [vmem:[%s678 + $0x7b0] sm:$0xff]
          %v5749 = vld [vmem:[%s678 + $0x7b8] sm:$0xff]
          %v5750 = vld [vmem:[%s678 + $0x7c0] sm:$0xff]
          %v5751 = vld [vmem:[%s678 + $0x7c8] sm:$0xff]
          %v5752 = vld [vmem:[%s678 + $0x7d0] sm:$0xff]
          %v5753 = vld [vmem:[%s678 + $0x7d8] sm:$0xff]
          %v5754 = vld [vmem:[%s678 + $0x7e0] sm:$0xff]
          %v5755 = vld [vmem:[%s678 + $0x7e8] sm:$0xff]
          %v5756 = vld [vmem:[%s678 + $0x7f0] sm:$0xff]
          %v5757 = vld [vmem:[%s678 + $0x7f8] sm:$0xff]
          %v5758 = vld [vmem:[%s678 + $0x800] sm:$0xff]
          %v5759 = vld [vmem:[%s678 + $0x808] sm:$0xff]
          %v5760 = vld [vmem:[%s678 + $0x810] sm:$0xff]
          %v5761 = vld [vmem:[%s678 + $0x818] sm:$0xff]
          %v5762 = vld [vmem:[%s678 + $0x820] sm:$0xff]
          %v5763 = vld [vmem:[%s678 + $0x828] sm:$0xff]
          %v5764 = vld [vmem:[%s678 + $0x830] sm:$0xff]
          %v5765 = vld [vmem:[%s678 + $0x838] sm:$0xff]
          %v5766 = vld [vmem:[%s678 + $0x840] sm:$0xff]
          %v5767 = vld [vmem:[%s678 + $0x848] sm:$0xff]
          %v5768 = vld [vmem:[%s678 + $0x850] sm:$0xff]
          %v5769 = vld [vmem:[%s678 + $0x858] sm:$0xff]
          %v5770 = vld [vmem:[%s678 + $0x860] sm:$0xff]
          %v5771 = vld [vmem:[%s678 + $0x868] sm:$0xff]
          %v5772 = vld [vmem:[%s678 + $0x870] sm:$0xff]
          %v5773 = vld [vmem:[%s678 + $0x878] sm:$0xff]
          %v5774 = vld [vmem:[%s678 + $0x880] sm:$0xff]
          %v5775 = vld [vmem:[%s678 + $0x888] sm:$0xff]
          %v5776 = vld [vmem:[%s678 + $0x890] sm:$0xff]
          %v5777 = vld [vmem:[%s678 + $0x898] sm:$0xff]
          %v5778 = vld [vmem:[%s678 + $0x8a0] sm:$0xff]
          %v5779 = vld [vmem:[%s678 + $0x8a8] sm:$0xff]
          %v5780 = vld [vmem:[%s678 + $0x8b0] sm:$0xff]
          %v5781 = vld [vmem:[%s678 + $0x8b8] sm:$0xff]
          %v5782 = vld [vmem:[%s678 + $0x8c0] sm:$0xff]
          %v5783 = vld [vmem:[%s678 + $0x8c8] sm:$0xff]
          %v5784 = vld [vmem:[%s678 + $0x8d0] sm:$0xff]
          %v5785 = vld [vmem:[%s678 + $0x8d8] sm:$0xff]
          %v5786 = vld [vmem:[%s678 + $0x8e0] sm:$0xff]
          %v5787 = vld [vmem:[%s678 + $0x8e8] sm:$0xff]
          %v5788 = vld [vmem:[%s678 + $0x8f0] sm:$0xff]
          %v5789 = vld [vmem:[%s678 + $0x8f8] sm:$0xff]
          %v5790 = vld [vmem:[%s678 + $0x900] sm:$0xff]
          %v5791 = vld [vmem:[%s678 + $0x908] sm:$0xff]
          %v5792 = vld [vmem:[%s678 + $0x910] sm:$0xff]
          %v5793 = vld [vmem:[%s678 + $0x918] sm:$0xff]
          %v5794 = vld [vmem:[%s678 + $0x920] sm:$0xff]
          %v5795 = vld [vmem:[%s678 + $0x928] sm:$0xff]
          %v5796 = vld [vmem:[%s678 + $0x930] sm:$0xff]
          %v5797 = vld [vmem:[%s678 + $0x938] sm:$0xff]
          %v5798 = vld [vmem:[%s678 + $0x940] sm:$0xff]
          %v5799 = vld [vmem:[%s678 + $0x948] sm:$0xff]
          %v5800 = vld [vmem:[%s678 + $0x950] sm:$0xff]
          %v5801 = vld [vmem:[%s678 + $0x958] sm:$0xff]
          %v5802 = vld [vmem:[%s678 + $0x960] sm:$0xff]
          %v5803 = vld [vmem:[%s678 + $0x968] sm:$0xff]
          %v5804 = vld [vmem:[%s678 + $0x970] sm:$0xff]
          %v5805 = vld [vmem:[%s678 + $0x978] sm:$0xff]
          %v5806 = vld [vmem:[%s678 + $0x980] sm:$0xff]
          %v5807 = vld [vmem:[%s678 + $0x988] sm:$0xff]
          %v5808 = vld [vmem:[%s678 + $0x990] sm:$0xff]
          %v5809 = vld [vmem:[%s678 + $0x998] sm:$0xff]
          %v5810 = vld [vmem:[%s678 + $0x9a0] sm:$0xff]
          %v5811 = vld [vmem:[%s678 + $0x9a8] sm:$0xff]
          %v5812 = vld [vmem:[%s678 + $0x9b0] sm:$0xff]
          %v5813 = vld [vmem:[%s678 + $0x9b8] sm:$0xff]
          %v5814 = vld [vmem:[%s678 + $0x9c0] sm:$0xff]
          %v5815 = vld [vmem:[%s678 + $0x9c8] sm:$0xff]
          %v5816 = vld [vmem:[%s678 + $0x9d0] sm:$0xff]
          %v5817 = vld [vmem:[%s678 + $0x9d8] sm:$0xff]
          %v5818 = vld [vmem:[%s678 + $0x9e0] sm:$0xff]
          %v5819 = vld [vmem:[%s678 + $0x9e8] sm:$0xff]
          %v5820 = vld [vmem:[%s678 + $0x9f0] sm:$0xff]
          %v5821 = vld [vmem:[%s678 + $0x9f8] sm:$0xff]
          %v5822 = vld [vmem:[%s678 + $0xa00] sm:$0xff]
          %v5823 = vld [vmem:[%s678 + $0xa08] sm:$0xff]
          %v5824 = vld [vmem:[%s678 + $0xa10] sm:$0xff]
          %v5825 = vld [vmem:[%s678 + $0xa18] sm:$0xff]
          %v5826 = vld [vmem:[%s678 + $0xa20] sm:$0xff]
          %v5827 = vld [vmem:[%s678 + $0xa28] sm:$0xff]
          %v5828 = vld [vmem:[%s678 + $0xa30] sm:$0xff]
          %v5829 = vld [vmem:[%s678 + $0xa38] sm:$0xff]
          %v5830 = vld [vmem:[%s678 + $0xa40] sm:$0xff]
          %v5831 = vld [vmem:[%s678 + $0xa48] sm:$0xff]
          %v5832 = vld [vmem:[%s678 + $0xa50] sm:$0xff]
          %v5833 = vld [vmem:[%s678 + $0xa58] sm:$0xff]
          %v5834 = vld [vmem:[%s678 + $0xa60] sm:$0xff]
          %v5835 = vld [vmem:[%s678 + $0xa68] sm:$0xff]
          %v5836 = vld [vmem:[%s678 + $0xa70] sm:$0xff]
          %v5837 = vld [vmem:[%s678 + $0xa78] sm:$0xff]
          %v5838 = vld [vmem:[%s678 + $0xa80] sm:$0xff]
          %v5839 = vld [vmem:[%s678 + $0xa88] sm:$0xff]
          %v5840 = vld [vmem:[%s678 + $0xa90] sm:$0xff]
          %v5841 = vld [vmem:[%s678 + $0xa98] sm:$0xff]
          %v5842 = vld [vmem:[%s678 + $0xaa0] sm:$0xff]
          %v5843 = vld [vmem:[%s678 + $0xaa8] sm:$0xff]
          %v5844 = vld [vmem:[%s678 + $0xab0] sm:$0xff]
          %v5845 = vld [vmem:[%s678 + $0xab8] sm:$0xff]
          %v5846 = vld [vmem:[%s678 + $0xac0] sm:$0xff]
          %v5847 = vld [vmem:[%s678 + $0xac8] sm:$0xff]
          %v5848 = vld [vmem:[%s678 + $0xad0] sm:$0xff]
          %v5849 = vld [vmem:[%s678 + $0xad8] sm:$0xff]
          %v5850 = vld [vmem:[%s678 + $0xae0] sm:$0xff]
          %v5851 = vld [vmem:[%s678 + $0xae8] sm:$0xff]
          %v5852 = vld [vmem:[%s678 + $0xaf0] sm:$0xff]
          %v5853 = vld [vmem:[%s678 + $0xaf8] sm:$0xff]
          %v5854 = vld [vmem:[%s678 + $0xb00] sm:$0xff]
          %v5855 = vld [vmem:[%s678 + $0xb08] sm:$0xff]
          %v5856 = vld [vmem:[%s678 + $0xb10] sm:$0xff]
          %v5857 = vld [vmem:[%s678 + $0xb18] sm:$0xff]
          %v5858 = vld [vmem:[%s678 + $0xb20] sm:$0xff]
          %v5859 = vld [vmem:[%s678 + $0xb28] sm:$0xff]
          %v5860 = vld [vmem:[%s678 + $0xb30] sm:$0xff]
          %v5861 = vld [vmem:[%s678 + $0xb38] sm:$0xff]
          %v5862 = vld [vmem:[%s678 + $0xb40] sm:$0xff]
          %v5863 = vld [vmem:[%s678 + $0xb48] sm:$0xff]
          %v5864 = vld [vmem:[%s678 + $0xb50] sm:$0xff]
          %v5865 = vld [vmem:[%s678 + $0xb58] sm:$0xff]
          %v5866 = vld [vmem:[%s678 + $0xb60] sm:$0xff]
          %v5867 = vld [vmem:[%s678 + $0xb68] sm:$0xff]
          %v5868 = vld [vmem:[%s678 + $0xb70] sm:$0xff]
          %v5869 = vld [vmem:[%s678 + $0xb78] sm:$0xff]
          %v5870 = vld [vmem:[%s678 + $0xb80] sm:$0xff]
          %v5871 = vld [vmem:[%s678 + $0xb88] sm:$0xff]
          %v5872 = vld [vmem:[%s678 + $0xb90] sm:$0xff]
          %v5873 = vld [vmem:[%s678 + $0xb98] sm:$0xff]
          %v5874 = vld [vmem:[%s678 + $0xba0] sm:$0xff]
          %v5875 = vld [vmem:[%s678 + $0xba8] sm:$0xff]
          %v5876 = vld [vmem:[%s678 + $0xbb0] sm:$0xff]
          %v5877 = vld [vmem:[%s678 + $0xbb8] sm:$0xff]
          %v5878 = vld [vmem:[%s678 + $0xbc0] sm:$0xff]
          %v5879 = vld [vmem:[%s678 + $0xbc8] sm:$0xff]
          %v5880 = vld [vmem:[%s678 + $0xbd0] sm:$0xff]
          %v5881 = vld [vmem:[%s678 + $0xbd8] sm:$0xff]
          %v5882 = vld [vmem:[%s678 + $0xbe0] sm:$0xff]
          %v5883 = vld [vmem:[%s678 + $0xbe8] sm:$0xff]
          %v5884 = vld [vmem:[%s678 + $0xbf0] sm:$0xff]
          %v5885 = vld [vmem:[%s678 + $0xbf8] sm:$0xff]
          %v5886 = vld [vmem:[%s678 + $0xc00] sm:$0xff]
          %v5887 = vld [vmem:[%s678 + $0xc08] sm:$0xff]
          %v5888 = vld [vmem:[%s678 + $0xc10] sm:$0xff]
          %v5889 = vld [vmem:[%s678 + $0xc18] sm:$0xff]
          %v5890 = vld [vmem:[%s678 + $0xc20] sm:$0xff]
          %v5891 = vld [vmem:[%s678 + $0xc28] sm:$0xff]
          %v5892 = vld [vmem:[%s678 + $0xc30] sm:$0xff]
          %v5893 = vld [vmem:[%s678 + $0xc38] sm:$0xff]
          %v5894 = vld [vmem:[%s678 + $0xc40] sm:$0xff]
          %v5895 = vld [vmem:[%s678 + $0xc48] sm:$0xff]
          %v5896 = vld [vmem:[%s678 + $0xc50] sm:$0xff]
          %v5897 = vld [vmem:[%s678 + $0xc58] sm:$0xff]
          %v5898 = vld [vmem:[%s678 + $0xc60] sm:$0xff]
          %v5899 = vld [vmem:[%s678 + $0xc68] sm:$0xff]
          %v5900 = vld [vmem:[%s678 + $0xc70] sm:$0xff]
          %v5901 = vld [vmem:[%s678 + $0xc78] sm:$0xff]
          %v5902 = vld [vmem:[%s678 + $0xc80] sm:$0xff]
          %v5903 = vld [vmem:[%s678 + $0xc88] sm:$0xff]
          %v5904 = vld [vmem:[%s678 + $0xc90] sm:$0xff]
          %v5905 = vld [vmem:[%s678 + $0xc98] sm:$0xff]
          %v5906 = vld [vmem:[%s678 + $0xca0] sm:$0xff]
          %v5907 = vld [vmem:[%s678 + $0xca8] sm:$0xff]
          %v5908 = vld [vmem:[%s678 + $0xcb0] sm:$0xff]
          %v5909 = vld [vmem:[%s678 + $0xcb8] sm:$0xff]
          %v5910 = vld [vmem:[%s678 + $0xcc0] sm:$0xff]
          %v5911 = vld [vmem:[%s678 + $0xcc8] sm:$0xff]
          %v5912 = vld [vmem:[%s678 + $0xcd0] sm:$0xff]
          %v5913 = vld [vmem:[%s678 + $0xcd8] sm:$0xff]
          %v5914 = vld [vmem:[%s678 + $0xce0] sm:$0xff]
          %v5915 = vld [vmem:[%s678 + $0xce8] sm:$0xff]
          %v5916 = vld [vmem:[%s678 + $0xcf0] sm:$0xff]
          %v5917 = vld [vmem:[%s678 + $0xcf8] sm:$0xff]
          %v5918 = vld [vmem:[%s678 + $0xd00] sm:$0xff]
          %v5919 = vld [vmem:[%s678 + $0xd08] sm:$0xff]
          %v5920 = vld [vmem:[%s678 + $0xd10] sm:$0xff]
          %v5921 = vld [vmem:[%s678 + $0xd18] sm:$0xff]
          %v5922 = vld [vmem:[%s678 + $0xd20] sm:$0xff]
          %v5923 = vld [vmem:[%s678 + $0xd28] sm:$0xff]
          %v5924 = vld [vmem:[%s678 + $0xd30] sm:$0xff]
          %v5925 = vld [vmem:[%s678 + $0xd38] sm:$0xff]
          %v5926 = vld [vmem:[%s678 + $0xd40] sm:$0xff]
          %v5927 = vld [vmem:[%s678 + $0xd48] sm:$0xff]
          %v5928 = vld [vmem:[%s678 + $0xd50] sm:$0xff]
          %v5929 = vld [vmem:[%s678 + $0xd58] sm:$0xff]
          %v5930 = vld [vmem:[%s678 + $0xd60] sm:$0xff]
          %v5931 = vld [vmem:[%s678 + $0xd68] sm:$0xff]
          %v5932 = vld [vmem:[%s678 + $0xd70] sm:$0xff]
          %v5933 = vld [vmem:[%s678 + $0xd78] sm:$0xff]
          %v5934 = vld [vmem:[%s678 + $0xd80] sm:$0xff]
          %v5935 = vld [vmem:[%s678 + $0xd88] sm:$0xff]
          %v5936 = vld [vmem:[%s678 + $0xd90] sm:$0xff]
          %v5937 = vld [vmem:[%s678 + $0xd98] sm:$0xff]
          %v5938 = vld [vmem:[%s678 + $0xda0] sm:$0xff]
          %v5939 = vld [vmem:[%s678 + $0xda8] sm:$0xff]
          %v5940 = vld [vmem:[%s678 + $0xdb0] sm:$0xff]
          %v5941 = vld [vmem:[%s678 + $0xdb8] sm:$0xff]
          %v5942 = vld [vmem:[%s678 + $0xdc0] sm:$0xff]
          %v5943 = vld [vmem:[%s678 + $0xdc8] sm:$0xff]
          %v5944 = vld [vmem:[%s678 + $0xdd0] sm:$0xff]
          %v5945 = vld [vmem:[%s678 + $0xdd8] sm:$0xff]
          %v5946 = vld [vmem:[%s678 + $0xde0] sm:$0xff]
          %v5947 = vld [vmem:[%s678 + $0xde8] sm:$0xff]
          %v5948 = vld [vmem:[%s678 + $0xdf0] sm:$0xff]
          %v5949 = vld [vmem:[%s678 + $0xdf8] sm:$0xff]
          %v5950 = vld [vmem:[%s678 + $0xe00] sm:$0xff]
          %v5951 = vld [vmem:[%s678 + $0xe08] sm:$0xff]
          %v5952 = vld [vmem:[%s678 + $0xe10] sm:$0xff]
          %v5953 = vld [vmem:[%s678 + $0xe18] sm:$0xff]
          %v5954 = vld [vmem:[%s678 + $0xe20] sm:$0xff]
          %v5955 = vld [vmem:[%s678 + $0xe28] sm:$0xff]
          %v5956 = vld [vmem:[%s678 + $0xe30] sm:$0xff]
          %v5957 = vld [vmem:[%s678 + $0xe38] sm:$0xff]
          %v5958 = vld [vmem:[%s678 + $0xe40] sm:$0xff]
          %v5959 = vld [vmem:[%s678 + $0xe48] sm:$0xff]
          %v5960 = vld [vmem:[%s678 + $0xe50] sm:$0xff]
          %v5961 = vld [vmem:[%s678 + $0xe58] sm:$0xff]
          %v5962 = vld [vmem:[%s678 + $0xe60] sm:$0xff]
          %v5963 = vld [vmem:[%s678 + $0xe68] sm:$0xff]
          %v5964 = vld [vmem:[%s678 + $0xe70] sm:$0xff]
          %v5965 = vld [vmem:[%s678 + $0xe78] sm:$0xff]
          %v5966 = vld [vmem:[%s678 + $0xe80] sm:$0xff]
          %v5967 = vld [vmem:[%s678 + $0xe88] sm:$0xff]
          %v5968 = vld [vmem:[%s678 + $0xe90] sm:$0xff]
          %v5969 = vld [vmem:[%s678 + $0xe98] sm:$0xff]
          %v5970 = vld [vmem:[%s678 + $0xea0] sm:$0xff]
          %v5971 = vld [vmem:[%s678 + $0xea8] sm:$0xff]
          %v5972 = vld [vmem:[%s678 + $0xeb0] sm:$0xff]
          %v5973 = vld [vmem:[%s678 + $0xeb8] sm:$0xff]
          %v5974 = vld [vmem:[%s678 + $0xec0] sm:$0xff]
          %v5975 = vld [vmem:[%s678 + $0xec8] sm:$0xff]
          %v5976 = vld [vmem:[%s678 + $0xed0] sm:$0xff]
          %v5977 = vld [vmem:[%s678 + $0xed8] sm:$0xff]
          %v5978 = vld [vmem:[%s678 + $0xee0] sm:$0xff]
          %v5979 = vld [vmem:[%s678 + $0xee8] sm:$0xff]
          %v5980 = vld [vmem:[%s678 + $0xef0] sm:$0xff]
          %v5981 = vld [vmem:[%s678 + $0xef8] sm:$0xff]
          %v5982 = vld [vmem:[%s678 + $0xf00] sm:$0xff]
          %v5983 = vld [vmem:[%s678 + $0xf08] sm:$0xff]
          %v5984 = vld [vmem:[%s678 + $0xf10] sm:$0xff]
          %v5985 = vld [vmem:[%s678 + $0xf18] sm:$0xff]
          %v5986 = vld [vmem:[%s678 + $0xf20] sm:$0xff]
          %v5987 = vld [vmem:[%s678 + $0xf28] sm:$0xff]
          %v5988 = vld [vmem:[%s678 + $0xf30] sm:$0xff]
          %v5989 = vld [vmem:[%s678 + $0xf38] sm:$0xff]
          %v5990 = vld [vmem:[%s678 + $0xf40] sm:$0xff]
          %v5991 = vld [vmem:[%s678 + $0xf48] sm:$0xff]
          %v5992 = vld [vmem:[%s678 + $0xf50] sm:$0xff]
          %v5993 = vld [vmem:[%s678 + $0xf58] sm:$0xff]
          %v5994 = vld [vmem:[%s678 + $0xf60] sm:$0xff]
          %v5995 = vld [vmem:[%s678 + $0xf68] sm:$0xff]
          %v5996 = vld [vmem:[%s678 + $0xf70] sm:$0xff]
          %v5997 = vld [vmem:[%s678 + $0xf78] sm:$0xff]
          %v5998 = vld [vmem:[%s678 + $0xf80] sm:$0xff]
          %v5999 = vld [vmem:[%s678 + $0xf88] sm:$0xff]
          %v6000 = vld [vmem:[%s678 + $0xf90] sm:$0xff]
          %v6001 = vld [vmem:[%s678 + $0xf98] sm:$0xff]
          %v6002 = vld [vmem:[%s678 + $0xfa0] sm:$0xff]
          %v6003 = vld [vmem:[%s678 + $0xfa8] sm:$0xff]
          %v6004 = vld [vmem:[%s678 + $0xfb0] sm:$0xff]
          %v6005 = vld [vmem:[%s678 + $0xfb8] sm:$0xff]
          %v6006 = vld [vmem:[%s678 + $0xfc0] sm:$0xff]
          %v6007 = vld [vmem:[%s678 + $0xfc8] sm:$0xff]
          %v6008 = vld [vmem:[%s678 + $0xfd0] sm:$0xff]
          %v6009 = vld [vmem:[%s678 + $0xfd8] sm:$0xff]
          %v6010 = vld [vmem:[%s678 + $0xfe0] sm:$0xff]
          %v6011 = vld [vmem:[%s678 + $0xfe8] sm:$0xff]
          %v6012 = vld [vmem:[%s678 + $0xff0] sm:$0xff]
          %v6013 = vld [vmem:[%s678 + $0xff8] sm:$0xff]
          %v6014 = vld [vmem:[%s687] sm:$0xff]
          %v6015 = vld [vmem:[%s687 + $0x8] sm:$0xff]
          %v6018 = vlaneseq
          %v6019 = vshrl.u32 %v6018, 7
          %v6020 = vsub.s32 0, %v6019
          %v6021 = vrot.slane %v6014, %v6020
          %v6022 = vlaneseq
          %v6023 = vshrl.u32 %v6022, 7
          %v6024 = vsub.s32 1, %v6023
          %v6025 = vrot.slane %v6014, %v6024
          %v6026 = vlaneseq
          %v6027 = vshrl.u32 %v6026, 7
          %v6028 = vsub.s32 2, %v6027
          %v6029 = vrot.slane %v6014, %v6028
          %v6030 = vlaneseq
          %v6031 = vshrl.u32 %v6030, 7
          %v6032 = vsub.s32 3, %v6031
          %v6033 = vrot.slane %v6014, %v6032
          %v6034 = vlaneseq
          %v6035 = vshrl.u32 %v6034, 7
          %v6036 = vsub.s32 4, %v6035
          %v6037 = vrot.slane %v6014, %v6036
          %v6038 = vlaneseq
          %v6039 = vshrl.u32 %v6038, 7
          %v6040 = vsub.s32 5, %v6039
          %v6041 = vrot.slane %v6014, %v6040
          %v6042 = vlaneseq
          %v6043 = vshrl.u32 %v6042, 7
          %v6044 = vsub.s32 6, %v6043
          %v6045 = vrot.slane %v6014, %v6044
          %v6046 = vlaneseq
          %v6047 = vshrl.u32 %v6046, 7
          %v6048 = vsub.s32 7, %v6047
          %v6049 = vrot.slane %v6014, %v6048
          %v6050 = vlaneseq
          %v6051 = vshrl.u32 %v6050, 7
          %v6052 = vsub.s32 0, %v6051
          %v6053 = vrot.slane %v6015, %v6052
          %v6054 = vlaneseq
          %v6055 = vshrl.u32 %v6054, 7
          %v6056 = vsub.s32 1, %v6055
          %v6057 = vrot.slane %v6015, %v6056
          %v6058 = vlaneseq
          %v6059 = vshrl.u32 %v6058, 7
          %v6060 = vsub.s32 2, %v6059
          %v6061 = vrot.slane %v6015, %v6060
          %v6062 = vlaneseq
          %v6063 = vshrl.u32 %v6062, 7
          %v6064 = vsub.s32 3, %v6063
          %v6065 = vrot.slane %v6015, %v6064
          %v6066 = vlaneseq
          %v6067 = vshrl.u32 %v6066, 7
          %v6068 = vsub.s32 4, %v6067
          %v6069 = vrot.slane %v6015, %v6068
          %v6070 = vlaneseq
          %v6071 = vshrl.u32 %v6070, 7
          %v6072 = vsub.s32 5, %v6071
          %v6073 = vrot.slane %v6015, %v6072
          %v6074 = vlaneseq
          %v6075 = vshrl.u32 %v6074, 7
          %v6076 = vsub.s32 6, %v6075
          %v6077 = vrot.slane %v6015, %v6076
          %v6078 = vlaneseq
          %v6079 = vshrl.u32 %v6078, 7
          %v6080 = vsub.s32 7, %v6079
          %v6081 = vrot.slane %v6015, %v6080
          %v6100 = vunpack.c.l.s4 1966171168
          %v6101 = vunpack.c.0.s8 %v6100
          %v6102 = vlaneseq
          %v6103 = vshrl.u32 %v6102, 7
          %v6104 = vsub.s32 %v6101, %v6103
          %v6105 = vrot.slane %v5501, %v6104
          %v6106 = vcombine.high %v6105, %v6105
          %v6108 = vunpack.c.l.s4 1966171168
          %v6109 = vunpack.c.0.s8 %v6108
          %v6110 = vlaneseq
          %v6111 = vshrl.u32 %v6110, 7
          %v6112 = vsub.s32 %v6109, %v6111
          %v6113 = vrot.slane %v6105, %v6112
          %v6115 = vunpack.c.l.s4 1966171168
          %v6116 = vunpack.c.0.s8 %v6115
          %v6117 = vlaneseq
          %v6118 = vshrl.u32 %v6117, 7
          %v6119 = vsub.s32 %v6116, %v6118
          %v6120 = vrot.slane %v6106, %v6119
          %v6121 = vcombine.high %v6113, %v6113
          %v6122 = vcombine.high %v6120, %v6120
          %v6639 = vunpack.c.l.b16 %v5502
          %v6640 = vunpack.c.h.b16 %v5502
          %v6641 = vunpack.c.l.b16 %v5503
          %v6642 = vunpack.c.h.b16 %v5503
          %v6643 = vunpack.c.l.b16 %v5504
          %v6644 = vunpack.c.h.b16 %v5504
          %v6645 = vunpack.c.l.b16 %v5505
          %v6646 = vunpack.c.h.b16 %v5505
          %v6647 = vunpack.c.l.b16 %v5506
          %v6648 = vunpack.c.h.b16 %v5506
          %v6649 = vunpack.c.l.b16 %v5507
          %v6650 = vunpack.c.h.b16 %v5507
          %v6651 = vunpack.c.l.b16 %v5508
          %v6652 = vunpack.c.h.b16 %v5508
          %v6653 = vunpack.c.l.b16 %v5509
          %v6654 = vunpack.c.h.b16 %v5509
          %v6655 = vunpack.c.l.b16 %v5510
          %v6656 = vunpack.c.h.b16 %v5510
          %v6657 = vunpack.c.l.b16 %v5511
          %v6658 = vunpack.c.h.b16 %v5511
          %v6659 = vunpack.c.l.b16 %v5512
          %v6660 = vunpack.c.h.b16 %v5512
          %v6661 = vunpack.c.l.b16 %v5513
          %v6662 = vunpack.c.h.b16 %v5513
          %v6663 = vunpack.c.l.b16 %v5514
          %v6664 = vunpack.c.h.b16 %v5514
          %v6665 = vunpack.c.l.b16 %v5515
          %v6666 = vunpack.c.h.b16 %v5515
          %v6667 = vunpack.c.l.b16 %v5516
          %v6668 = vunpack.c.h.b16 %v5516
          %v6669 = vunpack.c.l.b16 %v5517
          %v6670 = vunpack.c.h.b16 %v5517
          %v6671 = vunpack.c.l.b16 %v5518
          %v6672 = vunpack.c.h.b16 %v5518
          %v6673 = vunpack.c.l.b16 %v5519
          %v6674 = vunpack.c.h.b16 %v5519
          %v6675 = vunpack.c.l.b16 %v5520
          %v6676 = vunpack.c.h.b16 %v5520
          %v6677 = vunpack.c.l.b16 %v5521
          %v6678 = vunpack.c.h.b16 %v5521
          %v6679 = vunpack.c.l.b16 %v5522
          %v6680 = vunpack.c.h.b16 %v5522
          %v6681 = vunpack.c.l.b16 %v5523
          %v6682 = vunpack.c.h.b16 %v5523
          %v6683 = vunpack.c.l.b16 %v5524
          %v6684 = vunpack.c.h.b16 %v5524
          %v6685 = vunpack.c.l.b16 %v5525
          %v6686 = vunpack.c.h.b16 %v5525
          %v6687 = vunpack.c.l.b16 %v5526
          %v6688 = vunpack.c.h.b16 %v5526
          %v6689 = vunpack.c.l.b16 %v5527
          %v6690 = vunpack.c.h.b16 %v5527
          %v6691 = vunpack.c.l.b16 %v5528
          %v6692 = vunpack.c.h.b16 %v5528
          %v6693 = vunpack.c.l.b16 %v5529
          %v6694 = vunpack.c.h.b16 %v5529
          %v6695 = vunpack.c.l.b16 %v5530
          %v6696 = vunpack.c.h.b16 %v5530
          %v6697 = vunpack.c.l.b16 %v5531
          %v6698 = vunpack.c.h.b16 %v5531
          %v6699 = vunpack.c.l.b16 %v5532
          %v6700 = vunpack.c.h.b16 %v5532
          %v6701 = vunpack.c.l.b16 %v5533
          %v6702 = vunpack.c.h.b16 %v5533
          %v6703 = vunpack.c.l.b16 %v5534
          %v6704 = vunpack.c.h.b16 %v5534
          %v6705 = vunpack.c.l.b16 %v5535
          %v6706 = vunpack.c.h.b16 %v5535
          %v6707 = vunpack.c.l.b16 %v5536
          %v6708 = vunpack.c.h.b16 %v5536
          %v6709 = vunpack.c.l.b16 %v5537
          %v6710 = vunpack.c.h.b16 %v5537
          %v6711 = vunpack.c.l.b16 %v5538
          %v6712 = vunpack.c.h.b16 %v5538
          %v6713 = vunpack.c.l.b16 %v5539
          %v6714 = vunpack.c.h.b16 %v5539
          %v6715 = vunpack.c.l.b16 %v5540
          %v6716 = vunpack.c.h.b16 %v5540
          %v6717 = vunpack.c.l.b16 %v5541
          %v6718 = vunpack.c.h.b16 %v5541
          %v6719 = vunpack.c.l.b16 %v5542
          %v6720 = vunpack.c.h.b16 %v5542
          %v6721 = vunpack.c.l.b16 %v5543
          %v6722 = vunpack.c.h.b16 %v5543
          %v6723 = vunpack.c.l.b16 %v5544
          %v6724 = vunpack.c.h.b16 %v5544
          %v6725 = vunpack.c.l.b16 %v5545
          %v6726 = vunpack.c.h.b16 %v5545
          %v6727 = vunpack.c.l.b16 %v5546
          %v6728 = vunpack.c.h.b16 %v5546
          %v6729 = vunpack.c.l.b16 %v5547
          %v6730 = vunpack.c.h.b16 %v5547
          %v6731 = vunpack.c.l.b16 %v5548
          %v6732 = vunpack.c.h.b16 %v5548
          %v6733 = vunpack.c.l.b16 %v5549
          %v6734 = vunpack.c.h.b16 %v5549
          %v6735 = vunpack.c.l.b16 %v5550
          %v6736 = vunpack.c.h.b16 %v5550
          %v6737 = vunpack.c.l.b16 %v5551
          %v6738 = vunpack.c.h.b16 %v5551
          %v6739 = vunpack.c.l.b16 %v5552
          %v6740 = vunpack.c.h.b16 %v5552
          %v6741 = vunpack.c.l.b16 %v5553
          %v6742 = vunpack.c.h.b16 %v5553
          %v6743 = vunpack.c.l.b16 %v5554
          %v6744 = vunpack.c.h.b16 %v5554
          %v6745 = vunpack.c.l.b16 %v5555
          %v6746 = vunpack.c.h.b16 %v5555
          %v6747 = vunpack.c.l.b16 %v5556
          %v6748 = vunpack.c.h.b16 %v5556
          %v6749 = vunpack.c.l.b16 %v5557
          %v6750 = vunpack.c.h.b16 %v5557
          %v6751 = vunpack.c.l.b16 %v5558
          %v6752 = vunpack.c.h.b16 %v5558
          %v6753 = vunpack.c.l.b16 %v5559
          %v6754 = vunpack.c.h.b16 %v5559
          %v6755 = vunpack.c.l.b16 %v5560
          %v6756 = vunpack.c.h.b16 %v5560
          %v6757 = vunpack.c.l.b16 %v5561
          %v6758 = vunpack.c.h.b16 %v5561
          %v6759 = vunpack.c.l.b16 %v5562
          %v6760 = vunpack.c.h.b16 %v5562
          %v6761 = vunpack.c.l.b16 %v5563
          %v6762 = vunpack.c.h.b16 %v5563
          %v6763 = vunpack.c.l.b16 %v5564
          %v6764 = vunpack.c.h.b16 %v5564
          %v6765 = vunpack.c.l.b16 %v5565
          %v6766 = vunpack.c.h.b16 %v5565
          %v6767 = vunpack.c.l.b16 %v5566
          %v6768 = vunpack.c.h.b16 %v5566
          %v6769 = vunpack.c.l.b16 %v5567
          %v6770 = vunpack.c.h.b16 %v5567
          %v6771 = vunpack.c.l.b16 %v5568
          %v6772 = vunpack.c.h.b16 %v5568
          %v6773 = vunpack.c.l.b16 %v5569
          %v6774 = vunpack.c.h.b16 %v5569
          %v6775 = vunpack.c.l.b16 %v5570
          %v6776 = vunpack.c.h.b16 %v5570
          %v6777 = vunpack.c.l.b16 %v5571
          %v6778 = vunpack.c.h.b16 %v5571
          %v6779 = vunpack.c.l.b16 %v5572
          %v6780 = vunpack.c.h.b16 %v5572
          %v6781 = vunpack.c.l.b16 %v5573
          %v6782 = vunpack.c.h.b16 %v5573
          %v6783 = vunpack.c.l.b16 %v5574
          %v6784 = vunpack.c.h.b16 %v5574
          %v6785 = vunpack.c.l.b16 %v5575
          %v6786 = vunpack.c.h.b16 %v5575
          %v6787 = vunpack.c.l.b16 %v5576
          %v6788 = vunpack.c.h.b16 %v5576
          %v6789 = vunpack.c.l.b16 %v5577
          %v6790 = vunpack.c.h.b16 %v5577
          %v6791 = vunpack.c.l.b16 %v5578
          %v6792 = vunpack.c.h.b16 %v5578
          %v6793 = vunpack.c.l.b16 %v5579
          %v6794 = vunpack.c.h.b16 %v5579
          %v6795 = vunpack.c.l.b16 %v5580
          %v6796 = vunpack.c.h.b16 %v5580
          %v6797 = vunpack.c.l.b16 %v5581
          %v6798 = vunpack.c.h.b16 %v5581
          %v6799 = vunpack.c.l.b16 %v5582
          %v6800 = vunpack.c.h.b16 %v5582
          %v6801 = vunpack.c.l.b16 %v5583
          %v6802 = vunpack.c.h.b16 %v5583
          %v6803 = vunpack.c.l.b16 %v5584
          %v6804 = vunpack.c.h.b16 %v5584
          %v6805 = vunpack.c.l.b16 %v5585
          %v6806 = vunpack.c.h.b16 %v5585
          %v6807 = vunpack.c.l.b16 %v5586
          %v6808 = vunpack.c.h.b16 %v5586
          %v6809 = vunpack.c.l.b16 %v5587
          %v6810 = vunpack.c.h.b16 %v5587
          %v6811 = vunpack.c.l.b16 %v5588
          %v6812 = vunpack.c.h.b16 %v5588
          %v6813 = vunpack.c.l.b16 %v5589
          %v6814 = vunpack.c.h.b16 %v5589
          %v6815 = vunpack.c.l.b16 %v5590
          %v6816 = vunpack.c.h.b16 %v5590
          %v6817 = vunpack.c.l.b16 %v5591
          %v6818 = vunpack.c.h.b16 %v5591
          %v6819 = vunpack.c.l.b16 %v5592
          %v6820 = vunpack.c.h.b16 %v5592
          %v6821 = vunpack.c.l.b16 %v5593
          %v6822 = vunpack.c.h.b16 %v5593
          %v6823 = vunpack.c.l.b16 %v5594
          %v6824 = vunpack.c.h.b16 %v5594
          %v6825 = vunpack.c.l.b16 %v5595
          %v6826 = vunpack.c.h.b16 %v5595
          %v6827 = vunpack.c.l.b16 %v5596
          %v6828 = vunpack.c.h.b16 %v5596
          %v6829 = vunpack.c.l.b16 %v5597
          %v6830 = vunpack.c.h.b16 %v5597
          %v6831 = vunpack.c.l.b16 %v5598
          %v6832 = vunpack.c.h.b16 %v5598
          %v6833 = vunpack.c.l.b16 %v5599
          %v6834 = vunpack.c.h.b16 %v5599
          %v6835 = vunpack.c.l.b16 %v5600
          %v6836 = vunpack.c.h.b16 %v5600
          %v6837 = vunpack.c.l.b16 %v5601
          %v6838 = vunpack.c.h.b16 %v5601
          %v6839 = vunpack.c.l.b16 %v5602
          %v6840 = vunpack.c.h.b16 %v5602
          %v6841 = vunpack.c.l.b16 %v5603
          %v6842 = vunpack.c.h.b16 %v5603
          %v6843 = vunpack.c.l.b16 %v5604
          %v6844 = vunpack.c.h.b16 %v5604
          %v6845 = vunpack.c.l.b16 %v5605
          %v6846 = vunpack.c.h.b16 %v5605
          %v6847 = vunpack.c.l.b16 %v5606
          %v6848 = vunpack.c.h.b16 %v5606
          %v6849 = vunpack.c.l.b16 %v5607
          %v6850 = vunpack.c.h.b16 %v5607
          %v6851 = vunpack.c.l.b16 %v5608
          %v6852 = vunpack.c.h.b16 %v5608
          %v6853 = vunpack.c.l.b16 %v5609
          %v6854 = vunpack.c.h.b16 %v5609
          %v6855 = vunpack.c.l.b16 %v5610
          %v6856 = vunpack.c.h.b16 %v5610
          %v6857 = vunpack.c.l.b16 %v5611
          %v6858 = vunpack.c.h.b16 %v5611
          %v6859 = vunpack.c.l.b16 %v5612
          %v6860 = vunpack.c.h.b16 %v5612
          %v6861 = vunpack.c.l.b16 %v5613
          %v6862 = vunpack.c.h.b16 %v5613
          %v6863 = vunpack.c.l.b16 %v5614
          %v6864 = vunpack.c.h.b16 %v5614
          %v6865 = vunpack.c.l.b16 %v5615
          %v6866 = vunpack.c.h.b16 %v5615
          %v6867 = vunpack.c.l.b16 %v5616
          %v6868 = vunpack.c.h.b16 %v5616
          %v6869 = vunpack.c.l.b16 %v5617
          %v6870 = vunpack.c.h.b16 %v5617
          %v6871 = vunpack.c.l.b16 %v5618
          %v6872 = vunpack.c.h.b16 %v5618
          %v6873 = vunpack.c.l.b16 %v5619
          %v6874 = vunpack.c.h.b16 %v5619
          %v6875 = vunpack.c.l.b16 %v5620
          %v6876 = vunpack.c.h.b16 %v5620
          %v6877 = vunpack.c.l.b16 %v5621
          %v6878 = vunpack.c.h.b16 %v5621
          %v6879 = vunpack.c.l.b16 %v5622
          %v6880 = vunpack.c.h.b16 %v5622
          %v6881 = vunpack.c.l.b16 %v5623
          %v6882 = vunpack.c.h.b16 %v5623
          %v6883 = vunpack.c.l.b16 %v5624
          %v6884 = vunpack.c.h.b16 %v5624
          %v6885 = vunpack.c.l.b16 %v5625
          %v6886 = vunpack.c.h.b16 %v5625
          %v6887 = vunpack.c.l.b16 %v5626
          %v6888 = vunpack.c.h.b16 %v5626
          %v6889 = vunpack.c.l.b16 %v5627
          %v6890 = vunpack.c.h.b16 %v5627
          %v6891 = vunpack.c.l.b16 %v5628
          %v6892 = vunpack.c.h.b16 %v5628
          %v6893 = vunpack.c.l.b16 %v5629
          %v6894 = vunpack.c.h.b16 %v5629
          %v6895 = vunpack.c.l.b16 %v5630
          %v6896 = vunpack.c.h.b16 %v5630
          %v6897 = vunpack.c.l.b16 %v5631
          %v6898 = vunpack.c.h.b16 %v5631
          %v6899 = vunpack.c.l.b16 %v5632
          %v6900 = vunpack.c.h.b16 %v5632
          %v6901 = vunpack.c.l.b16 %v5633
          %v6902 = vunpack.c.h.b16 %v5633
          %v6903 = vunpack.c.l.b16 %v5634
          %v6904 = vunpack.c.h.b16 %v5634
          %v6905 = vunpack.c.l.b16 %v5635
          %v6906 = vunpack.c.h.b16 %v5635
          %v6907 = vunpack.c.l.b16 %v5636
          %v6908 = vunpack.c.h.b16 %v5636
          %v6909 = vunpack.c.l.b16 %v5637
          %v6910 = vunpack.c.h.b16 %v5637
          %v6911 = vunpack.c.l.b16 %v5638
          %v6912 = vunpack.c.h.b16 %v5638
          %v6913 = vunpack.c.l.b16 %v5639
          %v6914 = vunpack.c.h.b16 %v5639
          %v6915 = vunpack.c.l.b16 %v5640
          %v6916 = vunpack.c.h.b16 %v5640
          %v6917 = vunpack.c.l.b16 %v5641
          %v6918 = vunpack.c.h.b16 %v5641
          %v6919 = vunpack.c.l.b16 %v5642
          %v6920 = vunpack.c.h.b16 %v5642
          %v6921 = vunpack.c.l.b16 %v5643
          %v6922 = vunpack.c.h.b16 %v5643
          %v6923 = vunpack.c.l.b16 %v5644
          %v6924 = vunpack.c.h.b16 %v5644
          %v6925 = vunpack.c.l.b16 %v5645
          %v6926 = vunpack.c.h.b16 %v5645
          %v6927 = vunpack.c.l.b16 %v5646
          %v6928 = vunpack.c.h.b16 %v5646
          %v6929 = vunpack.c.l.b16 %v5647
          %v6930 = vunpack.c.h.b16 %v5647
          %v6931 = vunpack.c.l.b16 %v5648
          %v6932 = vunpack.c.h.b16 %v5648
          %v6933 = vunpack.c.l.b16 %v5649
          %v6934 = vunpack.c.h.b16 %v5649
          %v6935 = vunpack.c.l.b16 %v5650
          %v6936 = vunpack.c.h.b16 %v5650
          %v6937 = vunpack.c.l.b16 %v5651
          %v6938 = vunpack.c.h.b16 %v5651
          %v6939 = vunpack.c.l.b16 %v5652
          %v6940 = vunpack.c.h.b16 %v5652
          %v6941 = vunpack.c.l.b16 %v5653
          %v6942 = vunpack.c.h.b16 %v5653
          %v6943 = vunpack.c.l.b16 %v5654
          %v6944 = vunpack.c.h.b16 %v5654
          %v6945 = vunpack.c.l.b16 %v5655
          %v6946 = vunpack.c.h.b16 %v5655
          %v6947 = vunpack.c.l.b16 %v5656
          %v6948 = vunpack.c.h.b16 %v5656
          %v6949 = vunpack.c.l.b16 %v5657
          %v6950 = vunpack.c.h.b16 %v5657
          %v6951 = vunpack.c.l.b16 %v5658
          %v6952 = vunpack.c.h.b16 %v5658
          %v6953 = vunpack.c.l.b16 %v5659
          %v6954 = vunpack.c.h.b16 %v5659
          %v6955 = vunpack.c.l.b16 %v5660
          %v6956 = vunpack.c.h.b16 %v5660
          %v6957 = vunpack.c.l.b16 %v5661
          %v6958 = vunpack.c.h.b16 %v5661
          %v6959 = vunpack.c.l.b16 %v5662
          %v6960 = vunpack.c.h.b16 %v5662
          %v6961 = vunpack.c.l.b16 %v5663
          %v6962 = vunpack.c.h.b16 %v5663
          %v6963 = vunpack.c.l.b16 %v5664
          %v6964 = vunpack.c.h.b16 %v5664
          %v6965 = vunpack.c.l.b16 %v5665
          %v6966 = vunpack.c.h.b16 %v5665
          %v6967 = vunpack.c.l.b16 %v5666
          %v6968 = vunpack.c.h.b16 %v5666
          %v6969 = vunpack.c.l.b16 %v5667
          %v6970 = vunpack.c.h.b16 %v5667
          %v6971 = vunpack.c.l.b16 %v5668
          %v6972 = vunpack.c.h.b16 %v5668
          %v6973 = vunpack.c.l.b16 %v5669
          %v6974 = vunpack.c.h.b16 %v5669
          %v6975 = vunpack.c.l.b16 %v5670
          %v6976 = vunpack.c.h.b16 %v5670
          %v6977 = vunpack.c.l.b16 %v5671
          %v6978 = vunpack.c.h.b16 %v5671
          %v6979 = vunpack.c.l.b16 %v5672
          %v6980 = vunpack.c.h.b16 %v5672
          %v6981 = vunpack.c.l.b16 %v5673
          %v6982 = vunpack.c.h.b16 %v5673
          %v6983 = vunpack.c.l.b16 %v5674
          %v6984 = vunpack.c.h.b16 %v5674
          %v6985 = vunpack.c.l.b16 %v5675
          %v6986 = vunpack.c.h.b16 %v5675
          %v6987 = vunpack.c.l.b16 %v5676
          %v6988 = vunpack.c.h.b16 %v5676
          %v6989 = vunpack.c.l.b16 %v5677
          %v6990 = vunpack.c.h.b16 %v5677
          %v6991 = vunpack.c.l.b16 %v5678
          %v6992 = vunpack.c.h.b16 %v5678
          %v6993 = vunpack.c.l.b16 %v5679
          %v6994 = vunpack.c.h.b16 %v5679
          %v6995 = vunpack.c.l.b16 %v5680
          %v6996 = vunpack.c.h.b16 %v5680
          %v6997 = vunpack.c.l.b16 %v5681
          %v6998 = vunpack.c.h.b16 %v5681
          %v6999 = vunpack.c.l.b16 %v5682
          %v7000 = vunpack.c.h.b16 %v5682
          %v7001 = vunpack.c.l.b16 %v5683
          %v7002 = vunpack.c.h.b16 %v5683
          %v7003 = vunpack.c.l.b16 %v5684
          %v7004 = vunpack.c.h.b16 %v5684
          %v7005 = vunpack.c.l.b16 %v5685
          %v7006 = vunpack.c.h.b16 %v5685
          %v7007 = vunpack.c.l.b16 %v5686
          %v7008 = vunpack.c.h.b16 %v5686
          %v7009 = vunpack.c.l.b16 %v5687
          %v7010 = vunpack.c.h.b16 %v5687
          %v7011 = vunpack.c.l.b16 %v5688
          %v7012 = vunpack.c.h.b16 %v5688
          %v7013 = vunpack.c.l.b16 %v5689
          %v7014 = vunpack.c.h.b16 %v5689
          %v7015 = vunpack.c.l.b16 %v5690
          %v7016 = vunpack.c.h.b16 %v5690
          %v7017 = vunpack.c.l.b16 %v5691
          %v7018 = vunpack.c.h.b16 %v5691
          %v7019 = vunpack.c.l.b16 %v5692
          %v7020 = vunpack.c.h.b16 %v5692
          %v7021 = vunpack.c.l.b16 %v5693
          %v7022 = vunpack.c.h.b16 %v5693
          %v7023 = vunpack.c.l.b16 %v5694
          %v7024 = vunpack.c.h.b16 %v5694
          %v7025 = vunpack.c.l.b16 %v5695
          %v7026 = vunpack.c.h.b16 %v5695
          %v7027 = vunpack.c.l.b16 %v5696
          %v7028 = vunpack.c.h.b16 %v5696
          %v7029 = vunpack.c.l.b16 %v5697
          %v7030 = vunpack.c.h.b16 %v5697
          %v7031 = vunpack.c.l.b16 %v5698
          %v7032 = vunpack.c.h.b16 %v5698
          %v7033 = vunpack.c.l.b16 %v5699
          %v7034 = vunpack.c.h.b16 %v5699
          %v7035 = vunpack.c.l.b16 %v5700
          %v7036 = vunpack.c.h.b16 %v5700
          %v7037 = vunpack.c.l.b16 %v5701
          %v7038 = vunpack.c.h.b16 %v5701
          %v7039 = vunpack.c.l.b16 %v5702
          %v7040 = vunpack.c.h.b16 %v5702
          %v7041 = vunpack.c.l.b16 %v5703
          %v7042 = vunpack.c.h.b16 %v5703
          %v7043 = vunpack.c.l.b16 %v5704
          %v7044 = vunpack.c.h.b16 %v5704
          %v7045 = vunpack.c.l.b16 %v5705
          %v7046 = vunpack.c.h.b16 %v5705
          %v7047 = vunpack.c.l.b16 %v5706
          %v7048 = vunpack.c.h.b16 %v5706
          %v7049 = vunpack.c.l.b16 %v5707
          %v7050 = vunpack.c.h.b16 %v5707
          %v7051 = vunpack.c.l.b16 %v5708
          %v7052 = vunpack.c.h.b16 %v5708
          %v7053 = vunpack.c.l.b16 %v5709
          %v7054 = vunpack.c.h.b16 %v5709
          %v7055 = vunpack.c.l.b16 %v5710
          %v7056 = vunpack.c.h.b16 %v5710
          %v7057 = vunpack.c.l.b16 %v5711
          %v7058 = vunpack.c.h.b16 %v5711
          %v7059 = vunpack.c.l.b16 %v5712
          %v7060 = vunpack.c.h.b16 %v5712
          %v7061 = vunpack.c.l.b16 %v5713
          %v7062 = vunpack.c.h.b16 %v5713
          %v7063 = vunpack.c.l.b16 %v5714
          %v7064 = vunpack.c.h.b16 %v5714
          %v7065 = vunpack.c.l.b16 %v5715
          %v7066 = vunpack.c.h.b16 %v5715
          %v7067 = vunpack.c.l.b16 %v5716
          %v7068 = vunpack.c.h.b16 %v5716
          %v7069 = vunpack.c.l.b16 %v5717
          %v7070 = vunpack.c.h.b16 %v5717
          %v7071 = vunpack.c.l.b16 %v5718
          %v7072 = vunpack.c.h.b16 %v5718
          %v7073 = vunpack.c.l.b16 %v5719
          %v7074 = vunpack.c.h.b16 %v5719
          %v7075 = vunpack.c.l.b16 %v5720
          %v7076 = vunpack.c.h.b16 %v5720
          %v7077 = vunpack.c.l.b16 %v5721
          %v7078 = vunpack.c.h.b16 %v5721
          %v7079 = vunpack.c.l.b16 %v5722
          %v7080 = vunpack.c.h.b16 %v5722
          %v7081 = vunpack.c.l.b16 %v5723
          %v7082 = vunpack.c.h.b16 %v5723
          %v7083 = vunpack.c.l.b16 %v5724
          %v7084 = vunpack.c.h.b16 %v5724
          %v7085 = vunpack.c.l.b16 %v5725
          %v7086 = vunpack.c.h.b16 %v5725
          %v7087 = vunpack.c.l.b16 %v5726
          %v7088 = vunpack.c.h.b16 %v5726
          %v7089 = vunpack.c.l.b16 %v5727
          %v7090 = vunpack.c.h.b16 %v5727
          %v7091 = vunpack.c.l.b16 %v5728
          %v7092 = vunpack.c.h.b16 %v5728
          %v7093 = vunpack.c.l.b16 %v5729
          %v7094 = vunpack.c.h.b16 %v5729
          %v7095 = vunpack.c.l.b16 %v5730
          %v7096 = vunpack.c.h.b16 %v5730
          %v7097 = vunpack.c.l.b16 %v5731
          %v7098 = vunpack.c.h.b16 %v5731
          %v7099 = vunpack.c.l.b16 %v5732
          %v7100 = vunpack.c.h.b16 %v5732
          %v7101 = vunpack.c.l.b16 %v5733
          %v7102 = vunpack.c.h.b16 %v5733
          %v7103 = vunpack.c.l.b16 %v5734
          %v7104 = vunpack.c.h.b16 %v5734
          %v7105 = vunpack.c.l.b16 %v5735
          %v7106 = vunpack.c.h.b16 %v5735
          %v7107 = vunpack.c.l.b16 %v5736
          %v7108 = vunpack.c.h.b16 %v5736
          %v7109 = vunpack.c.l.b16 %v5737
          %v7110 = vunpack.c.h.b16 %v5737
          %v7111 = vunpack.c.l.b16 %v5738
          %v7112 = vunpack.c.h.b16 %v5738
          %v7113 = vunpack.c.l.b16 %v5739
          %v7114 = vunpack.c.h.b16 %v5739
          %v7115 = vunpack.c.l.b16 %v5740
          %v7116 = vunpack.c.h.b16 %v5740
          %v7117 = vunpack.c.l.b16 %v5741
          %v7118 = vunpack.c.h.b16 %v5741
          %v7119 = vunpack.c.l.b16 %v5742
          %v7120 = vunpack.c.h.b16 %v5742
          %v7121 = vunpack.c.l.b16 %v5743
          %v7122 = vunpack.c.h.b16 %v5743
          %v7123 = vunpack.c.l.b16 %v5744
          %v7124 = vunpack.c.h.b16 %v5744
          %v7125 = vunpack.c.l.b16 %v5745
          %v7126 = vunpack.c.h.b16 %v5745
          %v7127 = vunpack.c.l.b16 %v5746
          %v7128 = vunpack.c.h.b16 %v5746
          %v7129 = vunpack.c.l.b16 %v5747
          %v7130 = vunpack.c.h.b16 %v5747
          %v7131 = vunpack.c.l.b16 %v5748
          %v7132 = vunpack.c.h.b16 %v5748
          %v7133 = vunpack.c.l.b16 %v5749
          %v7134 = vunpack.c.h.b16 %v5749
          %v7135 = vunpack.c.l.b16 %v5750
          %v7136 = vunpack.c.h.b16 %v5750
          %v7137 = vunpack.c.l.b16 %v5751
          %v7138 = vunpack.c.h.b16 %v5751
          %v7139 = vunpack.c.l.b16 %v5752
          %v7140 = vunpack.c.h.b16 %v5752
          %v7141 = vunpack.c.l.b16 %v5753
          %v7142 = vunpack.c.h.b16 %v5753
          %v7143 = vunpack.c.l.b16 %v5754
          %v7144 = vunpack.c.h.b16 %v5754
          %v7145 = vunpack.c.l.b16 %v5755
          %v7146 = vunpack.c.h.b16 %v5755
          %v7147 = vunpack.c.l.b16 %v5756
          %v7148 = vunpack.c.h.b16 %v5756
          %v7149 = vunpack.c.l.b16 %v5757
          %v7150 = vunpack.c.h.b16 %v5757
          %v7151 = vunpack.c.l.b16 %v5758
          %v7152 = vunpack.c.h.b16 %v5758
          %v7153 = vunpack.c.l.b16 %v5759
          %v7154 = vunpack.c.h.b16 %v5759
          %v7155 = vunpack.c.l.b16 %v5760
          %v7156 = vunpack.c.h.b16 %v5760
          %v7157 = vunpack.c.l.b16 %v5761
          %v7158 = vunpack.c.h.b16 %v5761
          %v7159 = vunpack.c.l.b16 %v5762
          %v7160 = vunpack.c.h.b16 %v5762
          %v7161 = vunpack.c.l.b16 %v5763
          %v7162 = vunpack.c.h.b16 %v5763
          %v7163 = vunpack.c.l.b16 %v5764
          %v7164 = vunpack.c.h.b16 %v5764
          %v7165 = vunpack.c.l.b16 %v5765
          %v7166 = vunpack.c.h.b16 %v5765
          %v7167 = vunpack.c.l.b16 %v5766
          %v7168 = vunpack.c.h.b16 %v5766
          %v7169 = vunpack.c.l.b16 %v5767
          %v7170 = vunpack.c.h.b16 %v5767
          %v7171 = vunpack.c.l.b16 %v5768
          %v7172 = vunpack.c.h.b16 %v5768
          %v7173 = vunpack.c.l.b16 %v5769
          %v7174 = vunpack.c.h.b16 %v5769
          %v7175 = vunpack.c.l.b16 %v5770
          %v7176 = vunpack.c.h.b16 %v5770
          %v7177 = vunpack.c.l.b16 %v5771
          %v7178 = vunpack.c.h.b16 %v5771
          %v7179 = vunpack.c.l.b16 %v5772
          %v7180 = vunpack.c.h.b16 %v5772
          %v7181 = vunpack.c.l.b16 %v5773
          %v7182 = vunpack.c.h.b16 %v5773
          %v7183 = vunpack.c.l.b16 %v5774
          %v7184 = vunpack.c.h.b16 %v5774
          %v7185 = vunpack.c.l.b16 %v5775
          %v7186 = vunpack.c.h.b16 %v5775
          %v7187 = vunpack.c.l.b16 %v5776
          %v7188 = vunpack.c.h.b16 %v5776
          %v7189 = vunpack.c.l.b16 %v5777
          %v7190 = vunpack.c.h.b16 %v5777
          %v7191 = vunpack.c.l.b16 %v5778
          %v7192 = vunpack.c.h.b16 %v5778
          %v7193 = vunpack.c.l.b16 %v5779
          %v7194 = vunpack.c.h.b16 %v5779
          %v7195 = vunpack.c.l.b16 %v5780
          %v7196 = vunpack.c.h.b16 %v5780
          %v7197 = vunpack.c.l.b16 %v5781
          %v7198 = vunpack.c.h.b16 %v5781
          %v7199 = vunpack.c.l.b16 %v5782
          %v7200 = vunpack.c.h.b16 %v5782
          %v7201 = vunpack.c.l.b16 %v5783
          %v7202 = vunpack.c.h.b16 %v5783
          %v7203 = vunpack.c.l.b16 %v5784
          %v7204 = vunpack.c.h.b16 %v5784
          %v7205 = vunpack.c.l.b16 %v5785
          %v7206 = vunpack.c.h.b16 %v5785
          %v7207 = vunpack.c.l.b16 %v5786
          %v7208 = vunpack.c.h.b16 %v5786
          %v7209 = vunpack.c.l.b16 %v5787
          %v7210 = vunpack.c.h.b16 %v5787
          %v7211 = vunpack.c.l.b16 %v5788
          %v7212 = vunpack.c.h.b16 %v5788
          %v7213 = vunpack.c.l.b16 %v5789
          %v7214 = vunpack.c.h.b16 %v5789
          %v7215 = vunpack.c.l.b16 %v5790
          %v7216 = vunpack.c.h.b16 %v5790
          %v7217 = vunpack.c.l.b16 %v5791
          %v7218 = vunpack.c.h.b16 %v5791
          %v7219 = vunpack.c.l.b16 %v5792
          %v7220 = vunpack.c.h.b16 %v5792
          %v7221 = vunpack.c.l.b16 %v5793
          %v7222 = vunpack.c.h.b16 %v5793
          %v7223 = vunpack.c.l.b16 %v5794
          %v7224 = vunpack.c.h.b16 %v5794
          %v7225 = vunpack.c.l.b16 %v5795
          %v7226 = vunpack.c.h.b16 %v5795
          %v7227 = vunpack.c.l.b16 %v5796
          %v7228 = vunpack.c.h.b16 %v5796
          %v7229 = vunpack.c.l.b16 %v5797
          %v7230 = vunpack.c.h.b16 %v5797
          %v7231 = vunpack.c.l.b16 %v5798
          %v7232 = vunpack.c.h.b16 %v5798
          %v7233 = vunpack.c.l.b16 %v5799
          %v7234 = vunpack.c.h.b16 %v5799
          %v7235 = vunpack.c.l.b16 %v5800
          %v7236 = vunpack.c.h.b16 %v5800
          %v7237 = vunpack.c.l.b16 %v5801
          %v7238 = vunpack.c.h.b16 %v5801
          %v7239 = vunpack.c.l.b16 %v5802
          %v7240 = vunpack.c.h.b16 %v5802
          %v7241 = vunpack.c.l.b16 %v5803
          %v7242 = vunpack.c.h.b16 %v5803
          %v7243 = vunpack.c.l.b16 %v5804
          %v7244 = vunpack.c.h.b16 %v5804
          %v7245 = vunpack.c.l.b16 %v5805
          %v7246 = vunpack.c.h.b16 %v5805
          %v7247 = vunpack.c.l.b16 %v5806
          %v7248 = vunpack.c.h.b16 %v5806
          %v7249 = vunpack.c.l.b16 %v5807
          %v7250 = vunpack.c.h.b16 %v5807
          %v7251 = vunpack.c.l.b16 %v5808
          %v7252 = vunpack.c.h.b16 %v5808
          %v7253 = vunpack.c.l.b16 %v5809
          %v7254 = vunpack.c.h.b16 %v5809
          %v7255 = vunpack.c.l.b16 %v5810
          %v7256 = vunpack.c.h.b16 %v5810
          %v7257 = vunpack.c.l.b16 %v5811
          %v7258 = vunpack.c.h.b16 %v5811
          %v7259 = vunpack.c.l.b16 %v5812
          %v7260 = vunpack.c.h.b16 %v5812
          %v7261 = vunpack.c.l.b16 %v5813
          %v7262 = vunpack.c.h.b16 %v5813
          %v7263 = vunpack.c.l.b16 %v5814
          %v7264 = vunpack.c.h.b16 %v5814
          %v7265 = vunpack.c.l.b16 %v5815
          %v7266 = vunpack.c.h.b16 %v5815
          %v7267 = vunpack.c.l.b16 %v5816
          %v7268 = vunpack.c.h.b16 %v5816
          %v7269 = vunpack.c.l.b16 %v5817
          %v7270 = vunpack.c.h.b16 %v5817
          %v7271 = vunpack.c.l.b16 %v5818
          %v7272 = vunpack.c.h.b16 %v5818
          %v7273 = vunpack.c.l.b16 %v5819
          %v7274 = vunpack.c.h.b16 %v5819
          %v7275 = vunpack.c.l.b16 %v5820
          %v7276 = vunpack.c.h.b16 %v5820
          %v7277 = vunpack.c.l.b16 %v5821
          %v7278 = vunpack.c.h.b16 %v5821
          %v7279 = vunpack.c.l.b16 %v5822
          %v7280 = vunpack.c.h.b16 %v5822
          %v7281 = vunpack.c.l.b16 %v5823
          %v7282 = vunpack.c.h.b16 %v5823
          %v7283 = vunpack.c.l.b16 %v5824
          %v7284 = vunpack.c.h.b16 %v5824
          %v7285 = vunpack.c.l.b16 %v5825
          %v7286 = vunpack.c.h.b16 %v5825
          %v7287 = vunpack.c.l.b16 %v5826
          %v7288 = vunpack.c.h.b16 %v5826
          %v7289 = vunpack.c.l.b16 %v5827
          %v7290 = vunpack.c.h.b16 %v5827
          %v7291 = vunpack.c.l.b16 %v5828
          %v7292 = vunpack.c.h.b16 %v5828
          %v7293 = vunpack.c.l.b16 %v5829
          %v7294 = vunpack.c.h.b16 %v5829
          %v7295 = vunpack.c.l.b16 %v5830
          %v7296 = vunpack.c.h.b16 %v5830
          %v7297 = vunpack.c.l.b16 %v5831
          %v7298 = vunpack.c.h.b16 %v5831
          %v7299 = vunpack.c.l.b16 %v5832
          %v7300 = vunpack.c.h.b16 %v5832
          %v7301 = vunpack.c.l.b16 %v5833
          %v7302 = vunpack.c.h.b16 %v5833
          %v7303 = vunpack.c.l.b16 %v5834
          %v7304 = vunpack.c.h.b16 %v5834
          %v7305 = vunpack.c.l.b16 %v5835
          %v7306 = vunpack.c.h.b16 %v5835
          %v7307 = vunpack.c.l.b16 %v5836
          %v7308 = vunpack.c.h.b16 %v5836
          %v7309 = vunpack.c.l.b16 %v5837
          %v7310 = vunpack.c.h.b16 %v5837
          %v7311 = vunpack.c.l.b16 %v5838
          %v7312 = vunpack.c.h.b16 %v5838
          %v7313 = vunpack.c.l.b16 %v5839
          %v7314 = vunpack.c.h.b16 %v5839
          %v7315 = vunpack.c.l.b16 %v5840
          %v7316 = vunpack.c.h.b16 %v5840
          %v7317 = vunpack.c.l.b16 %v5841
          %v7318 = vunpack.c.h.b16 %v5841
          %v7319 = vunpack.c.l.b16 %v5842
          %v7320 = vunpack.c.h.b16 %v5842
          %v7321 = vunpack.c.l.b16 %v5843
          %v7322 = vunpack.c.h.b16 %v5843
          %v7323 = vunpack.c.l.b16 %v5844
          %v7324 = vunpack.c.h.b16 %v5844
          %v7325 = vunpack.c.l.b16 %v5845
          %v7326 = vunpack.c.h.b16 %v5845
          %v7327 = vunpack.c.l.b16 %v5846
          %v7328 = vunpack.c.h.b16 %v5846
          %v7329 = vunpack.c.l.b16 %v5847
          %v7330 = vunpack.c.h.b16 %v5847
          %v7331 = vunpack.c.l.b16 %v5848
          %v7332 = vunpack.c.h.b16 %v5848
          %v7333 = vunpack.c.l.b16 %v5849
          %v7334 = vunpack.c.h.b16 %v5849
          %v7335 = vunpack.c.l.b16 %v5850
          %v7336 = vunpack.c.h.b16 %v5850
          %v7337 = vunpack.c.l.b16 %v5851
          %v7338 = vunpack.c.h.b16 %v5851
          %v7339 = vunpack.c.l.b16 %v5852
          %v7340 = vunpack.c.h.b16 %v5852
          %v7341 = vunpack.c.l.b16 %v5853
          %v7342 = vunpack.c.h.b16 %v5853
          %v7343 = vunpack.c.l.b16 %v5854
          %v7344 = vunpack.c.h.b16 %v5854
          %v7345 = vunpack.c.l.b16 %v5855
          %v7346 = vunpack.c.h.b16 %v5855
          %v7347 = vunpack.c.l.b16 %v5856
          %v7348 = vunpack.c.h.b16 %v5856
          %v7349 = vunpack.c.l.b16 %v5857
          %v7350 = vunpack.c.h.b16 %v5857
          %v7351 = vunpack.c.l.b16 %v5858
          %v7352 = vunpack.c.h.b16 %v5858
          %v7353 = vunpack.c.l.b16 %v5859
          %v7354 = vunpack.c.h.b16 %v5859
          %v7355 = vunpack.c.l.b16 %v5860
          %v7356 = vunpack.c.h.b16 %v5860
          %v7357 = vunpack.c.l.b16 %v5861
          %v7358 = vunpack.c.h.b16 %v5861
          %v7359 = vunpack.c.l.b16 %v5862
          %v7360 = vunpack.c.h.b16 %v5862
          %v7361 = vunpack.c.l.b16 %v5863
          %v7362 = vunpack.c.h.b16 %v5863
          %v7363 = vunpack.c.l.b16 %v5864
          %v7364 = vunpack.c.h.b16 %v5864
          %v7365 = vunpack.c.l.b16 %v5865
          %v7366 = vunpack.c.h.b16 %v5865
          %v7367 = vunpack.c.l.b16 %v5866
          %v7368 = vunpack.c.h.b16 %v5866
          %v7369 = vunpack.c.l.b16 %v5867
          %v7370 = vunpack.c.h.b16 %v5867
          %v7371 = vunpack.c.l.b16 %v5868
          %v7372 = vunpack.c.h.b16 %v5868
          %v7373 = vunpack.c.l.b16 %v5869
          %v7374 = vunpack.c.h.b16 %v5869
          %v7375 = vunpack.c.l.b16 %v5870
          %v7376 = vunpack.c.h.b16 %v5870
          %v7377 = vunpack.c.l.b16 %v5871
          %v7378 = vunpack.c.h.b16 %v5871
          %v7379 = vunpack.c.l.b16 %v5872
          %v7380 = vunpack.c.h.b16 %v5872
          %v7381 = vunpack.c.l.b16 %v5873
          %v7382 = vunpack.c.h.b16 %v5873
          %v7383 = vunpack.c.l.b16 %v5874
          %v7384 = vunpack.c.h.b16 %v5874
          %v7385 = vunpack.c.l.b16 %v5875
          %v7386 = vunpack.c.h.b16 %v5875
          %v7387 = vunpack.c.l.b16 %v5876
          %v7388 = vunpack.c.h.b16 %v5876
          %v7389 = vunpack.c.l.b16 %v5877
          %v7390 = vunpack.c.h.b16 %v5877
          %v7391 = vunpack.c.l.b16 %v5878
          %v7392 = vunpack.c.h.b16 %v5878
          %v7393 = vunpack.c.l.b16 %v5879
          %v7394 = vunpack.c.h.b16 %v5879
          %v7395 = vunpack.c.l.b16 %v5880
          %v7396 = vunpack.c.h.b16 %v5880
          %v7397 = vunpack.c.l.b16 %v5881
          %v7398 = vunpack.c.h.b16 %v5881
          %v7399 = vunpack.c.l.b16 %v5882
          %v7400 = vunpack.c.h.b16 %v5882
          %v7401 = vunpack.c.l.b16 %v5883
          %v7402 = vunpack.c.h.b16 %v5883
          %v7403 = vunpack.c.l.b16 %v5884
          %v7404 = vunpack.c.h.b16 %v5884
          %v7405 = vunpack.c.l.b16 %v5885
          %v7406 = vunpack.c.h.b16 %v5885
          %v7407 = vunpack.c.l.b16 %v5886
          %v7408 = vunpack.c.h.b16 %v5886
          %v7409 = vunpack.c.l.b16 %v5887
          %v7410 = vunpack.c.h.b16 %v5887
          %v7411 = vunpack.c.l.b16 %v5888
          %v7412 = vunpack.c.h.b16 %v5888
          %v7413 = vunpack.c.l.b16 %v5889
          %v7414 = vunpack.c.h.b16 %v5889
          %v7415 = vunpack.c.l.b16 %v5890
          %v7416 = vunpack.c.h.b16 %v5890
          %v7417 = vunpack.c.l.b16 %v5891
          %v7418 = vunpack.c.h.b16 %v5891
          %v7419 = vunpack.c.l.b16 %v5892
          %v7420 = vunpack.c.h.b16 %v5892
          %v7421 = vunpack.c.l.b16 %v5893
          %v7422 = vunpack.c.h.b16 %v5893
          %v7423 = vunpack.c.l.b16 %v5894
          %v7424 = vunpack.c.h.b16 %v5894
          %v7425 = vunpack.c.l.b16 %v5895
          %v7426 = vunpack.c.h.b16 %v5895
          %v7427 = vunpack.c.l.b16 %v5896
          %v7428 = vunpack.c.h.b16 %v5896
          %v7429 = vunpack.c.l.b16 %v5897
          %v7430 = vunpack.c.h.b16 %v5897
          %v7431 = vunpack.c.l.b16 %v5898
          %v7432 = vunpack.c.h.b16 %v5898
          %v7433 = vunpack.c.l.b16 %v5899
          %v7434 = vunpack.c.h.b16 %v5899
          %v7435 = vunpack.c.l.b16 %v5900
          %v7436 = vunpack.c.h.b16 %v5900
          %v7437 = vunpack.c.l.b16 %v5901
          %v7438 = vunpack.c.h.b16 %v5901
          %v7439 = vunpack.c.l.b16 %v5902
          %v7440 = vunpack.c.h.b16 %v5902
          %v7441 = vunpack.c.l.b16 %v5903
          %v7442 = vunpack.c.h.b16 %v5903
          %v7443 = vunpack.c.l.b16 %v5904
          %v7444 = vunpack.c.h.b16 %v5904
          %v7445 = vunpack.c.l.b16 %v5905
          %v7446 = vunpack.c.h.b16 %v5905
          %v7447 = vunpack.c.l.b16 %v5906
          %v7448 = vunpack.c.h.b16 %v5906
          %v7449 = vunpack.c.l.b16 %v5907
          %v7450 = vunpack.c.h.b16 %v5907
          %v7451 = vunpack.c.l.b16 %v5908
          %v7452 = vunpack.c.h.b16 %v5908
          %v7453 = vunpack.c.l.b16 %v5909
          %v7454 = vunpack.c.h.b16 %v5909
          %v7455 = vunpack.c.l.b16 %v5910
          %v7456 = vunpack.c.h.b16 %v5910
          %v7457 = vunpack.c.l.b16 %v5911
          %v7458 = vunpack.c.h.b16 %v5911
          %v7459 = vunpack.c.l.b16 %v5912
          %v7460 = vunpack.c.h.b16 %v5912
          %v7461 = vunpack.c.l.b16 %v5913
          %v7462 = vunpack.c.h.b16 %v5913
          %v7463 = vunpack.c.l.b16 %v5914
          %v7464 = vunpack.c.h.b16 %v5914
          %v7465 = vunpack.c.l.b16 %v5915
          %v7466 = vunpack.c.h.b16 %v5915
          %v7467 = vunpack.c.l.b16 %v5916
          %v7468 = vunpack.c.h.b16 %v5916
          %v7469 = vunpack.c.l.b16 %v5917
          %v7470 = vunpack.c.h.b16 %v5917
          %v7471 = vunpack.c.l.b16 %v5918
          %v7472 = vunpack.c.h.b16 %v5918
          %v7473 = vunpack.c.l.b16 %v5919
          %v7474 = vunpack.c.h.b16 %v5919
          %v7475 = vunpack.c.l.b16 %v5920
          %v7476 = vunpack.c.h.b16 %v5920
          %v7477 = vunpack.c.l.b16 %v5921
          %v7478 = vunpack.c.h.b16 %v5921
          %v7479 = vunpack.c.l.b16 %v5922
          %v7480 = vunpack.c.h.b16 %v5922
          %v7481 = vunpack.c.l.b16 %v5923
          %v7482 = vunpack.c.h.b16 %v5923
          %v7483 = vunpack.c.l.b16 %v5924
          %v7484 = vunpack.c.h.b16 %v5924
          %v7485 = vunpack.c.l.b16 %v5925
          %v7486 = vunpack.c.h.b16 %v5925
          %v7487 = vunpack.c.l.b16 %v5926
          %v7488 = vunpack.c.h.b16 %v5926
          %v7489 = vunpack.c.l.b16 %v5927
          %v7490 = vunpack.c.h.b16 %v5927
          %v7491 = vunpack.c.l.b16 %v5928
          %v7492 = vunpack.c.h.b16 %v5928
          %v7493 = vunpack.c.l.b16 %v5929
          %v7494 = vunpack.c.h.b16 %v5929
          %v7495 = vunpack.c.l.b16 %v5930
          %v7496 = vunpack.c.h.b16 %v5930
          %v7497 = vunpack.c.l.b16 %v5931
          %v7498 = vunpack.c.h.b16 %v5931
          %v7499 = vunpack.c.l.b16 %v5932
          %v7500 = vunpack.c.h.b16 %v5932
          %v7501 = vunpack.c.l.b16 %v5933
          %v7502 = vunpack.c.h.b16 %v5933
          %v7503 = vunpack.c.l.b16 %v5934
          %v7504 = vunpack.c.h.b16 %v5934
          %v7505 = vunpack.c.l.b16 %v5935
          %v7506 = vunpack.c.h.b16 %v5935
          %v7507 = vunpack.c.l.b16 %v5936
          %v7508 = vunpack.c.h.b16 %v5936
          %v7509 = vunpack.c.l.b16 %v5937
          %v7510 = vunpack.c.h.b16 %v5937
          %v7511 = vunpack.c.l.b16 %v5938
          %v7512 = vunpack.c.h.b16 %v5938
          %v7513 = vunpack.c.l.b16 %v5939
          %v7514 = vunpack.c.h.b16 %v5939
          %v7515 = vunpack.c.l.b16 %v5940
          %v7516 = vunpack.c.h.b16 %v5940
          %v7517 = vunpack.c.l.b16 %v5941
          %v7518 = vunpack.c.h.b16 %v5941
          %v7519 = vunpack.c.l.b16 %v5942
          %v7520 = vunpack.c.h.b16 %v5942
          %v7521 = vunpack.c.l.b16 %v5943
          %v7522 = vunpack.c.h.b16 %v5943
          %v7523 = vunpack.c.l.b16 %v5944
          %v7524 = vunpack.c.h.b16 %v5944
          %v7525 = vunpack.c.l.b16 %v5945
          %v7526 = vunpack.c.h.b16 %v5945
          %v7527 = vunpack.c.l.b16 %v5946
          %v7528 = vunpack.c.h.b16 %v5946
          %v7529 = vunpack.c.l.b16 %v5947
          %v7530 = vunpack.c.h.b16 %v5947
          %v7531 = vunpack.c.l.b16 %v5948
          %v7532 = vunpack.c.h.b16 %v5948
          %v7533 = vunpack.c.l.b16 %v5949
          %v7534 = vunpack.c.h.b16 %v5949
          %v7535 = vunpack.c.l.b16 %v5950
          %v7536 = vunpack.c.h.b16 %v5950
          %v7537 = vunpack.c.l.b16 %v5951
          %v7538 = vunpack.c.h.b16 %v5951
          %v7539 = vunpack.c.l.b16 %v5952
          %v7540 = vunpack.c.h.b16 %v5952
          %v7541 = vunpack.c.l.b16 %v5953
          %v7542 = vunpack.c.h.b16 %v5953
          %v7543 = vunpack.c.l.b16 %v5954
          %v7544 = vunpack.c.h.b16 %v5954
          %v7545 = vunpack.c.l.b16 %v5955
          %v7546 = vunpack.c.h.b16 %v5955
          %v7547 = vunpack.c.l.b16 %v5956
          %v7548 = vunpack.c.h.b16 %v5956
          %v7549 = vunpack.c.l.b16 %v5957
          %v7550 = vunpack.c.h.b16 %v5957
          %v7551 = vunpack.c.l.b16 %v5958
          %v7552 = vunpack.c.h.b16 %v5958
          %v7553 = vunpack.c.l.b16 %v5959
          %v7554 = vunpack.c.h.b16 %v5959
          %v7555 = vunpack.c.l.b16 %v5960
          %v7556 = vunpack.c.h.b16 %v5960
          %v7557 = vunpack.c.l.b16 %v5961
          %v7558 = vunpack.c.h.b16 %v5961
          %v7559 = vunpack.c.l.b16 %v5962
          %v7560 = vunpack.c.h.b16 %v5962
          %v7561 = vunpack.c.l.b16 %v5963
          %v7562 = vunpack.c.h.b16 %v5963
          %v7563 = vunpack.c.l.b16 %v5964
          %v7564 = vunpack.c.h.b16 %v5964
          %v7565 = vunpack.c.l.b16 %v5965
          %v7566 = vunpack.c.h.b16 %v5965
          %v7567 = vunpack.c.l.b16 %v5966
          %v7568 = vunpack.c.h.b16 %v5966
          %v7569 = vunpack.c.l.b16 %v5967
          %v7570 = vunpack.c.h.b16 %v5967
          %v7571 = vunpack.c.l.b16 %v5968
          %v7572 = vunpack.c.h.b16 %v5968
          %v7573 = vunpack.c.l.b16 %v5969
          %v7574 = vunpack.c.h.b16 %v5969
          %v7575 = vunpack.c.l.b16 %v5970
          %v7576 = vunpack.c.h.b16 %v5970
          %v7577 = vunpack.c.l.b16 %v5971
          %v7578 = vunpack.c.h.b16 %v5971
          %v7579 = vunpack.c.l.b16 %v5972
          %v7580 = vunpack.c.h.b16 %v5972
          %v7581 = vunpack.c.l.b16 %v5973
          %v7582 = vunpack.c.h.b16 %v5973
          %v7583 = vunpack.c.l.b16 %v5974
          %v7584 = vunpack.c.h.b16 %v5974
          %v7585 = vunpack.c.l.b16 %v5975
          %v7586 = vunpack.c.h.b16 %v5975
          %v7587 = vunpack.c.l.b16 %v5976
          %v7588 = vunpack.c.h.b16 %v5976
          %v7589 = vunpack.c.l.b16 %v5977
          %v7590 = vunpack.c.h.b16 %v5977
          %v7591 = vunpack.c.l.b16 %v5978
          %v7592 = vunpack.c.h.b16 %v5978
          %v7593 = vunpack.c.l.b16 %v5979
          %v7594 = vunpack.c.h.b16 %v5979
          %v7595 = vunpack.c.l.b16 %v5980
          %v7596 = vunpack.c.h.b16 %v5980
          %v7597 = vunpack.c.l.b16 %v5981
          %v7598 = vunpack.c.h.b16 %v5981
          %v7599 = vunpack.c.l.b16 %v5982
          %v7600 = vunpack.c.h.b16 %v5982
          %v7601 = vunpack.c.l.b16 %v5983
          %v7602 = vunpack.c.h.b16 %v5983
          %v7603 = vunpack.c.l.b16 %v5984
          %v7604 = vunpack.c.h.b16 %v5984
          %v7605 = vunpack.c.l.b16 %v5985
          %v7606 = vunpack.c.h.b16 %v5985
          %v7607 = vunpack.c.l.b16 %v5986
          %v7608 = vunpack.c.h.b16 %v5986
          %v7609 = vunpack.c.l.b16 %v5987
          %v7610 = vunpack.c.h.b16 %v5987
          %v7611 = vunpack.c.l.b16 %v5988
          %v7612 = vunpack.c.h.b16 %v5988
          %v7613 = vunpack.c.l.b16 %v5989
          %v7614 = vunpack.c.h.b16 %v5989
          %v7615 = vunpack.c.l.b16 %v5990
          %v7616 = vunpack.c.h.b16 %v5990
          %v7617 = vunpack.c.l.b16 %v5991
          %v7618 = vunpack.c.h.b16 %v5991
          %v7619 = vunpack.c.l.b16 %v5992
          %v7620 = vunpack.c.h.b16 %v5992
          %v7621 = vunpack.c.l.b16 %v5993
          %v7622 = vunpack.c.h.b16 %v5993
          %v7623 = vunpack.c.l.b16 %v5994
          %v7624 = vunpack.c.h.b16 %v5994
          %v7625 = vunpack.c.l.b16 %v5995
          %v7626 = vunpack.c.h.b16 %v5995
          %v7627 = vunpack.c.l.b16 %v5996
          %v7628 = vunpack.c.h.b16 %v5996
          %v7629 = vunpack.c.l.b16 %v5997
          %v7630 = vunpack.c.h.b16 %v5997
          %v7631 = vunpack.c.l.b16 %v5998
          %v7632 = vunpack.c.h.b16 %v5998
          %v7633 = vunpack.c.l.b16 %v5999
          %v7634 = vunpack.c.h.b16 %v5999
          %v7635 = vunpack.c.l.b16 %v6000
          %v7636 = vunpack.c.h.b16 %v6000
          %v7637 = vunpack.c.l.b16 %v6001
          %v7638 = vunpack.c.h.b16 %v6001
          %v7639 = vunpack.c.l.b16 %v6002
          %v7640 = vunpack.c.h.b16 %v6002
          %v7641 = vunpack.c.l.b16 %v6003
          %v7642 = vunpack.c.h.b16 %v6003
          %v7643 = vunpack.c.l.b16 %v6004
          %v7644 = vunpack.c.h.b16 %v6004
          %v7645 = vunpack.c.l.b16 %v6005
          %v7646 = vunpack.c.h.b16 %v6005
          %v7647 = vunpack.c.l.b16 %v6006
          %v7648 = vunpack.c.h.b16 %v6006
          %v7649 = vunpack.c.l.b16 %v6007
          %v7650 = vunpack.c.h.b16 %v6007
          %v7651 = vunpack.c.l.b16 %v6008
          %v7652 = vunpack.c.h.b16 %v6008
          %v7653 = vunpack.c.l.b16 %v6009
          %v7654 = vunpack.c.h.b16 %v6009
          %v7655 = vunpack.c.l.b16 %v6010
          %v7656 = vunpack.c.h.b16 %v6010
          %v7657 = vunpack.c.l.b16 %v6011
          %v7658 = vunpack.c.h.b16 %v6011
          %v7659 = vunpack.c.l.b16 %v6012
          %v7660 = vunpack.c.h.b16 %v6012
          %v7661 = vunpack.c.l.b16 %v6013
          %v7662 = vunpack.c.h.b16 %v6013
          %v7663 = vpack.c.b16 %v6655, %v6639
          %v7664 = vpack.c.b16 %v6656, %v6640
          %v7665 = vpack.c.b16 %v6657, %v6641
          %v7666 = vpack.c.b16 %v6658, %v6642
          %v7667 = vpack.c.b16 %v6659, %v6643
          %v7668 = vpack.c.b16 %v6660, %v6644
          %v7669 = vpack.c.b16 %v6661, %v6645
          %v7670 = vpack.c.b16 %v6662, %v6646
          %v7671 = vpack.c.b16 %v6663, %v6647
          %v7672 = vpack.c.b16 %v6664, %v6648
          %v7673 = vpack.c.b16 %v6665, %v6649
          %v7674 = vpack.c.b16 %v6666, %v6650
          %v7675 = vpack.c.b16 %v6667, %v6651
          %v7676 = vpack.c.b16 %v6668, %v6652
          %v7677 = vpack.c.b16 %v6669, %v6653
          %v7678 = vpack.c.b16 %v6670, %v6654
          %v7679 = vpack.c.b16 %v6687, %v6671
          %v7680 = vpack.c.b16 %v6688, %v6672
          %v7681 = vpack.c.b16 %v6689, %v6673
          %v7682 = vpack.c.b16 %v6690, %v6674
          %v7683 = vpack.c.b16 %v6691, %v6675
          %v7684 = vpack.c.b16 %v6692, %v6676
          %v7685 = vpack.c.b16 %v6693, %v6677
          %v7686 = vpack.c.b16 %v6694, %v6678
          %v7687 = vpack.c.b16 %v6695, %v6679
          %v7688 = vpack.c.b16 %v6696, %v6680
          %v7689 = vpack.c.b16 %v6697, %v6681
          %v7690 = vpack.c.b16 %v6698, %v6682
          %v7691 = vpack.c.b16 %v6699, %v6683
          %v7692 = vpack.c.b16 %v6700, %v6684
          %v7693 = vpack.c.b16 %v6701, %v6685
          %v7694 = vpack.c.b16 %v6702, %v6686
          %v7695 = vpack.c.b16 %v6719, %v6703
          %v7696 = vpack.c.b16 %v6720, %v6704
          %v7697 = vpack.c.b16 %v6721, %v6705
          %v7698 = vpack.c.b16 %v6722, %v6706
          %v7699 = vpack.c.b16 %v6723, %v6707
          %v7700 = vpack.c.b16 %v6724, %v6708
          %v7701 = vpack.c.b16 %v6725, %v6709
          %v7702 = vpack.c.b16 %v6726, %v6710
          %v7703 = vpack.c.b16 %v6727, %v6711
          %v7704 = vpack.c.b16 %v6728, %v6712
          %v7705 = vpack.c.b16 %v6729, %v6713
          %v7706 = vpack.c.b16 %v6730, %v6714
          %v7707 = vpack.c.b16 %v6731, %v6715
          %v7708 = vpack.c.b16 %v6732, %v6716
          %v7709 = vpack.c.b16 %v6733, %v6717
          %v7710 = vpack.c.b16 %v6734, %v6718
          %v7711 = vpack.c.b16 %v6751, %v6735
          %v7712 = vpack.c.b16 %v6752, %v6736
          %v7713 = vpack.c.b16 %v6753, %v6737
          %v7714 = vpack.c.b16 %v6754, %v6738
          %v7715 = vpack.c.b16 %v6755, %v6739
          %v7716 = vpack.c.b16 %v6756, %v6740
          %v7717 = vpack.c.b16 %v6757, %v6741
          %v7718 = vpack.c.b16 %v6758, %v6742
          %v7719 = vpack.c.b16 %v6759, %v6743
          %v7720 = vpack.c.b16 %v6760, %v6744
          %v7721 = vpack.c.b16 %v6761, %v6745
          %v7722 = vpack.c.b16 %v6762, %v6746
          %v7723 = vpack.c.b16 %v6763, %v6747
          %v7724 = vpack.c.b16 %v6764, %v6748
          %v7725 = vpack.c.b16 %v6765, %v6749
          %v7726 = vpack.c.b16 %v6766, %v6750
          %v7727 = vpack.c.b16 %v6783, %v6767
          %v7728 = vpack.c.b16 %v6784, %v6768
          %v7729 = vpack.c.b16 %v6785, %v6769
          %v7730 = vpack.c.b16 %v6786, %v6770
          %v7731 = vpack.c.b16 %v6787, %v6771
          %v7732 = vpack.c.b16 %v6788, %v6772
          %v7733 = vpack.c.b16 %v6789, %v6773
          %v7734 = vpack.c.b16 %v6790, %v6774
          %v7735 = vpack.c.b16 %v6791, %v6775
          %v7736 = vpack.c.b16 %v6792, %v6776
          %v7737 = vpack.c.b16 %v6793, %v6777
          %v7738 = vpack.c.b16 %v6794, %v6778
          %v7739 = vpack.c.b16 %v6795, %v6779
          %v7740 = vpack.c.b16 %v6796, %v6780
          %v7741 = vpack.c.b16 %v6797, %v6781
          %v7742 = vpack.c.b16 %v6798, %v6782
          %v7743 = vpack.c.b16 %v6815, %v6799
          %v7744 = vpack.c.b16 %v6816, %v6800
          %v7745 = vpack.c.b16 %v6817, %v6801
          %v7746 = vpack.c.b16 %v6818, %v6802
          %v7747 = vpack.c.b16 %v6819, %v6803
          %v7748 = vpack.c.b16 %v6820, %v6804
          %v7749 = vpack.c.b16 %v6821, %v6805
          %v7750 = vpack.c.b16 %v6822, %v6806
          %v7751 = vpack.c.b16 %v6823, %v6807
          %v7752 = vpack.c.b16 %v6824, %v6808
          %v7753 = vpack.c.b16 %v6825, %v6809
          %v7754 = vpack.c.b16 %v6826, %v6810
          %v7755 = vpack.c.b16 %v6827, %v6811
          %v7756 = vpack.c.b16 %v6828, %v6812
          %v7757 = vpack.c.b16 %v6829, %v6813
          %v7758 = vpack.c.b16 %v6830, %v6814
          %v7759 = vpack.c.b16 %v6847, %v6831
          %v7760 = vpack.c.b16 %v6848, %v6832
          %v7761 = vpack.c.b16 %v6849, %v6833
          %v7762 = vpack.c.b16 %v6850, %v6834
          %v7763 = vpack.c.b16 %v6851, %v6835
          %v7764 = vpack.c.b16 %v6852, %v6836
          %v7765 = vpack.c.b16 %v6853, %v6837
          %v7766 = vpack.c.b16 %v6854, %v6838
          %v7767 = vpack.c.b16 %v6855, %v6839
          %v7768 = vpack.c.b16 %v6856, %v6840
          %v7769 = vpack.c.b16 %v6857, %v6841
          %v7770 = vpack.c.b16 %v6858, %v6842
          %v7771 = vpack.c.b16 %v6859, %v6843
          %v7772 = vpack.c.b16 %v6860, %v6844
          %v7773 = vpack.c.b16 %v6861, %v6845
          %v7774 = vpack.c.b16 %v6862, %v6846
          %v7775 = vpack.c.b16 %v6879, %v6863
          %v7776 = vpack.c.b16 %v6880, %v6864
          %v7777 = vpack.c.b16 %v6881, %v6865
          %v7778 = vpack.c.b16 %v6882, %v6866
          %v7779 = vpack.c.b16 %v6883, %v6867
          %v7780 = vpack.c.b16 %v6884, %v6868
          %v7781 = vpack.c.b16 %v6885, %v6869
          %v7782 = vpack.c.b16 %v6886, %v6870
          %v7783 = vpack.c.b16 %v6887, %v6871
          %v7784 = vpack.c.b16 %v6888, %v6872
          %v7785 = vpack.c.b16 %v6889, %v6873
          %v7786 = vpack.c.b16 %v6890, %v6874
          %v7787 = vpack.c.b16 %v6891, %v6875
          %v7788 = vpack.c.b16 %v6892, %v6876
          %v7789 = vpack.c.b16 %v6893, %v6877
          %v7790 = vpack.c.b16 %v6894, %v6878
          %v7791 = vpack.c.b16 %v6911, %v6895
          %v7792 = vpack.c.b16 %v6912, %v6896
          %v7793 = vpack.c.b16 %v6913, %v6897
          %v7794 = vpack.c.b16 %v6914, %v6898
          %v7795 = vpack.c.b16 %v6915, %v6899
          %v7796 = vpack.c.b16 %v6916, %v6900
          %v7797 = vpack.c.b16 %v6917, %v6901
          %v7798 = vpack.c.b16 %v6918, %v6902
          %v7799 = vpack.c.b16 %v6919, %v6903
          %v7800 = vpack.c.b16 %v6920, %v6904
          %v7801 = vpack.c.b16 %v6921, %v6905
          %v7802 = vpack.c.b16 %v6922, %v6906
          %v7803 = vpack.c.b16 %v6923, %v6907
          %v7804 = vpack.c.b16 %v6924, %v6908
          %v7805 = vpack.c.b16 %v6925, %v6909
          %v7806 = vpack.c.b16 %v6926, %v6910
          %v7807 = vpack.c.b16 %v6943, %v6927
          %v7808 = vpack.c.b16 %v6944, %v6928
          %v7809 = vpack.c.b16 %v6945, %v6929
          %v7810 = vpack.c.b16 %v6946, %v6930
          %v7811 = vpack.c.b16 %v6947, %v6931
          %v7812 = vpack.c.b16 %v6948, %v6932
          %v7813 = vpack.c.b16 %v6949, %v6933
          %v7814 = vpack.c.b16 %v6950, %v6934
          %v7815 = vpack.c.b16 %v6951, %v6935
          %v7816 = vpack.c.b16 %v6952, %v6936
          %v7817 = vpack.c.b16 %v6953, %v6937
          %v7818 = vpack.c.b16 %v6954, %v6938
          %v7819 = vpack.c.b16 %v6955, %v6939
          %v7820 = vpack.c.b16 %v6956, %v6940
          %v7821 = vpack.c.b16 %v6957, %v6941
          %v7822 = vpack.c.b16 %v6958, %v6942
          %v7823 = vpack.c.b16 %v6975, %v6959
          %v7824 = vpack.c.b16 %v6976, %v6960
          %v7825 = vpack.c.b16 %v6977, %v6961
          %v7826 = vpack.c.b16 %v6978, %v6962
          %v7827 = vpack.c.b16 %v6979, %v6963
          %v7828 = vpack.c.b16 %v6980, %v6964
          %v7829 = vpack.c.b16 %v6981, %v6965
          %v7830 = vpack.c.b16 %v6982, %v6966
          %v7831 = vpack.c.b16 %v6983, %v6967
          %v7832 = vpack.c.b16 %v6984, %v6968
          %v7833 = vpack.c.b16 %v6985, %v6969
          %v7834 = vpack.c.b16 %v6986, %v6970
          %v7835 = vpack.c.b16 %v6987, %v6971
          %v7836 = vpack.c.b16 %v6988, %v6972
          %v7837 = vpack.c.b16 %v6989, %v6973
          %v7838 = vpack.c.b16 %v6990, %v6974
          %v7839 = vpack.c.b16 %v7007, %v6991
          %v7840 = vpack.c.b16 %v7008, %v6992
          %v7841 = vpack.c.b16 %v7009, %v6993
          %v7842 = vpack.c.b16 %v7010, %v6994
          %v7843 = vpack.c.b16 %v7011, %v6995
          %v7844 = vpack.c.b16 %v7012, %v6996
          %v7845 = vpack.c.b16 %v7013, %v6997
          %v7846 = vpack.c.b16 %v7014, %v6998
          %v7847 = vpack.c.b16 %v7015, %v6999
          %v7848 = vpack.c.b16 %v7016, %v7000
          %v7849 = vpack.c.b16 %v7017, %v7001
          %v7850 = vpack.c.b16 %v7018, %v7002
          %v7851 = vpack.c.b16 %v7019, %v7003
          %v7852 = vpack.c.b16 %v7020, %v7004
          %v7853 = vpack.c.b16 %v7021, %v7005
          %v7854 = vpack.c.b16 %v7022, %v7006
          %v7855 = vpack.c.b16 %v7039, %v7023
          %v7856 = vpack.c.b16 %v7040, %v7024
          %v7857 = vpack.c.b16 %v7041, %v7025
          %v7858 = vpack.c.b16 %v7042, %v7026
          %v7859 = vpack.c.b16 %v7043, %v7027
          %v7860 = vpack.c.b16 %v7044, %v7028
          %v7861 = vpack.c.b16 %v7045, %v7029
          %v7862 = vpack.c.b16 %v7046, %v7030
          %v7863 = vpack.c.b16 %v7047, %v7031
          %v7864 = vpack.c.b16 %v7048, %v7032
          %v7865 = vpack.c.b16 %v7049, %v7033
          %v7866 = vpack.c.b16 %v7050, %v7034
          %v7867 = vpack.c.b16 %v7051, %v7035
          %v7868 = vpack.c.b16 %v7052, %v7036
          %v7869 = vpack.c.b16 %v7053, %v7037
          %v7870 = vpack.c.b16 %v7054, %v7038
          %v7871 = vpack.c.b16 %v7071, %v7055
          %v7872 = vpack.c.b16 %v7072, %v7056
          %v7873 = vpack.c.b16 %v7073, %v7057
          %v7874 = vpack.c.b16 %v7074, %v7058
          %v7875 = vpack.c.b16 %v7075, %v7059
          %v7876 = vpack.c.b16 %v7076, %v7060
          %v7877 = vpack.c.b16 %v7077, %v7061
          %v7878 = vpack.c.b16 %v7078, %v7062
          %v7879 = vpack.c.b16 %v7079, %v7063
          %v7880 = vpack.c.b16 %v7080, %v7064
          %v7881 = vpack.c.b16 %v7081, %v7065
          %v7882 = vpack.c.b16 %v7082, %v7066
          %v7883 = vpack.c.b16 %v7083, %v7067
          %v7884 = vpack.c.b16 %v7084, %v7068
          %v7885 = vpack.c.b16 %v7085, %v7069
          %v7886 = vpack.c.b16 %v7086, %v7070
          %v7887 = vpack.c.b16 %v7103, %v7087
          %v7888 = vpack.c.b16 %v7104, %v7088
          %v7889 = vpack.c.b16 %v7105, %v7089
          %v7890 = vpack.c.b16 %v7106, %v7090
          %v7891 = vpack.c.b16 %v7107, %v7091
          %v7892 = vpack.c.b16 %v7108, %v7092
          %v7893 = vpack.c.b16 %v7109, %v7093
          %v7894 = vpack.c.b16 %v7110, %v7094
          %v7895 = vpack.c.b16 %v7111, %v7095
          %v7896 = vpack.c.b16 %v7112, %v7096
          %v7897 = vpack.c.b16 %v7113, %v7097
          %v7898 = vpack.c.b16 %v7114, %v7098
          %v7899 = vpack.c.b16 %v7115, %v7099
          %v7900 = vpack.c.b16 %v7116, %v7100
          %v7901 = vpack.c.b16 %v7117, %v7101
          %v7902 = vpack.c.b16 %v7118, %v7102
          %v7903 = vpack.c.b16 %v7135, %v7119
          %v7904 = vpack.c.b16 %v7136, %v7120
          %v7905 = vpack.c.b16 %v7137, %v7121
          %v7906 = vpack.c.b16 %v7138, %v7122
          %v7907 = vpack.c.b16 %v7139, %v7123
          %v7908 = vpack.c.b16 %v7140, %v7124
          %v7909 = vpack.c.b16 %v7141, %v7125
          %v7910 = vpack.c.b16 %v7142, %v7126
          %v7911 = vpack.c.b16 %v7143, %v7127
          %v7912 = vpack.c.b16 %v7144, %v7128
          %v7913 = vpack.c.b16 %v7145, %v7129
          %v7914 = vpack.c.b16 %v7146, %v7130
          %v7915 = vpack.c.b16 %v7147, %v7131
          %v7916 = vpack.c.b16 %v7148, %v7132
          %v7917 = vpack.c.b16 %v7149, %v7133
          %v7918 = vpack.c.b16 %v7150, %v7134
          %v7919 = vpack.c.b16 %v7167, %v7151
          %v7920 = vpack.c.b16 %v7168, %v7152
          %v7921 = vpack.c.b16 %v7169, %v7153
          %v7922 = vpack.c.b16 %v7170, %v7154
          %v7923 = vpack.c.b16 %v7171, %v7155
          %v7924 = vpack.c.b16 %v7172, %v7156
          %v7925 = vpack.c.b16 %v7173, %v7157
          %v7926 = vpack.c.b16 %v7174, %v7158
          %v7927 = vpack.c.b16 %v7175, %v7159
          %v7928 = vpack.c.b16 %v7176, %v7160
          %v7929 = vpack.c.b16 %v7177, %v7161
          %v7930 = vpack.c.b16 %v7178, %v7162
          %v7931 = vpack.c.b16 %v7179, %v7163
          %v7932 = vpack.c.b16 %v7180, %v7164
          %v7933 = vpack.c.b16 %v7181, %v7165
          %v7934 = vpack.c.b16 %v7182, %v7166
          %v7935 = vpack.c.b16 %v7199, %v7183
          %v7936 = vpack.c.b16 %v7200, %v7184
          %v7937 = vpack.c.b16 %v7201, %v7185
          %v7938 = vpack.c.b16 %v7202, %v7186
          %v7939 = vpack.c.b16 %v7203, %v7187
          %v7940 = vpack.c.b16 %v7204, %v7188
          %v7941 = vpack.c.b16 %v7205, %v7189
          %v7942 = vpack.c.b16 %v7206, %v7190
          %v7943 = vpack.c.b16 %v7207, %v7191
          %v7944 = vpack.c.b16 %v7208, %v7192
          %v7945 = vpack.c.b16 %v7209, %v7193
          %v7946 = vpack.c.b16 %v7210, %v7194
          %v7947 = vpack.c.b16 %v7211, %v7195
          %v7948 = vpack.c.b16 %v7212, %v7196
          %v7949 = vpack.c.b16 %v7213, %v7197
          %v7950 = vpack.c.b16 %v7214, %v7198
          %v7951 = vpack.c.b16 %v7231, %v7215
          %v7952 = vpack.c.b16 %v7232, %v7216
          %v7953 = vpack.c.b16 %v7233, %v7217
          %v7954 = vpack.c.b16 %v7234, %v7218
          %v7955 = vpack.c.b16 %v7235, %v7219
          %v7956 = vpack.c.b16 %v7236, %v7220
          %v7957 = vpack.c.b16 %v7237, %v7221
          %v7958 = vpack.c.b16 %v7238, %v7222
          %v7959 = vpack.c.b16 %v7239, %v7223
          %v7960 = vpack.c.b16 %v7240, %v7224
          %v7961 = vpack.c.b16 %v7241, %v7225
          %v7962 = vpack.c.b16 %v7242, %v7226
          %v7963 = vpack.c.b16 %v7243, %v7227
          %v7964 = vpack.c.b16 %v7244, %v7228
          %v7965 = vpack.c.b16 %v7245, %v7229
          %v7966 = vpack.c.b16 %v7246, %v7230
          %v7967 = vpack.c.b16 %v7263, %v7247
          %v7968 = vpack.c.b16 %v7264, %v7248
          %v7969 = vpack.c.b16 %v7265, %v7249
          %v7970 = vpack.c.b16 %v7266, %v7250
          %v7971 = vpack.c.b16 %v7267, %v7251
          %v7972 = vpack.c.b16 %v7268, %v7252
          %v7973 = vpack.c.b16 %v7269, %v7253
          %v7974 = vpack.c.b16 %v7270, %v7254
          %v7975 = vpack.c.b16 %v7271, %v7255
          %v7976 = vpack.c.b16 %v7272, %v7256
          %v7977 = vpack.c.b16 %v7273, %v7257
          %v7978 = vpack.c.b16 %v7274, %v7258
          %v7979 = vpack.c.b16 %v7275, %v7259
          %v7980 = vpack.c.b16 %v7276, %v7260
          %v7981 = vpack.c.b16 %v7277, %v7261
          %v7982 = vpack.c.b16 %v7278, %v7262
          %v7983 = vpack.c.b16 %v7295, %v7279
          %v7984 = vpack.c.b16 %v7296, %v7280
          %v7985 = vpack.c.b16 %v7297, %v7281
          %v7986 = vpack.c.b16 %v7298, %v7282
          %v7987 = vpack.c.b16 %v7299, %v7283
          %v7988 = vpack.c.b16 %v7300, %v7284
          %v7989 = vpack.c.b16 %v7301, %v7285
          %v7990 = vpack.c.b16 %v7302, %v7286
          %v7991 = vpack.c.b16 %v7303, %v7287
          %v7992 = vpack.c.b16 %v7304, %v7288
          %v7993 = vpack.c.b16 %v7305, %v7289
          %v7994 = vpack.c.b16 %v7306, %v7290
          %v7995 = vpack.c.b16 %v7307, %v7291
          %v7996 = vpack.c.b16 %v7308, %v7292
          %v7997 = vpack.c.b16 %v7309, %v7293
          %v7998 = vpack.c.b16 %v7310, %v7294
          %v7999 = vpack.c.b16 %v7327, %v7311
          %v8000 = vpack.c.b16 %v7328, %v7312
          %v8001 = vpack.c.b16 %v7329, %v7313
          %v8002 = vpack.c.b16 %v7330, %v7314
          %v8003 = vpack.c.b16 %v7331, %v7315
          %v8004 = vpack.c.b16 %v7332, %v7316
          %v8005 = vpack.c.b16 %v7333, %v7317
          %v8006 = vpack.c.b16 %v7334, %v7318
          %v8007 = vpack.c.b16 %v7335, %v7319
          %v8008 = vpack.c.b16 %v7336, %v7320
          %v8009 = vpack.c.b16 %v7337, %v7321
          %v8010 = vpack.c.b16 %v7338, %v7322
          %v8011 = vpack.c.b16 %v7339, %v7323
          %v8012 = vpack.c.b16 %v7340, %v7324
          %v8013 = vpack.c.b16 %v7341, %v7325
          %v8014 = vpack.c.b16 %v7342, %v7326
          %v8015 = vpack.c.b16 %v7359, %v7343
          %v8016 = vpack.c.b16 %v7360, %v7344
          %v8017 = vpack.c.b16 %v7361, %v7345
          %v8018 = vpack.c.b16 %v7362, %v7346
          %v8019 = vpack.c.b16 %v7363, %v7347
          %v8020 = vpack.c.b16 %v7364, %v7348
          %v8021 = vpack.c.b16 %v7365, %v7349
          %v8022 = vpack.c.b16 %v7366, %v7350
          %v8023 = vpack.c.b16 %v7367, %v7351
          %v8024 = vpack.c.b16 %v7368, %v7352
          %v8025 = vpack.c.b16 %v7369, %v7353
          %v8026 = vpack.c.b16 %v7370, %v7354
          %v8027 = vpack.c.b16 %v7371, %v7355
          %v8028 = vpack.c.b16 %v7372, %v7356
          %v8029 = vpack.c.b16 %v7373, %v7357
          %v8030 = vpack.c.b16 %v7374, %v7358
          %v8031 = vpack.c.b16 %v7391, %v7375
          %v8032 = vpack.c.b16 %v7392, %v7376
          %v8033 = vpack.c.b16 %v7393, %v7377
          %v8034 = vpack.c.b16 %v7394, %v7378
          %v8035 = vpack.c.b16 %v7395, %v7379
          %v8036 = vpack.c.b16 %v7396, %v7380
          %v8037 = vpack.c.b16 %v7397, %v7381
          %v8038 = vpack.c.b16 %v7398, %v7382
          %v8039 = vpack.c.b16 %v7399, %v7383
          %v8040 = vpack.c.b16 %v7400, %v7384
          %v8041 = vpack.c.b16 %v7401, %v7385
          %v8042 = vpack.c.b16 %v7402, %v7386
          %v8043 = vpack.c.b16 %v7403, %v7387
          %v8044 = vpack.c.b16 %v7404, %v7388
          %v8045 = vpack.c.b16 %v7405, %v7389
          %v8046 = vpack.c.b16 %v7406, %v7390
          %v8047 = vpack.c.b16 %v7423, %v7407
          %v8048 = vpack.c.b16 %v7424, %v7408
          %v8049 = vpack.c.b16 %v7425, %v7409
          %v8050 = vpack.c.b16 %v7426, %v7410
          %v8051 = vpack.c.b16 %v7427, %v7411
          %v8052 = vpack.c.b16 %v7428, %v7412
          %v8053 = vpack.c.b16 %v7429, %v7413
          %v8054 = vpack.c.b16 %v7430, %v7414
          %v8055 = vpack.c.b16 %v7431, %v7415
          %v8056 = vpack.c.b16 %v7432, %v7416
          %v8057 = vpack.c.b16 %v7433, %v7417
          %v8058 = vpack.c.b16 %v7434, %v7418
          %v8059 = vpack.c.b16 %v7435, %v7419
          %v8060 = vpack.c.b16 %v7436, %v7420
          %v8061 = vpack.c.b16 %v7437, %v7421
          %v8062 = vpack.c.b16 %v7438, %v7422
          %v8063 = vpack.c.b16 %v7455, %v7439
          %v8064 = vpack.c.b16 %v7456, %v7440
          %v8065 = vpack.c.b16 %v7457, %v7441
          %v8066 = vpack.c.b16 %v7458, %v7442
          %v8067 = vpack.c.b16 %v7459, %v7443
          %v8068 = vpack.c.b16 %v7460, %v7444
          %v8069 = vpack.c.b16 %v7461, %v7445
          %v8070 = vpack.c.b16 %v7462, %v7446
          %v8071 = vpack.c.b16 %v7463, %v7447
          %v8072 = vpack.c.b16 %v7464, %v7448
          %v8073 = vpack.c.b16 %v7465, %v7449
          %v8074 = vpack.c.b16 %v7466, %v7450
          %v8075 = vpack.c.b16 %v7467, %v7451
          %v8076 = vpack.c.b16 %v7468, %v7452
          %v8077 = vpack.c.b16 %v7469, %v7453
          %v8078 = vpack.c.b16 %v7470, %v7454
          %v8079 = vpack.c.b16 %v7487, %v7471
          %v8080 = vpack.c.b16 %v7488, %v7472
          %v8081 = vpack.c.b16 %v7489, %v7473
          %v8082 = vpack.c.b16 %v7490, %v7474
          %v8083 = vpack.c.b16 %v7491, %v7475
          %v8084 = vpack.c.b16 %v7492, %v7476
          %v8085 = vpack.c.b16 %v7493, %v7477
          %v8086 = vpack.c.b16 %v7494, %v7478
          %v8087 = vpack.c.b16 %v7495, %v7479
          %v8088 = vpack.c.b16 %v7496, %v7480
          %v8089 = vpack.c.b16 %v7497, %v7481
          %v8090 = vpack.c.b16 %v7498, %v7482
          %v8091 = vpack.c.b16 %v7499, %v7483
          %v8092 = vpack.c.b16 %v7500, %v7484
          %v8093 = vpack.c.b16 %v7501, %v7485
          %v8094 = vpack.c.b16 %v7502, %v7486
          %v8095 = vpack.c.b16 %v7519, %v7503
          %v8096 = vpack.c.b16 %v7520, %v7504
          %v8097 = vpack.c.b16 %v7521, %v7505
          %v8098 = vpack.c.b16 %v7522, %v7506
          %v8099 = vpack.c.b16 %v7523, %v7507
          %v8100 = vpack.c.b16 %v7524, %v7508
          %v8101 = vpack.c.b16 %v7525, %v7509
          %v8102 = vpack.c.b16 %v7526, %v7510
          %v8103 = vpack.c.b16 %v7527, %v7511
          %v8104 = vpack.c.b16 %v7528, %v7512
          %v8105 = vpack.c.b16 %v7529, %v7513
          %v8106 = vpack.c.b16 %v7530, %v7514
          %v8107 = vpack.c.b16 %v7531, %v7515
          %v8108 = vpack.c.b16 %v7532, %v7516
          %v8109 = vpack.c.b16 %v7533, %v7517
          %v8110 = vpack.c.b16 %v7534, %v7518
          %v8111 = vpack.c.b16 %v7551, %v7535
          %v8112 = vpack.c.b16 %v7552, %v7536
          %v8113 = vpack.c.b16 %v7553, %v7537
          %v8114 = vpack.c.b16 %v7554, %v7538
          %v8115 = vpack.c.b16 %v7555, %v7539
          %v8116 = vpack.c.b16 %v7556, %v7540
          %v8117 = vpack.c.b16 %v7557, %v7541
          %v8118 = vpack.c.b16 %v7558, %v7542
          %v8119 = vpack.c.b16 %v7559, %v7543
          %v8120 = vpack.c.b16 %v7560, %v7544
          %v8121 = vpack.c.b16 %v7561, %v7545
          %v8122 = vpack.c.b16 %v7562, %v7546
          %v8123 = vpack.c.b16 %v7563, %v7547
          %v8124 = vpack.c.b16 %v7564, %v7548
          %v8125 = vpack.c.b16 %v7565, %v7549
          %v8126 = vpack.c.b16 %v7566, %v7550
          %v8127 = vpack.c.b16 %v7583, %v7567
          %v8128 = vpack.c.b16 %v7584, %v7568
          %v8129 = vpack.c.b16 %v7585, %v7569
          %v8130 = vpack.c.b16 %v7586, %v7570
          %v8131 = vpack.c.b16 %v7587, %v7571
          %v8132 = vpack.c.b16 %v7588, %v7572
          %v8133 = vpack.c.b16 %v7589, %v7573
          %v8134 = vpack.c.b16 %v7590, %v7574
          %v8135 = vpack.c.b16 %v7591, %v7575
          %v8136 = vpack.c.b16 %v7592, %v7576
          %v8137 = vpack.c.b16 %v7593, %v7577
          %v8138 = vpack.c.b16 %v7594, %v7578
          %v8139 = vpack.c.b16 %v7595, %v7579
          %v8140 = vpack.c.b16 %v7596, %v7580
          %v8141 = vpack.c.b16 %v7597, %v7581
          %v8142 = vpack.c.b16 %v7598, %v7582
          %v8143 = vpack.c.b16 %v7615, %v7599
          %v8144 = vpack.c.b16 %v7616, %v7600
          %v8145 = vpack.c.b16 %v7617, %v7601
          %v8146 = vpack.c.b16 %v7618, %v7602
          %v8147 = vpack.c.b16 %v7619, %v7603
          %v8148 = vpack.c.b16 %v7620, %v7604
          %v8149 = vpack.c.b16 %v7621, %v7605
          %v8150 = vpack.c.b16 %v7622, %v7606
          %v8151 = vpack.c.b16 %v7623, %v7607
          %v8152 = vpack.c.b16 %v7624, %v7608
          %v8153 = vpack.c.b16 %v7625, %v7609
          %v8154 = vpack.c.b16 %v7626, %v7610
          %v8155 = vpack.c.b16 %v7627, %v7611
          %v8156 = vpack.c.b16 %v7628, %v7612
          %v8157 = vpack.c.b16 %v7629, %v7613
          %v8158 = vpack.c.b16 %v7630, %v7614
          %v8159 = vpack.c.b16 %v7647, %v7631
          %v8160 = vpack.c.b16 %v7648, %v7632
          %v8161 = vpack.c.b16 %v7649, %v7633
          %v8162 = vpack.c.b16 %v7650, %v7634
          %v8163 = vpack.c.b16 %v7651, %v7635
          %v8164 = vpack.c.b16 %v7652, %v7636
          %v8165 = vpack.c.b16 %v7653, %v7637
          %v8166 = vpack.c.b16 %v7654, %v7638
          %v8167 = vpack.c.b16 %v7655, %v7639
          %v8168 = vpack.c.b16 %v7656, %v7640
          %v8169 = vpack.c.b16 %v7657, %v7641
          %v8170 = vpack.c.b16 %v7658, %v7642
          %v8171 = vpack.c.b16 %v7659, %v7643
          %v8172 = vpack.c.b16 %v7660, %v7644
          %v8173 = vpack.c.b16 %v7661, %v7645
          %v8174 = vpack.c.b16 %v7662, %v7646
          %8687 = vmatprep.subr.bf16.mxu0 %v7664
          %8688 = vmatpush1.bf16.msra.mxu0 %v7663
          %8689 = vmatprep.subr.bf16.mxu0 %v7680
          %8690 = vmatpush1.bf16.msra.mxu0 %v7679
          %8691 = vmatprep.subr.bf16.mxu0 %v7696
          %8692 = vmatpush1.bf16.msra.mxu0 %v7695
          %8693 = vmatprep.subr.bf16.mxu0 %v7712
          %8694 = vmatpush1.bf16.msra.mxu0 %v7711
          %8695 = vmatprep.subr.bf16.mxu0 %v7728
          %8696 = vmatpush1.bf16.msra.mxu0 %v7727
          %8697 = vmatprep.subr.bf16.mxu0 %v7744
          %8698 = vmatpush1.bf16.msra.mxu0 %v7743
          %8699 = vmatprep.subr.bf16.mxu0 %v7760
          %8700 = vmatpush1.bf16.msra.mxu0 %v7759
          %8701 = vmatprep.subr.bf16.mxu0 %v7776
          %8702 = vmatpush1.bf16.msra.mxu0 %v7775
          %8703 = vmatprep.subr.bf16.mxu0 %v7792
          %8704 = vmatpush1.bf16.msra.mxu0 %v7791
          %8705 = vmatprep.subr.bf16.mxu0 %v7808
          %8706 = vmatpush1.bf16.msra.mxu0 %v7807
          %8707 = vmatprep.subr.bf16.mxu0 %v7824
          %8708 = vmatpush1.bf16.msra.mxu0 %v7823
          %8709 = vmatprep.subr.bf16.mxu0 %v7840
          %8710 = vmatpush1.bf16.msra.mxu0 %v7839
          %8711 = vmatprep.subr.bf16.mxu0 %v7856
          %8712 = vmatpush1.bf16.msra.mxu0 %v7855
          %8713 = vmatprep.subr.bf16.mxu0 %v7872
          %8714 = vmatpush1.bf16.msra.mxu0 %v7871
          %8715 = vmatprep.subr.bf16.mxu0 %v7888
          %8716 = vmatpush1.bf16.msra.mxu0 %v7887
          %8717 = vmatprep.subr.bf16.mxu0 %v7904
          %8718 = vmatpush1.bf16.msra.mxu0 %v7903
          %8719 = vmatprep.mubr.bf16.mxu0 %v6120
          %8720 = vmatmul.mubr.bf16.gmra.mrb[0].mxu0 %v6113
          %v8721 = vpop.f32.mrb[0].mxu0
          %v8722 = vadd.f32 %v6021, %v8721
          %v8723 = vpop.f32.mrb[0].mxu0
          %v8724 = vadd.f32 %v6025, %v8723
          %v8725 = vpop.f32.mrb[0].mxu0
          %v8726 = vpop.f32.mrb[0].mxu0
          %8727 = vdwg.mxu0
          %8728 = vmatprep.subr.bf16.mxu0 %v7920
          %8729 = vmatpush1.bf16.msra.mxu0 %v7919
          %8730 = vmatprep.subr.bf16.mxu0 %v7936
          %8731 = vmatpush1.bf16.msra.mxu0 %v7935
          %8732 = vmatprep.subr.bf16.mxu0 %v7952
          %8733 = vmatpush1.bf16.msra.mxu0 %v7951
          %8734 = vmatprep.subr.bf16.mxu0 %v7968
          %8735 = vmatpush1.bf16.msra.mxu0 %v7967
          %8736 = vmatprep.subr.bf16.mxu0 %v7984
          %8737 = vmatpush1.bf16.msra.mxu0 %v7983
          %8738 = vmatprep.subr.bf16.mxu0 %v8000
          %8739 = vmatpush1.bf16.msra.mxu0 %v7999
          %8740 = vmatprep.subr.bf16.mxu0 %v8016
          %8741 = vmatpush1.bf16.msra.mxu0 %v8015
          %8742 = vmatprep.subr.bf16.mxu0 %v8032
          %8743 = vmatpush1.bf16.msra.mxu0 %v8031
          %8744 = vmatprep.subr.bf16.mxu0 %v8048
          %8745 = vmatpush1.bf16.msra.mxu0 %v8047
          %8746 = vmatprep.subr.bf16.mxu0 %v8064
          %8747 = vmatpush1.bf16.msra.mxu0 %v8063
          %8748 = vmatprep.subr.bf16.mxu0 %v8080
          %8749 = vmatpush1.bf16.msra.mxu0 %v8079
          %8750 = vmatprep.subr.bf16.mxu0 %v8096
          %8751 = vmatpush1.bf16.msra.mxu0 %v8095
          %8752 = vmatprep.subr.bf16.mxu0 %v8112
          %8753 = vmatpush1.bf16.msra.mxu0 %v8111
          %8754 = vmatprep.subr.bf16.mxu0 %v8128
          %8755 = vmatpush1.bf16.msra.mxu0 %v8127
          %8756 = vmatprep.subr.bf16.mxu0 %v8144
          %8757 = vmatpush1.bf16.msra.mxu0 %v8143
          %8758 = vmatprep.subr.bf16.mxu0 %v8160
          %8759 = vmatpush1.bf16.msra.mxu0 %v8159
          %8760 = vmatprep.mubr.bf16.mxu0 %v6122
          %8761 = vmatmul.mubr.bf16.gmra.mrb[0].mxu0 %v6121
          %v8762 = vpop.f32.mrb[0].mxu0
          %v8763 = vadd.f32 %v8722, %v8762
          %v8764 = vpop.f32.mrb[0].mxu0
          %v8765 = vadd.f32 %v8724, %v8764
          %v8766 = vpop.f32.mrb[0].mxu0
          %v8767 = vpop.f32.mrb[0].mxu0
          %8768 = vdwg.mxu0
          %8769 = vmatprep.subr.bf16.mxu0 %v7666
          %8770 = vmatpush1.bf16.msra.mxu0 %v7665
          %8771 = vmatprep.subr.bf16.mxu0 %v7682
          %8772 = vmatpush1.bf16.msra.mxu0 %v7681
          %8773 = vmatprep.subr.bf16.mxu0 %v7698
          %8774 = vmatpush1.bf16.msra.mxu0 %v7697
          %8775 = vmatprep.subr.bf16.mxu0 %v7714
          %8776 = vmatpush1.bf16.msra.mxu0 %v7713
          %8777 = vmatprep.subr.bf16.mxu0 %v7730
          %8778 = vmatpush1.bf16.msra.mxu0 %v7729
          %8779 = vmatprep.subr.bf16.mxu0 %v7746
          %8780 = vmatpush1.bf16.msra.mxu0 %v7745
          %8781 = vmatprep.subr.bf16.mxu0 %v7762
          %8782 = vmatpush1.bf16.msra.mxu0 %v7761
          %8783 = vmatprep.subr.bf16.mxu0 %v7778
          %8784 = vmatpush1.bf16.msra.mxu0 %v7777
          %8785 = vmatprep.subr.bf16.mxu0 %v7794
          %8786 = vmatpush1.bf16.msra.mxu0 %v7793
          %8787 = vmatprep.subr.bf16.mxu0 %v7810
          %8788 = vmatpush1.bf16.msra.mxu0 %v7809
          %8789 = vmatprep.subr.bf16.mxu0 %v7826
          %8790 = vmatpush1.bf16.msra.mxu0 %v7825
          %8791 = vmatprep.subr.bf16.mxu0 %v7842
          %8792 = vmatpush1.bf16.msra.mxu0 %v7841
          %8793 = vmatprep.subr.bf16.mxu0 %v7858
          %8794 = vmatpush1.bf16.msra.mxu0 %v7857
          %8795 = vmatprep.subr.bf16.mxu0 %v7874
          %8796 = vmatpush1.bf16.msra.mxu0 %v7873
          %8797 = vmatprep.subr.bf16.mxu0 %v7890
          %8798 = vmatpush1.bf16.msra.mxu0 %v7889
          %8799 = vmatprep.subr.bf16.mxu0 %v7906
          %8800 = vmatpush1.bf16.msra.mxu0 %v7905
          %8801 = vmatprep.mubr.bf16.mxu0 %v6120
          %8802 = vmatmul.mubr.bf16.gmra.mrb[0].mxu0 %v6113
          %v8803 = vpop.f32.mrb[0].mxu0
          %v8804 = vadd.f32 %v6029, %v8803
          %v8805 = vpop.f32.mrb[0].mxu0
          %v8806 = vadd.f32 %v6033, %v8805
          %v8807 = vpop.f32.mrb[0].mxu0
          %v8808 = vpop.f32.mrb[0].mxu0
          %8809 = vdwg.mxu0
          %8810 = vmatprep.subr.bf16.mxu0 %v7922
          %8811 = vmatpush1.bf16.msra.mxu0 %v7921
          %8812 = vmatprep.subr.bf16.mxu0 %v7938
          %8813 = vmatpush1.bf16.msra.mxu0 %v7937
          %8814 = vmatprep.subr.bf16.mxu0 %v7954
          %8815 = vmatpush1.bf16.msra.mxu0 %v7953
          %8816 = vmatprep.subr.bf16.mxu0 %v7970
          %8817 = vmatpush1.bf16.msra.mxu0 %v7969
          %8818 = vmatprep.subr.bf16.mxu0 %v7986
          %8819 = vmatpush1.bf16.msra.mxu0 %v7985
          %8820 = vmatprep.subr.bf16.mxu0 %v8002
          %8821 = vmatpush1.bf16.msra.mxu0 %v8001
          %8822 = vmatprep.subr.bf16.mxu0 %v8018
          %8823 = vmatpush1.bf16.msra.mxu0 %v8017
          %8824 = vmatprep.subr.bf16.mxu0 %v8034
          %8825 = vmatpush1.bf16.msra.mxu0 %v8033
          %8826 = vmatprep.subr.bf16.mxu0 %v8050
          %8827 = vmatpush1.bf16.msra.mxu0 %v8049
          %8828 = vmatprep.subr.bf16.mxu0 %v8066
          %8829 = vmatpush1.bf16.msra.mxu0 %v8065
          %8830 = vmatprep.subr.bf16.mxu0 %v8082
          %8831 = vmatpush1.bf16.msra.mxu0 %v8081
          %8832 = vmatprep.subr.bf16.mxu0 %v8098
          %8833 = vmatpush1.bf16.msra.mxu0 %v8097
          %8834 = vmatprep.subr.bf16.mxu0 %v8114
          %8835 = vmatpush1.bf16.msra.mxu0 %v8113
          %8836 = vmatprep.subr.bf16.mxu0 %v8130
          %8837 = vmatpush1.bf16.msra.mxu0 %v8129
          %8838 = vmatprep.subr.bf16.mxu0 %v8146
          %8839 = vmatpush1.bf16.msra.mxu0 %v8145
          %8840 = vmatprep.subr.bf16.mxu0 %v8162
          %8841 = vmatpush1.bf16.msra.mxu0 %v8161
          %8842 = vmatprep.mubr.bf16.mxu0 %v6122
          %8843 = vmatmul.mubr.bf16.gmra.mrb[0].mxu0 %v6121
          %v8844 = vpop.f32.mrb[0].mxu0
          %v8845 = vadd.f32 %v8804, %v8844
          %v8846 = vpop.f32.mrb[0].mxu0
          %v8847 = vadd.f32 %v8806, %v8846
          %v8848 = vpop.f32.mrb[0].mxu0
          %v8849 = vpop.f32.mrb[0].mxu0
          %8850 = vdwg.mxu0
          %8851 = vmatprep.subr.bf16.mxu0 %v7668
          %8852 = vmatpush1.bf16.msra.mxu0 %v7667
          %8853 = vmatprep.subr.bf16.mxu0 %v7684
          %8854 = vmatpush1.bf16.msra.mxu0 %v7683
          %8855 = vmatprep.subr.bf16.mxu0 %v7700
          %8856 = vmatpush1.bf16.msra.mxu0 %v7699
          %8857 = vmatprep.subr.bf16.mxu0 %v7716
          %8858 = vmatpush1.bf16.msra.mxu0 %v7715
          %8859 = vmatprep.subr.bf16.mxu0 %v7732
          %8860 = vmatpush1.bf16.msra.mxu0 %v7731
          %8861 = vmatprep.subr.bf16.mxu0 %v7748
          %8862 = vmatpush1.bf16.msra.mxu0 %v7747
          %8863 = vmatprep.subr.bf16.mxu0 %v7764
          %8864 = vmatpush1.bf16.msra.mxu0 %v7763
          %8865 = vmatprep.subr.bf16.mxu0 %v7780
          %8866 = vmatpush1.bf16.msra.mxu0 %v7779
          %8867 = vmatprep.subr.bf16.mxu0 %v7796
          %8868 = vmatpush1.bf16.msra.mxu0 %v7795
          %8869 = vmatprep.subr.bf16.mxu0 %v7812
          %8870 = vmatpush1.bf16.msra.mxu0 %v7811
          %8871 = vmatprep.subr.bf16.mxu0 %v7828
          %8872 = vmatpush1.bf16.msra.mxu0 %v7827
          %8873 = vmatprep.subr.bf16.mxu0 %v7844
          %8874 = vmatpush1.bf16.msra.mxu0 %v7843
          %8875 = vmatprep.subr.bf16.mxu0 %v7860
          %8876 = vmatpush1.bf16.msra.mxu0 %v7859
          %8877 = vmatprep.subr.bf16.mxu0 %v7876
          %8878 = vmatpush1.bf16.msra.mxu0 %v7875
          %8879 = vmatprep.subr.bf16.mxu0 %v7892
          %8880 = vmatpush1.bf16.msra.mxu0 %v7891
          %8881 = vmatprep.subr.bf16.mxu0 %v7908
          %8882 = vmatpush1.bf16.msra.mxu0 %v7907
          %8883 = vmatprep.mubr.bf16.mxu0 %v6120
          %8884 = vmatmul.mubr.bf16.gmra.mrb[0].mxu0 %v6113
          %v8885 = vpop.f32.mrb[0].mxu0
          %v8886 = vadd.f32 %v6037, %v8885
          %v8887 = vpop.f32.mrb[0].mxu0
          %v8888 = vadd.f32 %v6041, %v8887
          %v8889 = vpop.f32.mrb[0].mxu0
          %v8890 = vpop.f32.mrb[0].mxu0
          %8891 = vdwg.mxu0
          %8892 = vmatprep.subr.bf16.mxu0 %v7924
          %8893 = vmatpush1.bf16.msra.mxu0 %v7923
          %8894 = vmatprep.subr.bf16.mxu0 %v7940
          %8895 = vmatpush1.bf16.msra.mxu0 %v7939
          %8896 = vmatprep.subr.bf16.mxu0 %v7956
          %8897 = vmatpush1.bf16.msra.mxu0 %v7955
          %8898 = vmatprep.subr.bf16.mxu0 %v7972
          %8899 = vmatpush1.bf16.msra.mxu0 %v7971
          %8900 = vmatprep.subr.bf16.mxu0 %v7988
          %8901 = vmatpush1.bf16.msra.mxu0 %v7987
          %8902 = vmatprep.subr.bf16.mxu0 %v8004
          %8903 = vmatpush1.bf16.msra.mxu0 %v8003
          %8904 = vmatprep.subr.bf16.mxu0 %v8020
          %8905 = vmatpush1.bf16.msra.mxu0 %v8019
          %8906 = vmatprep.subr.bf16.mxu0 %v8036
          %8907 = vmatpush1.bf16.msra.mxu0 %v8035
          %8908 = vmatprep.subr.bf16.mxu0 %v8052
          %8909 = vmatpush1.bf16.msra.mxu0 %v8051
          %8910 = vmatprep.subr.bf16.mxu0 %v8068
          %8911 = vmatpush1.bf16.msra.mxu0 %v8067
          %8912 = vmatprep.subr.bf16.mxu0 %v8084
          %8913 = vmatpush1.bf16.msra.mxu0 %v8083
          %8914 = vmatprep.subr.bf16.mxu0 %v8100
          %8915 = vmatpush1.bf16.msra.mxu0 %v8099
          %8916 = vmatprep.subr.bf16.mxu0 %v8116
          %8917 = vmatpush1.bf16.msra.mxu0 %v8115
          %8918 = vmatprep.subr.bf16.mxu0 %v8132
          %8919 = vmatpush1.bf16.msra.mxu0 %v8131
          %8920 = vmatprep.subr.bf16.mxu0 %v8148
          %8921 = vmatpush1.bf16.msra.mxu0 %v8147
          %8922 = vmatprep.subr.bf16.mxu0 %v8164
          %8923 = vmatpush1.bf16.msra.mxu0 %v8163
          %8924 = vmatprep.mubr.bf16.mxu0 %v6122
          %8925 = vmatmul.mubr.bf16.gmra.mrb[0].mxu0 %v6121
          %v8926 = vpop.f32.mrb[0].mxu0
          %v8927 = vadd.f32 %v8886, %v8926
          %v8928 = vpop.f32.mrb[0].mxu0
          %v8929 = vadd.f32 %v8888, %v8928
          %v8930 = vpop.f32.mrb[0].mxu0
          %v8931 = vpop.f32.mrb[0].mxu0
          %8932 = vdwg.mxu0
          %8933 = vmatprep.subr.bf16.mxu0 %v7670
          %8934 = vmatpush1.bf16.msra.mxu0 %v7669
          %8935 = vmatprep.subr.bf16.mxu0 %v7686
          %8936 = vmatpush1.bf16.msra.mxu0 %v7685
          %8937 = vmatprep.subr.bf16.mxu0 %v7702
          %8938 = vmatpush1.bf16.msra.mxu0 %v7701
          %8939 = vmatprep.subr.bf16.mxu0 %v7718
          %8940 = vmatpush1.bf16.msra.mxu0 %v7717
          %8941 = vmatprep.subr.bf16.mxu0 %v7734
          %8942 = vmatpush1.bf16.msra.mxu0 %v7733
          %8943 = vmatprep.subr.bf16.mxu0 %v7750
          %8944 = vmatpush1.bf16.msra.mxu0 %v7749
          %8945 = vmatprep.subr.bf16.mxu0 %v7766
          %8946 = vmatpush1.bf16.msra.mxu0 %v7765
          %8947 = vmatprep.subr.bf16.mxu0 %v7782
          %8948 = vmatpush1.bf16.msra.mxu0 %v7781
          %8949 = vmatprep.subr.bf16.mxu0 %v7798
          %8950 = vmatpush1.bf16.msra.mxu0 %v7797
          %8951 = vmatprep.subr.bf16.mxu0 %v7814
          %8952 = vmatpush1.bf16.msra.mxu0 %v7813
          %8953 = vmatprep.subr.bf16.mxu0 %v7830
          %8954 = vmatpush1.bf16.msra.mxu0 %v7829
          %8955 = vmatprep.subr.bf16.mxu0 %v7846
          %8956 = vmatpush1.bf16.msra.mxu0 %v7845
          %8957 = vmatprep.subr.bf16.mxu0 %v7862
          %8958 = vmatpush1.bf16.msra.mxu0 %v7861
          %8959 = vmatprep.subr.bf16.mxu0 %v7878
          %8960 = vmatpush1.bf16.msra.mxu0 %v7877
          %8961 = vmatprep.subr.bf16.mxu0 %v7894
          %8962 = vmatpush1.bf16.msra.mxu0 %v7893
          %8963 = vmatprep.subr.bf16.mxu0 %v7910
          %8964 = vmatpush1.bf16.msra.mxu0 %v7909
          %8965 = vmatprep.mubr.bf16.mxu0 %v6120
          %8966 = vmatmul.mubr.bf16.gmra.mrb[0].mxu0 %v6113
          %v8967 = vpop.f32.mrb[0].mxu0
          %v8968 = vadd.f32 %v6045, %v8967
          %v8969 = vpop.f32.mrb[0].mxu0
          %v8970 = vadd.f32 %v6049, %v8969
          %v8971 = vpop.f32.mrb[0].mxu0
          %v8972 = vpop.f32.mrb[0].mxu0
          %8973 = vdwg.mxu0
          %8974 = vmatprep.subr.bf16.mxu0 %v7926
          %8975 = vmatpush1.bf16.msra.mxu0 %v7925
          %8976 = vmatprep.subr.bf16.mxu0 %v7942
          %8977 = vmatpush1.bf16.msra.mxu0 %v7941
          %8978 = vmatprep.subr.bf16.mxu0 %v7958
          %8979 = vmatpush1.bf16.msra.mxu0 %v7957
          %8980 = vmatprep.subr.bf16.mxu0 %v7974
          %8981 = vmatpush1.bf16.msra.mxu0 %v7973
          %8982 = vmatprep.subr.bf16.mxu0 %v7990
          %8983 = vmatpush1.bf16.msra.mxu0 %v7989
          %8984 = vmatprep.subr.bf16.mxu0 %v8006
          %8985 = vmatpush1.bf16.msra.mxu0 %v8005
          %8986 = vmatprep.subr.bf16.mxu0 %v8022
          %8987 = vmatpush1.bf16.msra.mxu0 %v8021
          %8988 = vmatprep.subr.bf16.mxu0 %v8038
          %8989 = vmatpush1.bf16.msra.mxu0 %v8037
          %8990 = vmatprep.subr.bf16.mxu0 %v8054
          %8991 = vmatpush1.bf16.msra.mxu0 %v8053
          %8992 = vmatprep.subr.bf16.mxu0 %v8070
          %8993 = vmatpush1.bf16.msra.mxu0 %v8069
          %8994 = vmatprep.subr.bf16.mxu0 %v8086
          %8995 = vmatpush1.bf16.msra.mxu0 %v8085
          %8996 = vmatprep.subr.bf16.mxu0 %v8102
          %8997 = vmatpush1.bf16.msra.mxu0 %v8101
          %8998 = vmatprep.subr.bf16.mxu0 %v8118
          %8999 = vmatpush1.bf16.msra.mxu0 %v8117
          %9000 = vmatprep.subr.bf16.mxu0 %v8134
          %9001 = vmatpush1.bf16.msra.mxu0 %v8133
          %9002 = vmatprep.subr.bf16.mxu0 %v8150
          %9003 = vmatpush1.bf16.msra.mxu0 %v8149
          %9004 = vmatprep.subr.bf16.mxu0 %v8166
          %9005 = vmatpush1.bf16.msra.mxu0 %v8165
          %9006 = vmatprep.mubr.bf16.mxu0 %v6122
          %9007 = vmatmul.mubr.bf16.gmra.mrb[0].mxu0 %v6121
          %v9008 = vpop.f32.mrb[0].mxu0
          %v9009 = vadd.f32 %v8968, %v9008
          %v9010 = vpop.f32.mrb[0].mxu0
          %v9011 = vadd.f32 %v8970, %v9010
          %v9012 = vpop.f32.mrb[0].mxu0
          %v9013 = vpop.f32.mrb[0].mxu0
          %9014 = vdwg.mxu0
          %9015 = vmatprep.subr.bf16.mxu0 %v7672
          %9016 = vmatpush1.bf16.msra.mxu0 %v7671
          %9017 = vmatprep.subr.bf16.mxu0 %v7688
          %9018 = vmatpush1.bf16.msra.mxu0 %v7687
          %9019 = vmatprep.subr.bf16.mxu0 %v7704
          %9020 = vmatpush1.bf16.msra.mxu0 %v7703
          %9021 = vmatprep.subr.bf16.mxu0 %v7720
          %9022 = vmatpush1.bf16.msra.mxu0 %v7719
          %9023 = vmatprep.subr.bf16.mxu0 %v7736
          %9024 = vmatpush1.bf16.msra.mxu0 %v7735
          %9025 = vmatprep.subr.bf16.mxu0 %v7752
          %9026 = vmatpush1.bf16.msra.mxu0 %v7751
          %9027 = vmatprep.subr.bf16.mxu0 %v7768
          %9028 = vmatpush1.bf16.msra.mxu0 %v7767
          %9029 = vmatprep.subr.bf16.mxu0 %v7784
          %9030 = vmatpush1.bf16.msra.mxu0 %v7783
          %9031 = vmatprep.subr.bf16.mxu0 %v7800
          %9032 = vmatpush1.bf16.msra.mxu0 %v7799
          %9033 = vmatprep.subr.bf16.mxu0 %v7816
          %9034 = vmatpush1.bf16.msra.mxu0 %v7815
          %9035 = vmatprep.subr.bf16.mxu0 %v7832
          %9036 = vmatpush1.bf16.msra.mxu0 %v7831
          %9037 = vmatprep.subr.bf16.mxu0 %v7848
          %9038 = vmatpush1.bf16.msra.mxu0 %v7847
          %9039 = vmatprep.subr.bf16.mxu0 %v7864
          %9040 = vmatpush1.bf16.msra.mxu0 %v7863
          %9041 = vmatprep.subr.bf16.mxu0 %v7880
          %9042 = vmatpush1.bf16.msra.mxu0 %v7879
          %9043 = vmatprep.subr.bf16.mxu0 %v7896
          %9044 = vmatpush1.bf16.msra.mxu0 %v7895
          %9045 = vmatprep.subr.bf16.mxu0 %v7912
          %9046 = vmatpush1.bf16.msra.mxu0 %v7911
          %9047 = vmatprep.mubr.bf16.mxu0 %v6120
          %9048 = vmatmul.mubr.bf16.gmra.mrb[0].mxu0 %v6113
          %v9049 = vpop.f32.mrb[0].mxu0
          %v9050 = vadd.f32 %v6053, %v9049
          %v9051 = vpop.f32.mrb[0].mxu0
          %v9052 = vadd.f32 %v6057, %v9051
          %v9053 = vpop.f32.mrb[0].mxu0
          %v9054 = vpop.f32.mrb[0].mxu0
          %9055 = vdwg.mxu0
          %9056 = vmatprep.subr.bf16.mxu0 %v7928
          %9057 = vmatpush1.bf16.msra.mxu0 %v7927
          %9058 = vmatprep.subr.bf16.mxu0 %v7944
          %9059 = vmatpush1.bf16.msra.mxu0 %v7943
          %9060 = vmatprep.subr.bf16.mxu0 %v7960
          %9061 = vmatpush1.bf16.msra.mxu0 %v7959
          %9062 = vmatprep.subr.bf16.mxu0 %v7976
          %9063 = vmatpush1.bf16.msra.mxu0 %v7975
          %9064 = vmatprep.subr.bf16.mxu0 %v7992
          %9065 = vmatpush1.bf16.msra.mxu0 %v7991
          %9066 = vmatprep.subr.bf16.mxu0 %v8008
          %9067 = vmatpush1.bf16.msra.mxu0 %v8007
          %9068 = vmatprep.subr.bf16.mxu0 %v8024
          %9069 = vmatpush1.bf16.msra.mxu0 %v8023
          %9070 = vmatprep.subr.bf16.mxu0 %v8040
          %9071 = vmatpush1.bf16.msra.mxu0 %v8039
          %9072 = vmatprep.subr.bf16.mxu0 %v8056
          %9073 = vmatpush1.bf16.msra.mxu0 %v8055
          %9074 = vmatprep.subr.bf16.mxu0 %v8072
          %9075 = vmatpush1.bf16.msra.mxu0 %v8071
          %9076 = vmatprep.subr.bf16.mxu0 %v8088
          %9077 = vmatpush1.bf16.msra.mxu0 %v8087
          %9078 = vmatprep.subr.bf16.mxu0 %v8104
          %9079 = vmatpush1.bf16.msra.mxu0 %v8103
          %9080 = vmatprep.subr.bf16.mxu0 %v8120
          %9081 = vmatpush1.bf16.msra.mxu0 %v8119
          %9082 = vmatprep.subr.bf16.mxu0 %v8136
          %9083 = vmatpush1.bf16.msra.mxu0 %v8135
          %9084 = vmatprep.subr.bf16.mxu0 %v8152
          %9085 = vmatpush1.bf16.msra.mxu0 %v8151
          %9086 = vmatprep.subr.bf16.mxu0 %v8168
          %9087 = vmatpush1.bf16.msra.mxu0 %v8167
          %9088 = vmatprep.mubr.bf16.mxu0 %v6122
          %9089 = vmatmul.mubr.bf16.gmra.mrb[0].mxu0 %v6121
          %v9090 = vpop.f32.mrb[0].mxu0
          %v9091 = vadd.f32 %v9050, %v9090
          %v9092 = vpop.f32.mrb[0].mxu0
          %v9093 = vadd.f32 %v9052, %v9092
          %v9094 = vpop.f32.mrb[0].mxu0
          %v9095 = vpop.f32.mrb[0].mxu0
          %9096 = vdwg.mxu0
          %9097 = vmatprep.subr.bf16.mxu0 %v7674
          %9098 = vmatpush1.bf16.msra.mxu0 %v7673
          %9099 = vmatprep.subr.bf16.mxu0 %v7690
          %9100 = vmatpush1.bf16.msra.mxu0 %v7689
          %9101 = vmatprep.subr.bf16.mxu0 %v7706
          %9102 = vmatpush1.bf16.msra.mxu0 %v7705
          %9103 = vmatprep.subr.bf16.mxu0 %v7722
          %9104 = vmatpush1.bf16.msra.mxu0 %v7721
          %9105 = vmatprep.subr.bf16.mxu0 %v7738
          %9106 = vmatpush1.bf16.msra.mxu0 %v7737
          %9107 = vmatprep.subr.bf16.mxu0 %v7754
          %9108 = vmatpush1.bf16.msra.mxu0 %v7753
          %9109 = vmatprep.subr.bf16.mxu0 %v7770
          %9110 = vmatpush1.bf16.msra.mxu0 %v7769
          %9111 = vmatprep.subr.bf16.mxu0 %v7786
          %9112 = vmatpush1.bf16.msra.mxu0 %v7785
          %9113 = vmatprep.subr.bf16.mxu0 %v7802
          %9114 = vmatpush1.bf16.msra.mxu0 %v7801
          %9115 = vmatprep.subr.bf16.mxu0 %v7818
          %9116 = vmatpush1.bf16.msra.mxu0 %v7817
          %9117 = vmatprep.subr.bf16.mxu0 %v7834
          %9118 = vmatpush1.bf16.msra.mxu0 %v7833
          %9119 = vmatprep.subr.bf16.mxu0 %v7850
          %9120 = vmatpush1.bf16.msra.mxu0 %v7849
          %9121 = vmatprep.subr.bf16.mxu0 %v7866
          %9122 = vmatpush1.bf16.msra.mxu0 %v7865
          %9123 = vmatprep.subr.bf16.mxu0 %v7882
          %9124 = vmatpush1.bf16.msra.mxu0 %v7881
          %9125 = vmatprep.subr.bf16.mxu0 %v7898
          %9126 = vmatpush1.bf16.msra.mxu0 %v7897
          %9127 = vmatprep.subr.bf16.mxu0 %v7914
          %9128 = vmatpush1.bf16.msra.mxu0 %v7913
          %9129 = vmatprep.mubr.bf16.mxu0 %v6120
          %9130 = vmatmul.mubr.bf16.gmra.mrb[0].mxu0 %v6113
          %v9131 = vpop.f32.mrb[0].mxu0
          %v9132 = vadd.f32 %v6061, %v9131
          %v9133 = vpop.f32.mrb[0].mxu0
          %v9134 = vadd.f32 %v6065, %v9133
          %v9135 = vpop.f32.mrb[0].mxu0
          %v9136 = vpop.f32.mrb[0].mxu0
          %9137 = vdwg.mxu0
          %9138 = vmatprep.subr.bf16.mxu0 %v7930
          %9139 = vmatpush1.bf16.msra.mxu0 %v7929
          %9140 = vmatprep.subr.bf16.mxu0 %v7946
          %9141 = vmatpush1.bf16.msra.mxu0 %v7945
          %9142 = vmatprep.subr.bf16.mxu0 %v7962
          %9143 = vmatpush1.bf16.msra.mxu0 %v7961
          %9144 = vmatprep.subr.bf16.mxu0 %v7978
          %9145 = vmatpush1.bf16.msra.mxu0 %v7977
          %9146 = vmatprep.subr.bf16.mxu0 %v7994
          %9147 = vmatpush1.bf16.msra.mxu0 %v7993
          %9148 = vmatprep.subr.bf16.mxu0 %v8010
          %9149 = vmatpush1.bf16.msra.mxu0 %v8009
          %9150 = vmatprep.subr.bf16.mxu0 %v8026
          %9151 = vmatpush1.bf16.msra.mxu0 %v8025
          %9152 = vmatprep.subr.bf16.mxu0 %v8042
          %9153 = vmatpush1.bf16.msra.mxu0 %v8041
          %9154 = vmatprep.subr.bf16.mxu0 %v8058
          %9155 = vmatpush1.bf16.msra.mxu0 %v8057
          %9156 = vmatprep.subr.bf16.mxu0 %v8074
          %9157 = vmatpush1.bf16.msra.mxu0 %v8073
          %9158 = vmatprep.subr.bf16.mxu0 %v8090
          %9159 = vmatpush1.bf16.msra.mxu0 %v8089
          %9160 = vmatprep.subr.bf16.mxu0 %v8106
          %9161 = vmatpush1.bf16.msra.mxu0 %v8105
          %9162 = vmatprep.subr.bf16.mxu0 %v8122
          %9163 = vmatpush1.bf16.msra.mxu0 %v8121
          %9164 = vmatprep.subr.bf16.mxu0 %v8138
          %9165 = vmatpush1.bf16.msra.mxu0 %v8137
          %9166 = vmatprep.subr.bf16.mxu0 %v8154
          %9167 = vmatpush1.bf16.msra.mxu0 %v8153
          %9168 = vmatprep.subr.bf16.mxu0 %v8170
          %9169 = vmatpush1.bf16.msra.mxu0 %v8169
          %9170 = vmatprep.mubr.bf16.mxu0 %v6122
          %9171 = vmatmul.mubr.bf16.gmra.mrb[0].mxu0 %v6121
          %v9172 = vpop.f32.mrb[0].mxu0
          %v9173 = vadd.f32 %v9132, %v9172
          %v9174 = vpop.f32.mrb[0].mxu0
          %v9175 = vadd.f32 %v9134, %v9174
          %v9176 = vpop.f32.mrb[0].mxu0
          %v9177 = vpop.f32.mrb[0].mxu0
          %9178 = vdwg.mxu0
          %9179 = vmatprep.subr.bf16.mxu0 %v7676
          %9180 = vmatpush1.bf16.msra.mxu0 %v7675
          %9181 = vmatprep.subr.bf16.mxu0 %v7692
          %9182 = vmatpush1.bf16.msra.mxu0 %v7691
          %9183 = vmatprep.subr.bf16.mxu0 %v7708
          %9184 = vmatpush1.bf16.msra.mxu0 %v7707
          %9185 = vmatprep.subr.bf16.mxu0 %v7724
          %9186 = vmatpush1.bf16.msra.mxu0 %v7723
          %9187 = vmatprep.subr.bf16.mxu0 %v7740
          %9188 = vmatpush1.bf16.msra.mxu0 %v7739
          %9189 = vmatprep.subr.bf16.mxu0 %v7756
          %9190 = vmatpush1.bf16.msra.mxu0 %v7755
          %9191 = vmatprep.subr.bf16.mxu0 %v7772
          %9192 = vmatpush1.bf16.msra.mxu0 %v7771
          %9193 = vmatprep.subr.bf16.mxu0 %v7788
          %9194 = vmatpush1.bf16.msra.mxu0 %v7787
          %9195 = vmatprep.subr.bf16.mxu0 %v7804
          %9196 = vmatpush1.bf16.msra.mxu0 %v7803
          %9197 = vmatprep.subr.bf16.mxu0 %v7820
          %9198 = vmatpush1.bf16.msra.mxu0 %v7819
          %9199 = vmatprep.subr.bf16.mxu0 %v7836
          %9200 = vmatpush1.bf16.msra.mxu0 %v7835
          %9201 = vmatprep.subr.bf16.mxu0 %v7852
          %9202 = vmatpush1.bf16.msra.mxu0 %v7851
          %9203 = vmatprep.subr.bf16.mxu0 %v7868
          %9204 = vmatpush1.bf16.msra.mxu0 %v7867
          %9205 = vmatprep.subr.bf16.mxu0 %v7884
          %9206 = vmatpush1.bf16.msra.mxu0 %v7883
          %9207 = vmatprep.subr.bf16.mxu0 %v7900
          %9208 = vmatpush1.bf16.msra.mxu0 %v7899
          %9209 = vmatprep.subr.bf16.mxu0 %v7916
          %9210 = vmatpush1.bf16.msra.mxu0 %v7915
          %9211 = vmatprep.mubr.bf16.mxu0 %v6120
          %9212 = vmatmul.mubr.bf16.gmra.mrb[0].mxu0 %v6113
          %v9213 = vpop.f32.mrb[0].mxu0
          %v9214 = vadd.f32 %v6069, %v9213
          %v9215 = vpop.f32.mrb[0].mxu0
          %v9216 = vadd.f32 %v6073, %v9215
          %v9217 = vpop.f32.mrb[0].mxu0
          %v9218 = vpop.f32.mrb[0].mxu0
          %9219 = vdwg.mxu0
          %9220 = vmatprep.subr.bf16.mxu0 %v7932
          %9221 = vmatpush1.bf16.msra.mxu0 %v7931
          %9222 = vmatprep.subr.bf16.mxu0 %v7948
          %9223 = vmatpush1.bf16.msra.mxu0 %v7947
          %9224 = vmatprep.subr.bf16.mxu0 %v7964
          %9225 = vmatpush1.bf16.msra.mxu0 %v7963
          %9226 = vmatprep.subr.bf16.mxu0 %v7980
          %9227 = vmatpush1.bf16.msra.mxu0 %v7979
          %9228 = vmatprep.subr.bf16.mxu0 %v7996
          %9229 = vmatpush1.bf16.msra.mxu0 %v7995
          %9230 = vmatprep.subr.bf16.mxu0 %v8012
          %9231 = vmatpush1.bf16.msra.mxu0 %v8011
          %9232 = vmatprep.subr.bf16.mxu0 %v8028
          %9233 = vmatpush1.bf16.msra.mxu0 %v8027
          %9234 = vmatprep.subr.bf16.mxu0 %v8044
          %9235 = vmatpush1.bf16.msra.mxu0 %v8043
          %9236 = vmatprep.subr.bf16.mxu0 %v8060
          %9237 = vmatpush1.bf16.msra.mxu0 %v8059
          %9238 = vmatprep.subr.bf16.mxu0 %v8076
          %9239 = vmatpush1.bf16.msra.mxu0 %v8075
          %9240 = vmatprep.subr.bf16.mxu0 %v8092
          %9241 = vmatpush1.bf16.msra.mxu0 %v8091
          %9242 = vmatprep.subr.bf16.mxu0 %v8108
          %9243 = vmatpush1.bf16.msra.mxu0 %v8107
          %9244 = vmatprep.subr.bf16.mxu0 %v8124
          %9245 = vmatpush1.bf16.msra.mxu0 %v8123
          %9246 = vmatprep.subr.bf16.mxu0 %v8140
          %9247 = vmatpush1.bf16.msra.mxu0 %v8139
          %9248 = vmatprep.subr.bf16.mxu0 %v8156
          %9249 = vmatpush1.bf16.msra.mxu0 %v8155
          %9250 = vmatprep.subr.bf16.mxu0 %v8172
          %9251 = vmatpush1.bf16.msra.mxu0 %v8171
          %9252 = vmatprep.mubr.bf16.mxu0 %v6122
          %9253 = vmatmul.mubr.bf16.gmra.mrb[0].mxu0 %v6121
          %v9254 = vpop.f32.mrb[0].mxu0
          %v9255 = vadd.f32 %v9214, %v9254
          %v9256 = vpop.f32.mrb[0].mxu0
          %v9257 = vadd.f32 %v9216, %v9256
          %v9258 = vpop.f32.mrb[0].mxu0
          %v9259 = vpop.f32.mrb[0].mxu0
          %9260 = vdwg.mxu0
          %9261 = vmatprep.subr.bf16.mxu0 %v7678
          %9262 = vmatpush1.bf16.msra.mxu0 %v7677
          %9263 = vmatprep.subr.bf16.mxu0 %v7694
          %9264 = vmatpush1.bf16.msra.mxu0 %v7693
          %9265 = vmatprep.subr.bf16.mxu0 %v7710
          %9266 = vmatpush1.bf16.msra.mxu0 %v7709
          %9267 = vmatprep.subr.bf16.mxu0 %v7726
          %9268 = vmatpush1.bf16.msra.mxu0 %v7725
          %9269 = vmatprep.subr.bf16.mxu0 %v7742
          %9270 = vmatpush1.bf16.msra.mxu0 %v7741
          %9271 = vmatprep.subr.bf16.mxu0 %v7758
          %9272 = vmatpush1.bf16.msra.mxu0 %v7757
          %9273 = vmatprep.subr.bf16.mxu0 %v7774
          %9274 = vmatpush1.bf16.msra.mxu0 %v7773
          %9275 = vmatprep.subr.bf16.mxu0 %v7790
          %9276 = vmatpush1.bf16.msra.mxu0 %v7789
          %9277 = vmatprep.subr.bf16.mxu0 %v7806
          %9278 = vmatpush1.bf16.msra.mxu0 %v7805
          %9279 = vmatprep.subr.bf16.mxu0 %v7822
          %9280 = vmatpush1.bf16.msra.mxu0 %v7821
          %9281 = vmatprep.subr.bf16.mxu0 %v7838
          %9282 = vmatpush1.bf16.msra.mxu0 %v7837
          %9283 = vmatprep.subr.bf16.mxu0 %v7854
          %9284 = vmatpush1.bf16.msra.mxu0 %v7853
          %9285 = vmatprep.subr.bf16.mxu0 %v7870
          %9286 = vmatpush1.bf16.msra.mxu0 %v7869
          %9287 = vmatprep.subr.bf16.mxu0 %v7886
          %9288 = vmatpush1.bf16.msra.mxu0 %v7885
          %9289 = vmatprep.subr.bf16.mxu0 %v7902
          %9290 = vmatpush1.bf16.msra.mxu0 %v7901
          %9291 = vmatprep.subr.bf16.mxu0 %v7918
          %9292 = vmatpush1.bf16.msra.mxu0 %v7917
          %9293 = vmatprep.mubr.bf16.mxu0 %v6120
          %9294 = vmatmul.mubr.bf16.gmra.mrb[0].mxu0 %v6113
          %v9295 = vpop.f32.mrb[0].mxu0
          %v9296 = vadd.f32 %v6077, %v9295
          %v9297 = vpop.f32.mrb[0].mxu0
          %v9298 = vadd.f32 %v6081, %v9297
          %v9299 = vpop.f32.mrb[0].mxu0
          %v9300 = vpop.f32.mrb[0].mxu0
          %9301 = vdwg.mxu0
          %9302 = vmatprep.subr.bf16.mxu0 %v7934
          %9303 = vmatpush1.bf16.msra.mxu0 %v7933
          %9304 = vmatprep.subr.bf16.mxu0 %v7950
          %9305 = vmatpush1.bf16.msra.mxu0 %v7949
          %9306 = vmatprep.subr.bf16.mxu0 %v7966
          %9307 = vmatpush1.bf16.msra.mxu0 %v7965
          %9308 = vmatprep.subr.bf16.mxu0 %v7982
          %9309 = vmatpush1.bf16.msra.mxu0 %v7981
          %9310 = vmatprep.subr.bf16.mxu0 %v7998
          %9311 = vmatpush1.bf16.msra.mxu0 %v7997
          %9312 = vmatprep.subr.bf16.mxu0 %v8014
          %9313 = vmatpush1.bf16.msra.mxu0 %v8013
          %9314 = vmatprep.subr.bf16.mxu0 %v8030
          %9315 = vmatpush1.bf16.msra.mxu0 %v8029
          %9316 = vmatprep.subr.bf16.mxu0 %v8046
          %9317 = vmatpush1.bf16.msra.mxu0 %v8045
          %9318 = vmatprep.subr.bf16.mxu0 %v8062
          %9319 = vmatpush1.bf16.msra.mxu0 %v8061
          %9320 = vmatprep.subr.bf16.mxu0 %v8078
          %9321 = vmatpush1.bf16.msra.mxu0 %v8077
          %9322 = vmatprep.subr.bf16.mxu0 %v8094
          %9323 = vmatpush1.bf16.msra.mxu0 %v8093
          %9324 = vmatprep.subr.bf16.mxu0 %v8110
          %9325 = vmatpush1.bf16.msra.mxu0 %v8109
          %9326 = vmatprep.subr.bf16.mxu0 %v8126
          %9327 = vmatpush1.bf16.msra.mxu0 %v8125
          %9328 = vmatprep.subr.bf16.mxu0 %v8142
          %9329 = vmatpush1.bf16.msra.mxu0 %v8141
          %9330 = vmatprep.subr.bf16.mxu0 %v8158
          %9331 = vmatpush1.bf16.msra.mxu0 %v8157
          %9332 = vmatprep.subr.bf16.mxu0 %v8174
          %9333 = vmatpush1.bf16.msra.mxu0 %v8173
          %9334 = vmatprep.mubr.bf16.mxu0 %v6122
          %9335 = vmatmul.mubr.bf16.gmra.mrb[0].mxu0 %v6121
          %v9336 = vpop.f32.mrb[0].mxu0
          %v9337 = vadd.f32 %v9296, %v9336
          %v9338 = vpop.f32.mrb[0].mxu0
          %v9339 = vadd.f32 %v9298, %v9338
          %v9340 = vpop.f32.mrb[0].mxu0
          %v9341 = vpop.f32.mrb[0].mxu0
          %9342 = vdwg.mxu0
          %v9343 = vld [vmem:[%s640] sm:$0xff]
          %v9344 = vld [vmem:[%s640 + $0x8] sm:$0xff]
          %v9345 = vunpack.c.l.bf16 %v9343
          %v9346 = vunpack.c.h.bf16 %v9343
          %v9347 = vunpack.c.l.bf16 %v9344
          %v9348 = vunpack.c.h.bf16 %v9344
          %v9353 = vlaneseq
          %v9354 = vshrl.u32 %v9353, 7
          %v9355 = vsub.s32 0, %v9354
          %v9356 = vrot.slane %v9345, %v9355
          %v9357 = vlaneseq
          %v9358 = vshrl.u32 %v9357, 7
          %v9359 = vsub.s32 2, %v9358
          %v9360 = vrot.slane %v9345, %v9359
          %v9361 = vlaneseq
          %v9362 = vshrl.u32 %v9361, 7
          %v9363 = vsub.s32 4, %v9362
          %v9364 = vrot.slane %v9345, %v9363
          %v9365 = vlaneseq
          %v9366 = vshrl.u32 %v9365, 7
          %v9367 = vsub.s32 6, %v9366
          %v9368 = vrot.slane %v9345, %v9367
          %v9369 = vlaneseq
          %v9370 = vshrl.u32 %v9369, 7
          %v9371 = vsub.s32 0, %v9370
          %v9372 = vrot.slane %v9346, %v9371
          %v9373 = vlaneseq
          %v9374 = vshrl.u32 %v9373, 7
          %v9375 = vsub.s32 2, %v9374
          %v9376 = vrot.slane %v9346, %v9375
          %v9377 = vlaneseq
          %v9378 = vshrl.u32 %v9377, 7
          %v9379 = vsub.s32 4, %v9378
          %v9380 = vrot.slane %v9346, %v9379
          %v9381 = vlaneseq
          %v9382 = vshrl.u32 %v9381, 7
          %v9383 = vsub.s32 6, %v9382
          %v9384 = vrot.slane %v9346, %v9383
          %v9385 = vlaneseq
          %v9386 = vshrl.u32 %v9385, 7
          %v9387 = vsub.s32 0, %v9386
          %v9388 = vrot.slane %v9347, %v9387
          %v9389 = vlaneseq
          %v9390 = vshrl.u32 %v9389, 7
          %v9391 = vsub.s32 2, %v9390
          %v9392 = vrot.slane %v9347, %v9391
          %v9393 = vlaneseq
          %v9394 = vshrl.u32 %v9393, 7
          %v9395 = vsub.s32 4, %v9394
          %v9396 = vrot.slane %v9347, %v9395
          %v9397 = vlaneseq
          %v9398 = vshrl.u32 %v9397, 7
          %v9399 = vsub.s32 6, %v9398
          %v9400 = vrot.slane %v9347, %v9399
          %v9401 = vlaneseq
          %v9402 = vshrl.u32 %v9401, 7
          %v9403 = vsub.s32 0, %v9402
          %v9404 = vrot.slane %v9348, %v9403
          %v9405 = vlaneseq
          %v9406 = vshrl.u32 %v9405, 7
          %v9407 = vsub.s32 2, %v9406
          %v9408 = vrot.slane %v9348, %v9407
          %v9409 = vlaneseq
          %v9410 = vshrl.u32 %v9409, 7
          %v9411 = vsub.s32 4, %v9410
          %v9412 = vrot.slane %v9348, %v9411
          %v9413 = vlaneseq
          %v9414 = vshrl.u32 %v9413, 7
          %v9415 = vsub.s32 6, %v9414
          %v9416 = vrot.slane %v9348, %v9415
          %v9433 = vlaneseq
          %v9434 = vshrl.u32 %v9433, 7
          %v9435 = vsub.s32 0, %v9434
          %v9436 = vrot.slane %v9356, %v9435
          %v9437 = vlaneseq
          %v9438 = vshrl.u32 %v9437, 7
          %v9439 = vsub.s32 0, %v9438
          %v9440 = vrot.slane %v9360, %v9439
          %v9441 = vlaneseq
          %v9442 = vshrl.u32 %v9441, 7
          %v9443 = vsub.s32 0, %v9442
          %v9444 = vrot.slane %v9364, %v9443
          %v9445 = vlaneseq
          %v9446 = vshrl.u32 %v9445, 7
          %v9447 = vsub.s32 0, %v9446
          %v9448 = vrot.slane %v9368, %v9447
          %v9449 = vlaneseq
          %v9450 = vshrl.u32 %v9449, 7
          %v9451 = vsub.s32 0, %v9450
          %v9452 = vrot.slane %v9372, %v9451
          %v9453 = vlaneseq
          %v9454 = vshrl.u32 %v9453, 7
          %v9455 = vsub.s32 0, %v9454
          %v9456 = vrot.slane %v9376, %v9455
          %v9457 = vlaneseq
          %v9458 = vshrl.u32 %v9457, 7
          %v9459 = vsub.s32 0, %v9458
          %v9460 = vrot.slane %v9380, %v9459
          %v9461 = vlaneseq
          %v9462 = vshrl.u32 %v9461, 7
          %v9463 = vsub.s32 0, %v9462
          %v9464 = vrot.slane %v9384, %v9463
          %v9465 = vlaneseq
          %v9466 = vshrl.u32 %v9465, 7
          %v9467 = vsub.s32 0, %v9466
          %v9468 = vrot.slane %v9388, %v9467
          %v9469 = vlaneseq
          %v9470 = vshrl.u32 %v9469, 7
          %v9471 = vsub.s32 0, %v9470
          %v9472 = vrot.slane %v9392, %v9471
          %v9473 = vlaneseq
          %v9474 = vshrl.u32 %v9473, 7
          %v9475 = vsub.s32 0, %v9474
          %v9476 = vrot.slane %v9396, %v9475
          %v9477 = vlaneseq
          %v9478 = vshrl.u32 %v9477, 7
          %v9479 = vsub.s32 0, %v9478
          %v9480 = vrot.slane %v9400, %v9479
          %v9481 = vlaneseq
          %v9482 = vshrl.u32 %v9481, 7
          %v9483 = vsub.s32 0, %v9482
          %v9484 = vrot.slane %v9404, %v9483
          %v9485 = vlaneseq
          %v9486 = vshrl.u32 %v9485, 7
          %v9487 = vsub.s32 0, %v9486
          %v9488 = vrot.slane %v9408, %v9487
          %v9489 = vlaneseq
          %v9490 = vshrl.u32 %v9489, 7
          %v9491 = vsub.s32 0, %v9490
          %v9492 = vrot.slane %v9412, %v9491
          %v9493 = vlaneseq
          %v9494 = vshrl.u32 %v9493, 7
          %v9495 = vsub.s32 0, %v9494
          %v9496 = vrot.slane %v9416, %v9495
          %v9497 = vadd.f32 %v8763, %v9436
          %v9498 = vadd.f32 %v8765, %v9440
          %v9499 = vadd.f32 %v8845, %v9444
          %v9500 = vadd.f32 %v8847, %v9448
          %v9501 = vadd.f32 %v8927, %v9452
          %v9502 = vadd.f32 %v8929, %v9456
          %v9503 = vadd.f32 %v9009, %v9460
          %v9504 = vadd.f32 %v9011, %v9464
          %v9505 = vadd.f32 %v9091, %v9468
          %v9506 = vadd.f32 %v9093, %v9472
          %v9507 = vadd.f32 %v9173, %v9476
          %v9508 = vadd.f32 %v9175, %v9480
          %v9509 = vadd.f32 %v9255, %v9484
          %v9510 = vadd.f32 %v9257, %v9488
          %v9511 = vadd.f32 %v9337, %v9492
          %v9512 = vadd.f32 %v9339, %v9496
          %v9529 = vcombine.low %v9497, %v9498
          %v9530 = vcombine.low %v9499, %v9500
          %v9531 = vcombine.low %v9501, %v9502
          %v9532 = vcombine.low %v9503, %v9504
          %v9534 = vunpack.c.l.s4 1966171168
          %v9535 = vunpack.c.0.s8 %v9534
          %v9536 = vlaneseq
          %v9537 = vshrl.u32 %v9536, 7
          %v9538 = vsub.s32 %v9535, %v9537
          %v9539 = vrot.slane %v9529, %v9538
          %v9541 = vunpack.c.l.s4 1966171168
          %v9542 = vunpack.c.0.s8 %v9541
          %v9543 = vlaneseq
          %v9544 = vshrl.u32 %v9543, 7
          %v9545 = vsub.s32 %v9542, %v9544
          %v9546 = vrot.slane %v9530, %v9545
          %v9548 = vunpack.c.l.s4 1966171168
          %v9549 = vunpack.c.0.s8 %v9548
          %v9550 = vlaneseq
          %v9551 = vshrl.u32 %v9550, 7
          %v9552 = vsub.s32 %v9549, %v9551
          %v9553 = vrot.slane %v9531, %v9552
          %v9555 = vunpack.c.l.s4 1966171168
          %v9556 = vunpack.c.0.s8 %v9555
          %v9557 = vlaneseq
          %v9558 = vshrl.u32 %v9557, 7
          %v9559 = vsub.s32 %v9556, %v9558
          %v9560 = vrot.slane %v9532, %v9559
          %v9561 = vcombine.low %v9539, %v9546
          %v9562 = vcombine.high %v9539, %v9546
          %v9563 = vcombine.low %v9553, %v9560
          %v9564 = vcombine.high %v9553, %v9560
          %v9566 = vunpack.c.l.s4 1966171168
          %v9567 = vunpack.c.0.s8 %v9566
          %v9568 = vlaneseq
          %v9569 = vshrl.u32 %v9568, 7
          %v9570 = vsub.s32 %v9567, %v9569
          %v9571 = vrot.slane %v9561, %v9570
          %v9573 = vunpack.c.l.s4 1966171168
          %v9574 = vunpack.c.0.s8 %v9573
          %v9575 = vlaneseq
          %v9576 = vshrl.u32 %v9575, 7
          %v9577 = vsub.s32 %v9574, %v9576
          %v9578 = vrot.slane %v9562, %v9577
          %v9580 = vunpack.c.l.s4 1966171168
          %v9581 = vunpack.c.0.s8 %v9580
          %v9582 = vlaneseq
          %v9583 = vshrl.u32 %v9582, 7
          %v9584 = vsub.s32 %v9581, %v9583
          %v9585 = vrot.slane %v9563, %v9584
          %v9587 = vunpack.c.l.s4 1966171168
          %v9588 = vunpack.c.0.s8 %v9587
          %v9589 = vlaneseq
          %v9590 = vshrl.u32 %v9589, 7
          %v9591 = vsub.s32 %v9588, %v9590
          %v9592 = vrot.slane %v9564, %v9591
          %v9593 = vcombine.low %v9571, %v9585
          %v9594 = vcombine.low %v9578, %v9592
          %v9595 = vcombine.low %v9505, %v9506
          %v9596 = vcombine.low %v9507, %v9508
          %v9597 = vcombine.low %v9509, %v9510
          %v9598 = vcombine.low %v9511, %v9512
          %v9600 = vunpack.c.l.s4 1966171168
          %v9601 = vunpack.c.0.s8 %v9600
          %v9602 = vlaneseq
          %v9603 = vshrl.u32 %v9602, 7
          %v9604 = vsub.s32 %v9601, %v9603
          %v9605 = vrot.slane %v9595, %v9604
          %v9607 = vunpack.c.l.s4 1966171168
          %v9608 = vunpack.c.0.s8 %v9607
          %v9609 = vlaneseq
          %v9610 = vshrl.u32 %v9609, 7
          %v9611 = vsub.s32 %v9608, %v9610
          %v9612 = vrot.slane %v9596, %v9611
          %v9614 = vunpack.c.l.s4 1966171168
          %v9615 = vunpack.c.0.s8 %v9614
          %v9616 = vlaneseq
          %v9617 = vshrl.u32 %v9616, 7
          %v9618 = vsub.s32 %v9615, %v9617
          %v9619 = vrot.slane %v9597, %v9618
          %v9621 = vunpack.c.l.s4 1966171168
          %v9622 = vunpack.c.0.s8 %v9621
          %v9623 = vlaneseq
          %v9624 = vshrl.u32 %v9623, 7
          %v9625 = vsub.s32 %v9622, %v9624
          %v9626 = vrot.slane %v9598, %v9625
          %v9627 = vcombine.low %v9605, %v9612
          %v9628 = vcombine.high %v9605, %v9612
          %v9629 = vcombine.low %v9619, %v9626
          %v9630 = vcombine.high %v9619, %v9626
          %v9632 = vunpack.c.l.s4 1966171168
          %v9633 = vunpack.c.0.s8 %v9632
          %v9634 = vlaneseq
          %v9635 = vshrl.u32 %v9634, 7
          %v9636 = vsub.s32 %v9633, %v9635
          %v9637 = vrot.slane %v9627, %v9636
          %v9639 = vunpack.c.l.s4 1966171168
          %v9640 = vunpack.c.0.s8 %v9639
          %v9641 = vlaneseq
          %v9642 = vshrl.u32 %v9641, 7
          %v9643 = vsub.s32 %v9640, %v9642
          %v9644 = vrot.slane %v9628, %v9643
          %v9646 = vunpack.c.l.s4 1966171168
          %v9647 = vunpack.c.0.s8 %v9646
          %v9648 = vlaneseq
          %v9649 = vshrl.u32 %v9648, 7
          %v9650 = vsub.s32 %v9647, %v9649
          %v9651 = vrot.slane %v9629, %v9650
          %v9653 = vunpack.c.l.s4 1966171168
          %v9654 = vunpack.c.0.s8 %v9653
          %v9655 = vlaneseq
          %v9656 = vshrl.u32 %v9655, 7
          %v9657 = vsub.s32 %v9654, %v9656
          %v9658 = vrot.slane %v9630, %v9657
          %v9659 = vcombine.low %v9637, %v9651
          %v9660 = vcombine.low %v9644, %v9658
          %v9665 = vld [vmem:[#allocation20] sm:$0xff]
          %v9666 = vld [vmem:[#allocation20 + $0x8] sm:$0xff]
          %v9667 = vld [vmem:[#allocation20 + $0x10] sm:$0xff]
          %v9668 = vld [vmem:[#allocation20 + $0x18] sm:$0xff]
          %v9669 = vld [vmem:[#allocation20 + $0x20] sm:$0xff]
          %v9670 = vld [vmem:[#allocation20 + $0x28] sm:$0xff]
          %v9671 = vld [vmem:[#allocation20 + $0x30] sm:$0xff]
          %v9672 = vld [vmem:[#allocation20 + $0x38] sm:$0xff]
          %v9673 = vld [vmem:[#allocation20 + $0x40] sm:$0xff]
          %v9674 = vld [vmem:[#allocation20 + $0x48] sm:$0xff]
          %v9675 = vld [vmem:[#allocation20 + $0x50] sm:$0xff]
          %v9676 = vld [vmem:[#allocation20 + $0x58] sm:$0xff]
          %v9677 = vld [vmem:[#allocation20 + $0x60] sm:$0xff]
          %v9678 = vld [vmem:[#allocation20 + $0x68] sm:$0xff]
          %v9679 = vld [vmem:[#allocation20 + $0x70] sm:$0xff]
          %v9680 = vld [vmem:[#allocation20 + $0x78] sm:$0xff]
          %v9681 = vld [vmem:[#allocation20 + $0x80] sm:$0xff]
          %v9682 = vld [vmem:[#allocation20 + $0x88] sm:$0xff]
          %v9683 = vld [vmem:[#allocation20 + $0x90] sm:$0xff]
          %v9684 = vld [vmem:[#allocation20 + $0x98] sm:$0xff]
          %v9685 = vld [vmem:[#allocation20 + $0xa0] sm:$0xff]
          %v9686 = vld [vmem:[#allocation20 + $0xa8] sm:$0xff]
          %v9687 = vld [vmem:[#allocation20 + $0xb0] sm:$0xff]
          %v9688 = vld [vmem:[#allocation20 + $0xb8] sm:$0xff]
          %v9689 = vld [vmem:[#allocation20 + $0xc0] sm:$0xff]
          %v9690 = vld [vmem:[#allocation20 + $0xc8] sm:$0xff]
          %v9691 = vld [vmem:[#allocation20 + $0xd0] sm:$0xff]
          %v9692 = vld [vmem:[#allocation20 + $0xd8] sm:$0xff]
          %v9693 = vld [vmem:[#allocation20 + $0xe0] sm:$0xff]
          %v9694 = vld [vmem:[#allocation20 + $0xe8] sm:$0xff]
          %v9695 = vld [vmem:[#allocation20 + $0xf0] sm:$0xff]
          %v9696 = vld [vmem:[#allocation20 + $0xf8] sm:$0xff]
          %v9697 = vld [vmem:[#allocation21] sm:$0x3]
          %v9699 = vlaneseq
          %v9700 = vshrl.u32 %v9699, 7
          %v9701 = vsub.s32 0, %v9700
          %v9702 = vrot.slane %v9697, %v9701
          %v9703 = vlaneseq
          %v9704 = vshrl.u32 %v9703, 7
          %v9705 = vsub.s32 1, %v9704
          %v9706 = vrot.slane %v9697, %v9705
          %9709 = vmatprep.subr.mxu0 %v9666
          %9710 = vmatpush1.msra.mxu0 %v9665
          %9711 = vmatprep.subr.mxu0 %v9668
          %9712 = vmatpush1.msra.mxu0 %v9667
          %9713 = vmatprep.subr.mxu0 %v9670
          %9714 = vmatpush1.msra.mxu0 %v9669
          %9715 = vmatprep.subr.mxu0 %v9672
          %9716 = vmatpush1.msra.mxu0 %v9671
          %9717 = vmatprep.subr.mxu0 %v9674
          %9718 = vmatpush1.msra.mxu0 %v9673
          %9719 = vmatprep.subr.mxu0 %v9676
          %9720 = vmatpush1.msra.mxu0 %v9675
          %9721 = vmatprep.subr.mxu0 %v9678
          %9722 = vmatpush1.msra.mxu0 %v9677
          %9723 = vmatprep.subr.mxu0 %v9680
          %9724 = vmatpush1.msra.mxu0 %v9679
          %9725 = vmatprep.subr.mxu0 %v9682
          %9726 = vmatpush1.msra.mxu0 %v9681
          %9727 = vmatprep.subr.mxu0 %v9684
          %9728 = vmatpush1.msra.mxu0 %v9683
          %9729 = vmatprep.subr.mxu0 %v9686
          %9730 = vmatpush1.msra.mxu0 %v9685
          %9731 = vmatprep.subr.mxu0 %v9688
          %9732 = vmatpush1.msra.mxu0 %v9687
          %9733 = vmatprep.subr.mxu0 %v9690
          %9734 = vmatpush1.msra.mxu0 %v9689
          %9735 = vmatprep.subr.mxu0 %v9692
          %9736 = vmatpush1.msra.mxu0 %v9691
          %9737 = vmatprep.subr.mxu0 %v9694
          %9738 = vmatpush1.msra.mxu0 %v9693
          %9739 = vmatprep.subr.mxu0 %v9696
          %9740 = vmatpush1.msra.mxu0 %v9695
          %9741 = vmatprep.subr.mxu0 0.0
          %9742 = vmatpush1.msra.mxu0 0.0
          %9743 = vmatprep.subr.mxu0 0.0
          %9744 = vmatpush1.msra.mxu0 0.0
          %9745 = vmatprep.subr.mxu0 0.0
          %9746 = vmatpush1.msra.mxu0 0.0
          %9747 = vmatprep.subr.mxu0 0.0
          %9748 = vmatpush1.msra.mxu0 0.0
          %9749 = vmatprep.subr.mxu0 0.0
          %9750 = vmatpush1.msra.mxu0 0.0
          %9751 = vmatprep.subr.mxu0 0.0
          %9752 = vmatpush1.msra.mxu0 0.0
          %9753 = vmatprep.subr.mxu0 0.0
          %9754 = vmatpush1.msra.mxu0 0.0
          %9755 = vmatprep.subr.mxu0 0.0
          %9756 = vmatpush1.msra.mxu0 0.0
          %9757 = vmatprep.subr.mxu0 0.0
          %9758 = vmatpush1.msra.mxu0 0.0
          %9759 = vmatprep.subr.mxu0 0.0
          %9760 = vmatpush1.msra.mxu0 0.0
          %9761 = vmatprep.subr.mxu0 0.0
          %9762 = vmatpush1.msra.mxu0 0.0
          %9763 = vmatprep.subr.mxu0 0.0
          %9764 = vmatpush1.msra.mxu0 0.0
          %9765 = vmatprep.subr.mxu0 0.0
          %9766 = vmatpush1.msra.mxu0 0.0
          %9767 = vmatprep.subr.mxu0 0.0
          %9768 = vmatpush1.msra.mxu0 0.0
          %9769 = vmatprep.subr.mxu0 0.0
          %9770 = vmatpush1.msra.mxu0 0.0
          %9771 = vmatprep.subr.mxu0 0.0
          %9772 = vmatpush1.msra.mxu0 0.0
          %9773 = vmatprep.mubr.f32.mxu0 0.0
          %9774 = vmatmul.mubr.f32.gmra.mrb[0].mxu0 %v9593
          %v9775 = vpop.f32.mrb[0].mxu0
          %v9776 = vadd.f32 %v9702, %v9775
          %v9777 = vpop.f32.mrb[0].mxu0
          %v9778 = vadd.f32 %v9706, %v9777
          %9779 = vmatprep.mubr.f32.mxu0 0.0
          %9780 = vmatmul.mubr.f32.gmra.mrb[0].mxu0 %v9659
          %v9781 = vpop.f32.mrb[0].mxu0
          %v9782 = vadd.f32 %v9702, %v9781
          %v9783 = vpop.f32.mrb[0].mxu0
          %v9784 = vadd.f32 %v9706, %v9783
          %9785 = vmatprep.mubr.f32.mxu0 0.0
          %9786 = vmatmul.mubr.f32.gmra.mrb[0].mxu0 %v9594
          %v9787 = vpop.f32.mrb[0].mxu0
          %v9788 = vadd.f32 %v9702, %v9787
          %v9789 = vpop.f32.mrb[0].mxu0
          %v9790 = vadd.f32 %v9706, %v9789
          %9791 = vmatprep.mubr.f32.mxu0 0.0
          %9792 = vmatmul.mubr.f32.gmra.mrb[0].mxu0 %v9660
          %v9793 = vpop.f32.mrb[0].mxu0
          %v9794 = vadd.f32 %v9702, %v9793
          %v9795 = vpop.f32.mrb[0].mxu0
          %v9796 = vadd.f32 %v9706, %v9795
          %9797 = vdwg.mxu0
          %9798 = vst [vmem:[%s759] sm:$0xff] %v9776
          %9799 = vst [vmem:[%s759 + $0x8] sm:$0xff] %v9778
          %9800 = vst [vmem:[%s759 + $0x10] sm:$0xff] %v9782
          %9801 = vst [vmem:[%s759 + $0x18] sm:$0xff] %v9784
          %9802 = vst [vmem:[%s759 + $0x20] sm:$0xff] %v9788
          %9803 = vst [vmem:[%s759 + $0x28] sm:$0xff] %v9790
          %9804 = vst [vmem:[%s759 + $0x30] sm:$0xff] %v9794
          %9805 = vst [vmem:[%s759 + $0x38] sm:$0xff] %v9796
        $region136: #{tpu_custom_call.1} parent=71 // pred_fallthru
          _
        %s9806 = sand.u32 %s396, 1
        %s9807 = scalar_lea.sflag [#allocation24], %s9806
        %s9808 = sand.u32 %s396, 1
        %s9809 = smul.addr %s9808, 64
        %s9810 = scalar_lea.vmem [#allocation23], %s9809
        // Predicated region
        $region137: #{tpu_custom_call.1} parent=71 // pred_check
          %p9811 = pneg %p378
        $region138: #{tpu_custom_call.1} parent=71 // pred_check_branch
          %9813 = sbr.rel (%p9811) target = $region140
        $region139: #{tpu_custom_call.1} parent=71 // pred_region
          %s9815 = ssub.s32 32, 32
          %9816 = vsyncadd [#allocation6], %s9815
          %s9818 = sshll.u32 [#allocation22], 4
          %s9819 = int_to_ptr.vmem [resolvable:$true] %s9818
          %9821 = dma.vmem_to_hbm [thread:$0]  %s9819, 32, %s13, [#allocation6]
        $region140: #{tpu_custom_call.1} parent=71 // pred_fallthru
          _
        // Predicated region
        $region141: #{tpu_custom_call.1} parent=71 // pred_check
          %p9822 = pneg %p406
        $region142: #{tpu_custom_call.1} parent=71 // pred_check_branch
          %9824 = sbr.rel (%p9822) target = $region144
        $region143: #{tpu_custom_call.1} parent=71 // pred_region
          #allocation26 [shape = 'u32[6]{0}', space=smem, size = 0x18, scoped, tag = 'DMA stride descriptor']
          %s9825 = smul.u32 %s44, %s43
          %s9826 = smul.u32 2, %s9825
          %s9828 = ssub.s32 1024, 1024
          %9829 = vsyncadd %s9807, %s9828
          %s9830 = smul.addr %s9826, 2
          %s9831 = smul.addr %s9830, 128
          %s9832 = scalar_lea.hbm %s14, %s9831
          %s9834 = sshll.u32 1, 14
          %s9835 = sxor.u32 4294967295, %s9834
          %s9838 = sshll.u32 7, 18
          %s9839 = sxor.u32 4294967295, %s9838
          %s9840 = sand.u32 0, %s9839
          %s9842 = sor.u32 %s9840, 0
          %s9844 = sshll.u32 3, 24
          %s9845 = sxor.u32 4294967295, %s9844
          %s9846 = sand.u32 %s9842, %s9845
          %s9848 = sor.u32 %s9846, 0
          %s9849 = sshll.u32 %s9810, 4
          %s9850 = int_to_ptr.vmem [resolvable:$true] %s9849
          %9856 = sst [smem:[#allocation26]] 512
          %s9857 = scalar_lea.smem [#allocation26], 1
          %9858 = sst [smem:[%s9857]] 1024
          %s9859 = scalar_lea.smem [#allocation26], 2
          %9860 = sst [smem:[%s9859]] 2
          %s9861 = scalar_lea.smem [#allocation26], 3
          %9862 = sst [smem:[%s9861]] 256
          %s9863 = scalar_lea.smem [#allocation26], 4
          %9864 = sst [smem:[%s9863]] 256
          %s9865 = scalar_lea.smem [#allocation26], 5
          %9866 = sst [smem:[%s9865]] 16
          %9868 = dma.general %s9850, 1024, %s9832, %s9807, [#allocation25], [#allocation26], %s9848, 0
        $region144: #{tpu_custom_call.1} parent=71 // pred_fallthru
          _
        // Predicated region
        $region145: #{tpu_custom_call.1} parent=71 // pred_check
          %p9869 = pneg %p378
        $region146: #{tpu_custom_call.1} parent=71 // pred_check_branch
          %9871 = sbr.rel (%p9869) target = $region148
        $region147: #{tpu_custom_call.1} parent=71 // pred_region
          %9872 = dma.done [#allocation6], 32
        $region148: #{tpu_custom_call.1} parent=71 // pred_fallthru
          _
      $region72: #{tpu_custom_call.1} parent=5 // pred_fallthru
        _
      %p9873 = scmp.le.s32.totalorder 2, %s34
      // Predicated region
      $region149: #{tpu_custom_call.1} parent=5 // pred_check
        %p9874 = pneg %p9873
      $region150: #{tpu_custom_call.1} parent=5 // pred_check_branch
        %9876 = sbr.rel (%p9874) target = $region152
      $region151: #{tpu_custom_call.1} parent=5 // pred_region
        %s9877 = ssub.s32 %s34, 2
        // Predicated region
        $region153: #{tpu_custom_call.1} parent=151 // pred_check
          %p9878 = pneg %p412
        $region154: #{tpu_custom_call.1} parent=151 // pred_check_branch
          %9880 = sbr.rel (%p9878) target = $region156
        $region155: #{tpu_custom_call.1} parent=151 // pred_region
          %s9881 = sand.u32 %s397, 1
          %s9882 = scalar_lea.sflag [#allocation24], %s9881
          %s9883 = sand.u32 %s397, 1
          %s9884 = smul.addr %s9883, 64
          %s9885 = scalar_lea.vmem [#allocation23], %s9884
          %9886 = dma.done %s9882, 1024
        $region156: #{tpu_custom_call.1} parent=151 // pred_fallthru
          _
      $region152: #{tpu_custom_call.1} parent=5 // pred_fallthru
        _
    $region6: #{tpu_custom_call.1} parent=1 // loop_footer
      %s38 = sadd.s32 1, %s34
    $region7: #{tpu_custom_call.1} parent=1 // loop_footer_branch
      %33 = sbr.rel target = $region3
    $region8: #{tpu_custom_call.1} parent=1 // loop_exit
      _
    %9887 = vsyncpa [#allocation5], 1
    %s9888 = scalar_lea.sflag [#allocation5], 1
    %9889 = vsyncpa %s9888, 1
    %9890 = vsyncpa [#allocation8], 1
    %s9891 = scalar_lea.sflag [#allocation8], 1
    %9892 = vsyncpa %s9891, 1
    %9893 = vsyncpa [#allocation11], 1
    %9894 = vsyncpa [#allocation14], 1
    %9895 = vsyncpa [#allocation17], 1
    %9896 = vsyncpa [#allocation6], 1
    %s9897 = scalar_lea.sflag [#allocation6], 1
    %9898 = vsyncpa %s9897, 1
    %9899 = vsyncpa [#allocation24], 1
    %s9900 = scalar_lea.sflag [#allocation24], 1
    %9901 = vsyncpa %s9900, 1

</llo_original>
